<compile_context>
chip_gen: v7x
topology: tpu7x:2x2x1
jax: 0.10.0
libtpu: 0.0.40
codegen_flags: <defaults>
</compile_context>

<pallas_src>
import functools
import math

import jax
import jax.numpy as jnp
from jax import lax
from jax.experimental import pallas as pl
from jax.experimental.pallas import tpu as pltpu

CFG = {
    'A': [[64], [128], [256, 256], [512, 512], [512, 512]],
    'B': [[64, 64], [128, 128], [256, 256], [512, 512], [512, 512]],
    'D': [[64, 64], [128, 128], [256, 256, 256], [512, 512, 512], [512, 512, 512]],
    'E': [[64, 64], [128, 128], [256, 256, 256, 256], [512, 512, 512, 512], [512, 512, 512, 512]],
    'S': [[64], [128], [256], [512], [512]],
}

_KEEP_THR = int(0.6 * (1 << 23))        # keep where uniform <= 0.6 (masked_fill(u > 0.6, 0))


# ----------------------------------------------------------------------------- helpers

@functools.lru_cache(maxsize=1)
def _vmem_limit():
    """Generation-dependent VMEM budget: ~70% of physical, capped at 100 MiB."""
    cap = 64 * 1024 * 1024
    try:
        info = pltpu.get_tpu_info()
        cap = int(getattr(info, "vmem_capacity_bytes", cap) or cap)
    except Exception:
        pass
    return int(min(cap * 7 // 10, 100 * 1024 * 1024))


def _conv_budget():
    return max(min(_vmem_limit() // 2, 32 * 1024 * 1024), 8 * 1024 * 1024)


def _compiler_params(semantics=None):
    return pltpu.CompilerParams(dimension_semantics=semantics,
                                vmem_limit_bytes=_vmem_limit())


def _divisors(n):
    return [d for d in range(1, n + 1) if n % d == 0]


def _pick_conv_tiles(N, H, W, Cin, Cout, pool, out_bytes):
    """Pick (nb, th): batch tile and output-row tile for the general 3x3 conv."""
    budget = _conv_budget()
    wbytes = 2 * (9 * Cin * Cout * 2 + Cout * 4)          # double-buffered weights + bias
    best_key, best = None, None
    for nb in _divisors(N):
        xres = 2 * nb * (H + 2) * (W + 2) * Cin * 2       # resident padded image, dbl-buffered
        for th in _divisors(H):
            if pool and th % 2:
                continue
            m = nb * th * W
            im2col = 2 * nb * th * W * 3 * Cin * 2
            acc = nb * th * W * Cout * 4
            oh, ow = (th // 2, W // 2) if pool else (th, W)
            outb = 2 * nb * oh * ow * Cout * out_bytes
            total = wbytes + xres + im2col + acc + outb
            if total > budget:
                continue
            key = (min(m, 2048), -total)                  # feed the MXU, then smallest ws
            if best_key is None or key > best_key:
                best_key, best = key, (nb, th)
    if best is None:
        th = next(t for t in _divisors(H) if not pool or t % 2 == 0)
        return 1, th
    return best


def _pick_first_row_tile(H, W, K, Cout, pool, out_bytes):
    budget = _conv_budget()
    wb = 2 * (K * Cout * 2 + Cout * 4)
    per_row = W * (2 * K * 2 + Cout * 4 + 2 * Cout * out_bytes)
    cands = [t for t in _divisors(H)
             if (not pool or t % 2 == 0) and wb + t * per_row <= budget]
    if cands:
        return max(cands)
    return next(t for t in _divisors(H) if not pool or t % 2 == 0)


def _pick_branch_rows(M, C, T):
    budget = _conv_budget()
    wbytes = 2 * (C * T + T * T) * 2
    per_row = 2 * C * 2 + 3 * T * 4 + 8
    cap = min(max((budget - wbytes) // per_row, 8), 4096)
    cands = [d for d in _divisors(M) if d <= cap and (d % 8 == 0 or d == M)]
    if cands:
        return max(cands)
    return M


# ----------------------------------------------------------------------------- conv kernels

def _conv3x3_kernel(x_ref, w_ref, b_ref, *rest, th, relu, pool, drop, img_h, img_w):
    """General 3x3 conv: 3 accumulating K=3*Cin dots, fused dropout / relu / 2x2 pool.

    x_ref: (nb, H+2, W+2, Cin) resident padded images for this batch tile.
    w_ref: (3, 3*Cin, Cout); b_ref: (1, Cout); optional seed_ref: (1, 1) int32.
    """
    if drop:
        seed_ref, o_ref = rest
    else:
        (o_ref,) = rest
    r = pl.program_id(1)
    nb, _, Wp, Cin = x_ref.shape
    W = Wp - 2
    Cout = w_ref.shape[-1]

    slab = x_ref[:, pl.ds(r * th, th + 2), :, :]                    # (nb, th+2, Wp, Cin)

    if drop:
        # Deterministic per-element Bernoulli(keep=0.6) mask from a hash of the global
        # element index (consistent across halos / tiles; pad positions are zero anyway).
        shp = slab.shape
        n_i = lax.broadcasted_iota(jnp.int32, shp, 0)
        h_i = lax.broadcasted_iota(jnp.int32, shp, 1)
        w_i = lax.broadcasted_iota(jnp.int32, shp, 2)
        c_i = lax.broadcasted_iota(jnp.int32, shp, 3)
        g = (pl.program_id(0) * nb + n_i) * img_h + (r * th - 1 + h_i)
        g = (g * img_w + (w_i - 1)) * Cin + c_i
        v = g * (-1640531535) + seed_ref[0, 0]                      # 0x9E3779B1
        v = v ^ (v >> 16)
        v = v * (-2048144789)                                       # 0x85EBCA6B
        v = v ^ (v >> 13)
        v = v * (-1028477387)                                       # 0xC2B2AE35
        v = v ^ (v >> 16)
        keep = (v & 0x7FFFFF) <= _KEEP_THR
        slab = jnp.where(keep, slab, jnp.zeros_like(slab))

    slab = slab.astype(jnp.bfloat16)

    acc = jnp.zeros((nb * th * W, Cout), jnp.float32)
    for dy in range(3):
        rows = slab[:, dy:dy + th, :, :]                            # (nb, th, Wp, Cin)
        cols = jnp.concatenate([rows[:, :, dx:dx + W, :] for dx in range(3)], axis=-1)
        acc = acc + jnp.dot(cols.reshape(nb * th * W, 3 * Cin), w_ref[dy],
                            preferred_element_type=jnp.float32)
    acc = acc + b_ref[...]
    if relu:
        acc = jnp.maximum(acc, 0.0)

    if pool:
        y = acc.reshape(nb * th, W // 2, 2, Cout)
        y = jnp.max(y, axis=2)                                      # (nb*th, W/2, Cout)
        y = jnp.max(y.reshape(nb * th // 2, 2, W // 2, Cout), axis=1)
        o_ref[...] = y.reshape(nb, th // 2, W // 2, Cout).astype(o_ref.dtype)
    else:
        o_ref[...] = acc.reshape(nb, th, W, Cout).astype(o_ref.dtype)


def _pw_conv_kernel(x_ref, w_ref, b_ref, o_ref, *, relu, pool):
    """Pointwise conv over pre-im2col'd patches (first layer, K = 27)."""
    _, th, W, K = x_ref.shape
    Cout = w_ref.shape[1]
    x = x_ref[0].astype(jnp.bfloat16).reshape(th * W, K)
    acc = jnp.dot(x, w_ref[...], preferred_element_type=jnp.float32)
    acc = acc + b_ref[...]
    if relu:
        acc = jnp.maximum(acc, 0.0)
    if pool:
        acc = jnp.max(acc.reshape(th, W // 2, 2, Cout), axis=2)
        acc = jnp.max(acc.reshape(th // 2, 2, W // 2, Cout), axis=1)
        o_ref[0] = acc.astype(o_ref.dtype)
    else:
        o_ref[0] = acc.reshape(th, W, Cout).astype(o_ref.dtype)


def conv3x3(x, w, b, *, relu, pool=False, out_dtype=jnp.bfloat16, drop_seed=None):
    """3x3 conv, stride 1, pad 1, optional fused input-dropout and ReLU + 2x2 max-pool.

    x: (N,H,W,Cin), w: (3, 3*Cin, Cout) bf16, b: (1, Cout) f32, drop_seed: (1,1) int32.
    """
    N, H, W, Cin = x.shape
    Cout = w.shape[-1]
    Ho, Wo = (H // 2, W // 2) if pool else (H, W)
    out_bytes = jnp.dtype(out_dtype).itemsize

    if Cin < 8:
        # First layer (Cin=3): im2col in the wrapper (tiny), one K=27 dot per tile.
        K = 3 * w.shape[1]
        w2d = w.reshape(K, Cout)
        xp = jnp.pad(x, ((0, 0), (1, 1), (1, 1), (0, 0)))
        patches = jnp.concatenate(
            [xp[:, dy:dy + H, dx:dx + W, :] for dy in range(3) for dx in range(3)],
            axis=-1).astype(jnp.bfloat16)                           # (N,H,W,9*Cin)
        th = _pick_first_row_tile(H, W, K, Cout, pool, out_bytes)
        kern = functools.partial(_pw_conv_kernel, relu=relu, pool=pool)
        return pl.pallas_call(
            kern,
            out_shape=jax.ShapeDtypeStruct((N, Ho, Wo, Cout), out_dtype),
            grid=(N, H // th),
            in_specs=[
                pl.BlockSpec((1, th, W, K), lambda n, r: (n, r, 0, 0)),
                pl.BlockSpec((K, Cout), lambda n, r: (0, 0)),
                pl.BlockSpec((1, Cout), lambda n, r: (0, 0)),
            ],
            out_specs=pl.BlockSpec((1, th // 2 if pool else th, Wo, Cout),
                                   lambda n, r: (n, r, 0, 0)),
            compiler_params=_compiler_params(("parallel", "parallel")),
        )(patches, w2d, b)

    xp = jnp.pad(x, ((0, 0), (1, 1), (1, 1), (0, 0)))
    nb, th = _pick_conv_tiles(N, H, W, Cin, Cout, pool, out_bytes)
    drop = drop_seed is not None
    kern = functools.partial(_conv3x3_kernel, th=th, relu=relu, pool=pool,
                             drop=drop, img_h=H, img_w=W)
    in_specs = [
        pl.BlockSpec((nb, H + 2, W + 2, Cin), lambda n, r: (n, 0, 0, 0)),
        pl.BlockSpec((3, 3 * Cin, Cout), lambda n, r: (0, 0, 0)),
        pl.BlockSpec((1, Cout), lambda n, r: (0, 0)),
    ]
    args = [xp, w, b]
    if drop:
        in_specs.append(pl.BlockSpec((1, 1), lambda n, r: (0, 0)))
        args.append(drop_seed)
    return pl.pallas_call(
        kern,
        out_shape=jax.ShapeDtypeStruct((N, Ho, Wo, Cout), out_dtype),
        grid=(N // nb, H // th),
        in_specs=in_specs,
        out_specs=pl.BlockSpec((nb, th // 2 if pool else th, Wo, Cout),
                               lambda n, r: (n, r, 0, 0)),
        compiler_params=_compiler_params(("parallel", "parallel")),
    )(*args)


# ----------------------------------------------------------------------------- branch head

def _branch_head_kernel(x_ref, w1_ref, w2_ref, o_ref):
    """Fused (c->t)(t->t) 1x1 convs + per-pixel channel mean-of-squares epilogue."""
    T = w2_ref.shape[-1]
    h = jnp.dot(x_ref[...].astype(jnp.bfloat16), w1_ref[...],
                preferred_element_type=jnp.float32)
    y = jnp.dot(h.astype(jnp.bfloat16), w2_ref[...],
                preferred_element_type=jnp.float32)
    ms = jnp.sum(y * y, axis=-1, keepdims=True) * (1.0 / T)         # (tm, 1)
    o_ref[...] = ms.astype(o_ref.dtype)


def conv1x1_pair_msq(x, w1, w2):
    """branch(o).pow(2).mean(channel) -> (N, H*W) f32; the (M, T) tensor never hits HBM."""
    N, H, W, C = x.shape
    T = w1.shape[1]
    M = N * H * W
    xf = x.reshape(M, C)
    tm = _pick_branch_rows(M, C, T)
    out = pl.pallas_call(
        _branch_head_kernel,
        out_shape=jax.ShapeDtypeStruct((M, 1), jnp.float32),
        grid=(M // tm,),
        in_specs=[
            pl.BlockSpec((tm, C), lambda i: (i, 0)),
            pl.BlockSpec((C, T), lambda i: (0, 0)),
            pl.BlockSpec((T, T), lambda i: (0, 0)),
        ],
        out_specs=pl.BlockSpec((tm, 1), lambda i: (i, 0)),
        compiler_params=_compiler_params(("parallel",)),
    )(xf, w1, w2)
    return out.reshape(N, H * W)


def _l2norm_kernel(x_ref, o_ref):
    x = x_ref[...]
    nrm = jnp.sqrt(jnp.sum(x * x, axis=-1, keepdims=True))
    o_ref[...] = x / jnp.maximum(nrm, 1e-12)


def l2_normalize_rows(x):
    """F.normalize(x, dim=1) for a small (N, D) f32 tensor."""
    N, D = x.shape
    return pl.pallas_call(
        _l2norm_kernel,
        out_shape=jax.ShapeDtypeStruct((N, D), jnp.float32),
        grid=(1,),
        in_specs=[pl.BlockSpec((N, D), lambda i: (0, 0))],
        out_specs=pl.BlockSpec((N, D), lambda i: (0, 0)),
        compiler_params=_compiler_params(("arbitrary",)),
    )(x)


# ----------------------------------------------------------------------------- pooling / heads

def _maxpool_kernel(x_ref, o_ref):
    _, H, W, C = x_ref.shape
    x = x_ref[0]
    x = jnp.max(x.reshape(H, W // 2, 2, C), axis=2)
    x = jnp.max(x.reshape(H // 2, 2, W // 2, C), axis=1)
    o_ref[0] = x.astype(o_ref.dtype)


def maxpool2x2(x):
    """Standalone 2x2 max-pool (leading pools of the aux extractors)."""
    N, H, W, C = x.shape
    return pl.pallas_call(
        _maxpool_kernel,
        out_shape=jax.ShapeDtypeStruct((N, H // 2, W // 2, C), x.dtype),
        grid=(N,),
        in_specs=[pl.BlockSpec((1, H, W, C), lambda n: (n, 0, 0, 0))],
        out_specs=pl.BlockSpec((1, H // 2, W // 2, C), lambda n: (n, 0, 0, 0)),
        compiler_params=_compiler_params(("parallel",)),
    )(x)


def _tail_kernel(x_ref, w_ref, b_ref, *out_refs, with_gram):
    """Fused AdaptiveAvgPool2d((1,1)) + optional gram (mid @ mid.T) + linear head."""
    if with_gram:
        gram_ref, fc_ref = out_refs
    else:
        (fc_ref,) = out_refs
    x = x_ref[...].astype(jnp.float32)                              # (N, HW, C)
    pooled = jnp.mean(x, axis=1)                                    # (N, C)
    if with_gram:
        gram_ref[...] = lax.dot_general(
            pooled, pooled, (((1,), (1,)), ((), ())),
            preferred_element_type=jnp.float32).astype(gram_ref.dtype)
    y = jnp.dot(pooled.astype(jnp.bfloat16), w_ref[...],
                preferred_element_type=jnp.float32) + b_ref[...]
    fc_ref[...] = y.astype(fc_ref.dtype)


def pooled_head(x, w, b, *, with_gram):
    """Global-avg-pool + (gram,) fc in one kernel; x: (N,H,W,C), w: (C, nc), b: (1, nc)."""
    N, H, W, C = x.shape
    HW = H * W
    xr = x.reshape(N, HW, C)
    nc = w.shape[1]
    fc_sds = jax.ShapeDtypeStruct((N, nc), jnp.float32)
    fc_spec = pl.BlockSpec((N, nc), lambda i: (0, 0))
    if with_gram:
        out_shape = (jax.ShapeDtypeStruct((N, N), jnp.float32), fc_sds)
        out_specs = (pl.BlockSpec((N, N), lambda i: (0, 0)), fc_spec)
    else:
        out_shape = fc_sds
        out_specs = fc_spec
    kern = functools.partial(_tail_kernel, with_gram=with_gram)
    outs = pl.pallas_call(
        kern,
        out_shape=out_shape,
        grid=(1,),
        in_specs=[
            pl.BlockSpec((N, HW, C), lambda i: (0, 0, 0)),
            pl.BlockSpec((C, nc), lambda i: (0, 0)),
            pl.BlockSpec((1, nc), lambda i: (0, 0)),
        ],
        out_specs=out_specs,
        compiler_params=_compiler_params(("arbitrary",)),
    )(xr, w, b)
    return outs


# ----------------------------------------------------------------------------- params

def softplus(v):
    return jnp.log(jnp.exp(v) + 1.0)


def conv3x3_params(key, cin, cout):
    std = math.sqrt(2.0 / (9 * cout))
    w = std * jax.random.normal(key, (3, 3, cin, cout), jnp.float32)
    w = w.reshape(3, 3 * cin, cout).astype(jnp.bfloat16)
    b = jnp.zeros((1, cout), jnp.float32)
    return (w, b)


def conv1x1_params(key, cin, cout):
    std = math.sqrt(2.0 / cout)
    return (std * jax.random.normal(key, (cin, cout), jnp.float32)).astype(jnp.bfloat16)


def linear_params(key, cin, cout):
    w = (0.01 * jax.random.normal(key, (cin, cout), jnp.float32)).astype(jnp.bfloat16)
    return (w, jnp.zeros((1, cout), jnp.float32))


def vgg_block_params(key, blk_cfg, in_ch):
    params = []
    for v in blk_cfg:
        key, sub = jax.random.split(key)
        params.append(conv3x3_params(sub, in_ch, v))
        in_ch = v
    return params


def init_params(key, cfg, num_classes):
    keys = iter(jax.random.split(key, 64))
    nk = lambda: next(keys)

    backbone = {}
    blocks, in_ch = [], 3
    for blk in cfg:
        blocks.append(vgg_block_params(nk(), blk, in_ch))
        in_ch = blk[-1]
    backbone['blocks'] = blocks
    backbone['classifier'] = linear_params(nk(), 512, num_classes)

    lw = [128, 256, 512, 512]
    tw = [256, 512, 1024, 2048]
    branches = []
    for c, t in zip(lw, tw):
        branches.append([
            conv3x3_params(nk(), c, c),
            conv3x3_params(nk(), c, c),
            conv1x1_params(nk(), c, t),
            conv1x1_params(nk(), t, t),
        ])
    backbone['branches'] = branches

    init_v = math.log(math.exp(5.0) + 1.0)          # softplus(5.0), as in __init__
    backbone['variance_params'] = [jnp.full((s,), init_v, jnp.float32)
                                   for s in (3136, 784, 196, 49)]

    # Aux extractors: ('pool',) = standalone 2x2 max-pool; ('block', params, pool_after).
    aux = {}
    ext1 = [('pool',),
            ('block', vgg_block_params(nk(), cfg[2], cfg[1][-1]), True),
            ('block', vgg_block_params(nk(), cfg[3], cfg[2][-1]), True),
            ('block', vgg_block_params(nk(), cfg[4], cfg[3][-1]), False),
            ('block', vgg_block_params(nk(), cfg[4], cfg[3][-1]), False)]
    ext2 = [('pool',),
            ('block', vgg_block_params(nk(), cfg[3], cfg[2][-1]), True),
            ('block', vgg_block_params(nk(), cfg[4], cfg[3][-1]), False),
            ('block', vgg_block_params(nk(), cfg[4], cfg[3][-1]), False)]
    ext3 = [('pool',),
            ('block', vgg_block_params(nk(), cfg[4], cfg[3][-1]), False),
            ('block', vgg_block_params(nk(), cfg[4], cfg[3][-1]), False)]
    ext4 = [('block', vgg_block_params(nk(), cfg[4], cfg[4][-1]), False),
            ('block', vgg_block_params(nk(), cfg[4], cfg[3][-1]), False)]
    aux['extractors'] = [ext1, ext2, ext3, ext4]
    aux['fc'] = [linear_params(nk(), 512, num_classes) for _ in range(4)]

    return {
        'backbone': backbone,
        'aux': aux,
        'variance_param': jnp.full((64,), init_v, jnp.float32),
        'logsigma': (1.0 / 64.0) * jnp.ones((64, 1), jnp.float32),
    }


# ----------------------------------------------------------------------------- forward

def apply_vgg_block(params, x, *, pool=False, out_dtype=jnp.bfloat16):
    # Every block use-site applies ReLU right after the block, so all convs get ReLU;
    # the block's trailing 2x2 max-pool (when present) is fused into the last conv.
    n = len(params)
    for i, (w, b) in enumerate(params):
        last = (i == n - 1)
        x = conv3x3(x, w, b, relu=True,
                    pool=(pool and last),
                    out_dtype=(out_dtype if last else jnp.bfloat16))
    return x


def apply_branch(bp, x, seed):
    # o_i = f.masked_fill(uniform() > 0.6, 0) is fused into the first conv (drop_seed);
    # no activation between the branch convs (matches the reference Sequential).
    (w0, b0), (w1, b1), w2, w3 = bp
    x = conv3x3(x, w0, b0, relu=False, out_dtype=jnp.bfloat16, drop_seed=seed)
    x = conv3x3(x, w1, b1, relu=False, out_dtype=jnp.bfloat16)
    msq = conv1x1_pair_msq(x, w2, w3)                 # pow(2).mean(channel) -> (N, H*W)
    return l2_normalize_rows(msq)                     # F.normalize(dim=1)


def backbone_forward(P, x, key):
    blocks = P['blocks']
    # Block-boundary activations are stored in bf16 (every consumer casts to bf16 anyway).
    x = apply_vgg_block(blocks[0], x, pool=True)
    x = apply_vgg_block(blocks[1], x, pool=True); f1_1 = x
    x = apply_vgg_block(blocks[2], x, pool=True); f2_1 = x
    x = apply_vgg_block(blocks[3], x, pool=True); f3_1 = x
    x = apply_vgg_block(blocks[4], x, pool=True); out = x

    cw, cb = P['classifier']
    logit = pooled_head(out, cw, cb, with_gram=False)              # gap + classifier fused

    # TODO(synk): the reference hard-codes CUDA dropout-mask shapes (64, C, 56, 56); we
    # generate Bernoulli(uniform > 0.6) masks matching the actual feature shapes, fused
    # into the first branch conv via an integer-hash PRNG (no HBM mask tensor).
    seeds = jax.random.randint(key, (4, 1, 1), 0, 2 ** 31 - 1, dtype=jnp.int32)
    feats = [f1_1, f2_1, f3_1, out]
    branch_outs = [apply_branch(P['branches'][i], f, seeds[i])
                   for i, f in enumerate(feats)]

    # TODO(synk): `input.dim()` in the reference is a bug (builtin `input`); treated as
    # `x.dim() == 4`, so variances get a leading singleton dim.
    variances = [softplus(v)[None, :] for v in P['variance_params']]
    mid = list(zip(branch_outs, variances))
    return logit, mid, feats


def aux_forward(A, feats):
    ss_logits = []
    for i, f in enumerate(feats):
        x = f
        for op in A['extractors'][i]:
            if op[0] == 'pool':
                x = maxpool2x2(x)
            else:
                x = apply_vgg_block(op[1], x, pool=op[2])
        fw, fb = A['fc'][i]
        g, logits = pooled_head(x, fw, fb, with_gram=True)   # gap + gram + fc fused
        ss_logits.append(g)
        ss_logits.append(logits)
    return ss_logits


def vgg_auxiliary_forward(params, x, key, grad=False):
    logit, mid, feats = backbone_forward(params['backbone'], x, key)
    if not grad:
        feats = [jax.lax.stop_gradient(f) for f in feats]
    ss_logits = aux_forward(params['aux'], feats)
    var = softplus(params['variance_param'])[None, :]
    # TODO(synk): reference returns self.logsigma1 which does not exist (AttributeError);
    # we return self.logsigma instead.
    return (logit, mid, feats,
            [(ss_logits[0], var), (ss_logits[2], var),
             (ss_logits[4], var), (ss_logits[6], var)],
            [ss_logits[1], ss_logits[3], ss_logits[5], ss_logits[7]],
            params['logsigma'], ss_logits)


# ----------------------------------------------------------------------------- main

if __name__ == "__main__":
    key = jax.random.PRNGKey(0)
    pk, xk, mk = jax.random.split(key, 3)

    num_classes = 10
    params = init_params(pk, CFG['S'], num_classes)

    # PyTorch input is NCHW; kernel layout is NHWC (documented above).
    x_nchw = jax.random.normal(xk, (2, 3, 32, 32), jnp.float32)
    x = jnp.transpose(x_nchw, (0, 2, 3, 1))

    outputs = vgg_auxiliary_forward(params, x, mk)
    jax.block_until_ready(outputs)
    print("KERNEL_OK")
</pallas_src>

<mosaic_0001>
module attributes {stable_mosaic.version = 11 : i64} {
  func.func @_pw_conv_kernel(%arg0: i32, %arg1: i32, %arg2: memref<1x32x32x27xbf16, #tpu.memory_space<vmem>>, %arg3: memref<27x64xbf16, #tpu.memory_space<vmem>>, %arg4: memref<1x64xf32, #tpu.memory_space<vmem>>, %arg5: memref<1x16x16x64xbf16, #tpu.memory_space<vmem>>) attributes {dimension_semantics = [#tpu.dimension_semantics<parallel>, #tpu.dimension_semantics<parallel>], iteration_bounds = array<i64: 2, 1>, scalar_prefetch = 0 : i64, scratch_operands = 0 : i64, tpu.core_type = #tpu.core_type<tc>, window_params = [{transform_indices = @transform_0, window_bounds = array<i64: 1, 32, 32, 27>}, {pipeline_mode = #tpu.pipeline_mode<synchronous>, transform_indices = @transform_1, window_bounds = array<i64: 27, 64>}, {pipeline_mode = #tpu.pipeline_mode<synchronous>, transform_indices = @transform_2, window_bounds = array<i64: 1, 64>}, {transform_indices = @transform_3, window_bounds = array<i64: 1, 16, 16, 64>}]} {
    %c0 = arith.constant 0 : index
    %c0_0 = arith.constant 0 : index
    %c0_1 = arith.constant 0 : index
    %c0_2 = arith.constant 0 : index
    %0 = vector.load %arg2[%c0, %c0_0, %c0_1, %c0_2] : memref<1x32x32x27xbf16, #tpu.memory_space<vmem>>, vector<1x32x32x27xbf16>
    %1 = vector.shape_cast %0 : vector<1x32x32x27xbf16> to vector<32x32x27xbf16>
    %2 = vector.shape_cast %1 : vector<32x32x27xbf16> to vector<1024x27xbf16>
    %c0_3 = arith.constant 0 : index
    %c0_4 = arith.constant 0 : index
    %3 = vector.load %arg3[%c0_3, %c0_4] : memref<27x64xbf16, #tpu.memory_space<vmem>>, vector<27x64xbf16>
    %cst = arith.constant dense<0.000000e+00> : vector<1024x64xf32>
    %4 = tpu.matmul %2, %3, %cst {dimension_numbers = #tpu.dot_dimension_numbers<[1], [0], [0], [1], [0, 0, 1, 1], [], []>} : vector<1024x27xbf16>, vector<27x64xbf16>, vector<1024x64xf32> -> vector<1024x64xf32>
    %c0_5 = arith.constant 0 : index
    %c0_6 = arith.constant 0 : index
    %5 = vector.load %arg4[%c0_5, %c0_6] : memref<1x64xf32, #tpu.memory_space<vmem>>, vector<1x64xf32>
    %6 = vector.broadcast %5 : vector<1x64xf32> to vector<1024x64xf32>
    %7 = arith.addf %4, %6 : vector<1024x64xf32>
    %cst_7 = arith.constant 0.000000e+00 : f32
    %8 = vector.broadcast %cst_7 : f32 to vector<1024x64xf32>
    %9 = arith.maximumf %7, %8 : vector<1024x64xf32>
    %10 = vector.shape_cast %9 : vector<1024x64xf32> to vector<32x16x2x64xf32>
    %cst_8 = arith.constant dense<0xFF800000> : vector<32x16x64xf32>
    %11 = vector.multi_reduction <maximumf>, %10, %cst_8 [2] : vector<32x16x2x64xf32> to vector<32x16x64xf32>
    %12 = vector.shape_cast %11 : vector<32x16x64xf32> to vector<16x2x16x64xf32>
    %cst_9 = arith.constant dense<0xFF800000> : vector<16x16x64xf32>
    %13 = vector.multi_reduction <maximumf>, %12, %cst_9 [1] : vector<16x2x16x64xf32> to vector<16x16x64xf32>
    %14 = arith.truncf %13 : vector<16x16x64xf32> to vector<16x16x64xbf16>
    %c0_10 = arith.constant 0 : index
    %c0_11 = arith.constant 0 : index
    %c0_12 = arith.constant 0 : index
    %c0_13 = arith.constant 0 : index
    %15 = vector.load %arg5[%c0_10, %c0_11, %c0_12, %c0_13] : memref<1x16x16x64xbf16, #tpu.memory_space<vmem>>, vector<1x16x16x64xbf16>
    %16 = vector.shape_cast %15 : vector<1x16x16x64xbf16> to vector<16x16x64xbf16>
    %17 = vector.shape_cast %14 : vector<16x16x64xbf16> to vector<1x16x16x64xbf16>
    tpu.vector_store %arg5[%c0_10, %c0_11, %c0_12, %c0_13], %17 {strides = array<i32>} : memref<1x16x16x64xbf16, #tpu.memory_space<vmem>>, vector<1x16x16x64xbf16>,
    return
  }
  func.func @transform_0(%arg0: i32, %arg1: i32) -> (i32, i32, i32, i32) {
    %c0_i32 = arith.constant 0 : i32
    %c0_i32_0 = arith.constant 0 : i32
    %c0_i32_1 = arith.constant 0 : i32
    return %arg0, %arg1, %c0_i32, %c0_i32_0 : i32, i32, i32, i32
  }
  func.func @transform_1(%arg0: i32, %arg1: i32) -> (i32, i32) {
    %c0_i32 = arith.constant 0 : i32
    %c0_i32_0 = arith.constant 0 : i32
    %c0_i32_1 = arith.constant 0 : i32
    return %c0_i32, %c0_i32_0 : i32, i32
  }
  func.func @transform_2(%arg0: i32, %arg1: i32) -> (i32, i32) {
    %c0_i32 = arith.constant 0 : i32
    %c0_i32_0 = arith.constant 0 : i32
    %c0_i32_1 = arith.constant 0 : i32
    return %c0_i32, %c0_i32_0 : i32, i32
  }
  func.func @transform_3(%arg0: i32, %arg1: i32) -> (i32, i32, i32, i32) {
    %c0_i32 = arith.constant 0 : i32
    %c0_i32_0 = arith.constant 0 : i32
    %c0_i32_1 = arith.constant 0 : i32
    return %arg0, %arg1, %c0_i32, %c0_i32_0 : i32, i32, i32, i32
  }
}

</mosaic_0001>

<llo_original>
// kernel: tpu_custom_call.1
$region0: #{tpu_custom_call.1}
  #allocation0 [shape = 'u32[]', space=smem, size = 0x4, offset = 0x4, fixed_abs, tag = 'smem constant byte address 0x4 - core index']
  #allocation1 [shape = 'u32[144,128]{1,0:T(1,128)}', space=vmem, size = 0x12000, scoped, tag = 'internal scratch']
  %s0 = inlined_call_operand.vmem [shape: bf16[2,32,32,27], index: 0, kind: input, shape index: {}]
  %s1 = inlined_call_operand.vmem [shape: bf16[27,64], index: 1, kind: input, shape index: {}]
  %s2 = inlined_call_operand.vmem [shape: f32[1,64], index: 2, kind: input, shape index: {}]
  %s3 = inlined_call_operand.hbm [shape: bf16[2,16,16,64], index: 3, kind: output, shape index: {}]
  %s4 = sld [smem:[#allocation0]]
  $region45: #{tpu_custom_call.1} parent=0
    _
  %s6 = ssub.s32 1, %s4
  %s7 = scalar_select 0, %s6, %s4
  $region1: #{tpu_custom_call.1} parent=0
    #allocation2 [shape = 'u8[131072]{0}', space=vmem, size = 0x20000, scoped, tag = 'output window, operand 0']
    #allocation3 [shape = 's32[2]{0}', space=sflag, size = 0x8, scoped, tag = 'scoped memory for tpu_custom_call.1']
    %8 = vsyncpa [#allocation3], 0
    %s9 = scalar_lea.sflag [#allocation3], 1
    %10 = vsyncpa %s9, 0
    loop: start=0, step=1, limit=4
    $region2: #{tpu_custom_call.1} parent=1 // loop_pre_header
      _
    $region3: #{tpu_custom_call.1} parent=1 // loop_header
      %s12 = sphi 0, %s16
      %p13 = scmp.ge.s32.totalorder %s12, 4
      %s19 = sphi 0, %s31
      %s20 = sphi 0, %s27
      %s21 = sphi 0, %s19
      %s22 = sphi 0, %s20
      %s23 = sphi 0, %s21
      %s24 = sphi 0, %s22
      %s36 = sphi 0, %s38
      %s39 = sphi 0, %s36
      %s40 = sphi 0, %s39
      %s56 = sphi 0, %s40
      %s60 = sphi 0, %s60
      %s62 = sphi 0, %s60
      %s63 = sphi 0, %s62
      %s77 = sphi 0, %s63
      %s81 = sphi 0, %s81
      %s83 = sphi 0, %s81
      %s84 = sphi 0, %s83
      %s98 = sphi 0, %s84
      %s106 = sphi 0, %s108
      %s109 = sphi 0, %s106
      %s110 = sphi 0, %s109
      %s126 = sphi 0, %s110
    $region4: #{tpu_custom_call.1} parent=1 // loop_header_branch
      %15 = sbr.rel (%p13) target = $region8
    $region5: #{tpu_custom_call.1} parent=1 // loop_body
      %s17 = ssub.s32 %s12, 1
      %s18 = ssub.s32 %s12, 2
      %s25 = sadd.s32 1, %s20
      %p26 = scmp.ge.s32.totalorder %s25, 1
      %s27 = scalar_select %p26, 0, %s25
      %s28 = sadd.s32 1, %s19
      %s29 = scalar_select %p26, %s28, %s19
      %p30 = scmp.ge.s32.totalorder %s29, 2
      %s31 = scalar_select %p30, 0, %s29
      %s32 = ssub.s32 %s19, %s31
      %s33 = ssub.s32 %s20, %s27
      %s34 = sor.u32 %s32, %s33
      %p35 = scmp.eq.s32.totalorder %s34, 0
      %s37 = sadd.s32 %s36, 1
      %s38 = scalar_select %p35, %s36, %s37
      %p41 = pneg %p35
      %p42 = scmp.eq.s32.totalorder %s12, 1
      %p43 = por %p41, %p42
      %p44 = scmp.ne.s32.totalorder %s36, %s39
      %p45 = scmp.eq.s32.totalorder %s12, 0
      %p46 = por %p44, %p45
      %p47 = scmp.ne.s32.totalorder %s36, %s39
      %p48 = scmp.eq.s32.totalorder %s17, 1
      %p49 = por %p47, %p48
      %p50 = scmp.ne.s32.totalorder %s39, %s40
      %p51 = scmp.eq.s32.totalorder %s17, 0
      %p52 = por %p50, %p51
      %p53 = scmp.ne.s32.totalorder %s39, %s40
      %p54 = scmp.eq.s32.totalorder %s18, 1
      %p55 = por %p53, %p54
      %p57 = scmp.ne.s32.totalorder %s40, %s56
      %p58 = scmp.eq.s32.totalorder %s18, 0
      %p59 = por %p57, %p58
      %s61 = sadd.s32 %s60, 1
      %p64 = scmp.eq.s32.totalorder %s12, 1
      %p65 = scmp.ne.s32.totalorder %s60, %s62
      %p66 = scmp.eq.s32.totalorder %s12, 0
      %p67 = por %p65, %p66
      %p68 = scmp.ne.s32.totalorder %s60, %s62
      %p69 = scmp.eq.s32.totalorder %s17, 1
      %p70 = por %p68, %p69
      %p71 = scmp.ne.s32.totalorder %s62, %s63
      %p72 = scmp.eq.s32.totalorder %s17, 0
      %p73 = por %p71, %p72
      %p74 = scmp.ne.s32.totalorder %s62, %s63
      %p75 = scmp.eq.s32.totalorder %s18, 1
      %p76 = por %p74, %p75
      %p78 = scmp.ne.s32.totalorder %s63, %s77
      %p79 = scmp.eq.s32.totalorder %s18, 0
      %p80 = por %p78, %p79
      %s82 = sadd.s32 %s81, 1
      %p85 = scmp.eq.s32.totalorder %s12, 1
      %p86 = scmp.ne.s32.totalorder %s81, %s83
      %p87 = scmp.eq.s32.totalorder %s12, 0
      %p88 = por %p86, %p87
      %p89 = scmp.ne.s32.totalorder %s81, %s83
      %p90 = scmp.eq.s32.totalorder %s17, 1
      %p91 = por %p89, %p90
      %p92 = scmp.ne.s32.totalorder %s83, %s84
      %p93 = scmp.eq.s32.totalorder %s17, 0
      %p94 = por %p92, %p93
      %p95 = scmp.ne.s32.totalorder %s83, %s84
      %p96 = scmp.eq.s32.totalorder %s18, 1
      %p97 = por %p95, %p96
      %p99 = scmp.ne.s32.totalorder %s84, %s98
      %p100 = scmp.eq.s32.totalorder %s18, 0
      %p101 = por %p99, %p100
      %s102 = ssub.s32 %s19, %s31
      %s103 = ssub.s32 %s20, %s27
      %s104 = sor.u32 %s102, %s103
      %p105 = scmp.eq.s32.totalorder %s104, 0
      %s107 = sadd.s32 %s106, 1
      %s108 = scalar_select %p105, %s106, %s107
      %p111 = pneg %p105
      %p112 = scmp.eq.s32.totalorder %s12, 1
      %p113 = por %p111, %p112
      %p114 = scmp.ne.s32.totalorder %s106, %s109
      %p115 = scmp.eq.s32.totalorder %s12, 0
      %p116 = por %p114, %p115
      %p117 = scmp.ne.s32.totalorder %s106, %s109
      %p118 = scmp.eq.s32.totalorder %s17, 1
      %p119 = por %p117, %p118
      %p120 = scmp.ne.s32.totalorder %s109, %s110
      %p121 = scmp.eq.s32.totalorder %s17, 0
      %p122 = por %p120, %p121
      %p123 = scmp.ne.s32.totalorder %s109, %s110
      %p124 = scmp.eq.s32.totalorder %s18, 1
      %p125 = por %p123, %p124
      %p127 = scmp.ne.s32.totalorder %s110, %s126
      %p128 = scmp.eq.s32.totalorder %s18, 0
      %p129 = por %p127, %p128
      %p130 = scmp.le.s32.totalorder 1, %s12
      %p131 = scmp.lt.s32.totalorder %s12, 3
      %p132 = pnand %p130, %p131
      %p133 = pneg %p132
      // Predicated region
      $region9: #{tpu_custom_call.1} parent=5 // pred_check
        _
      $region10: #{tpu_custom_call.1} parent=5 // pred_check_branch
        %135 = sbr.rel (%p132) target = $region12
      $region11: #{tpu_custom_call.1} parent=5 // pred_region
        %s136 = ssub.s32 %s12, 1
        // Predicated region
        $region13: #{tpu_custom_call.1} parent=11 // pred_check
          %p137 = pneg %p73
        $region14: #{tpu_custom_call.1} parent=11 // pred_check_branch
          %139 = sbr.rel (%p137) target = $region16
        $region15: #{tpu_custom_call.1} parent=11 // pred_region
          _
        $region16: #{tpu_custom_call.1} parent=11 // pred_fallthru
          _
        // Predicated region
        $region17: #{tpu_custom_call.1} parent=11 // pred_check
          %p140 = pneg %p94
        $region18: #{tpu_custom_call.1} parent=11 // pred_check_branch
          %142 = sbr.rel (%p140) target = $region20
        $region19: #{tpu_custom_call.1} parent=11 // pred_region
          _
        $region20: #{tpu_custom_call.1} parent=11 // pred_fallthru
          _
      $region12: #{tpu_custom_call.1} parent=5 // pred_fallthru
        _
      %p143 = scmp.lt.s32.totalorder %s12, 2
      // Predicated region
      $region21: #{tpu_custom_call.1} parent=5 // pred_check
        %p144 = pneg %p143
      $region22: #{tpu_custom_call.1} parent=5 // pred_check_branch
        %146 = sbr.rel (%p144) target = $region24
      $region23: #{tpu_custom_call.1} parent=5 // pred_region
        // Predicated region
        $region25: #{tpu_custom_call.1} parent=23 // pred_check
          %p147 = pneg %p46
        $region26: #{tpu_custom_call.1} parent=23 // pred_check_branch
          %149 = sbr.rel (%p147) target = $region28
        $region27: #{tpu_custom_call.1} parent=23 // pred_region
          %s150 = smul.u32 32, %s20
          %p151 = scmp.lt.s32.totalorder %s19, 1
          %s152 = scalar_select %p151, %s19, 1
          %p153 = scmp.lt.s32.totalorder %s150, 31
          %s154 = scalar_select %p153, %s150, 31
          %s155 = smul.addr %s154, 4
          %s156 = smul.addr %s152, 128
          %s157 = sadd.s32 %s155, %s156
          %s158 = smul.addr %s157, 4
          %s159 = scalar_lea.vmem %s0, %s158
          %s160 = smul.u32 32, %s20
        $region28: #{tpu_custom_call.1} parent=23 // pred_fallthru
          _
      $region24: #{tpu_custom_call.1} parent=5 // pred_fallthru
        _
      %p161 = scmp.le.s32.totalorder 1, %s12
      %p162 = scmp.lt.s32.totalorder %s12, 3
      %p163 = pnand %p161, %p162
      %p164 = pneg %p163
      // Predicated region
      $region29: #{tpu_custom_call.1} parent=5 // pred_check
        _
      $region30: #{tpu_custom_call.1} parent=5 // pred_check_branch
        %166 = sbr.rel (%p163) target = $region32
      $region31: #{tpu_custom_call.1} parent=5 // pred_region
        %s167 = ssub.s32 %s12, 1
        %s168 = smul.u32 32, %s22
        %p169 = scmp.lt.s32.totalorder %s21, 1
        %s170 = scalar_select %p169, %s21, 1
        %p171 = scmp.lt.s32.totalorder %s168, 31
        %s172 = scalar_select %p171, %s168, 31
        %s173 = smul.addr %s172, 4
        %s174 = smul.addr %s170, 128
        %s175 = sadd.s32 %s173, %s174
        %s176 = smul.addr %s175, 4
        %s177 = scalar_lea.vmem %s0, %s176
        %p178 = pneg %p52
        %p179 = pneg %p49
        %p180 = pneg %p73
        %p181 = pneg %p70
        %p182 = pneg %p94
        %p183 = pneg %p91
        %p184 = pneg %p122
        %p185 = pneg %p119
        %s186 = sand.u32 %s109, 1
        %s187 = scalar_lea.sflag [#allocation3], %s186
        %s188 = sand.u32 %s109, 1
        %s189 = smul.addr %s188, 128
        %s190 = scalar_lea.vmem [#allocation2], %s189
        %s191 = smul.u32 32, %s22
        %p192 = scmp.lt.s32.totalorder %s21, 1
        %s193 = scalar_select %p192, %s21, 1
        %p194 = scmp.lt.s32.totalorder %s191, 31
        %s195 = scalar_select %p194, %s191, 31
        %s196 = smul.addr %s195, 4
        %s197 = smul.addr %s193, 128
        %s198 = sadd.s32 %s196, %s197
        %s199 = smul.addr %s198, 4
        %s200 = scalar_lea.vmem %s0, %s199
        %s201 = smul.u32 32, %s22
        %s202 = smul.u32 16, %s22
        %v204 = vld [vmem:[%s200] sm:$0xf]
        %v205 = vld [vmem:[%s200 + $0x4] sm:$0xf]
        %v206 = vld [vmem:[%s200 + $0x8] sm:$0xf]
        %v207 = vld [vmem:[%s200 + $0xc] sm:$0xf]
        %v208 = vld [vmem:[%s200 + $0x10] sm:$0xf]
        %v209 = vld [vmem:[%s200 + $0x14] sm:$0xf]
        %v210 = vld [vmem:[%s200 + $0x18] sm:$0xf]
        %v211 = vld [vmem:[%s200 + $0x1c] sm:$0xf]
        %v212 = vld [vmem:[%s200 + $0x20] sm:$0xf]
        %v213 = vld [vmem:[%s200 + $0x24] sm:$0xf]
        %v214 = vld [vmem:[%s200 + $0x28] sm:$0xf]
        %v215 = vld [vmem:[%s200 + $0x2c] sm:$0xf]
        %v216 = vld [vmem:[%s200 + $0x30] sm:$0xf]
        %v217 = vld [vmem:[%s200 + $0x34] sm:$0xf]
        %v218 = vld [vmem:[%s200 + $0x38] sm:$0xf]
        %v219 = vld [vmem:[%s200 + $0x3c] sm:$0xf]
        %v220 = vld [vmem:[%s200 + $0x40] sm:$0xf]
        %v221 = vld [vmem:[%s200 + $0x44] sm:$0xf]
        %v222 = vld [vmem:[%s200 + $0x48] sm:$0xf]
        %v223 = vld [vmem:[%s200 + $0x4c] sm:$0xf]
        %v224 = vld [vmem:[%s200 + $0x50] sm:$0xf]
        %v225 = vld [vmem:[%s200 + $0x54] sm:$0xf]
        %v226 = vld [vmem:[%s200 + $0x58] sm:$0xf]
        %v227 = vld [vmem:[%s200 + $0x5c] sm:$0xf]
        %v228 = vld [vmem:[%s200 + $0x60] sm:$0xf]
        %v229 = vld [vmem:[%s200 + $0x64] sm:$0xf]
        %v230 = vld [vmem:[%s200 + $0x68] sm:$0xf]
        %v231 = vld [vmem:[%s200 + $0x6c] sm:$0xf]
        %v232 = vld [vmem:[%s200 + $0x70] sm:$0xf]
        %v233 = vld [vmem:[%s200 + $0x74] sm:$0xf]
        %v234 = vld [vmem:[%s200 + $0x78] sm:$0xf]
        %v235 = vld [vmem:[%s200 + $0x7c] sm:$0xf]
        %v236 = vld [vmem:[%s200 + $0x80] sm:$0xf]
        %v237 = vld [vmem:[%s200 + $0x84] sm:$0xf]
        %v238 = vld [vmem:[%s200 + $0x88] sm:$0xf]
        %v239 = vld [vmem:[%s200 + $0x8c] sm:$0xf]
        %v240 = vld [vmem:[%s200 + $0x90] sm:$0xf]
        %v241 = vld [vmem:[%s200 + $0x94] sm:$0xf]
        %v242 = vld [vmem:[%s200 + $0x98] sm:$0xf]
        %v243 = vld [vmem:[%s200 + $0x9c] sm:$0xf]
        %v244 = vld [vmem:[%s200 + $0xa0] sm:$0xf]
        %v245 = vld [vmem:[%s200 + $0xa4] sm:$0xf]
        %v246 = vld [vmem:[%s200 + $0xa8] sm:$0xf]
        %v247 = vld [vmem:[%s200 + $0xac] sm:$0xf]
        %v248 = vld [vmem:[%s200 + $0xb0] sm:$0xf]
        %v249 = vld [vmem:[%s200 + $0xb4] sm:$0xf]
        %v250 = vld [vmem:[%s200 + $0xb8] sm:$0xf]
        %v251 = vld [vmem:[%s200 + $0xbc] sm:$0xf]
        %v252 = vld [vmem:[%s200 + $0xc0] sm:$0xf]
        %v253 = vld [vmem:[%s200 + $0xc4] sm:$0xf]
        %v254 = vld [vmem:[%s200 + $0xc8] sm:$0xf]
        %v255 = vld [vmem:[%s200 + $0xcc] sm:$0xf]
        %v256 = vld [vmem:[%s200 + $0xd0] sm:$0xf]
        %v257 = vld [vmem:[%s200 + $0xd4] sm:$0xf]
        %v258 = vld [vmem:[%s200 + $0xd8] sm:$0xf]
        %v259 = vld [vmem:[%s200 + $0xdc] sm:$0xf]
        %v260 = vld [vmem:[%s200 + $0xe0] sm:$0xf]
        %v261 = vld [vmem:[%s200 + $0xe4] sm:$0xf]
        %v262 = vld [vmem:[%s200 + $0xe8] sm:$0xf]
        %v263 = vld [vmem:[%s200 + $0xec] sm:$0xf]
        %v264 = vld [vmem:[%s200 + $0xf0] sm:$0xf]
        %v265 = vld [vmem:[%s200 + $0xf4] sm:$0xf]
        %v266 = vld [vmem:[%s200 + $0xf8] sm:$0xf]
        %v267 = vld [vmem:[%s200 + $0xfc] sm:$0xf]
        %v268 = vld [vmem:[%s200 + $0x100] sm:$0xf]
        %v269 = vld [vmem:[%s200 + $0x104] sm:$0xf]
        %v270 = vld [vmem:[%s200 + $0x108] sm:$0xf]
        %v271 = vld [vmem:[%s200 + $0x10c] sm:$0xf]
        %v272 = vld [vmem:[%s200 + $0x110] sm:$0xf]
        %v273 = vld [vmem:[%s200 + $0x114] sm:$0xf]
        %v274 = vld [vmem:[%s200 + $0x118] sm:$0xf]
        %v275 = vld [vmem:[%s200 + $0x11c] sm:$0xf]
        %v276 = vld [vmem:[%s200 + $0x120] sm:$0xf]
        %v277 = vld [vmem:[%s200 + $0x124] sm:$0xf]
        %v278 = vld [vmem:[%s200 + $0x128] sm:$0xf]
        %v279 = vld [vmem:[%s200 + $0x12c] sm:$0xf]
        %v280 = vld [vmem:[%s200 + $0x130] sm:$0xf]
        %v281 = vld [vmem:[%s200 + $0x134] sm:$0xf]
        %v282 = vld [vmem:[%s200 + $0x138] sm:$0xf]
        %v283 = vld [vmem:[%s200 + $0x13c] sm:$0xf]
        %v284 = vld [vmem:[%s200 + $0x140] sm:$0xf]
        %v285 = vld [vmem:[%s200 + $0x144] sm:$0xf]
        %v286 = vld [vmem:[%s200 + $0x148] sm:$0xf]
        %v287 = vld [vmem:[%s200 + $0x14c] sm:$0xf]
        %v288 = vld [vmem:[%s200 + $0x150] sm:$0xf]
        %v289 = vld [vmem:[%s200 + $0x154] sm:$0xf]
        %v290 = vld [vmem:[%s200 + $0x158] sm:$0xf]
        %v291 = vld [vmem:[%s200 + $0x15c] sm:$0xf]
        %v292 = vld [vmem:[%s200 + $0x160] sm:$0xf]
        %v293 = vld [vmem:[%s200 + $0x164] sm:$0xf]
        %v294 = vld [vmem:[%s200 + $0x168] sm:$0xf]
        %v295 = vld [vmem:[%s200 + $0x16c] sm:$0xf]
        %v296 = vld [vmem:[%s200 + $0x170] sm:$0xf]
        %v297 = vld [vmem:[%s200 + $0x174] sm:$0xf]
        %v298 = vld [vmem:[%s200 + $0x178] sm:$0xf]
        %v299 = vld [vmem:[%s200 + $0x17c] sm:$0xf]
        %v300 = vld [vmem:[%s200 + $0x180] sm:$0xf]
        %v301 = vld [vmem:[%s200 + $0x184] sm:$0xf]
        %v302 = vld [vmem:[%s200 + $0x188] sm:$0xf]
        %v303 = vld [vmem:[%s200 + $0x18c] sm:$0xf]
        %v304 = vld [vmem:[%s200 + $0x190] sm:$0xf]
        %v305 = vld [vmem:[%s200 + $0x194] sm:$0xf]
        %v306 = vld [vmem:[%s200 + $0x198] sm:$0xf]
        %v307 = vld [vmem:[%s200 + $0x19c] sm:$0xf]
        %v308 = vld [vmem:[%s200 + $0x1a0] sm:$0xf]
        %v309 = vld [vmem:[%s200 + $0x1a4] sm:$0xf]
        %v310 = vld [vmem:[%s200 + $0x1a8] sm:$0xf]
        %v311 = vld [vmem:[%s200 + $0x1ac] sm:$0xf]
        %v312 = vld [vmem:[%s200 + $0x1b0] sm:$0xf]
        %v313 = vld [vmem:[%s200 + $0x1b4] sm:$0xf]
        %v314 = vld [vmem:[%s200 + $0x1b8] sm:$0xf]
        %v315 = vld [vmem:[%s200 + $0x1bc] sm:$0xf]
        %v316 = vld [vmem:[%s200 + $0x1c0] sm:$0xf]
        %v317 = vld [vmem:[%s200 + $0x1c4] sm:$0xf]
        %v318 = vld [vmem:[%s200 + $0x1c8] sm:$0xf]
        %v319 = vld [vmem:[%s200 + $0x1cc] sm:$0xf]
        %v320 = vld [vmem:[%s200 + $0x1d0] sm:$0xf]
        %v321 = vld [vmem:[%s200 + $0x1d4] sm:$0xf]
        %v322 = vld [vmem:[%s200 + $0x1d8] sm:$0xf]
        %v323 = vld [vmem:[%s200 + $0x1dc] sm:$0xf]
        %v324 = vld [vmem:[%s200 + $0x1e0] sm:$0xf]
        %v325 = vld [vmem:[%s200 + $0x1e4] sm:$0xf]
        %v326 = vld [vmem:[%s200 + $0x1e8] sm:$0xf]
        %v327 = vld [vmem:[%s200 + $0x1ec] sm:$0xf]
        %v328 = vld [vmem:[%s200 + $0x1f0] sm:$0xf]
        %v329 = vld [vmem:[%s200 + $0x1f4] sm:$0xf]
        %v330 = vld [vmem:[%s200 + $0x1f8] sm:$0xf]
        %v331 = vld [vmem:[%s200 + $0x1fc] sm:$0xf]
        %v332 = vld [vmem:[%s1] sm:$0xf]
        %v333 = vld [vmem:[%s1 + $0x4] sm:$0xf]
        %v334 = vld [vmem:[%s1 + $0x8] sm:$0xf]
        %v335 = vld [vmem:[%s1 + $0xc] sm:$0x3]
        %v336 = vld [vmem:[%s2] sm:$0x1]
        %v338 = vlaneseq
        %v339 = vshrl.u32 %v338, 7
        %v340 = vsub.s32 0, %v339
        %v341 = vrot.slane %v336, %v340
        %v471 = vunpack.c.l.b16 %v204
        %v472 = vunpack.c.l.b16 %v205
        %v473 = vunpack.c.l.b16 %v206
        %v474 = vunpack.c.l.b16 %v207
        %v475 = vunpack.c.l.b16 %v208
        %v476 = vunpack.c.l.b16 %v209
        %v477 = vunpack.c.l.b16 %v210
        %v478 = vunpack.c.l.b16 %v211
        %v479 = vunpack.c.l.b16 %v212
        %v480 = vunpack.c.l.b16 %v213
        %v481 = vunpack.c.l.b16 %v214
        %v482 = vunpack.c.l.b16 %v215
        %v483 = vunpack.c.l.b16 %v216
        %v484 = vunpack.c.l.b16 %v217
        %v485 = vunpack.c.l.b16 %v218
        %v486 = vunpack.c.l.b16 %v219
        %v487 = vunpack.c.l.b16 %v220
        %v488 = vunpack.c.l.b16 %v221
        %v489 = vunpack.c.l.b16 %v222
        %v490 = vunpack.c.l.b16 %v223
        %v491 = vunpack.c.l.b16 %v224
        %v492 = vunpack.c.l.b16 %v225
        %v493 = vunpack.c.l.b16 %v226
        %v494 = vunpack.c.l.b16 %v227
        %v495 = vunpack.c.l.b16 %v228
        %v496 = vunpack.c.l.b16 %v229
        %v497 = vunpack.c.l.b16 %v230
        %v498 = vunpack.c.l.b16 %v231
        %v499 = vunpack.c.l.b16 %v232
        %v500 = vunpack.c.l.b16 %v233
        %v501 = vunpack.c.l.b16 %v234
        %v502 = vunpack.c.l.b16 %v235
        %v503 = vunpack.c.l.b16 %v236
        %v504 = vunpack.c.l.b16 %v237
        %v505 = vunpack.c.l.b16 %v238
        %v506 = vunpack.c.l.b16 %v239
        %v507 = vunpack.c.l.b16 %v240
        %v508 = vunpack.c.l.b16 %v241
        %v509 = vunpack.c.l.b16 %v242
        %v510 = vunpack.c.l.b16 %v243
        %v511 = vunpack.c.l.b16 %v244
        %v512 = vunpack.c.l.b16 %v245
        %v513 = vunpack.c.l.b16 %v246
        %v514 = vunpack.c.l.b16 %v247
        %v515 = vunpack.c.l.b16 %v248
        %v516 = vunpack.c.l.b16 %v249
        %v517 = vunpack.c.l.b16 %v250
        %v518 = vunpack.c.l.b16 %v251
        %v519 = vunpack.c.l.b16 %v252
        %v520 = vunpack.c.l.b16 %v253
        %v521 = vunpack.c.l.b16 %v254
        %v522 = vunpack.c.l.b16 %v255
        %v523 = vunpack.c.l.b16 %v256
        %v524 = vunpack.c.l.b16 %v257
        %v525 = vunpack.c.l.b16 %v258
        %v526 = vunpack.c.l.b16 %v259
        %v527 = vunpack.c.l.b16 %v260
        %v528 = vunpack.c.l.b16 %v261
        %v529 = vunpack.c.l.b16 %v262
        %v530 = vunpack.c.l.b16 %v263
        %v531 = vunpack.c.l.b16 %v264
        %v532 = vunpack.c.l.b16 %v265
        %v533 = vunpack.c.l.b16 %v266
        %v534 = vunpack.c.l.b16 %v267
        %v535 = vunpack.c.l.b16 %v268
        %v536 = vunpack.c.l.b16 %v269
        %v537 = vunpack.c.l.b16 %v270
        %v538 = vunpack.c.l.b16 %v271
        %v539 = vunpack.c.l.b16 %v272
        %v540 = vunpack.c.l.b16 %v273
        %v541 = vunpack.c.l.b16 %v274
        %v542 = vunpack.c.l.b16 %v275
        %v543 = vunpack.c.l.b16 %v276
        %v544 = vunpack.c.l.b16 %v277
        %v545 = vunpack.c.l.b16 %v278
        %v546 = vunpack.c.l.b16 %v279
        %v547 = vunpack.c.l.b16 %v280
        %v548 = vunpack.c.l.b16 %v281
        %v549 = vunpack.c.l.b16 %v282
        %v550 = vunpack.c.l.b16 %v283
        %v551 = vunpack.c.l.b16 %v284
        %v552 = vunpack.c.l.b16 %v285
        %v553 = vunpack.c.l.b16 %v286
        %v554 = vunpack.c.l.b16 %v287
        %v555 = vunpack.c.l.b16 %v288
        %v556 = vunpack.c.l.b16 %v289
        %v557 = vunpack.c.l.b16 %v290
        %v558 = vunpack.c.l.b16 %v291
        %v559 = vunpack.c.l.b16 %v292
        %v560 = vunpack.c.l.b16 %v293
        %v561 = vunpack.c.l.b16 %v294
        %v562 = vunpack.c.l.b16 %v295
        %v563 = vunpack.c.l.b16 %v296
        %v564 = vunpack.c.l.b16 %v297
        %v565 = vunpack.c.l.b16 %v298
        %v566 = vunpack.c.l.b16 %v299
        %v567 = vunpack.c.l.b16 %v300
        %v568 = vunpack.c.l.b16 %v301
        %v569 = vunpack.c.l.b16 %v302
        %v570 = vunpack.c.l.b16 %v303
        %v571 = vunpack.c.l.b16 %v304
        %v572 = vunpack.c.l.b16 %v305
        %v573 = vunpack.c.l.b16 %v306
        %v574 = vunpack.c.l.b16 %v307
        %v575 = vunpack.c.l.b16 %v308
        %v576 = vunpack.c.l.b16 %v309
        %v577 = vunpack.c.l.b16 %v310
        %v578 = vunpack.c.l.b16 %v311
        %v579 = vunpack.c.l.b16 %v312
        %v580 = vunpack.c.l.b16 %v313
        %v581 = vunpack.c.l.b16 %v314
        %v582 = vunpack.c.l.b16 %v315
        %v583 = vunpack.c.l.b16 %v316
        %v584 = vunpack.c.l.b16 %v317
        %v585 = vunpack.c.l.b16 %v318
        %v586 = vunpack.c.l.b16 %v319
        %v587 = vunpack.c.l.b16 %v320
        %v588 = vunpack.c.l.b16 %v321
        %v589 = vunpack.c.l.b16 %v322
        %v590 = vunpack.c.l.b16 %v323
        %v591 = vunpack.c.l.b16 %v324
        %v592 = vunpack.c.l.b16 %v325
        %v593 = vunpack.c.l.b16 %v326
        %v594 = vunpack.c.l.b16 %v327
        %v595 = vunpack.c.l.b16 %v328
        %v596 = vunpack.c.l.b16 %v329
        %v597 = vunpack.c.l.b16 %v330
        %v598 = vunpack.c.l.b16 %v331
        %v599 = vpack.c.b16 %v472, %v471
        %v600 = vpack.c.b16 %v474, %v473
        %v601 = vpack.c.b16 %v476, %v475
        %v602 = vpack.c.b16 %v478, %v477
        %v603 = vpack.c.b16 %v480, %v479
        %v604 = vpack.c.b16 %v482, %v481
        %v605 = vpack.c.b16 %v484, %v483
        %v606 = vpack.c.b16 %v486, %v485
        %v607 = vpack.c.b16 %v488, %v487
        %v608 = vpack.c.b16 %v490, %v489
        %v609 = vpack.c.b16 %v492, %v491
        %v610 = vpack.c.b16 %v494, %v493
        %v611 = vpack.c.b16 %v496, %v495
        %v612 = vpack.c.b16 %v498, %v497
        %v613 = vpack.c.b16 %v500, %v499
        %v614 = vpack.c.b16 %v502, %v501
        %v615 = vpack.c.b16 %v504, %v503
        %v616 = vpack.c.b16 %v506, %v505
        %v617 = vpack.c.b16 %v508, %v507
        %v618 = vpack.c.b16 %v510, %v509
        %v619 = vpack.c.b16 %v512, %v511
        %v620 = vpack.c.b16 %v514, %v513
        %v621 = vpack.c.b16 %v516, %v515
        %v622 = vpack.c.b16 %v518, %v517
        %v623 = vpack.c.b16 %v520, %v519
        %v624 = vpack.c.b16 %v522, %v521
        %v625 = vpack.c.b16 %v524, %v523
        %v626 = vpack.c.b16 %v526, %v525
        %v627 = vpack.c.b16 %v528, %v527
        %v628 = vpack.c.b16 %v530, %v529
        %v629 = vpack.c.b16 %v532, %v531
        %v630 = vpack.c.b16 %v534, %v533
        %v631 = vpack.c.b16 %v536, %v535
        %v632 = vpack.c.b16 %v538, %v537
        %v633 = vpack.c.b16 %v540, %v539
        %v634 = vpack.c.b16 %v542, %v541
        %v635 = vpack.c.b16 %v544, %v543
        %v636 = vpack.c.b16 %v546, %v545
        %v637 = vpack.c.b16 %v548, %v547
        %v638 = vpack.c.b16 %v550, %v549
        %v639 = vpack.c.b16 %v552, %v551
        %v640 = vpack.c.b16 %v554, %v553
        %v641 = vpack.c.b16 %v556, %v555
        %v642 = vpack.c.b16 %v558, %v557
        %v643 = vpack.c.b16 %v560, %v559
        %v644 = vpack.c.b16 %v562, %v561
        %v645 = vpack.c.b16 %v564, %v563
        %v646 = vpack.c.b16 %v566, %v565
        %v647 = vpack.c.b16 %v568, %v567
        %v648 = vpack.c.b16 %v570, %v569
        %v649 = vpack.c.b16 %v572, %v571
        %v650 = vpack.c.b16 %v574, %v573
        %v651 = vpack.c.b16 %v576, %v575
        %v652 = vpack.c.b16 %v578, %v577
        %v653 = vpack.c.b16 %v580, %v579
        %v654 = vpack.c.b16 %v582, %v581
        %v655 = vpack.c.b16 %v584, %v583
        %v656 = vpack.c.b16 %v586, %v585
        %v657 = vpack.c.b16 %v588, %v587
        %v658 = vpack.c.b16 %v590, %v589
        %v659 = vpack.c.b16 %v592, %v591
        %v660 = vpack.c.b16 %v594, %v593
        %v661 = vpack.c.b16 %v596, %v595
        %v662 = vpack.c.b16 %v598, %v597
        %v667 = vunpack.c.l.b16 %v332
        %v668 = vunpack.c.l.b16 %v333
        %v669 = vunpack.c.l.b16 %v334
        %v670 = vunpack.c.l.b16 %v335
        %v671 = vpack.c.b16 %v668, %v667
        %v672 = vpack.c.b16 %v670, %v669
        %vm674 = vcmask 220160
        %v676 = vsel %vm674, %v599, 0
        %v679 = vsel %vm674, %v600, 0
        %v682 = vsel %vm674, %v601, 0
        %v685 = vsel %vm674, %v602, 0
        %v688 = vsel %vm674, %v603, 0
        %v691 = vsel %vm674, %v604, 0
        %v694 = vsel %vm674, %v605, 0
        %v697 = vsel %vm674, %v606, 0
        %v700 = vsel %vm674, %v607, 0
        %v703 = vsel %vm674, %v608, 0
        %v706 = vsel %vm674, %v609, 0
        %v709 = vsel %vm674, %v610, 0
        %v712 = vsel %vm674, %v611, 0
        %v715 = vsel %vm674, %v612, 0
        %v718 = vsel %vm674, %v613, 0
        %v721 = vsel %vm674, %v614, 0
        %v724 = vsel %vm674, %v615, 0
        %v727 = vsel %vm674, %v616, 0
        %v730 = vsel %vm674, %v617, 0
        %v733 = vsel %vm674, %v618, 0
        %v736 = vsel %vm674, %v619, 0
        %v739 = vsel %vm674, %v620, 0
        %v742 = vsel %vm674, %v621, 0
        %v745 = vsel %vm674, %v622, 0
        %v748 = vsel %vm674, %v623, 0
        %v751 = vsel %vm674, %v624, 0
        %v754 = vsel %vm674, %v625, 0
        %v757 = vsel %vm674, %v626, 0
        %v760 = vsel %vm674, %v627, 0
        %v763 = vsel %vm674, %v628, 0
        %v766 = vsel %vm674, %v629, 0
        %v769 = vsel %vm674, %v630, 0
        %v772 = vsel %vm674, %v631, 0
        %v775 = vsel %vm674, %v632, 0
        %v778 = vsel %vm674, %v633, 0
        %v781 = vsel %vm674, %v634, 0
        %v784 = vsel %vm674, %v635, 0
        %v787 = vsel %vm674, %v636, 0
        %v790 = vsel %vm674, %v637, 0
        %v793 = vsel %vm674, %v638, 0
        %v796 = vsel %vm674, %v639, 0
        %v799 = vsel %vm674, %v640, 0
        %v802 = vsel %vm674, %v641, 0
        %v805 = vsel %vm674, %v642, 0
        %v808 = vsel %vm674, %v643, 0
        %v811 = vsel %vm674, %v644, 0
        %v814 = vsel %vm674, %v645, 0
        %v817 = vsel %vm674, %v646, 0
        %v820 = vsel %vm674, %v647, 0
        %v823 = vsel %vm674, %v648, 0
        %v826 = vsel %vm674, %v649, 0
        %v829 = vsel %vm674, %v650, 0
        %v832 = vsel %vm674, %v651, 0
        %v835 = vsel %vm674, %v652, 0
        %v838 = vsel %vm674, %v653, 0
        %v841 = vsel %vm674, %v654, 0
        %v844 = vsel %vm674, %v655, 0
        %v847 = vsel %vm674, %v656, 0
        %v850 = vsel %vm674, %v657, 0
        %v853 = vsel %vm674, %v658, 0
        %v856 = vsel %vm674, %v659, 0
        %v859 = vsel %vm674, %v660, 0
        %v862 = vsel %vm674, %v661, 0
        %v865 = vsel %vm674, %v662, 0
        %vm867 = vcmask 1044480
        %vm868 = vcmask 1045504
        %v869 = vsel %vm867, 4294967295, 65535
        %v870 = vsel %vm868, %v869, 0
        %v872 = vand.u32 %v672, %v870
        %874 = vmatprep.subr.bf16.mxu0 0
        %875 = vmatpush1.bf16.msra.mxu0 %v671
        %876 = vmatprep.subr.bf16.mxu0 0
        %877 = vmatpush1.bf16.msra.mxu0 %v872
        %878 = vmatprep.subr.bf16.mxu0 0
        %879 = vmatpush1.bf16.msra.mxu0 0
        %880 = vmatprep.subr.bf16.mxu0 0
        %881 = vmatpush1.bf16.msra.mxu0 0
        %882 = vmatprep.subr.bf16.mxu0 0
        %883 = vmatpush1.bf16.msra.mxu0 0
        %884 = vmatprep.subr.bf16.mxu0 0
        %885 = vmatpush1.bf16.msra.mxu0 0
        %886 = vmatprep.subr.bf16.mxu0 0
        %887 = vmatpush1.bf16.msra.mxu0 0
        %888 = vmatprep.subr.bf16.mxu0 0
        %889 = vmatpush1.bf16.msra.mxu0 0
        %890 = vmatprep.subr.bf16.mxu0 0
        %891 = vmatpush1.bf16.msra.mxu0 0
        %892 = vmatprep.subr.bf16.mxu0 0
        %893 = vmatpush1.bf16.msra.mxu0 0
        %894 = vmatprep.subr.bf16.mxu0 0
        %895 = vmatpush1.bf16.msra.mxu0 0
        %896 = vmatprep.subr.bf16.mxu0 0
        %897 = vmatpush1.bf16.msra.mxu0 0
        %898 = vmatprep.subr.bf16.mxu0 0
        %899 = vmatpush1.bf16.msra.mxu0 0
        %900 = vmatprep.subr.bf16.mxu0 0
        %901 = vmatpush1.bf16.msra.mxu0 0
        %902 = vmatprep.subr.bf16.mxu0 0
        %903 = vmatpush1.bf16.msra.mxu0 0
        %904 = vmatprep.subr.bf16.mxu0 0
        %905 = vmatpush1.bf16.msra.mxu0 0
        %906 = vmatprep.mubr.bf16.mxu0 0
        %907 = vmatmul.mubr.bf16.gmra.mrb[0].mxu0 %v676
        %v908 = vpop.f32.mrb[0].mxu0
        %v909 = vadd.f32 %v341, %v908
        %v910 = vpop.f32.mrb[0].mxu0
        %v911 = vpop.f32.mrb[0].mxu0
        %v912 = vadd.f32 %v341, %v911
        %v913 = vpop.f32.mrb[0].mxu0
        %914 = vmatprep.mubr.bf16.mxu0 0
        %915 = vmatmul.mubr.bf16.gmra.mrb[0].mxu0 %v679
        %v916 = vpop.f32.mrb[0].mxu0
        %v917 = vadd.f32 %v341, %v916
        %v918 = vpop.f32.mrb[0].mxu0
        %v919 = vpop.f32.mrb[0].mxu0
        %v920 = vadd.f32 %v341, %v919
        %v921 = vpop.f32.mrb[0].mxu0
        %922 = vmatprep.mubr.bf16.mxu0 0
        %923 = vmatmul.mubr.bf16.gmra.mrb[0].mxu0 %v682
        %v924 = vpop.f32.mrb[0].mxu0
        %v925 = vadd.f32 %v341, %v924
        %v926 = vpop.f32.mrb[0].mxu0
        %v927 = vpop.f32.mrb[0].mxu0
        %v928 = vadd.f32 %v341, %v927
        %v929 = vpop.f32.mrb[0].mxu0
        %930 = vmatprep.mubr.bf16.mxu0 0
        %931 = vmatmul.mubr.bf16.gmra.mrb[0].mxu0 %v685
        %v932 = vpop.f32.mrb[0].mxu0
        %v933 = vadd.f32 %v341, %v932
        %v934 = vpop.f32.mrb[0].mxu0
        %v935 = vpop.f32.mrb[0].mxu0
        %v936 = vadd.f32 %v341, %v935
        %v937 = vpop.f32.mrb[0].mxu0
        %938 = vmatprep.mubr.bf16.mxu0 0
        %939 = vmatmul.mubr.bf16.gmra.mrb[0].mxu0 %v688
        %v940 = vpop.f32.mrb[0].mxu0
        %v941 = vadd.f32 %v341, %v940
        %v942 = vpop.f32.mrb[0].mxu0
        %v943 = vpop.f32.mrb[0].mxu0
        %v944 = vadd.f32 %v341, %v943
        %v945 = vpop.f32.mrb[0].mxu0
        %946 = vmatprep.mubr.bf16.mxu0 0
        %947 = vmatmul.mubr.bf16.gmra.mrb[0].mxu0 %v691
        %v948 = vpop.f32.mrb[0].mxu0
        %v949 = vadd.f32 %v341, %v948
        %v950 = vpop.f32.mrb[0].mxu0
        %v951 = vpop.f32.mrb[0].mxu0
        %v952 = vadd.f32 %v341, %v951
        %v953 = vpop.f32.mrb[0].mxu0
        %954 = vmatprep.mubr.bf16.mxu0 0
        %955 = vmatmul.mubr.bf16.gmra.mrb[0].mxu0 %v694
        %v956 = vpop.f32.mrb[0].mxu0
        %v957 = vadd.f32 %v341, %v956
        %v958 = vpop.f32.mrb[0].mxu0
        %v959 = vpop.f32.mrb[0].mxu0
        %v960 = vadd.f32 %v341, %v959
        %v961 = vpop.f32.mrb[0].mxu0
        %962 = vmatprep.mubr.bf16.mxu0 0
        %963 = vmatmul.mubr.bf16.gmra.mrb[0].mxu0 %v697
        %v964 = vpop.f32.mrb[0].mxu0
        %v965 = vadd.f32 %v341, %v964
        %v966 = vpop.f32.mrb[0].mxu0
        %v967 = vpop.f32.mrb[0].mxu0
        %v968 = vadd.f32 %v341, %v967
        %v969 = vpop.f32.mrb[0].mxu0
        %970 = vmatprep.mubr.bf16.mxu0 0
        %971 = vmatmul.mubr.bf16.gmra.mrb[0].mxu0 %v700
        %v972 = vpop.f32.mrb[0].mxu0
        %v973 = vadd.f32 %v341, %v972
        %v974 = vpop.f32.mrb[0].mxu0
        %v975 = vpop.f32.mrb[0].mxu0
        %v976 = vadd.f32 %v341, %v975
        %v977 = vpop.f32.mrb[0].mxu0
        %978 = vmatprep.mubr.bf16.mxu0 0
        %979 = vmatmul.mubr.bf16.gmra.mrb[0].mxu0 %v703
        %v980 = vpop.f32.mrb[0].mxu0
        %v981 = vadd.f32 %v341, %v980
        %v982 = vpop.f32.mrb[0].mxu0
        %v983 = vpop.f32.mrb[0].mxu0
        %v984 = vadd.f32 %v341, %v983
        %v985 = vpop.f32.mrb[0].mxu0
        %986 = vmatprep.mubr.bf16.mxu0 0
        %987 = vmatmul.mubr.bf16.gmra.mrb[0].mxu0 %v706
        %v988 = vpop.f32.mrb[0].mxu0
        %v989 = vadd.f32 %v341, %v988
        %v990 = vpop.f32.mrb[0].mxu0
        %v991 = vpop.f32.mrb[0].mxu0
        %v992 = vadd.f32 %v341, %v991
        %v993 = vpop.f32.mrb[0].mxu0
        %994 = vmatprep.mubr.bf16.mxu0 0
        %995 = vmatmul.mubr.bf16.gmra.mrb[0].mxu0 %v709
        %v996 = vpop.f32.mrb[0].mxu0
        %v997 = vadd.f32 %v341, %v996
        %v998 = vpop.f32.mrb[0].mxu0
        %v999 = vpop.f32.mrb[0].mxu0
        %v1000 = vadd.f32 %v341, %v999
        %v1001 = vpop.f32.mrb[0].mxu0
        %1002 = vmatprep.mubr.bf16.mxu0 0
        %1003 = vmatmul.mubr.bf16.gmra.mrb[0].mxu0 %v712
        %v1004 = vpop.f32.mrb[0].mxu0
        %v1005 = vadd.f32 %v341, %v1004
        %v1006 = vpop.f32.mrb[0].mxu0
        %v1007 = vpop.f32.mrb[0].mxu0
        %v1008 = vadd.f32 %v341, %v1007
        %v1009 = vpop.f32.mrb[0].mxu0
        %1010 = vmatprep.mubr.bf16.mxu0 0
        %1011 = vmatmul.mubr.bf16.gmra.mrb[0].mxu0 %v715
        %v1012 = vpop.f32.mrb[0].mxu0
        %v1013 = vadd.f32 %v341, %v1012
        %v1014 = vpop.f32.mrb[0].mxu0
        %v1015 = vpop.f32.mrb[0].mxu0
        %v1016 = vadd.f32 %v341, %v1015
        %v1017 = vpop.f32.mrb[0].mxu0
        %1018 = vmatprep.mubr.bf16.mxu0 0
        %1019 = vmatmul.mubr.bf16.gmra.mrb[0].mxu0 %v718
        %v1020 = vpop.f32.mrb[0].mxu0
        %v1021 = vadd.f32 %v341, %v1020
        %v1022 = vpop.f32.mrb[0].mxu0
        %v1023 = vpop.f32.mrb[0].mxu0
        %v1024 = vadd.f32 %v341, %v1023
        %v1025 = vpop.f32.mrb[0].mxu0
        %1026 = vmatprep.mubr.bf16.mxu0 0
        %1027 = vmatmul.mubr.bf16.gmra.mrb[0].mxu0 %v721
        %v1028 = vpop.f32.mrb[0].mxu0
        %v1029 = vadd.f32 %v341, %v1028
        %v1030 = vpop.f32.mrb[0].mxu0
        %v1031 = vpop.f32.mrb[0].mxu0
        %v1032 = vadd.f32 %v341, %v1031
        %v1033 = vpop.f32.mrb[0].mxu0
        %1034 = vmatprep.mubr.bf16.mxu0 0
        %1035 = vmatmul.mubr.bf16.gmra.mrb[0].mxu0 %v724
        %v1036 = vpop.f32.mrb[0].mxu0
        %v1037 = vadd.f32 %v341, %v1036
        %v1038 = vpop.f32.mrb[0].mxu0
        %v1039 = vpop.f32.mrb[0].mxu0
        %v1040 = vadd.f32 %v341, %v1039
        %v1041 = vpop.f32.mrb[0].mxu0
        %1042 = vmatprep.mubr.bf16.mxu0 0
        %1043 = vmatmul.mubr.bf16.gmra.mrb[0].mxu0 %v727
        %v1044 = vpop.f32.mrb[0].mxu0
        %v1045 = vadd.f32 %v341, %v1044
        %v1046 = vpop.f32.mrb[0].mxu0
        %v1047 = vpop.f32.mrb[0].mxu0
        %v1048 = vadd.f32 %v341, %v1047
        %v1049 = vpop.f32.mrb[0].mxu0
        %1050 = vmatprep.mubr.bf16.mxu0 0
        %1051 = vmatmul.mubr.bf16.gmra.mrb[0].mxu0 %v730
        %v1052 = vpop.f32.mrb[0].mxu0
        %v1053 = vadd.f32 %v341, %v1052
        %v1054 = vpop.f32.mrb[0].mxu0
        %v1055 = vpop.f32.mrb[0].mxu0
        %v1056 = vadd.f32 %v341, %v1055
        %v1057 = vpop.f32.mrb[0].mxu0
        %1058 = vmatprep.mubr.bf16.mxu0 0
        %1059 = vmatmul.mubr.bf16.gmra.mrb[0].mxu0 %v733
        %v1060 = vpop.f32.mrb[0].mxu0
        %v1061 = vadd.f32 %v341, %v1060
        %v1062 = vpop.f32.mrb[0].mxu0
        %v1063 = vpop.f32.mrb[0].mxu0
        %v1064 = vadd.f32 %v341, %v1063
        %v1065 = vpop.f32.mrb[0].mxu0
        %1066 = vmatprep.mubr.bf16.mxu0 0
        %1067 = vmatmul.mubr.bf16.gmra.mrb[0].mxu0 %v736
        %v1068 = vpop.f32.mrb[0].mxu0
        %v1069 = vadd.f32 %v341, %v1068
        %v1070 = vpop.f32.mrb[0].mxu0
        %v1071 = vpop.f32.mrb[0].mxu0
        %v1072 = vadd.f32 %v341, %v1071
        %v1073 = vpop.f32.mrb[0].mxu0
        %1074 = vmatprep.mubr.bf16.mxu0 0
        %1075 = vmatmul.mubr.bf16.gmra.mrb[0].mxu0 %v739
        %v1076 = vpop.f32.mrb[0].mxu0
        %v1077 = vadd.f32 %v341, %v1076
        %v1078 = vpop.f32.mrb[0].mxu0
        %v1079 = vpop.f32.mrb[0].mxu0
        %v1080 = vadd.f32 %v341, %v1079
        %v1081 = vpop.f32.mrb[0].mxu0
        %1082 = vmatprep.mubr.bf16.mxu0 0
        %1083 = vmatmul.mubr.bf16.gmra.mrb[0].mxu0 %v742
        %v1084 = vpop.f32.mrb[0].mxu0
        %v1085 = vadd.f32 %v341, %v1084
        %v1086 = vpop.f32.mrb[0].mxu0
        %v1087 = vpop.f32.mrb[0].mxu0
        %v1088 = vadd.f32 %v341, %v1087
        %v1089 = vpop.f32.mrb[0].mxu0
        %1090 = vmatprep.mubr.bf16.mxu0 0
        %1091 = vmatmul.mubr.bf16.gmra.mrb[0].mxu0 %v745
        %v1092 = vpop.f32.mrb[0].mxu0
        %v1093 = vadd.f32 %v341, %v1092
        %v1094 = vpop.f32.mrb[0].mxu0
        %v1095 = vpop.f32.mrb[0].mxu0
        %v1096 = vadd.f32 %v341, %v1095
        %v1097 = vpop.f32.mrb[0].mxu0
        %1098 = vmatprep.mubr.bf16.mxu0 0
        %1099 = vmatmul.mubr.bf16.gmra.mrb[0].mxu0 %v748
        %v1100 = vpop.f32.mrb[0].mxu0
        %v1101 = vadd.f32 %v341, %v1100
        %v1102 = vpop.f32.mrb[0].mxu0
        %v1103 = vpop.f32.mrb[0].mxu0
        %v1104 = vadd.f32 %v341, %v1103
        %v1105 = vpop.f32.mrb[0].mxu0
        %1106 = vmatprep.mubr.bf16.mxu0 0
        %1107 = vmatmul.mubr.bf16.gmra.mrb[0].mxu0 %v751
        %v1108 = vpop.f32.mrb[0].mxu0
        %v1109 = vadd.f32 %v341, %v1108
        %v1110 = vpop.f32.mrb[0].mxu0
        %v1111 = vpop.f32.mrb[0].mxu0
        %v1112 = vadd.f32 %v341, %v1111
        %v1113 = vpop.f32.mrb[0].mxu0
        %1114 = vmatprep.mubr.bf16.mxu0 0
        %1115 = vmatmul.mubr.bf16.gmra.mrb[0].mxu0 %v754
        %v1116 = vpop.f32.mrb[0].mxu0
        %v1117 = vadd.f32 %v341, %v1116
        %v1118 = vpop.f32.mrb[0].mxu0
        %v1119 = vpop.f32.mrb[0].mxu0
        %v1120 = vadd.f32 %v341, %v1119
        %v1121 = vpop.f32.mrb[0].mxu0
        %1122 = vmatprep.mubr.bf16.mxu0 0
        %1123 = vmatmul.mubr.bf16.gmra.mrb[0].mxu0 %v757
        %v1124 = vpop.f32.mrb[0].mxu0
        %v1125 = vadd.f32 %v341, %v1124
        %v1126 = vpop.f32.mrb[0].mxu0
        %v1127 = vpop.f32.mrb[0].mxu0
        %v1128 = vadd.f32 %v341, %v1127
        %v1129 = vpop.f32.mrb[0].mxu0
        %1130 = vmatprep.mubr.bf16.mxu0 0
        %1131 = vmatmul.mubr.bf16.gmra.mrb[0].mxu0 %v760
        %v1132 = vpop.f32.mrb[0].mxu0
        %v1133 = vadd.f32 %v341, %v1132
        %v1134 = vpop.f32.mrb[0].mxu0
        %v1135 = vpop.f32.mrb[0].mxu0
        %v1136 = vadd.f32 %v341, %v1135
        %v1137 = vpop.f32.mrb[0].mxu0
        %1138 = vmatprep.mubr.bf16.mxu0 0
        %1139 = vmatmul.mubr.bf16.gmra.mrb[0].mxu0 %v763
        %v1140 = vpop.f32.mrb[0].mxu0
        %v1141 = vadd.f32 %v341, %v1140
        %v1142 = vpop.f32.mrb[0].mxu0
        %v1143 = vpop.f32.mrb[0].mxu0
        %v1144 = vadd.f32 %v341, %v1143
        %v1145 = vpop.f32.mrb[0].mxu0
        %1146 = vmatprep.mubr.bf16.mxu0 0
        %1147 = vmatmul.mubr.bf16.gmra.mrb[0].mxu0 %v766
        %v1148 = vpop.f32.mrb[0].mxu0
        %v1149 = vadd.f32 %v341, %v1148
        %v1150 = vpop.f32.mrb[0].mxu0
        %v1151 = vpop.f32.mrb[0].mxu0
        %v1152 = vadd.f32 %v341, %v1151
        %v1153 = vpop.f32.mrb[0].mxu0
        %1154 = vmatprep.mubr.bf16.mxu0 0
        %1155 = vmatmul.mubr.bf16.gmra.mrb[0].mxu0 %v769
        %v1156 = vpop.f32.mrb[0].mxu0
        %v1157 = vadd.f32 %v341, %v1156
        %v1158 = vpop.f32.mrb[0].mxu0
        %v1159 = vpop.f32.mrb[0].mxu0
        %v1160 = vadd.f32 %v341, %v1159
        %v1161 = vpop.f32.mrb[0].mxu0
        %1162 = vmatprep.mubr.bf16.mxu0 0
        %1163 = vmatmul.mubr.bf16.gmra.mrb[0].mxu0 %v772
        %v1164 = vpop.f32.mrb[0].mxu0
        %v1165 = vadd.f32 %v341, %v1164
        %v1166 = vpop.f32.mrb[0].mxu0
        %v1167 = vpop.f32.mrb[0].mxu0
        %v1168 = vadd.f32 %v341, %v1167
        %v1169 = vpop.f32.mrb[0].mxu0
        %1170 = vmatprep.mubr.bf16.mxu0 0
        %1171 = vmatmul.mubr.bf16.gmra.mrb[0].mxu0 %v775
        %v1172 = vpop.f32.mrb[0].mxu0
        %v1173 = vadd.f32 %v341, %v1172
        %v1174 = vpop.f32.mrb[0].mxu0
        %v1175 = vpop.f32.mrb[0].mxu0
        %v1176 = vadd.f32 %v341, %v1175
        %v1177 = vpop.f32.mrb[0].mxu0
        %1178 = vmatprep.mubr.bf16.mxu0 0
        %1179 = vmatmul.mubr.bf16.gmra.mrb[0].mxu0 %v778
        %v1180 = vpop.f32.mrb[0].mxu0
        %v1181 = vadd.f32 %v341, %v1180
        %v1182 = vpop.f32.mrb[0].mxu0
        %v1183 = vpop.f32.mrb[0].mxu0
        %v1184 = vadd.f32 %v341, %v1183
        %v1185 = vpop.f32.mrb[0].mxu0
        %1186 = vmatprep.mubr.bf16.mxu0 0
        %1187 = vmatmul.mubr.bf16.gmra.mrb[0].mxu0 %v781
        %v1188 = vpop.f32.mrb[0].mxu0
        %v1189 = vadd.f32 %v341, %v1188
        %v1190 = vpop.f32.mrb[0].mxu0
        %v1191 = vpop.f32.mrb[0].mxu0
        %v1192 = vadd.f32 %v341, %v1191
        %v1193 = vpop.f32.mrb[0].mxu0
        %1194 = vmatprep.mubr.bf16.mxu0 0
        %1195 = vmatmul.mubr.bf16.gmra.mrb[0].mxu0 %v784
        %v1196 = vpop.f32.mrb[0].mxu0
        %v1197 = vadd.f32 %v341, %v1196
        %v1198 = vpop.f32.mrb[0].mxu0
        %v1199 = vpop.f32.mrb[0].mxu0
        %v1200 = vadd.f32 %v341, %v1199
        %v1201 = vpop.f32.mrb[0].mxu0
        %1202 = vmatprep.mubr.bf16.mxu0 0
        %1203 = vmatmul.mubr.bf16.gmra.mrb[0].mxu0 %v787
        %v1204 = vpop.f32.mrb[0].mxu0
        %v1205 = vadd.f32 %v341, %v1204
        %v1206 = vpop.f32.mrb[0].mxu0
        %v1207 = vpop.f32.mrb[0].mxu0
        %v1208 = vadd.f32 %v341, %v1207
        %v1209 = vpop.f32.mrb[0].mxu0
        %1210 = vmatprep.mubr.bf16.mxu0 0
        %1211 = vmatmul.mubr.bf16.gmra.mrb[0].mxu0 %v790
        %v1212 = vpop.f32.mrb[0].mxu0
        %v1213 = vadd.f32 %v341, %v1212
        %v1214 = vpop.f32.mrb[0].mxu0
        %v1215 = vpop.f32.mrb[0].mxu0
        %v1216 = vadd.f32 %v341, %v1215
        %v1217 = vpop.f32.mrb[0].mxu0
        %1218 = vmatprep.mubr.bf16.mxu0 0
        %1219 = vmatmul.mubr.bf16.gmra.mrb[0].mxu0 %v793
        %v1220 = vpop.f32.mrb[0].mxu0
        %v1221 = vadd.f32 %v341, %v1220
        %v1222 = vpop.f32.mrb[0].mxu0
        %v1223 = vpop.f32.mrb[0].mxu0
        %v1224 = vadd.f32 %v341, %v1223
        %v1225 = vpop.f32.mrb[0].mxu0
        %1226 = vmatprep.mubr.bf16.mxu0 0
        %1227 = vmatmul.mubr.bf16.gmra.mrb[0].mxu0 %v796
        %v1228 = vpop.f32.mrb[0].mxu0
        %v1229 = vadd.f32 %v341, %v1228
        %v1230 = vpop.f32.mrb[0].mxu0
        %v1231 = vpop.f32.mrb[0].mxu0
        %v1232 = vadd.f32 %v341, %v1231
        %v1233 = vpop.f32.mrb[0].mxu0
        %1234 = vmatprep.mubr.bf16.mxu0 0
        %1235 = vmatmul.mubr.bf16.gmra.mrb[0].mxu0 %v799
        %v1236 = vpop.f32.mrb[0].mxu0
        %v1237 = vadd.f32 %v341, %v1236
        %v1238 = vpop.f32.mrb[0].mxu0
        %v1239 = vpop.f32.mrb[0].mxu0
        %v1240 = vadd.f32 %v341, %v1239
        %v1241 = vpop.f32.mrb[0].mxu0
        %1242 = vmatprep.mubr.bf16.mxu0 0
        %1243 = vmatmul.mubr.bf16.gmra.mrb[0].mxu0 %v802
        %v1244 = vpop.f32.mrb[0].mxu0
        %v1245 = vadd.f32 %v341, %v1244
        %v1246 = vpop.f32.mrb[0].mxu0
        %v1247 = vpop.f32.mrb[0].mxu0
        %v1248 = vadd.f32 %v341, %v1247
        %v1249 = vpop.f32.mrb[0].mxu0
        %1250 = vmatprep.mubr.bf16.mxu0 0
        %1251 = vmatmul.mubr.bf16.gmra.mrb[0].mxu0 %v805
        %v1252 = vpop.f32.mrb[0].mxu0
        %v1253 = vadd.f32 %v341, %v1252
        %v1254 = vpop.f32.mrb[0].mxu0
        %v1255 = vpop.f32.mrb[0].mxu0
        %v1256 = vadd.f32 %v341, %v1255
        %v1257 = vpop.f32.mrb[0].mxu0
        %1258 = vmatprep.mubr.bf16.mxu0 0
        %1259 = vmatmul.mubr.bf16.gmra.mrb[0].mxu0 %v808
        %v1260 = vpop.f32.mrb[0].mxu0
        %v1261 = vadd.f32 %v341, %v1260
        %v1262 = vpop.f32.mrb[0].mxu0
        %v1263 = vpop.f32.mrb[0].mxu0
        %v1264 = vadd.f32 %v341, %v1263
        %v1265 = vpop.f32.mrb[0].mxu0
        %1266 = vmatprep.mubr.bf16.mxu0 0
        %1267 = vmatmul.mubr.bf16.gmra.mrb[0].mxu0 %v811
        %v1268 = vpop.f32.mrb[0].mxu0
        %v1269 = vadd.f32 %v341, %v1268
        %v1270 = vpop.f32.mrb[0].mxu0
        %v1271 = vpop.f32.mrb[0].mxu0
        %v1272 = vadd.f32 %v341, %v1271
        %v1273 = vpop.f32.mrb[0].mxu0
        %1274 = vmatprep.mubr.bf16.mxu0 0
        %1275 = vmatmul.mubr.bf16.gmra.mrb[0].mxu0 %v814
        %v1276 = vpop.f32.mrb[0].mxu0
        %v1277 = vadd.f32 %v341, %v1276
        %v1278 = vpop.f32.mrb[0].mxu0
        %v1279 = vpop.f32.mrb[0].mxu0
        %v1280 = vadd.f32 %v341, %v1279
        %v1281 = vpop.f32.mrb[0].mxu0
        %1282 = vmatprep.mubr.bf16.mxu0 0
        %1283 = vmatmul.mubr.bf16.gmra.mrb[0].mxu0 %v817
        %v1284 = vpop.f32.mrb[0].mxu0
        %v1285 = vadd.f32 %v341, %v1284
        %v1286 = vpop.f32.mrb[0].mxu0
        %v1287 = vpop.f32.mrb[0].mxu0
        %v1288 = vadd.f32 %v341, %v1287
        %v1289 = vpop.f32.mrb[0].mxu0
        %1290 = vmatprep.mubr.bf16.mxu0 0
        %1291 = vmatmul.mubr.bf16.gmra.mrb[0].mxu0 %v820
        %v1292 = vpop.f32.mrb[0].mxu0
        %v1293 = vadd.f32 %v341, %v1292
        %v1294 = vpop.f32.mrb[0].mxu0
        %v1295 = vpop.f32.mrb[0].mxu0
        %v1296 = vadd.f32 %v341, %v1295
        %v1297 = vpop.f32.mrb[0].mxu0
        %1298 = vmatprep.mubr.bf16.mxu0 0
        %1299 = vmatmul.mubr.bf16.gmra.mrb[0].mxu0 %v823
        %v1300 = vpop.f32.mrb[0].mxu0
        %v1301 = vadd.f32 %v341, %v1300
        %v1302 = vpop.f32.mrb[0].mxu0
        %v1303 = vpop.f32.mrb[0].mxu0
        %v1304 = vadd.f32 %v341, %v1303
        %v1305 = vpop.f32.mrb[0].mxu0
        %1306 = vmatprep.mubr.bf16.mxu0 0
        %1307 = vmatmul.mubr.bf16.gmra.mrb[0].mxu0 %v826
        %v1308 = vpop.f32.mrb[0].mxu0
        %v1309 = vadd.f32 %v341, %v1308
        %v1310 = vpop.f32.mrb[0].mxu0
        %v1311 = vpop.f32.mrb[0].mxu0
        %v1312 = vadd.f32 %v341, %v1311
        %v1313 = vpop.f32.mrb[0].mxu0
        %1314 = vmatprep.mubr.bf16.mxu0 0
        %1315 = vmatmul.mubr.bf16.gmra.mrb[0].mxu0 %v829
        %v1316 = vpop.f32.mrb[0].mxu0
        %v1317 = vadd.f32 %v341, %v1316
        %v1318 = vpop.f32.mrb[0].mxu0
        %v1319 = vpop.f32.mrb[0].mxu0
        %v1320 = vadd.f32 %v341, %v1319
        %v1321 = vpop.f32.mrb[0].mxu0
        %1322 = vmatprep.mubr.bf16.mxu0 0
        %1323 = vmatmul.mubr.bf16.gmra.mrb[0].mxu0 %v832
        %v1324 = vpop.f32.mrb[0].mxu0
        %v1325 = vadd.f32 %v341, %v1324
        %v1326 = vpop.f32.mrb[0].mxu0
        %v1327 = vpop.f32.mrb[0].mxu0
        %v1328 = vadd.f32 %v341, %v1327
        %v1329 = vpop.f32.mrb[0].mxu0
        %1330 = vmatprep.mubr.bf16.mxu0 0
        %1331 = vmatmul.mubr.bf16.gmra.mrb[0].mxu0 %v835
        %v1332 = vpop.f32.mrb[0].mxu0
        %v1333 = vadd.f32 %v341, %v1332
        %v1334 = vpop.f32.mrb[0].mxu0
        %v1335 = vpop.f32.mrb[0].mxu0
        %v1336 = vadd.f32 %v341, %v1335
        %v1337 = vpop.f32.mrb[0].mxu0
        %1338 = vmatprep.mubr.bf16.mxu0 0
        %1339 = vmatmul.mubr.bf16.gmra.mrb[0].mxu0 %v838
        %v1340 = vpop.f32.mrb[0].mxu0
        %v1341 = vadd.f32 %v341, %v1340
        %v1342 = vpop.f32.mrb[0].mxu0
        %v1343 = vpop.f32.mrb[0].mxu0
        %v1344 = vadd.f32 %v341, %v1343
        %v1345 = vpop.f32.mrb[0].mxu0
        %1346 = vmatprep.mubr.bf16.mxu0 0
        %1347 = vmatmul.mubr.bf16.gmra.mrb[0].mxu0 %v841
        %v1348 = vpop.f32.mrb[0].mxu0
        %v1349 = vadd.f32 %v341, %v1348
        %v1350 = vpop.f32.mrb[0].mxu0
        %v1351 = vpop.f32.mrb[0].mxu0
        %v1352 = vadd.f32 %v341, %v1351
        %v1353 = vpop.f32.mrb[0].mxu0
        %1354 = vmatprep.mubr.bf16.mxu0 0
        %1355 = vmatmul.mubr.bf16.gmra.mrb[0].mxu0 %v844
        %v1356 = vpop.f32.mrb[0].mxu0
        %v1357 = vadd.f32 %v341, %v1356
        %v1358 = vpop.f32.mrb[0].mxu0
        %v1359 = vpop.f32.mrb[0].mxu0
        %v1360 = vadd.f32 %v341, %v1359
        %v1361 = vpop.f32.mrb[0].mxu0
        %1362 = vmatprep.mubr.bf16.mxu0 0
        %1363 = vmatmul.mubr.bf16.gmra.mrb[0].mxu0 %v847
        %v1364 = vpop.f32.mrb[0].mxu0
        %v1365 = vadd.f32 %v341, %v1364
        %v1366 = vpop.f32.mrb[0].mxu0
        %v1367 = vpop.f32.mrb[0].mxu0
        %v1368 = vadd.f32 %v341, %v1367
        %v1369 = vpop.f32.mrb[0].mxu0
        %1370 = vmatprep.mubr.bf16.mxu0 0
        %1371 = vmatmul.mubr.bf16.gmra.mrb[0].mxu0 %v850
        %v1372 = vpop.f32.mrb[0].mxu0
        %v1373 = vadd.f32 %v341, %v1372
        %v1374 = vpop.f32.mrb[0].mxu0
        %v1375 = vpop.f32.mrb[0].mxu0
        %v1376 = vadd.f32 %v341, %v1375
        %v1377 = vpop.f32.mrb[0].mxu0
        %1378 = vmatprep.mubr.bf16.mxu0 0
        %1379 = vmatmul.mubr.bf16.gmra.mrb[0].mxu0 %v853
        %v1380 = vpop.f32.mrb[0].mxu0
        %v1381 = vadd.f32 %v341, %v1380
        %v1382 = vpop.f32.mrb[0].mxu0
        %v1383 = vpop.f32.mrb[0].mxu0
        %v1384 = vadd.f32 %v341, %v1383
        %v1385 = vpop.f32.mrb[0].mxu0
        %1386 = vmatprep.mubr.bf16.mxu0 0
        %1387 = vmatmul.mubr.bf16.gmra.mrb[0].mxu0 %v856
        %v1388 = vpop.f32.mrb[0].mxu0
        %v1389 = vadd.f32 %v341, %v1388
        %v1390 = vpop.f32.mrb[0].mxu0
        %v1391 = vpop.f32.mrb[0].mxu0
        %v1392 = vadd.f32 %v341, %v1391
        %v1393 = vpop.f32.mrb[0].mxu0
        %1394 = vmatprep.mubr.bf16.mxu0 0
        %1395 = vmatmul.mubr.bf16.gmra.mrb[0].mxu0 %v859
        %v1396 = vpop.f32.mrb[0].mxu0
        %v1397 = vadd.f32 %v341, %v1396
        %v1398 = vpop.f32.mrb[0].mxu0
        %v1399 = vpop.f32.mrb[0].mxu0
        %v1400 = vadd.f32 %v341, %v1399
        %v1401 = vpop.f32.mrb[0].mxu0
        %1402 = vmatprep.mubr.bf16.mxu0 0
        %1403 = vmatmul.mubr.bf16.gmra.mrb[0].mxu0 %v862
        %v1404 = vpop.f32.mrb[0].mxu0
        %v1405 = vadd.f32 %v341, %v1404
        %v1406 = vpop.f32.mrb[0].mxu0
        %v1407 = vpop.f32.mrb[0].mxu0
        %v1408 = vadd.f32 %v341, %v1407
        %v1409 = vpop.f32.mrb[0].mxu0
        %1410 = vmatprep.mubr.bf16.mxu0 0
        %1411 = vmatmul.mubr.bf16.gmra.mrb[0].mxu0 %v865
        %v1412 = vpop.f32.mrb[0].mxu0
        %v1413 = vadd.f32 %v341, %v1412
        %v1414 = vpop.f32.mrb[0].mxu0
        %v1415 = vpop.f32.mrb[0].mxu0
        %v1416 = vadd.f32 %v341, %v1415
        %v1417 = vpop.f32.mrb[0].mxu0
        %1418 = vdwg.mxu0
        %v1419 = vmax.f32 %v909, 0.0
        %v1420 = vmax.f32 %v912, 0.0
        %v1421 = vmax.f32 %v917, 0.0
        %v1422 = vmax.f32 %v920, 0.0
        %v1423 = vmax.f32 %v925, 0.0
        %v1424 = vmax.f32 %v928, 0.0
        %v1425 = vmax.f32 %v933, 0.0
        %v1426 = vmax.f32 %v936, 0.0
        %v1427 = vmax.f32 %v941, 0.0
        %v1428 = vmax.f32 %v944, 0.0
        %v1429 = vmax.f32 %v949, 0.0
        %v1430 = vmax.f32 %v952, 0.0
        %v1431 = vmax.f32 %v957, 0.0
        %v1432 = vmax.f32 %v960, 0.0
        %v1433 = vmax.f32 %v965, 0.0
        %v1434 = vmax.f32 %v968, 0.0
        %v1435 = vmax.f32 %v973, 0.0
        %v1436 = vmax.f32 %v976, 0.0
        %v1437 = vmax.f32 %v981, 0.0
        %v1438 = vmax.f32 %v984, 0.0
        %v1439 = vmax.f32 %v989, 0.0
        %v1440 = vmax.f32 %v992, 0.0
        %v1441 = vmax.f32 %v997, 0.0
        %v1442 = vmax.f32 %v1000, 0.0
        %v1443 = vmax.f32 %v1005, 0.0
        %v1444 = vmax.f32 %v1008, 0.0
        %v1445 = vmax.f32 %v1013, 0.0
        %v1446 = vmax.f32 %v1016, 0.0
        %v1447 = vmax.f32 %v1021, 0.0
        %v1448 = vmax.f32 %v1024, 0.0
        %v1449 = vmax.f32 %v1029, 0.0
        %v1450 = vmax.f32 %v1032, 0.0
        %v1451 = vmax.f32 %v1037, 0.0
        %v1452 = vmax.f32 %v1040, 0.0
        %v1453 = vmax.f32 %v1045, 0.0
        %v1454 = vmax.f32 %v1048, 0.0
        %v1455 = vmax.f32 %v1053, 0.0
        %v1456 = vmax.f32 %v1056, 0.0
        %v1457 = vmax.f32 %v1061, 0.0
        %v1458 = vmax.f32 %v1064, 0.0
        %v1459 = vmax.f32 %v1069, 0.0
        %v1460 = vmax.f32 %v1072, 0.0
        %v1461 = vmax.f32 %v1077, 0.0
        %v1462 = vmax.f32 %v1080, 0.0
        %v1463 = vmax.f32 %v1085, 0.0
        %v1464 = vmax.f32 %v1088, 0.0
        %v1465 = vmax.f32 %v1093, 0.0
        %v1466 = vmax.f32 %v1096, 0.0
        %v1467 = vmax.f32 %v1101, 0.0
        %v1468 = vmax.f32 %v1104, 0.0
        %v1469 = vmax.f32 %v1109, 0.0
        %v1470 = vmax.f32 %v1112, 0.0
        %v1471 = vmax.f32 %v1117, 0.0
        %v1472 = vmax.f32 %v1120, 0.0
        %v1473 = vmax.f32 %v1125, 0.0
        %v1474 = vmax.f32 %v1128, 0.0
        %v1475 = vmax.f32 %v1133, 0.0
        %v1476 = vmax.f32 %v1136, 0.0
        %v1477 = vmax.f32 %v1141, 0.0
        %v1478 = vmax.f32 %v1144, 0.0
        %v1479 = vmax.f32 %v1149, 0.0
        %v1480 = vmax.f32 %v1152, 0.0
        %v1481 = vmax.f32 %v1157, 0.0
        %v1482 = vmax.f32 %v1160, 0.0
        %v1483 = vmax.f32 %v1165, 0.0
        %v1484 = vmax.f32 %v1168, 0.0
        %v1485 = vmax.f32 %v1173, 0.0
        %v1486 = vmax.f32 %v1176, 0.0
        %v1487 = vmax.f32 %v1181, 0.0
        %v1488 = vmax.f32 %v1184, 0.0
        %v1489 = vmax.f32 %v1189, 0.0
        %v1490 = vmax.f32 %v1192, 0.0
        %v1491 = vmax.f32 %v1197, 0.0
        %v1492 = vmax.f32 %v1200, 0.0
        %v1493 = vmax.f32 %v1205, 0.0
        %v1494 = vmax.f32 %v1208, 0.0
        %v1495 = vmax.f32 %v1213, 0.0
        %v1496 = vmax.f32 %v1216, 0.0
        %v1497 = vmax.f32 %v1221, 0.0
        %v1498 = vmax.f32 %v1224, 0.0
        %v1499 = vmax.f32 %v1229, 0.0
        %v1500 = vmax.f32 %v1232, 0.0
        %v1501 = vmax.f32 %v1237, 0.0
        %v1502 = vmax.f32 %v1240, 0.0
        %v1503 = vmax.f32 %v1245, 0.0
        %v1504 = vmax.f32 %v1248, 0.0
        %v1505 = vmax.f32 %v1253, 0.0
        %v1506 = vmax.f32 %v1256, 0.0
        %v1507 = vmax.f32 %v1261, 0.0
        %v1508 = vmax.f32 %v1264, 0.0
        %v1509 = vmax.f32 %v1269, 0.0
        %v1510 = vmax.f32 %v1272, 0.0
        %v1511 = vmax.f32 %v1277, 0.0
        %v1512 = vmax.f32 %v1280, 0.0
        %v1513 = vmax.f32 %v1285, 0.0
        %v1514 = vmax.f32 %v1288, 0.0
        %v1515 = vmax.f32 %v1293, 0.0
        %v1516 = vmax.f32 %v1296, 0.0
        %v1517 = vmax.f32 %v1301, 0.0
        %v1518 = vmax.f32 %v1304, 0.0
        %v1519 = vmax.f32 %v1309, 0.0
        %v1520 = vmax.f32 %v1312, 0.0
        %v1521 = vmax.f32 %v1317, 0.0
        %v1522 = vmax.f32 %v1320, 0.0
        %v1523 = vmax.f32 %v1325, 0.0
        %v1524 = vmax.f32 %v1328, 0.0
        %v1525 = vmax.f32 %v1333, 0.0
        %v1526 = vmax.f32 %v1336, 0.0
        %v1527 = vmax.f32 %v1341, 0.0
        %v1528 = vmax.f32 %v1344, 0.0
        %v1529 = vmax.f32 %v1349, 0.0
        %v1530 = vmax.f32 %v1352, 0.0
        %v1531 = vmax.f32 %v1357, 0.0
        %v1532 = vmax.f32 %v1360, 0.0
        %v1533 = vmax.f32 %v1365, 0.0
        %v1534 = vmax.f32 %v1368, 0.0
        %v1535 = vmax.f32 %v1373, 0.0
        %v1536 = vmax.f32 %v1376, 0.0
        %v1537 = vmax.f32 %v1381, 0.0
        %v1538 = vmax.f32 %v1384, 0.0
        %v1539 = vmax.f32 %v1389, 0.0
        %v1540 = vmax.f32 %v1392, 0.0
        %v1541 = vmax.f32 %v1397, 0.0
        %v1542 = vmax.f32 %v1400, 0.0
        %v1543 = vmax.f32 %v1405, 0.0
        %v1544 = vmax.f32 %v1408, 0.0
        %v1545 = vmax.f32 %v1413, 0.0
        %v1546 = vmax.f32 %v1416, 0.0
        %v1675 = vcombine.high %v1419, %v1419
        %v1677 = vunpack.c.l.s4 1983009808
        %v1678 = vunpack.c.0.s8 %v1677
        %v1679 = vlaneseq
        %v1680 = vshrl.u32 %v1679, 7
        %v1681 = vsub.s32 %v1678, %v1680
        %v1682 = vrot.slane %v1419, %v1681
        %v1684 = vunpack.c.l.s4 1983009808
        %v1685 = vunpack.c.0.s8 %v1684
        %v1686 = vlaneseq
        %v1687 = vshrl.u32 %v1686, 7
        %v1688 = vsub.s32 %v1685, %v1687
        %v1689 = vrot.slane %v1675, %v1688
        %v1690 = vcombine.high %v1682, %v1682
        %v1691 = vcombine.high %v1689, %v1689
        %v1692 = vcombine.high %v1420, %v1420
        %v1694 = vunpack.c.l.s4 1983009808
        %v1695 = vunpack.c.0.s8 %v1694
        %v1696 = vlaneseq
        %v1697 = vshrl.u32 %v1696, 7
        %v1698 = vsub.s32 %v1695, %v1697
        %v1699 = vrot.slane %v1420, %v1698
        %v1701 = vunpack.c.l.s4 1983009808
        %v1702 = vunpack.c.0.s8 %v1701
        %v1703 = vlaneseq
        %v1704 = vshrl.u32 %v1703, 7
        %v1705 = vsub.s32 %v1702, %v1704
        %v1706 = vrot.slane %v1692, %v1705
        %v1707 = vcombine.high %v1699, %v1699
        %v1708 = vcombine.high %v1706, %v1706
        %v1709 = vcombine.high %v1421, %v1421
        %v1711 = vunpack.c.l.s4 1983009808
        %v1712 = vunpack.c.0.s8 %v1711
        %v1713 = vlaneseq
        %v1714 = vshrl.u32 %v1713, 7
        %v1715 = vsub.s32 %v1712, %v1714
        %v1716 = vrot.slane %v1421, %v1715
        %v1718 = vunpack.c.l.s4 1983009808
        %v1719 = vunpack.c.0.s8 %v1718
        %v1720 = vlaneseq
        %v1721 = vshrl.u32 %v1720, 7
        %v1722 = vsub.s32 %v1719, %v1721
        %v1723 = vrot.slane %v1709, %v1722
        %v1724 = vcombine.high %v1716, %v1716
        %v1725 = vcombine.high %v1723, %v1723
        %v1726 = vcombine.high %v1422, %v1422
        %v1728 = vunpack.c.l.s4 1983009808
        %v1729 = vunpack.c.0.s8 %v1728
        %v1730 = vlaneseq
        %v1731 = vshrl.u32 %v1730, 7
        %v1732 = vsub.s32 %v1729, %v1731
        %v1733 = vrot.slane %v1422, %v1732
        %v1735 = vunpack.c.l.s4 1983009808
        %v1736 = vunpack.c.0.s8 %v1735
        %v1737 = vlaneseq
        %v1738 = vshrl.u32 %v1737, 7
        %v1739 = vsub.s32 %v1736, %v1738
        %v1740 = vrot.slane %v1726, %v1739
        %v1741 = vcombine.high %v1733, %v1733
        %v1742 = vcombine.high %v1740, %v1740
        %v1743 = vcombine.high %v1423, %v1423
        %v1745 = vunpack.c.l.s4 1983009808
        %v1746 = vunpack.c.0.s8 %v1745
        %v1747 = vlaneseq
        %v1748 = vshrl.u32 %v1747, 7
        %v1749 = vsub.s32 %v1746, %v1748
        %v1750 = vrot.slane %v1423, %v1749
        %v1752 = vunpack.c.l.s4 1983009808
        %v1753 = vunpack.c.0.s8 %v1752
        %v1754 = vlaneseq
        %v1755 = vshrl.u32 %v1754, 7
        %v1756 = vsub.s32 %v1753, %v1755
        %v1757 = vrot.slane %v1743, %v1756
        %v1758 = vcombine.high %v1750, %v1750
        %v1759 = vcombine.high %v1757, %v1757
        %v1760 = vcombine.high %v1424, %v1424
        %v1762 = vunpack.c.l.s4 1983009808
        %v1763 = vunpack.c.0.s8 %v1762
        %v1764 = vlaneseq
        %v1765 = vshrl.u32 %v1764, 7
        %v1766 = vsub.s32 %v1763, %v1765
        %v1767 = vrot.slane %v1424, %v1766
        %v1769 = vunpack.c.l.s4 1983009808
        %v1770 = vunpack.c.0.s8 %v1769
        %v1771 = vlaneseq
        %v1772 = vshrl.u32 %v1771, 7
        %v1773 = vsub.s32 %v1770, %v1772
        %v1774 = vrot.slane %v1760, %v1773
        %v1775 = vcombine.high %v1767, %v1767
        %v1776 = vcombine.high %v1774, %v1774
        %v1777 = vcombine.high %v1425, %v1425
        %v1779 = vunpack.c.l.s4 1983009808
        %v1780 = vunpack.c.0.s8 %v1779
        %v1781 = vlaneseq
        %v1782 = vshrl.u32 %v1781, 7
        %v1783 = vsub.s32 %v1780, %v1782
        %v1784 = vrot.slane %v1425, %v1783
        %v1786 = vunpack.c.l.s4 1983009808
        %v1787 = vunpack.c.0.s8 %v1786
        %v1788 = vlaneseq
        %v1789 = vshrl.u32 %v1788, 7
        %v1790 = vsub.s32 %v1787, %v1789
        %v1791 = vrot.slane %v1777, %v1790
        %v1792 = vcombine.high %v1784, %v1784
        %v1793 = vcombine.high %v1791, %v1791
        %v1794 = vcombine.high %v1426, %v1426
        %v1796 = vunpack.c.l.s4 1983009808
        %v1797 = vunpack.c.0.s8 %v1796
        %v1798 = vlaneseq
        %v1799 = vshrl.u32 %v1798, 7
        %v1800 = vsub.s32 %v1797, %v1799
        %v1801 = vrot.slane %v1426, %v1800
        %v1803 = vunpack.c.l.s4 1983009808
        %v1804 = vunpack.c.0.s8 %v1803
        %v1805 = vlaneseq
        %v1806 = vshrl.u32 %v1805, 7
        %v1807 = vsub.s32 %v1804, %v1806
        %v1808 = vrot.slane %v1794, %v1807
        %v1809 = vcombine.high %v1801, %v1801
        %v1810 = vcombine.high %v1808, %v1808
        %v1811 = vcombine.high %v1427, %v1427
        %v1813 = vunpack.c.l.s4 1983009808
        %v1814 = vunpack.c.0.s8 %v1813
        %v1815 = vlaneseq
        %v1816 = vshrl.u32 %v1815, 7
        %v1817 = vsub.s32 %v1814, %v1816
        %v1818 = vrot.slane %v1427, %v1817
        %v1820 = vunpack.c.l.s4 1983009808
        %v1821 = vunpack.c.0.s8 %v1820
        %v1822 = vlaneseq
        %v1823 = vshrl.u32 %v1822, 7
        %v1824 = vsub.s32 %v1821, %v1823
        %v1825 = vrot.slane %v1811, %v1824
        %v1826 = vcombine.high %v1818, %v1818
        %v1827 = vcombine.high %v1825, %v1825
        %v1828 = vcombine.high %v1428, %v1428
        %v1830 = vunpack.c.l.s4 1983009808
        %v1831 = vunpack.c.0.s8 %v1830
        %v1832 = vlaneseq
        %v1833 = vshrl.u32 %v1832, 7
        %v1834 = vsub.s32 %v1831, %v1833
        %v1835 = vrot.slane %v1428, %v1834
        %v1837 = vunpack.c.l.s4 1983009808
        %v1838 = vunpack.c.0.s8 %v1837
        %v1839 = vlaneseq
        %v1840 = vshrl.u32 %v1839, 7
        %v1841 = vsub.s32 %v1838, %v1840
        %v1842 = vrot.slane %v1828, %v1841
        %v1843 = vcombine.high %v1835, %v1835
        %v1844 = vcombine.high %v1842, %v1842
        %v1845 = vcombine.high %v1429, %v1429
        %v1847 = vunpack.c.l.s4 1983009808
        %v1848 = vunpack.c.0.s8 %v1847
        %v1849 = vlaneseq
        %v1850 = vshrl.u32 %v1849, 7
        %v1851 = vsub.s32 %v1848, %v1850
        %v1852 = vrot.slane %v1429, %v1851
        %v1854 = vunpack.c.l.s4 1983009808
        %v1855 = vunpack.c.0.s8 %v1854
        %v1856 = vlaneseq
        %v1857 = vshrl.u32 %v1856, 7
        %v1858 = vsub.s32 %v1855, %v1857
        %v1859 = vrot.slane %v1845, %v1858
        %v1860 = vcombine.high %v1852, %v1852
        %v1861 = vcombine.high %v1859, %v1859
        %v1862 = vcombine.high %v1430, %v1430
        %v1864 = vunpack.c.l.s4 1983009808
        %v1865 = vunpack.c.0.s8 %v1864
        %v1866 = vlaneseq
        %v1867 = vshrl.u32 %v1866, 7
        %v1868 = vsub.s32 %v1865, %v1867
        %v1869 = vrot.slane %v1430, %v1868
        %v1871 = vunpack.c.l.s4 1983009808
        %v1872 = vunpack.c.0.s8 %v1871
        %v1873 = vlaneseq
        %v1874 = vshrl.u32 %v1873, 7
        %v1875 = vsub.s32 %v1872, %v1874
        %v1876 = vrot.slane %v1862, %v1875
        %v1877 = vcombine.high %v1869, %v1869
        %v1878 = vcombine.high %v1876, %v1876
        %v1879 = vcombine.high %v1431, %v1431
        %v1881 = vunpack.c.l.s4 1983009808
        %v1882 = vunpack.c.0.s8 %v1881
        %v1883 = vlaneseq
        %v1884 = vshrl.u32 %v1883, 7
        %v1885 = vsub.s32 %v1882, %v1884
        %v1886 = vrot.slane %v1431, %v1885
        %v1888 = vunpack.c.l.s4 1983009808
        %v1889 = vunpack.c.0.s8 %v1888
        %v1890 = vlaneseq
        %v1891 = vshrl.u32 %v1890, 7
        %v1892 = vsub.s32 %v1889, %v1891
        %v1893 = vrot.slane %v1879, %v1892
        %v1894 = vcombine.high %v1886, %v1886
        %v1895 = vcombine.high %v1893, %v1893
        %v1896 = vcombine.high %v1432, %v1432
        %v1898 = vunpack.c.l.s4 1983009808
        %v1899 = vunpack.c.0.s8 %v1898
        %v1900 = vlaneseq
        %v1901 = vshrl.u32 %v1900, 7
        %v1902 = vsub.s32 %v1899, %v1901
        %v1903 = vrot.slane %v1432, %v1902
        %v1905 = vunpack.c.l.s4 1983009808
        %v1906 = vunpack.c.0.s8 %v1905
        %v1907 = vlaneseq
        %v1908 = vshrl.u32 %v1907, 7
        %v1909 = vsub.s32 %v1906, %v1908
        %v1910 = vrot.slane %v1896, %v1909
        %v1911 = vcombine.high %v1903, %v1903
        %v1912 = vcombine.high %v1910, %v1910
        %v1913 = vcombine.high %v1433, %v1433
        %v1915 = vunpack.c.l.s4 1983009808
        %v1916 = vunpack.c.0.s8 %v1915
        %v1917 = vlaneseq
        %v1918 = vshrl.u32 %v1917, 7
        %v1919 = vsub.s32 %v1916, %v1918
        %v1920 = vrot.slane %v1433, %v1919
        %v1922 = vunpack.c.l.s4 1983009808
        %v1923 = vunpack.c.0.s8 %v1922
        %v1924 = vlaneseq
        %v1925 = vshrl.u32 %v1924, 7
        %v1926 = vsub.s32 %v1923, %v1925
        %v1927 = vrot.slane %v1913, %v1926
        %v1928 = vcombine.high %v1920, %v1920
        %v1929 = vcombine.high %v1927, %v1927
        %v1930 = vcombine.high %v1434, %v1434
        %v1932 = vunpack.c.l.s4 1983009808
        %v1933 = vunpack.c.0.s8 %v1932
        %v1934 = vlaneseq
        %v1935 = vshrl.u32 %v1934, 7
        %v1936 = vsub.s32 %v1933, %v1935
        %v1937 = vrot.slane %v1434, %v1936
        %v1939 = vunpack.c.l.s4 1983009808
        %v1940 = vunpack.c.0.s8 %v1939
        %v1941 = vlaneseq
        %v1942 = vshrl.u32 %v1941, 7
        %v1943 = vsub.s32 %v1940, %v1942
        %v1944 = vrot.slane %v1930, %v1943
        %v1945 = vcombine.high %v1937, %v1937
        %v1946 = vcombine.high %v1944, %v1944
        %v1947 = vcombine.high %v1435, %v1435
        %v1949 = vunpack.c.l.s4 1983009808
        %v1950 = vunpack.c.0.s8 %v1949
        %v1951 = vlaneseq
        %v1952 = vshrl.u32 %v1951, 7
        %v1953 = vsub.s32 %v1950, %v1952
        %v1954 = vrot.slane %v1435, %v1953
        %v1956 = vunpack.c.l.s4 1983009808
        %v1957 = vunpack.c.0.s8 %v1956
        %v1958 = vlaneseq
        %v1959 = vshrl.u32 %v1958, 7
        %v1960 = vsub.s32 %v1957, %v1959
        %v1961 = vrot.slane %v1947, %v1960
        %v1962 = vcombine.high %v1954, %v1954
        %v1963 = vcombine.high %v1961, %v1961
        %v1964 = vcombine.high %v1436, %v1436
        %v1966 = vunpack.c.l.s4 1983009808
        %v1967 = vunpack.c.0.s8 %v1966
        %v1968 = vlaneseq
        %v1969 = vshrl.u32 %v1968, 7
        %v1970 = vsub.s32 %v1967, %v1969
        %v1971 = vrot.slane %v1436, %v1970
        %v1973 = vunpack.c.l.s4 1983009808
        %v1974 = vunpack.c.0.s8 %v1973
        %v1975 = vlaneseq
        %v1976 = vshrl.u32 %v1975, 7
        %v1977 = vsub.s32 %v1974, %v1976
        %v1978 = vrot.slane %v1964, %v1977
        %v1979 = vcombine.high %v1971, %v1971
        %v1980 = vcombine.high %v1978, %v1978
        %v1981 = vcombine.high %v1437, %v1437
        %v1983 = vunpack.c.l.s4 1983009808
        %v1984 = vunpack.c.0.s8 %v1983
        %v1985 = vlaneseq
        %v1986 = vshrl.u32 %v1985, 7
        %v1987 = vsub.s32 %v1984, %v1986
        %v1988 = vrot.slane %v1437, %v1987
        %v1990 = vunpack.c.l.s4 1983009808
        %v1991 = vunpack.c.0.s8 %v1990
        %v1992 = vlaneseq
        %v1993 = vshrl.u32 %v1992, 7
        %v1994 = vsub.s32 %v1991, %v1993
        %v1995 = vrot.slane %v1981, %v1994
        %v1996 = vcombine.high %v1988, %v1988
        %v1997 = vcombine.high %v1995, %v1995
        %v1998 = vcombine.high %v1438, %v1438
        %v2000 = vunpack.c.l.s4 1983009808
        %v2001 = vunpack.c.0.s8 %v2000
        %v2002 = vlaneseq
        %v2003 = vshrl.u32 %v2002, 7
        %v2004 = vsub.s32 %v2001, %v2003
        %v2005 = vrot.slane %v1438, %v2004
        %v2007 = vunpack.c.l.s4 1983009808
        %v2008 = vunpack.c.0.s8 %v2007
        %v2009 = vlaneseq
        %v2010 = vshrl.u32 %v2009, 7
        %v2011 = vsub.s32 %v2008, %v2010
        %v2012 = vrot.slane %v1998, %v2011
        %v2013 = vcombine.high %v2005, %v2005
        %v2014 = vcombine.high %v2012, %v2012
        %v2015 = vcombine.high %v1439, %v1439
        %v2017 = vunpack.c.l.s4 1983009808
        %v2018 = vunpack.c.0.s8 %v2017
        %v2019 = vlaneseq
        %v2020 = vshrl.u32 %v2019, 7
        %v2021 = vsub.s32 %v2018, %v2020
        %v2022 = vrot.slane %v1439, %v2021
        %v2024 = vunpack.c.l.s4 1983009808
        %v2025 = vunpack.c.0.s8 %v2024
        %v2026 = vlaneseq
        %v2027 = vshrl.u32 %v2026, 7
        %v2028 = vsub.s32 %v2025, %v2027
        %v2029 = vrot.slane %v2015, %v2028
        %v2030 = vcombine.high %v2022, %v2022
        %v2031 = vcombine.high %v2029, %v2029
        %v2032 = vcombine.high %v1440, %v1440
        %v2034 = vunpack.c.l.s4 1983009808
        %v2035 = vunpack.c.0.s8 %v2034
        %v2036 = vlaneseq
        %v2037 = vshrl.u32 %v2036, 7
        %v2038 = vsub.s32 %v2035, %v2037
        %v2039 = vrot.slane %v1440, %v2038
        %v2041 = vunpack.c.l.s4 1983009808
        %v2042 = vunpack.c.0.s8 %v2041
        %v2043 = vlaneseq
        %v2044 = vshrl.u32 %v2043, 7
        %v2045 = vsub.s32 %v2042, %v2044
        %v2046 = vrot.slane %v2032, %v2045
        %v2047 = vcombine.high %v2039, %v2039
        %v2048 = vcombine.high %v2046, %v2046
        %v2049 = vcombine.high %v1441, %v1441
        %v2051 = vunpack.c.l.s4 1983009808
        %v2052 = vunpack.c.0.s8 %v2051
        %v2053 = vlaneseq
        %v2054 = vshrl.u32 %v2053, 7
        %v2055 = vsub.s32 %v2052, %v2054
        %v2056 = vrot.slane %v1441, %v2055
        %v2058 = vunpack.c.l.s4 1983009808
        %v2059 = vunpack.c.0.s8 %v2058
        %v2060 = vlaneseq
        %v2061 = vshrl.u32 %v2060, 7
        %v2062 = vsub.s32 %v2059, %v2061
        %v2063 = vrot.slane %v2049, %v2062
        %v2064 = vcombine.high %v2056, %v2056
        %v2065 = vcombine.high %v2063, %v2063
        %v2066 = vcombine.high %v1442, %v1442
        %v2068 = vunpack.c.l.s4 1983009808
        %v2069 = vunpack.c.0.s8 %v2068
        %v2070 = vlaneseq
        %v2071 = vshrl.u32 %v2070, 7
        %v2072 = vsub.s32 %v2069, %v2071
        %v2073 = vrot.slane %v1442, %v2072
        %v2075 = vunpack.c.l.s4 1983009808
        %v2076 = vunpack.c.0.s8 %v2075
        %v2077 = vlaneseq
        %v2078 = vshrl.u32 %v2077, 7
        %v2079 = vsub.s32 %v2076, %v2078
        %v2080 = vrot.slane %v2066, %v2079
        %v2081 = vcombine.high %v2073, %v2073
        %v2082 = vcombine.high %v2080, %v2080
        %v2083 = vcombine.high %v1443, %v1443
        %v2085 = vunpack.c.l.s4 1983009808
        %v2086 = vunpack.c.0.s8 %v2085
        %v2087 = vlaneseq
        %v2088 = vshrl.u32 %v2087, 7
        %v2089 = vsub.s32 %v2086, %v2088
        %v2090 = vrot.slane %v1443, %v2089
        %v2092 = vunpack.c.l.s4 1983009808
        %v2093 = vunpack.c.0.s8 %v2092
        %v2094 = vlaneseq
        %v2095 = vshrl.u32 %v2094, 7
        %v2096 = vsub.s32 %v2093, %v2095
        %v2097 = vrot.slane %v2083, %v2096
        %v2098 = vcombine.high %v2090, %v2090
        %v2099 = vcombine.high %v2097, %v2097
        %v2100 = vcombine.high %v1444, %v1444
        %v2102 = vunpack.c.l.s4 1983009808
        %v2103 = vunpack.c.0.s8 %v2102
        %v2104 = vlaneseq
        %v2105 = vshrl.u32 %v2104, 7
        %v2106 = vsub.s32 %v2103, %v2105
        %v2107 = vrot.slane %v1444, %v2106
        %v2109 = vunpack.c.l.s4 1983009808
        %v2110 = vunpack.c.0.s8 %v2109
        %v2111 = vlaneseq
        %v2112 = vshrl.u32 %v2111, 7
        %v2113 = vsub.s32 %v2110, %v2112
        %v2114 = vrot.slane %v2100, %v2113
        %v2115 = vcombine.high %v2107, %v2107
        %v2116 = vcombine.high %v2114, %v2114
        %v2117 = vcombine.high %v1445, %v1445
        %v2119 = vunpack.c.l.s4 1983009808
        %v2120 = vunpack.c.0.s8 %v2119
        %v2121 = vlaneseq
        %v2122 = vshrl.u32 %v2121, 7
        %v2123 = vsub.s32 %v2120, %v2122
        %v2124 = vrot.slane %v1445, %v2123
        %v2126 = vunpack.c.l.s4 1983009808
        %v2127 = vunpack.c.0.s8 %v2126
        %v2128 = vlaneseq
        %v2129 = vshrl.u32 %v2128, 7
        %v2130 = vsub.s32 %v2127, %v2129
        %v2131 = vrot.slane %v2117, %v2130
        %v2132 = vcombine.high %v2124, %v2124
        %v2133 = vcombine.high %v2131, %v2131
        %v2134 = vcombine.high %v1446, %v1446
        %v2136 = vunpack.c.l.s4 1983009808
        %v2137 = vunpack.c.0.s8 %v2136
        %v2138 = vlaneseq
        %v2139 = vshrl.u32 %v2138, 7
        %v2140 = vsub.s32 %v2137, %v2139
        %v2141 = vrot.slane %v1446, %v2140
        %v2143 = vunpack.c.l.s4 1983009808
        %v2144 = vunpack.c.0.s8 %v2143
        %v2145 = vlaneseq
        %v2146 = vshrl.u32 %v2145, 7
        %v2147 = vsub.s32 %v2144, %v2146
        %v2148 = vrot.slane %v2134, %v2147
        %v2149 = vcombine.high %v2141, %v2141
        %v2150 = vcombine.high %v2148, %v2148
        %v2151 = vcombine.high %v1447, %v1447
        %v2153 = vunpack.c.l.s4 1983009808
        %v2154 = vunpack.c.0.s8 %v2153
        %v2155 = vlaneseq
        %v2156 = vshrl.u32 %v2155, 7
        %v2157 = vsub.s32 %v2154, %v2156
        %v2158 = vrot.slane %v1447, %v2157
        %v2160 = vunpack.c.l.s4 1983009808
        %v2161 = vunpack.c.0.s8 %v2160
        %v2162 = vlaneseq
        %v2163 = vshrl.u32 %v2162, 7
        %v2164 = vsub.s32 %v2161, %v2163
        %v2165 = vrot.slane %v2151, %v2164
        %v2166 = vcombine.high %v2158, %v2158
        %v2167 = vcombine.high %v2165, %v2165
        %v2168 = vcombine.high %v1448, %v1448
        %v2170 = vunpack.c.l.s4 1983009808
        %v2171 = vunpack.c.0.s8 %v2170
        %v2172 = vlaneseq
        %v2173 = vshrl.u32 %v2172, 7
        %v2174 = vsub.s32 %v2171, %v2173
        %v2175 = vrot.slane %v1448, %v2174
        %v2177 = vunpack.c.l.s4 1983009808
        %v2178 = vunpack.c.0.s8 %v2177
        %v2179 = vlaneseq
        %v2180 = vshrl.u32 %v2179, 7
        %v2181 = vsub.s32 %v2178, %v2180
        %v2182 = vrot.slane %v2168, %v2181
        %v2183 = vcombine.high %v2175, %v2175
        %v2184 = vcombine.high %v2182, %v2182
        %v2185 = vcombine.high %v1449, %v1449
        %v2187 = vunpack.c.l.s4 1983009808
        %v2188 = vunpack.c.0.s8 %v2187
        %v2189 = vlaneseq
        %v2190 = vshrl.u32 %v2189, 7
        %v2191 = vsub.s32 %v2188, %v2190
        %v2192 = vrot.slane %v1449, %v2191
        %v2194 = vunpack.c.l.s4 1983009808
        %v2195 = vunpack.c.0.s8 %v2194
        %v2196 = vlaneseq
        %v2197 = vshrl.u32 %v2196, 7
        %v2198 = vsub.s32 %v2195, %v2197
        %v2199 = vrot.slane %v2185, %v2198
        %v2200 = vcombine.high %v2192, %v2192
        %v2201 = vcombine.high %v2199, %v2199
        %v2202 = vcombine.high %v1450, %v1450
        %v2204 = vunpack.c.l.s4 1983009808
        %v2205 = vunpack.c.0.s8 %v2204
        %v2206 = vlaneseq
        %v2207 = vshrl.u32 %v2206, 7
        %v2208 = vsub.s32 %v2205, %v2207
        %v2209 = vrot.slane %v1450, %v2208
        %v2211 = vunpack.c.l.s4 1983009808
        %v2212 = vunpack.c.0.s8 %v2211
        %v2213 = vlaneseq
        %v2214 = vshrl.u32 %v2213, 7
        %v2215 = vsub.s32 %v2212, %v2214
        %v2216 = vrot.slane %v2202, %v2215
        %v2217 = vcombine.high %v2209, %v2209
        %v2218 = vcombine.high %v2216, %v2216
        %v2219 = vcombine.high %v1451, %v1451
        %v2221 = vunpack.c.l.s4 1983009808
        %v2222 = vunpack.c.0.s8 %v2221
        %v2223 = vlaneseq
        %v2224 = vshrl.u32 %v2223, 7
        %v2225 = vsub.s32 %v2222, %v2224
        %v2226 = vrot.slane %v1451, %v2225
        %v2228 = vunpack.c.l.s4 1983009808
        %v2229 = vunpack.c.0.s8 %v2228
        %v2230 = vlaneseq
        %v2231 = vshrl.u32 %v2230, 7
        %v2232 = vsub.s32 %v2229, %v2231
        %v2233 = vrot.slane %v2219, %v2232
        %v2234 = vcombine.high %v2226, %v2226
        %v2235 = vcombine.high %v2233, %v2233
        %v2236 = vcombine.high %v1452, %v1452
        %v2238 = vunpack.c.l.s4 1983009808
        %v2239 = vunpack.c.0.s8 %v2238
        %v2240 = vlaneseq
        %v2241 = vshrl.u32 %v2240, 7
        %v2242 = vsub.s32 %v2239, %v2241
        %v2243 = vrot.slane %v1452, %v2242
        %v2245 = vunpack.c.l.s4 1983009808
        %v2246 = vunpack.c.0.s8 %v2245
        %v2247 = vlaneseq
        %v2248 = vshrl.u32 %v2247, 7
        %v2249 = vsub.s32 %v2246, %v2248
        %v2250 = vrot.slane %v2236, %v2249
        %v2251 = vcombine.high %v2243, %v2243
        %v2252 = vcombine.high %v2250, %v2250
        %v2253 = vcombine.high %v1453, %v1453
        %v2255 = vunpack.c.l.s4 1983009808
        %v2256 = vunpack.c.0.s8 %v2255
        %v2257 = vlaneseq
        %v2258 = vshrl.u32 %v2257, 7
        %v2259 = vsub.s32 %v2256, %v2258
        %v2260 = vrot.slane %v1453, %v2259
        %v2262 = vunpack.c.l.s4 1983009808
        %v2263 = vunpack.c.0.s8 %v2262
        %v2264 = vlaneseq
        %v2265 = vshrl.u32 %v2264, 7
        %v2266 = vsub.s32 %v2263, %v2265
        %v2267 = vrot.slane %v2253, %v2266
        %v2268 = vcombine.high %v2260, %v2260
        %v2269 = vcombine.high %v2267, %v2267
        %v2270 = vcombine.high %v1454, %v1454
        %v2272 = vunpack.c.l.s4 1983009808
        %v2273 = vunpack.c.0.s8 %v2272
        %v2274 = vlaneseq
        %v2275 = vshrl.u32 %v2274, 7
        %v2276 = vsub.s32 %v2273, %v2275
        %v2277 = vrot.slane %v1454, %v2276
        %v2279 = vunpack.c.l.s4 1983009808
        %v2280 = vunpack.c.0.s8 %v2279
        %v2281 = vlaneseq
        %v2282 = vshrl.u32 %v2281, 7
        %v2283 = vsub.s32 %v2280, %v2282
        %v2284 = vrot.slane %v2270, %v2283
        %v2285 = vcombine.high %v2277, %v2277
        %v2286 = vcombine.high %v2284, %v2284
        %v2287 = vcombine.high %v1455, %v1455
        %v2289 = vunpack.c.l.s4 1983009808
        %v2290 = vunpack.c.0.s8 %v2289
        %v2291 = vlaneseq
        %v2292 = vshrl.u32 %v2291, 7
        %v2293 = vsub.s32 %v2290, %v2292
        %v2294 = vrot.slane %v1455, %v2293
        %v2296 = vunpack.c.l.s4 1983009808
        %v2297 = vunpack.c.0.s8 %v2296
        %v2298 = vlaneseq
        %v2299 = vshrl.u32 %v2298, 7
        %v2300 = vsub.s32 %v2297, %v2299
        %v2301 = vrot.slane %v2287, %v2300
        %v2302 = vcombine.high %v2294, %v2294
        %v2303 = vcombine.high %v2301, %v2301
        %v2304 = vcombine.high %v1456, %v1456
        %v2306 = vunpack.c.l.s4 1983009808
        %v2307 = vunpack.c.0.s8 %v2306
        %v2308 = vlaneseq
        %v2309 = vshrl.u32 %v2308, 7
        %v2310 = vsub.s32 %v2307, %v2309
        %v2311 = vrot.slane %v1456, %v2310
        %v2313 = vunpack.c.l.s4 1983009808
        %v2314 = vunpack.c.0.s8 %v2313
        %v2315 = vlaneseq
        %v2316 = vshrl.u32 %v2315, 7
        %v2317 = vsub.s32 %v2314, %v2316
        %v2318 = vrot.slane %v2304, %v2317
        %v2319 = vcombine.high %v2311, %v2311
        %v2320 = vcombine.high %v2318, %v2318
        %v2321 = vcombine.high %v1457, %v1457
        %v2323 = vunpack.c.l.s4 1983009808
        %v2324 = vunpack.c.0.s8 %v2323
        %v2325 = vlaneseq
        %v2326 = vshrl.u32 %v2325, 7
        %v2327 = vsub.s32 %v2324, %v2326
        %v2328 = vrot.slane %v1457, %v2327
        %v2330 = vunpack.c.l.s4 1983009808
        %v2331 = vunpack.c.0.s8 %v2330
        %v2332 = vlaneseq
        %v2333 = vshrl.u32 %v2332, 7
        %v2334 = vsub.s32 %v2331, %v2333
        %v2335 = vrot.slane %v2321, %v2334
        %v2336 = vcombine.high %v2328, %v2328
        %v2337 = vcombine.high %v2335, %v2335
        %v2338 = vcombine.high %v1458, %v1458
        %v2340 = vunpack.c.l.s4 1983009808
        %v2341 = vunpack.c.0.s8 %v2340
        %v2342 = vlaneseq
        %v2343 = vshrl.u32 %v2342, 7
        %v2344 = vsub.s32 %v2341, %v2343
        %v2345 = vrot.slane %v1458, %v2344
        %v2347 = vunpack.c.l.s4 1983009808
        %v2348 = vunpack.c.0.s8 %v2347
        %v2349 = vlaneseq
        %v2350 = vshrl.u32 %v2349, 7
        %v2351 = vsub.s32 %v2348, %v2350
        %v2352 = vrot.slane %v2338, %v2351
        %v2353 = vcombine.high %v2345, %v2345
        %v2354 = vcombine.high %v2352, %v2352
        %v2355 = vcombine.high %v1459, %v1459
        %v2357 = vunpack.c.l.s4 1983009808
        %v2358 = vunpack.c.0.s8 %v2357
        %v2359 = vlaneseq
        %v2360 = vshrl.u32 %v2359, 7
        %v2361 = vsub.s32 %v2358, %v2360
        %v2362 = vrot.slane %v1459, %v2361
        %v2364 = vunpack.c.l.s4 1983009808
        %v2365 = vunpack.c.0.s8 %v2364
        %v2366 = vlaneseq
        %v2367 = vshrl.u32 %v2366, 7
        %v2368 = vsub.s32 %v2365, %v2367
        %v2369 = vrot.slane %v2355, %v2368
        %v2370 = vcombine.high %v2362, %v2362
        %v2371 = vcombine.high %v2369, %v2369
        %v2372 = vcombine.high %v1460, %v1460
        %v2374 = vunpack.c.l.s4 1983009808
        %v2375 = vunpack.c.0.s8 %v2374
        %v2376 = vlaneseq
        %v2377 = vshrl.u32 %v2376, 7
        %v2378 = vsub.s32 %v2375, %v2377
        %v2379 = vrot.slane %v1460, %v2378
        %v2381 = vunpack.c.l.s4 1983009808
        %v2382 = vunpack.c.0.s8 %v2381
        %v2383 = vlaneseq
        %v2384 = vshrl.u32 %v2383, 7
        %v2385 = vsub.s32 %v2382, %v2384
        %v2386 = vrot.slane %v2372, %v2385
        %v2387 = vcombine.high %v2379, %v2379
        %v2388 = vcombine.high %v2386, %v2386
        %v2389 = vcombine.high %v1461, %v1461
        %v2391 = vunpack.c.l.s4 1983009808
        %v2392 = vunpack.c.0.s8 %v2391
        %v2393 = vlaneseq
        %v2394 = vshrl.u32 %v2393, 7
        %v2395 = vsub.s32 %v2392, %v2394
        %v2396 = vrot.slane %v1461, %v2395
        %v2398 = vunpack.c.l.s4 1983009808
        %v2399 = vunpack.c.0.s8 %v2398
        %v2400 = vlaneseq
        %v2401 = vshrl.u32 %v2400, 7
        %v2402 = vsub.s32 %v2399, %v2401
        %v2403 = vrot.slane %v2389, %v2402
        %v2404 = vcombine.high %v2396, %v2396
        %v2405 = vcombine.high %v2403, %v2403
        %v2406 = vcombine.high %v1462, %v1462
        %v2408 = vunpack.c.l.s4 1983009808
        %v2409 = vunpack.c.0.s8 %v2408
        %v2410 = vlaneseq
        %v2411 = vshrl.u32 %v2410, 7
        %v2412 = vsub.s32 %v2409, %v2411
        %v2413 = vrot.slane %v1462, %v2412
        %v2415 = vunpack.c.l.s4 1983009808
        %v2416 = vunpack.c.0.s8 %v2415
        %v2417 = vlaneseq
        %v2418 = vshrl.u32 %v2417, 7
        %v2419 = vsub.s32 %v2416, %v2418
        %v2420 = vrot.slane %v2406, %v2419
        %v2421 = vcombine.high %v2413, %v2413
        %v2422 = vcombine.high %v2420, %v2420
        %v2423 = vcombine.high %v1463, %v1463
        %v2425 = vunpack.c.l.s4 1983009808
        %v2426 = vunpack.c.0.s8 %v2425
        %v2427 = vlaneseq
        %v2428 = vshrl.u32 %v2427, 7
        %v2429 = vsub.s32 %v2426, %v2428
        %v2430 = vrot.slane %v1463, %v2429
        %v2432 = vunpack.c.l.s4 1983009808
        %v2433 = vunpack.c.0.s8 %v2432
        %v2434 = vlaneseq
        %v2435 = vshrl.u32 %v2434, 7
        %v2436 = vsub.s32 %v2433, %v2435
        %v2437 = vrot.slane %v2423, %v2436
        %v2438 = vcombine.high %v2430, %v2430
        %v2439 = vcombine.high %v2437, %v2437
        %v2440 = vcombine.high %v1464, %v1464
        %v2442 = vunpack.c.l.s4 1983009808
        %v2443 = vunpack.c.0.s8 %v2442
        %v2444 = vlaneseq
        %v2445 = vshrl.u32 %v2444, 7
        %v2446 = vsub.s32 %v2443, %v2445
        %v2447 = vrot.slane %v1464, %v2446
        %v2449 = vunpack.c.l.s4 1983009808
        %v2450 = vunpack.c.0.s8 %v2449
        %v2451 = vlaneseq
        %v2452 = vshrl.u32 %v2451, 7
        %v2453 = vsub.s32 %v2450, %v2452
        %v2454 = vrot.slane %v2440, %v2453
        %v2455 = vcombine.high %v2447, %v2447
        %v2456 = vcombine.high %v2454, %v2454
        %v2457 = vcombine.high %v1465, %v1465
        %v2459 = vunpack.c.l.s4 1983009808
        %v2460 = vunpack.c.0.s8 %v2459
        %v2461 = vlaneseq
        %v2462 = vshrl.u32 %v2461, 7
        %v2463 = vsub.s32 %v2460, %v2462
        %v2464 = vrot.slane %v1465, %v2463
        %v2466 = vunpack.c.l.s4 1983009808
        %v2467 = vunpack.c.0.s8 %v2466
        %v2468 = vlaneseq
        %v2469 = vshrl.u32 %v2468, 7
        %v2470 = vsub.s32 %v2467, %v2469
        %v2471 = vrot.slane %v2457, %v2470
        %v2472 = vcombine.high %v2464, %v2464
        %v2473 = vcombine.high %v2471, %v2471
        %v2474 = vcombine.high %v1466, %v1466
        %v2476 = vunpack.c.l.s4 1983009808
        %v2477 = vunpack.c.0.s8 %v2476
        %v2478 = vlaneseq
        %v2479 = vshrl.u32 %v2478, 7
        %v2480 = vsub.s32 %v2477, %v2479
        %v2481 = vrot.slane %v1466, %v2480
        %v2483 = vunpack.c.l.s4 1983009808
        %v2484 = vunpack.c.0.s8 %v2483
        %v2485 = vlaneseq
        %v2486 = vshrl.u32 %v2485, 7
        %v2487 = vsub.s32 %v2484, %v2486
        %v2488 = vrot.slane %v2474, %v2487
        %v2489 = vcombine.high %v2481, %v2481
        %v2490 = vcombine.high %v2488, %v2488
        %v2491 = vcombine.high %v1467, %v1467
        %v2493 = vunpack.c.l.s4 1983009808
        %v2494 = vunpack.c.0.s8 %v2493
        %v2495 = vlaneseq
        %v2496 = vshrl.u32 %v2495, 7
        %v2497 = vsub.s32 %v2494, %v2496
        %v2498 = vrot.slane %v1467, %v2497
        %v2500 = vunpack.c.l.s4 1983009808
        %v2501 = vunpack.c.0.s8 %v2500
        %v2502 = vlaneseq
        %v2503 = vshrl.u32 %v2502, 7
        %v2504 = vsub.s32 %v2501, %v2503
        %v2505 = vrot.slane %v2491, %v2504
        %v2506 = vcombine.high %v2498, %v2498
        %v2507 = vcombine.high %v2505, %v2505
        %v2508 = vcombine.high %v1468, %v1468
        %v2510 = vunpack.c.l.s4 1983009808
        %v2511 = vunpack.c.0.s8 %v2510
        %v2512 = vlaneseq
        %v2513 = vshrl.u32 %v2512, 7
        %v2514 = vsub.s32 %v2511, %v2513
        %v2515 = vrot.slane %v1468, %v2514
        %v2517 = vunpack.c.l.s4 1983009808
        %v2518 = vunpack.c.0.s8 %v2517
        %v2519 = vlaneseq
        %v2520 = vshrl.u32 %v2519, 7
        %v2521 = vsub.s32 %v2518, %v2520
        %v2522 = vrot.slane %v2508, %v2521
        %v2523 = vcombine.high %v2515, %v2515
        %v2524 = vcombine.high %v2522, %v2522
        %v2525 = vcombine.high %v1469, %v1469
        %v2527 = vunpack.c.l.s4 1983009808
        %v2528 = vunpack.c.0.s8 %v2527
        %v2529 = vlaneseq
        %v2530 = vshrl.u32 %v2529, 7
        %v2531 = vsub.s32 %v2528, %v2530
        %v2532 = vrot.slane %v1469, %v2531
        %v2534 = vunpack.c.l.s4 1983009808
        %v2535 = vunpack.c.0.s8 %v2534
        %v2536 = vlaneseq
        %v2537 = vshrl.u32 %v2536, 7
        %v2538 = vsub.s32 %v2535, %v2537
        %v2539 = vrot.slane %v2525, %v2538
        %v2540 = vcombine.high %v2532, %v2532
        %v2541 = vcombine.high %v2539, %v2539
        %v2542 = vcombine.high %v1470, %v1470
        %v2544 = vunpack.c.l.s4 1983009808
        %v2545 = vunpack.c.0.s8 %v2544
        %v2546 = vlaneseq
        %v2547 = vshrl.u32 %v2546, 7
        %v2548 = vsub.s32 %v2545, %v2547
        %v2549 = vrot.slane %v1470, %v2548
        %v2551 = vunpack.c.l.s4 1983009808
        %v2552 = vunpack.c.0.s8 %v2551
        %v2553 = vlaneseq
        %v2554 = vshrl.u32 %v2553, 7
        %v2555 = vsub.s32 %v2552, %v2554
        %v2556 = vrot.slane %v2542, %v2555
        %v2557 = vcombine.high %v2549, %v2549
        %v2558 = vcombine.high %v2556, %v2556
        %v2559 = vcombine.high %v1471, %v1471
        %v2561 = vunpack.c.l.s4 1983009808
        %v2562 = vunpack.c.0.s8 %v2561
        %v2563 = vlaneseq
        %v2564 = vshrl.u32 %v2563, 7
        %v2565 = vsub.s32 %v2562, %v2564
        %v2566 = vrot.slane %v1471, %v2565
        %v2568 = vunpack.c.l.s4 1983009808
        %v2569 = vunpack.c.0.s8 %v2568
        %v2570 = vlaneseq
        %v2571 = vshrl.u32 %v2570, 7
        %v2572 = vsub.s32 %v2569, %v2571
        %v2573 = vrot.slane %v2559, %v2572
        %v2574 = vcombine.high %v2566, %v2566
        %v2575 = vcombine.high %v2573, %v2573
        %v2576 = vcombine.high %v1472, %v1472
        %v2578 = vunpack.c.l.s4 1983009808
        %v2579 = vunpack.c.0.s8 %v2578
        %v2580 = vlaneseq
        %v2581 = vshrl.u32 %v2580, 7
        %v2582 = vsub.s32 %v2579, %v2581
        %v2583 = vrot.slane %v1472, %v2582
        %v2585 = vunpack.c.l.s4 1983009808
        %v2586 = vunpack.c.0.s8 %v2585
        %v2587 = vlaneseq
        %v2588 = vshrl.u32 %v2587, 7
        %v2589 = vsub.s32 %v2586, %v2588
        %v2590 = vrot.slane %v2576, %v2589
        %v2591 = vcombine.high %v2583, %v2583
        %v2592 = vcombine.high %v2590, %v2590
        %v2593 = vcombine.high %v1473, %v1473
        %v2595 = vunpack.c.l.s4 1983009808
        %v2596 = vunpack.c.0.s8 %v2595
        %v2597 = vlaneseq
        %v2598 = vshrl.u32 %v2597, 7
        %v2599 = vsub.s32 %v2596, %v2598
        %v2600 = vrot.slane %v1473, %v2599
        %v2602 = vunpack.c.l.s4 1983009808
        %v2603 = vunpack.c.0.s8 %v2602
        %v2604 = vlaneseq
        %v2605 = vshrl.u32 %v2604, 7
        %v2606 = vsub.s32 %v2603, %v2605
        %v2607 = vrot.slane %v2593, %v2606
        %v2608 = vcombine.high %v2600, %v2600
        %v2609 = vcombine.high %v2607, %v2607
        %v2610 = vcombine.high %v1474, %v1474
        %v2612 = vunpack.c.l.s4 1983009808
        %v2613 = vunpack.c.0.s8 %v2612
        %v2614 = vlaneseq
        %v2615 = vshrl.u32 %v2614, 7
        %v2616 = vsub.s32 %v2613, %v2615
        %v2617 = vrot.slane %v1474, %v2616
        %v2619 = vunpack.c.l.s4 1983009808
        %v2620 = vunpack.c.0.s8 %v2619
        %v2621 = vlaneseq
        %v2622 = vshrl.u32 %v2621, 7
        %v2623 = vsub.s32 %v2620, %v2622
        %v2624 = vrot.slane %v2610, %v2623
        %v2625 = vcombine.high %v2617, %v2617
        %v2626 = vcombine.high %v2624, %v2624
        %v2627 = vcombine.high %v1475, %v1475
        %v2629 = vunpack.c.l.s4 1983009808
        %v2630 = vunpack.c.0.s8 %v2629
        %v2631 = vlaneseq
        %v2632 = vshrl.u32 %v2631, 7
        %v2633 = vsub.s32 %v2630, %v2632
        %v2634 = vrot.slane %v1475, %v2633
        %v2636 = vunpack.c.l.s4 1983009808
        %v2637 = vunpack.c.0.s8 %v2636
        %v2638 = vlaneseq
        %v2639 = vshrl.u32 %v2638, 7
        %v2640 = vsub.s32 %v2637, %v2639
        %v2641 = vrot.slane %v2627, %v2640
        %v2642 = vcombine.high %v2634, %v2634
        %v2643 = vcombine.high %v2641, %v2641
        %v2644 = vcombine.high %v1476, %v1476
        %v2646 = vunpack.c.l.s4 1983009808
        %v2647 = vunpack.c.0.s8 %v2646
        %v2648 = vlaneseq
        %v2649 = vshrl.u32 %v2648, 7
        %v2650 = vsub.s32 %v2647, %v2649
        %v2651 = vrot.slane %v1476, %v2650
        %v2653 = vunpack.c.l.s4 1983009808
        %v2654 = vunpack.c.0.s8 %v2653
        %v2655 = vlaneseq
        %v2656 = vshrl.u32 %v2655, 7
        %v2657 = vsub.s32 %v2654, %v2656
        %v2658 = vrot.slane %v2644, %v2657
        %v2659 = vcombine.high %v2651, %v2651
        %v2660 = vcombine.high %v2658, %v2658
        %v2661 = vcombine.high %v1477, %v1477
        %v2663 = vunpack.c.l.s4 1983009808
        %v2664 = vunpack.c.0.s8 %v2663
        %v2665 = vlaneseq
        %v2666 = vshrl.u32 %v2665, 7
        %v2667 = vsub.s32 %v2664, %v2666
        %v2668 = vrot.slane %v1477, %v2667
        %v2670 = vunpack.c.l.s4 1983009808
        %v2671 = vunpack.c.0.s8 %v2670
        %v2672 = vlaneseq
        %v2673 = vshrl.u32 %v2672, 7
        %v2674 = vsub.s32 %v2671, %v2673
        %v2675 = vrot.slane %v2661, %v2674
        %v2676 = vcombine.high %v2668, %v2668
        %v2677 = vcombine.high %v2675, %v2675
        %v2678 = vcombine.high %v1478, %v1478
        %v2680 = vunpack.c.l.s4 1983009808
        %v2681 = vunpack.c.0.s8 %v2680
        %v2682 = vlaneseq
        %v2683 = vshrl.u32 %v2682, 7
        %v2684 = vsub.s32 %v2681, %v2683
        %v2685 = vrot.slane %v1478, %v2684
        %v2687 = vunpack.c.l.s4 1983009808
        %v2688 = vunpack.c.0.s8 %v2687
        %v2689 = vlaneseq
        %v2690 = vshrl.u32 %v2689, 7
        %v2691 = vsub.s32 %v2688, %v2690
        %v2692 = vrot.slane %v2678, %v2691
        %v2693 = vcombine.high %v2685, %v2685
        %v2694 = vcombine.high %v2692, %v2692
        %v2695 = vcombine.high %v1479, %v1479
        %v2697 = vunpack.c.l.s4 1983009808
        %v2698 = vunpack.c.0.s8 %v2697
        %v2699 = vlaneseq
        %v2700 = vshrl.u32 %v2699, 7
        %v2701 = vsub.s32 %v2698, %v2700
        %v2702 = vrot.slane %v1479, %v2701
        %v2704 = vunpack.c.l.s4 1983009808
        %v2705 = vunpack.c.0.s8 %v2704
        %v2706 = vlaneseq
        %v2707 = vshrl.u32 %v2706, 7
        %v2708 = vsub.s32 %v2705, %v2707
        %v2709 = vrot.slane %v2695, %v2708
        %v2710 = vcombine.high %v2702, %v2702
        %v2711 = vcombine.high %v2709, %v2709
        %v2712 = vcombine.high %v1480, %v1480
        %v2714 = vunpack.c.l.s4 1983009808
        %v2715 = vunpack.c.0.s8 %v2714
        %v2716 = vlaneseq
        %v2717 = vshrl.u32 %v2716, 7
        %v2718 = vsub.s32 %v2715, %v2717
        %v2719 = vrot.slane %v1480, %v2718
        %v2721 = vunpack.c.l.s4 1983009808
        %v2722 = vunpack.c.0.s8 %v2721
        %v2723 = vlaneseq
        %v2724 = vshrl.u32 %v2723, 7
        %v2725 = vsub.s32 %v2722, %v2724
        %v2726 = vrot.slane %v2712, %v2725
        %v2727 = vcombine.high %v2719, %v2719
        %v2728 = vcombine.high %v2726, %v2726
        %v2729 = vcombine.high %v1481, %v1481
        %v2731 = vunpack.c.l.s4 1983009808
        %v2732 = vunpack.c.0.s8 %v2731
        %v2733 = vlaneseq
        %v2734 = vshrl.u32 %v2733, 7
        %v2735 = vsub.s32 %v2732, %v2734
        %v2736 = vrot.slane %v1481, %v2735
        %v2738 = vunpack.c.l.s4 1983009808
        %v2739 = vunpack.c.0.s8 %v2738
        %v2740 = vlaneseq
        %v2741 = vshrl.u32 %v2740, 7
        %v2742 = vsub.s32 %v2739, %v2741
        %v2743 = vrot.slane %v2729, %v2742
        %v2744 = vcombine.high %v2736, %v2736
        %v2745 = vcombine.high %v2743, %v2743
        %v2746 = vcombine.high %v1482, %v1482
        %v2748 = vunpack.c.l.s4 1983009808
        %v2749 = vunpack.c.0.s8 %v2748
        %v2750 = vlaneseq
        %v2751 = vshrl.u32 %v2750, 7
        %v2752 = vsub.s32 %v2749, %v2751
        %v2753 = vrot.slane %v1482, %v2752
        %v2755 = vunpack.c.l.s4 1983009808
        %v2756 = vunpack.c.0.s8 %v2755
        %v2757 = vlaneseq
        %v2758 = vshrl.u32 %v2757, 7
        %v2759 = vsub.s32 %v2756, %v2758
        %v2760 = vrot.slane %v2746, %v2759
        %v2761 = vcombine.high %v2753, %v2753
        %v2762 = vcombine.high %v2760, %v2760
        %v2763 = vcombine.high %v1483, %v1483
        %v2765 = vunpack.c.l.s4 1983009808
        %v2766 = vunpack.c.0.s8 %v2765
        %v2767 = vlaneseq
        %v2768 = vshrl.u32 %v2767, 7
        %v2769 = vsub.s32 %v2766, %v2768
        %v2770 = vrot.slane %v1483, %v2769
        %v2772 = vunpack.c.l.s4 1983009808
        %v2773 = vunpack.c.0.s8 %v2772
        %v2774 = vlaneseq
        %v2775 = vshrl.u32 %v2774, 7
        %v2776 = vsub.s32 %v2773, %v2775
        %v2777 = vrot.slane %v2763, %v2776
        %v2778 = vcombine.high %v2770, %v2770
        %v2779 = vcombine.high %v2777, %v2777
        %v2780 = vcombine.high %v1484, %v1484
        %v2782 = vunpack.c.l.s4 1983009808
        %v2783 = vunpack.c.0.s8 %v2782
        %v2784 = vlaneseq
        %v2785 = vshrl.u32 %v2784, 7
        %v2786 = vsub.s32 %v2783, %v2785
        %v2787 = vrot.slane %v1484, %v2786
        %v2789 = vunpack.c.l.s4 1983009808
        %v2790 = vunpack.c.0.s8 %v2789
        %v2791 = vlaneseq
        %v2792 = vshrl.u32 %v2791, 7
        %v2793 = vsub.s32 %v2790, %v2792
        %v2794 = vrot.slane %v2780, %v2793
        %v2795 = vcombine.high %v2787, %v2787
        %v2796 = vcombine.high %v2794, %v2794
        %v2797 = vcombine.high %v1485, %v1485
        %v2799 = vunpack.c.l.s4 1983009808
        %v2800 = vunpack.c.0.s8 %v2799
        %v2801 = vlaneseq
        %v2802 = vshrl.u32 %v2801, 7
        %v2803 = vsub.s32 %v2800, %v2802
        %v2804 = vrot.slane %v1485, %v2803
        %v2806 = vunpack.c.l.s4 1983009808
        %v2807 = vunpack.c.0.s8 %v2806
        %v2808 = vlaneseq
        %v2809 = vshrl.u32 %v2808, 7
        %v2810 = vsub.s32 %v2807, %v2809
        %v2811 = vrot.slane %v2797, %v2810
        %v2812 = vcombine.high %v2804, %v2804
        %v2813 = vcombine.high %v2811, %v2811
        %v2814 = vcombine.high %v1486, %v1486
        %v2816 = vunpack.c.l.s4 1983009808
        %v2817 = vunpack.c.0.s8 %v2816
        %v2818 = vlaneseq
        %v2819 = vshrl.u32 %v2818, 7
        %v2820 = vsub.s32 %v2817, %v2819
        %v2821 = vrot.slane %v1486, %v2820
        %v2823 = vunpack.c.l.s4 1983009808
        %v2824 = vunpack.c.0.s8 %v2823
        %v2825 = vlaneseq
        %v2826 = vshrl.u32 %v2825, 7
        %v2827 = vsub.s32 %v2824, %v2826
        %v2828 = vrot.slane %v2814, %v2827
        %v2829 = vcombine.high %v2821, %v2821
        %v2830 = vcombine.high %v2828, %v2828
        %v2831 = vcombine.high %v1487, %v1487
        %v2833 = vunpack.c.l.s4 1983009808
        %v2834 = vunpack.c.0.s8 %v2833
        %v2835 = vlaneseq
        %v2836 = vshrl.u32 %v2835, 7
        %v2837 = vsub.s32 %v2834, %v2836
        %v2838 = vrot.slane %v1487, %v2837
        %v2840 = vunpack.c.l.s4 1983009808
        %v2841 = vunpack.c.0.s8 %v2840
        %v2842 = vlaneseq
        %v2843 = vshrl.u32 %v2842, 7
        %v2844 = vsub.s32 %v2841, %v2843
        %v2845 = vrot.slane %v2831, %v2844
        %v2846 = vcombine.high %v2838, %v2838
        %v2847 = vcombine.high %v2845, %v2845
        %v2848 = vcombine.high %v1488, %v1488
        %v2850 = vunpack.c.l.s4 1983009808
        %v2851 = vunpack.c.0.s8 %v2850
        %v2852 = vlaneseq
        %v2853 = vshrl.u32 %v2852, 7
        %v2854 = vsub.s32 %v2851, %v2853
        %v2855 = vrot.slane %v1488, %v2854
        %v2857 = vunpack.c.l.s4 1983009808
        %v2858 = vunpack.c.0.s8 %v2857
        %v2859 = vlaneseq
        %v2860 = vshrl.u32 %v2859, 7
        %v2861 = vsub.s32 %v2858, %v2860
        %v2862 = vrot.slane %v2848, %v2861
        %v2863 = vcombine.high %v2855, %v2855
        %v2864 = vcombine.high %v2862, %v2862
        %v2865 = vcombine.high %v1489, %v1489
        %v2867 = vunpack.c.l.s4 1983009808
        %v2868 = vunpack.c.0.s8 %v2867
        %v2869 = vlaneseq
        %v2870 = vshrl.u32 %v2869, 7
        %v2871 = vsub.s32 %v2868, %v2870
        %v2872 = vrot.slane %v1489, %v2871
        %v2874 = vunpack.c.l.s4 1983009808
        %v2875 = vunpack.c.0.s8 %v2874
        %v2876 = vlaneseq
        %v2877 = vshrl.u32 %v2876, 7
        %v2878 = vsub.s32 %v2875, %v2877
        %v2879 = vrot.slane %v2865, %v2878
        %v2880 = vcombine.high %v2872, %v2872
        %v2881 = vcombine.high %v2879, %v2879
        %v2882 = vcombine.high %v1490, %v1490
        %v2884 = vunpack.c.l.s4 1983009808
        %v2885 = vunpack.c.0.s8 %v2884
        %v2886 = vlaneseq
        %v2887 = vshrl.u32 %v2886, 7
        %v2888 = vsub.s32 %v2885, %v2887
        %v2889 = vrot.slane %v1490, %v2888
        %v2891 = vunpack.c.l.s4 1983009808
        %v2892 = vunpack.c.0.s8 %v2891
        %v2893 = vlaneseq
        %v2894 = vshrl.u32 %v2893, 7
        %v2895 = vsub.s32 %v2892, %v2894
        %v2896 = vrot.slane %v2882, %v2895
        %v2897 = vcombine.high %v2889, %v2889
        %v2898 = vcombine.high %v2896, %v2896
        %v2899 = vcombine.high %v1491, %v1491
        %v2901 = vunpack.c.l.s4 1983009808
        %v2902 = vunpack.c.0.s8 %v2901
        %v2903 = vlaneseq
        %v2904 = vshrl.u32 %v2903, 7
        %v2905 = vsub.s32 %v2902, %v2904
        %v2906 = vrot.slane %v1491, %v2905
        %v2908 = vunpack.c.l.s4 1983009808
        %v2909 = vunpack.c.0.s8 %v2908
        %v2910 = vlaneseq
        %v2911 = vshrl.u32 %v2910, 7
        %v2912 = vsub.s32 %v2909, %v2911
        %v2913 = vrot.slane %v2899, %v2912
        %v2914 = vcombine.high %v2906, %v2906
        %v2915 = vcombine.high %v2913, %v2913
        %v2916 = vcombine.high %v1492, %v1492
        %v2918 = vunpack.c.l.s4 1983009808
        %v2919 = vunpack.c.0.s8 %v2918
        %v2920 = vlaneseq
        %v2921 = vshrl.u32 %v2920, 7
        %v2922 = vsub.s32 %v2919, %v2921
        %v2923 = vrot.slane %v1492, %v2922
        %v2925 = vunpack.c.l.s4 1983009808
        %v2926 = vunpack.c.0.s8 %v2925
        %v2927 = vlaneseq
        %v2928 = vshrl.u32 %v2927, 7
        %v2929 = vsub.s32 %v2926, %v2928
        %v2930 = vrot.slane %v2916, %v2929
        %v2931 = vcombine.high %v2923, %v2923
        %v2932 = vcombine.high %v2930, %v2930
        %v2933 = vcombine.high %v1493, %v1493
        %v2935 = vunpack.c.l.s4 1983009808
        %v2936 = vunpack.c.0.s8 %v2935
        %v2937 = vlaneseq
        %v2938 = vshrl.u32 %v2937, 7
        %v2939 = vsub.s32 %v2936, %v2938
        %v2940 = vrot.slane %v1493, %v2939
        %v2942 = vunpack.c.l.s4 1983009808
        %v2943 = vunpack.c.0.s8 %v2942
        %v2944 = vlaneseq
        %v2945 = vshrl.u32 %v2944, 7
        %v2946 = vsub.s32 %v2943, %v2945
        %v2947 = vrot.slane %v2933, %v2946
        %v2948 = vcombine.high %v2940, %v2940
        %v2949 = vcombine.high %v2947, %v2947
        %v2950 = vcombine.high %v1494, %v1494
        %v2952 = vunpack.c.l.s4 1983009808
        %v2953 = vunpack.c.0.s8 %v2952
        %v2954 = vlaneseq
        %v2955 = vshrl.u32 %v2954, 7
        %v2956 = vsub.s32 %v2953, %v2955
        %v2957 = vrot.slane %v1494, %v2956
        %v2959 = vunpack.c.l.s4 1983009808
        %v2960 = vunpack.c.0.s8 %v2959
        %v2961 = vlaneseq
        %v2962 = vshrl.u32 %v2961, 7
        %v2963 = vsub.s32 %v2960, %v2962
        %v2964 = vrot.slane %v2950, %v2963
        %v2965 = vcombine.high %v2957, %v2957
        %v2966 = vcombine.high %v2964, %v2964
        %v2967 = vcombine.high %v1495, %v1495
        %v2969 = vunpack.c.l.s4 1983009808
        %v2970 = vunpack.c.0.s8 %v2969
        %v2971 = vlaneseq
        %v2972 = vshrl.u32 %v2971, 7
        %v2973 = vsub.s32 %v2970, %v2972
        %v2974 = vrot.slane %v1495, %v2973
        %v2976 = vunpack.c.l.s4 1983009808
        %v2977 = vunpack.c.0.s8 %v2976
        %v2978 = vlaneseq
        %v2979 = vshrl.u32 %v2978, 7
        %v2980 = vsub.s32 %v2977, %v2979
        %v2981 = vrot.slane %v2967, %v2980
        %v2982 = vcombine.high %v2974, %v2974
        %v2983 = vcombine.high %v2981, %v2981
        %v2984 = vcombine.high %v1496, %v1496
        %v2986 = vunpack.c.l.s4 1983009808
        %v2987 = vunpack.c.0.s8 %v2986
        %v2988 = vlaneseq
        %v2989 = vshrl.u32 %v2988, 7
        %v2990 = vsub.s32 %v2987, %v2989
        %v2991 = vrot.slane %v1496, %v2990
        %v2993 = vunpack.c.l.s4 1983009808
        %v2994 = vunpack.c.0.s8 %v2993
        %v2995 = vlaneseq
        %v2996 = vshrl.u32 %v2995, 7
        %v2997 = vsub.s32 %v2994, %v2996
        %v2998 = vrot.slane %v2984, %v2997
        %v2999 = vcombine.high %v2991, %v2991
        %v3000 = vcombine.high %v2998, %v2998
        %v3001 = vcombine.high %v1497, %v1497
        %v3003 = vunpack.c.l.s4 1983009808
        %v3004 = vunpack.c.0.s8 %v3003
        %v3005 = vlaneseq
        %v3006 = vshrl.u32 %v3005, 7
        %v3007 = vsub.s32 %v3004, %v3006
        %v3008 = vrot.slane %v1497, %v3007
        %v3010 = vunpack.c.l.s4 1983009808
        %v3011 = vunpack.c.0.s8 %v3010
        %v3012 = vlaneseq
        %v3013 = vshrl.u32 %v3012, 7
        %v3014 = vsub.s32 %v3011, %v3013
        %v3015 = vrot.slane %v3001, %v3014
        %v3016 = vcombine.high %v3008, %v3008
        %v3017 = vcombine.high %v3015, %v3015
        %v3018 = vcombine.high %v1498, %v1498
        %v3020 = vunpack.c.l.s4 1983009808
        %v3021 = vunpack.c.0.s8 %v3020
        %v3022 = vlaneseq
        %v3023 = vshrl.u32 %v3022, 7
        %v3024 = vsub.s32 %v3021, %v3023
        %v3025 = vrot.slane %v1498, %v3024
        %v3027 = vunpack.c.l.s4 1983009808
        %v3028 = vunpack.c.0.s8 %v3027
        %v3029 = vlaneseq
        %v3030 = vshrl.u32 %v3029, 7
        %v3031 = vsub.s32 %v3028, %v3030
        %v3032 = vrot.slane %v3018, %v3031
        %v3033 = vcombine.high %v3025, %v3025
        %v3034 = vcombine.high %v3032, %v3032
        %v3035 = vcombine.high %v1499, %v1499
        %v3037 = vunpack.c.l.s4 1983009808
        %v3038 = vunpack.c.0.s8 %v3037
        %v3039 = vlaneseq
        %v3040 = vshrl.u32 %v3039, 7
        %v3041 = vsub.s32 %v3038, %v3040
        %v3042 = vrot.slane %v1499, %v3041
        %v3044 = vunpack.c.l.s4 1983009808
        %v3045 = vunpack.c.0.s8 %v3044
        %v3046 = vlaneseq
        %v3047 = vshrl.u32 %v3046, 7
        %v3048 = vsub.s32 %v3045, %v3047
        %v3049 = vrot.slane %v3035, %v3048
        %v3050 = vcombine.high %v3042, %v3042
        %v3051 = vcombine.high %v3049, %v3049
        %v3052 = vcombine.high %v1500, %v1500
        %v3054 = vunpack.c.l.s4 1983009808
        %v3055 = vunpack.c.0.s8 %v3054
        %v3056 = vlaneseq
        %v3057 = vshrl.u32 %v3056, 7
        %v3058 = vsub.s32 %v3055, %v3057
        %v3059 = vrot.slane %v1500, %v3058
        %v3061 = vunpack.c.l.s4 1983009808
        %v3062 = vunpack.c.0.s8 %v3061
        %v3063 = vlaneseq
        %v3064 = vshrl.u32 %v3063, 7
        %v3065 = vsub.s32 %v3062, %v3064
        %v3066 = vrot.slane %v3052, %v3065
        %v3067 = vcombine.high %v3059, %v3059
        %v3068 = vcombine.high %v3066, %v3066
        %v3069 = vcombine.high %v1501, %v1501
        %v3071 = vunpack.c.l.s4 1983009808
        %v3072 = vunpack.c.0.s8 %v3071
        %v3073 = vlaneseq
        %v3074 = vshrl.u32 %v3073, 7
        %v3075 = vsub.s32 %v3072, %v3074
        %v3076 = vrot.slane %v1501, %v3075
        %v3078 = vunpack.c.l.s4 1983009808
        %v3079 = vunpack.c.0.s8 %v3078
        %v3080 = vlaneseq
        %v3081 = vshrl.u32 %v3080, 7
        %v3082 = vsub.s32 %v3079, %v3081
        %v3083 = vrot.slane %v3069, %v3082
        %v3084 = vcombine.high %v3076, %v3076
        %v3085 = vcombine.high %v3083, %v3083
        %v3086 = vcombine.high %v1502, %v1502
        %v3088 = vunpack.c.l.s4 1983009808
        %v3089 = vunpack.c.0.s8 %v3088
        %v3090 = vlaneseq
        %v3091 = vshrl.u32 %v3090, 7
        %v3092 = vsub.s32 %v3089, %v3091
        %v3093 = vrot.slane %v1502, %v3092
        %v3095 = vunpack.c.l.s4 1983009808
        %v3096 = vunpack.c.0.s8 %v3095
        %v3097 = vlaneseq
        %v3098 = vshrl.u32 %v3097, 7
        %v3099 = vsub.s32 %v3096, %v3098
        %v3100 = vrot.slane %v3086, %v3099
        %v3101 = vcombine.high %v3093, %v3093
        %v3102 = vcombine.high %v3100, %v3100
        %v3103 = vcombine.high %v1503, %v1503
        %v3105 = vunpack.c.l.s4 1983009808
        %v3106 = vunpack.c.0.s8 %v3105
        %v3107 = vlaneseq
        %v3108 = vshrl.u32 %v3107, 7
        %v3109 = vsub.s32 %v3106, %v3108
        %v3110 = vrot.slane %v1503, %v3109
        %v3112 = vunpack.c.l.s4 1983009808
        %v3113 = vunpack.c.0.s8 %v3112
        %v3114 = vlaneseq
        %v3115 = vshrl.u32 %v3114, 7
        %v3116 = vsub.s32 %v3113, %v3115
        %v3117 = vrot.slane %v3103, %v3116
        %v3118 = vcombine.high %v3110, %v3110
        %v3119 = vcombine.high %v3117, %v3117
        %v3120 = vcombine.high %v1504, %v1504
        %v3122 = vunpack.c.l.s4 1983009808
        %v3123 = vunpack.c.0.s8 %v3122
        %v3124 = vlaneseq
        %v3125 = vshrl.u32 %v3124, 7
        %v3126 = vsub.s32 %v3123, %v3125
        %v3127 = vrot.slane %v1504, %v3126
        %v3129 = vunpack.c.l.s4 1983009808
        %v3130 = vunpack.c.0.s8 %v3129
        %v3131 = vlaneseq
        %v3132 = vshrl.u32 %v3131, 7
        %v3133 = vsub.s32 %v3130, %v3132
        %v3134 = vrot.slane %v3120, %v3133
        %v3135 = vcombine.high %v3127, %v3127
        %v3136 = vcombine.high %v3134, %v3134
        %v3137 = vcombine.high %v1505, %v1505
        %v3139 = vunpack.c.l.s4 1983009808
        %v3140 = vunpack.c.0.s8 %v3139
        %v3141 = vlaneseq
        %v3142 = vshrl.u32 %v3141, 7
        %v3143 = vsub.s32 %v3140, %v3142
        %v3144 = vrot.slane %v1505, %v3143
        %v3146 = vunpack.c.l.s4 1983009808
        %v3147 = vunpack.c.0.s8 %v3146
        %v3148 = vlaneseq
        %v3149 = vshrl.u32 %v3148, 7
        %v3150 = vsub.s32 %v3147, %v3149
        %v3151 = vrot.slane %v3137, %v3150
        %v3152 = vcombine.high %v3144, %v3144
        %v3153 = vcombine.high %v3151, %v3151
        %v3154 = vcombine.high %v1506, %v1506
        %v3156 = vunpack.c.l.s4 1983009808
        %v3157 = vunpack.c.0.s8 %v3156
        %v3158 = vlaneseq
        %v3159 = vshrl.u32 %v3158, 7
        %v3160 = vsub.s32 %v3157, %v3159
        %v3161 = vrot.slane %v1506, %v3160
        %v3163 = vunpack.c.l.s4 1983009808
        %v3164 = vunpack.c.0.s8 %v3163
        %v3165 = vlaneseq
        %v3166 = vshrl.u32 %v3165, 7
        %v3167 = vsub.s32 %v3164, %v3166
        %v3168 = vrot.slane %v3154, %v3167
        %v3169 = vcombine.high %v3161, %v3161
        %v3170 = vcombine.high %v3168, %v3168
        %v3171 = vcombine.high %v1507, %v1507
        %v3173 = vunpack.c.l.s4 1983009808
        %v3174 = vunpack.c.0.s8 %v3173
        %v3175 = vlaneseq
        %v3176 = vshrl.u32 %v3175, 7
        %v3177 = vsub.s32 %v3174, %v3176
        %v3178 = vrot.slane %v1507, %v3177
        %v3180 = vunpack.c.l.s4 1983009808
        %v3181 = vunpack.c.0.s8 %v3180
        %v3182 = vlaneseq
        %v3183 = vshrl.u32 %v3182, 7
        %v3184 = vsub.s32 %v3181, %v3183
        %v3185 = vrot.slane %v3171, %v3184
        %v3186 = vcombine.high %v3178, %v3178
        %v3187 = vcombine.high %v3185, %v3185
        %v3188 = vcombine.high %v1508, %v1508
        %v3190 = vunpack.c.l.s4 1983009808
        %v3191 = vunpack.c.0.s8 %v3190
        %v3192 = vlaneseq
        %v3193 = vshrl.u32 %v3192, 7
        %v3194 = vsub.s32 %v3191, %v3193
        %v3195 = vrot.slane %v1508, %v3194
        %v3197 = vunpack.c.l.s4 1983009808
        %v3198 = vunpack.c.0.s8 %v3197
        %v3199 = vlaneseq
        %v3200 = vshrl.u32 %v3199, 7
        %v3201 = vsub.s32 %v3198, %v3200
        %v3202 = vrot.slane %v3188, %v3201
        %v3203 = vcombine.high %v3195, %v3195
        %v3204 = vcombine.high %v3202, %v3202
        %v3205 = vcombine.high %v1509, %v1509
        %v3207 = vunpack.c.l.s4 1983009808
        %v3208 = vunpack.c.0.s8 %v3207
        %v3209 = vlaneseq
        %v3210 = vshrl.u32 %v3209, 7
        %v3211 = vsub.s32 %v3208, %v3210
        %v3212 = vrot.slane %v1509, %v3211
        %v3214 = vunpack.c.l.s4 1983009808
        %v3215 = vunpack.c.0.s8 %v3214
        %v3216 = vlaneseq
        %v3217 = vshrl.u32 %v3216, 7
        %v3218 = vsub.s32 %v3215, %v3217
        %v3219 = vrot.slane %v3205, %v3218
        %v3220 = vcombine.high %v3212, %v3212
        %v3221 = vcombine.high %v3219, %v3219
        %v3222 = vcombine.high %v1510, %v1510
        %v3224 = vunpack.c.l.s4 1983009808
        %v3225 = vunpack.c.0.s8 %v3224
        %v3226 = vlaneseq
        %v3227 = vshrl.u32 %v3226, 7
        %v3228 = vsub.s32 %v3225, %v3227
        %v3229 = vrot.slane %v1510, %v3228
        %v3231 = vunpack.c.l.s4 1983009808
        %v3232 = vunpack.c.0.s8 %v3231
        %v3233 = vlaneseq
        %v3234 = vshrl.u32 %v3233, 7
        %v3235 = vsub.s32 %v3232, %v3234
        %v3236 = vrot.slane %v3222, %v3235
        %v3237 = vcombine.high %v3229, %v3229
        %v3238 = vcombine.high %v3236, %v3236
        %v3239 = vcombine.high %v1511, %v1511
        %v3241 = vunpack.c.l.s4 1983009808
        %v3242 = vunpack.c.0.s8 %v3241
        %v3243 = vlaneseq
        %v3244 = vshrl.u32 %v3243, 7
        %v3245 = vsub.s32 %v3242, %v3244
        %v3246 = vrot.slane %v1511, %v3245
        %v3248 = vunpack.c.l.s4 1983009808
        %v3249 = vunpack.c.0.s8 %v3248
        %v3250 = vlaneseq
        %v3251 = vshrl.u32 %v3250, 7
        %v3252 = vsub.s32 %v3249, %v3251
        %v3253 = vrot.slane %v3239, %v3252
        %v3254 = vcombine.high %v3246, %v3246
        %v3255 = vcombine.high %v3253, %v3253
        %v3256 = vcombine.high %v1512, %v1512
        %v3258 = vunpack.c.l.s4 1983009808
        %v3259 = vunpack.c.0.s8 %v3258
        %v3260 = vlaneseq
        %v3261 = vshrl.u32 %v3260, 7
        %v3262 = vsub.s32 %v3259, %v3261
        %v3263 = vrot.slane %v1512, %v3262
        %v3265 = vunpack.c.l.s4 1983009808
        %v3266 = vunpack.c.0.s8 %v3265
        %v3267 = vlaneseq
        %v3268 = vshrl.u32 %v3267, 7
        %v3269 = vsub.s32 %v3266, %v3268
        %v3270 = vrot.slane %v3256, %v3269
        %v3271 = vcombine.high %v3263, %v3263
        %v3272 = vcombine.high %v3270, %v3270
        %v3273 = vcombine.high %v1513, %v1513
        %v3275 = vunpack.c.l.s4 1983009808
        %v3276 = vunpack.c.0.s8 %v3275
        %v3277 = vlaneseq
        %v3278 = vshrl.u32 %v3277, 7
        %v3279 = vsub.s32 %v3276, %v3278
        %v3280 = vrot.slane %v1513, %v3279
        %v3282 = vunpack.c.l.s4 1983009808
        %v3283 = vunpack.c.0.s8 %v3282
        %v3284 = vlaneseq
        %v3285 = vshrl.u32 %v3284, 7
        %v3286 = vsub.s32 %v3283, %v3285
        %v3287 = vrot.slane %v3273, %v3286
        %v3288 = vcombine.high %v3280, %v3280
        %v3289 = vcombine.high %v3287, %v3287
        %v3290 = vcombine.high %v1514, %v1514
        %v3292 = vunpack.c.l.s4 1983009808
        %v3293 = vunpack.c.0.s8 %v3292
        %v3294 = vlaneseq
        %v3295 = vshrl.u32 %v3294, 7
        %v3296 = vsub.s32 %v3293, %v3295
        %v3297 = vrot.slane %v1514, %v3296
        %v3299 = vunpack.c.l.s4 1983009808
        %v3300 = vunpack.c.0.s8 %v3299
        %v3301 = vlaneseq
        %v3302 = vshrl.u32 %v3301, 7
        %v3303 = vsub.s32 %v3300, %v3302
        %v3304 = vrot.slane %v3290, %v3303
        %v3305 = vcombine.high %v3297, %v3297
        %v3306 = vcombine.high %v3304, %v3304
        %v3307 = vcombine.high %v1515, %v1515
        %v3309 = vunpack.c.l.s4 1983009808
        %v3310 = vunpack.c.0.s8 %v3309
        %v3311 = vlaneseq
        %v3312 = vshrl.u32 %v3311, 7
        %v3313 = vsub.s32 %v3310, %v3312
        %v3314 = vrot.slane %v1515, %v3313
        %v3316 = vunpack.c.l.s4 1983009808
        %v3317 = vunpack.c.0.s8 %v3316
        %v3318 = vlaneseq
        %v3319 = vshrl.u32 %v3318, 7
        %v3320 = vsub.s32 %v3317, %v3319
        %v3321 = vrot.slane %v3307, %v3320
        %v3322 = vcombine.high %v3314, %v3314
        %v3323 = vcombine.high %v3321, %v3321
        %v3324 = vcombine.high %v1516, %v1516
        %v3326 = vunpack.c.l.s4 1983009808
        %v3327 = vunpack.c.0.s8 %v3326
        %v3328 = vlaneseq
        %v3329 = vshrl.u32 %v3328, 7
        %v3330 = vsub.s32 %v3327, %v3329
        %v3331 = vrot.slane %v1516, %v3330
        %v3333 = vunpack.c.l.s4 1983009808
        %v3334 = vunpack.c.0.s8 %v3333
        %v3335 = vlaneseq
        %v3336 = vshrl.u32 %v3335, 7
        %v3337 = vsub.s32 %v3334, %v3336
        %v3338 = vrot.slane %v3324, %v3337
        %v3339 = vcombine.high %v3331, %v3331
        %v3340 = vcombine.high %v3338, %v3338
        %v3341 = vcombine.high %v1517, %v1517
        %v3343 = vunpack.c.l.s4 1983009808
        %v3344 = vunpack.c.0.s8 %v3343
        %v3345 = vlaneseq
        %v3346 = vshrl.u32 %v3345, 7
        %v3347 = vsub.s32 %v3344, %v3346
        %v3348 = vrot.slane %v1517, %v3347
        %v3350 = vunpack.c.l.s4 1983009808
        %v3351 = vunpack.c.0.s8 %v3350
        %v3352 = vlaneseq
        %v3353 = vshrl.u32 %v3352, 7
        %v3354 = vsub.s32 %v3351, %v3353
        %v3355 = vrot.slane %v3341, %v3354
        %v3356 = vcombine.high %v3348, %v3348
        %v3357 = vcombine.high %v3355, %v3355
        %v3358 = vcombine.high %v1518, %v1518
        %v3360 = vunpack.c.l.s4 1983009808
        %v3361 = vunpack.c.0.s8 %v3360
        %v3362 = vlaneseq
        %v3363 = vshrl.u32 %v3362, 7
        %v3364 = vsub.s32 %v3361, %v3363
        %v3365 = vrot.slane %v1518, %v3364
        %v3367 = vunpack.c.l.s4 1983009808
        %v3368 = vunpack.c.0.s8 %v3367
        %v3369 = vlaneseq
        %v3370 = vshrl.u32 %v3369, 7
        %v3371 = vsub.s32 %v3368, %v3370
        %v3372 = vrot.slane %v3358, %v3371
        %v3373 = vcombine.high %v3365, %v3365
        %v3374 = vcombine.high %v3372, %v3372
        %v3375 = vcombine.high %v1519, %v1519
        %v3377 = vunpack.c.l.s4 1983009808
        %v3378 = vunpack.c.0.s8 %v3377
        %v3379 = vlaneseq
        %v3380 = vshrl.u32 %v3379, 7
        %v3381 = vsub.s32 %v3378, %v3380
        %v3382 = vrot.slane %v1519, %v3381
        %v3384 = vunpack.c.l.s4 1983009808
        %v3385 = vunpack.c.0.s8 %v3384
        %v3386 = vlaneseq
        %v3387 = vshrl.u32 %v3386, 7
        %v3388 = vsub.s32 %v3385, %v3387
        %v3389 = vrot.slane %v3375, %v3388
        %v3390 = vcombine.high %v3382, %v3382
        %v3391 = vcombine.high %v3389, %v3389
        %v3392 = vcombine.high %v1520, %v1520
        %v3394 = vunpack.c.l.s4 1983009808
        %v3395 = vunpack.c.0.s8 %v3394
        %v3396 = vlaneseq
        %v3397 = vshrl.u32 %v3396, 7
        %v3398 = vsub.s32 %v3395, %v3397
        %v3399 = vrot.slane %v1520, %v3398
        %v3401 = vunpack.c.l.s4 1983009808
        %v3402 = vunpack.c.0.s8 %v3401
        %v3403 = vlaneseq
        %v3404 = vshrl.u32 %v3403, 7
        %v3405 = vsub.s32 %v3402, %v3404
        %v3406 = vrot.slane %v3392, %v3405
        %v3407 = vcombine.high %v3399, %v3399
        %v3408 = vcombine.high %v3406, %v3406
        %v3409 = vcombine.high %v1521, %v1521
        %v3411 = vunpack.c.l.s4 1983009808
        %v3412 = vunpack.c.0.s8 %v3411
        %v3413 = vlaneseq
        %v3414 = vshrl.u32 %v3413, 7
        %v3415 = vsub.s32 %v3412, %v3414
        %v3416 = vrot.slane %v1521, %v3415
        %v3418 = vunpack.c.l.s4 1983009808
        %v3419 = vunpack.c.0.s8 %v3418
        %v3420 = vlaneseq
        %v3421 = vshrl.u32 %v3420, 7
        %v3422 = vsub.s32 %v3419, %v3421
        %v3423 = vrot.slane %v3409, %v3422
        %v3424 = vcombine.high %v3416, %v3416
        %v3425 = vcombine.high %v3423, %v3423
        %v3426 = vcombine.high %v1522, %v1522
        %v3428 = vunpack.c.l.s4 1983009808
        %v3429 = vunpack.c.0.s8 %v3428
        %v3430 = vlaneseq
        %v3431 = vshrl.u32 %v3430, 7
        %v3432 = vsub.s32 %v3429, %v3431
        %v3433 = vrot.slane %v1522, %v3432
        %v3435 = vunpack.c.l.s4 1983009808
        %v3436 = vunpack.c.0.s8 %v3435
        %v3437 = vlaneseq
        %v3438 = vshrl.u32 %v3437, 7
        %v3439 = vsub.s32 %v3436, %v3438
        %v3440 = vrot.slane %v3426, %v3439
        %v3441 = vcombine.high %v3433, %v3433
        %v3442 = vcombine.high %v3440, %v3440
        %v3443 = vcombine.high %v1523, %v1523
        %v3445 = vunpack.c.l.s4 1983009808
        %v3446 = vunpack.c.0.s8 %v3445
        %v3447 = vlaneseq
        %v3448 = vshrl.u32 %v3447, 7
        %v3449 = vsub.s32 %v3446, %v3448
        %v3450 = vrot.slane %v1523, %v3449
        %v3452 = vunpack.c.l.s4 1983009808
        %v3453 = vunpack.c.0.s8 %v3452
        %v3454 = vlaneseq
        %v3455 = vshrl.u32 %v3454, 7
        %v3456 = vsub.s32 %v3453, %v3455
        %v3457 = vrot.slane %v3443, %v3456
        %v3458 = vcombine.high %v3450, %v3450
        %v3459 = vcombine.high %v3457, %v3457
        %v3460 = vcombine.high %v1524, %v1524
        %v3462 = vunpack.c.l.s4 1983009808
        %v3463 = vunpack.c.0.s8 %v3462
        %v3464 = vlaneseq
        %v3465 = vshrl.u32 %v3464, 7
        %v3466 = vsub.s32 %v3463, %v3465
        %v3467 = vrot.slane %v1524, %v3466
        %v3469 = vunpack.c.l.s4 1983009808
        %v3470 = vunpack.c.0.s8 %v3469
        %v3471 = vlaneseq
        %v3472 = vshrl.u32 %v3471, 7
        %v3473 = vsub.s32 %v3470, %v3472
        %v3474 = vrot.slane %v3460, %v3473
        %v3475 = vcombine.high %v3467, %v3467
        %v3476 = vcombine.high %v3474, %v3474
        %v3477 = vcombine.high %v1525, %v1525
        %v3479 = vunpack.c.l.s4 1983009808
        %v3480 = vunpack.c.0.s8 %v3479
        %v3481 = vlaneseq
        %v3482 = vshrl.u32 %v3481, 7
        %v3483 = vsub.s32 %v3480, %v3482
        %v3484 = vrot.slane %v1525, %v3483
        %v3486 = vunpack.c.l.s4 1983009808
        %v3487 = vunpack.c.0.s8 %v3486
        %v3488 = vlaneseq
        %v3489 = vshrl.u32 %v3488, 7
        %v3490 = vsub.s32 %v3487, %v3489
        %v3491 = vrot.slane %v3477, %v3490
        %v3492 = vcombine.high %v3484, %v3484
        %v3493 = vcombine.high %v3491, %v3491
        %v3494 = vcombine.high %v1526, %v1526
        %v3496 = vunpack.c.l.s4 1983009808
        %v3497 = vunpack.c.0.s8 %v3496
        %v3498 = vlaneseq
        %v3499 = vshrl.u32 %v3498, 7
        %v3500 = vsub.s32 %v3497, %v3499
        %v3501 = vrot.slane %v1526, %v3500
        %v3503 = vunpack.c.l.s4 1983009808
        %v3504 = vunpack.c.0.s8 %v3503
        %v3505 = vlaneseq
        %v3506 = vshrl.u32 %v3505, 7
        %v3507 = vsub.s32 %v3504, %v3506
        %v3508 = vrot.slane %v3494, %v3507
        %v3509 = vcombine.high %v3501, %v3501
        %v3510 = vcombine.high %v3508, %v3508
        %v3511 = vcombine.high %v1527, %v1527
        %v3513 = vunpack.c.l.s4 1983009808
        %v3514 = vunpack.c.0.s8 %v3513
        %v3515 = vlaneseq
        %v3516 = vshrl.u32 %v3515, 7
        %v3517 = vsub.s32 %v3514, %v3516
        %v3518 = vrot.slane %v1527, %v3517
        %v3520 = vunpack.c.l.s4 1983009808
        %v3521 = vunpack.c.0.s8 %v3520
        %v3522 = vlaneseq
        %v3523 = vshrl.u32 %v3522, 7
        %v3524 = vsub.s32 %v3521, %v3523
        %v3525 = vrot.slane %v3511, %v3524
        %v3526 = vcombine.high %v3518, %v3518
        %v3527 = vcombine.high %v3525, %v3525
        %v3528 = vcombine.high %v1528, %v1528
        %v3530 = vunpack.c.l.s4 1983009808
        %v3531 = vunpack.c.0.s8 %v3530
        %v3532 = vlaneseq
        %v3533 = vshrl.u32 %v3532, 7
        %v3534 = vsub.s32 %v3531, %v3533
        %v3535 = vrot.slane %v1528, %v3534
        %v3537 = vunpack.c.l.s4 1983009808
        %v3538 = vunpack.c.0.s8 %v3537
        %v3539 = vlaneseq
        %v3540 = vshrl.u32 %v3539, 7
        %v3541 = vsub.s32 %v3538, %v3540
        %v3542 = vrot.slane %v3528, %v3541
        %v3543 = vcombine.high %v3535, %v3535
        %v3544 = vcombine.high %v3542, %v3542
        %v3545 = vcombine.high %v1529, %v1529
        %v3547 = vunpack.c.l.s4 1983009808
        %v3548 = vunpack.c.0.s8 %v3547
        %v3549 = vlaneseq
        %v3550 = vshrl.u32 %v3549, 7
        %v3551 = vsub.s32 %v3548, %v3550
        %v3552 = vrot.slane %v1529, %v3551
        %v3554 = vunpack.c.l.s4 1983009808
        %v3555 = vunpack.c.0.s8 %v3554
        %v3556 = vlaneseq
        %v3557 = vshrl.u32 %v3556, 7
        %v3558 = vsub.s32 %v3555, %v3557
        %v3559 = vrot.slane %v3545, %v3558
        %v3560 = vcombine.high %v3552, %v3552
        %v3561 = vcombine.high %v3559, %v3559
        %v3562 = vcombine.high %v1530, %v1530
        %v3564 = vunpack.c.l.s4 1983009808
        %v3565 = vunpack.c.0.s8 %v3564
        %v3566 = vlaneseq
        %v3567 = vshrl.u32 %v3566, 7
        %v3568 = vsub.s32 %v3565, %v3567
        %v3569 = vrot.slane %v1530, %v3568
        %v3571 = vunpack.c.l.s4 1983009808
        %v3572 = vunpack.c.0.s8 %v3571
        %v3573 = vlaneseq
        %v3574 = vshrl.u32 %v3573, 7
        %v3575 = vsub.s32 %v3572, %v3574
        %v3576 = vrot.slane %v3562, %v3575
        %v3577 = vcombine.high %v3569, %v3569
        %v3578 = vcombine.high %v3576, %v3576
        %v3579 = vcombine.high %v1531, %v1531
        %v3581 = vunpack.c.l.s4 1983009808
        %v3582 = vunpack.c.0.s8 %v3581
        %v3583 = vlaneseq
        %v3584 = vshrl.u32 %v3583, 7
        %v3585 = vsub.s32 %v3582, %v3584
        %v3586 = vrot.slane %v1531, %v3585
        %v3588 = vunpack.c.l.s4 1983009808
        %v3589 = vunpack.c.0.s8 %v3588
        %v3590 = vlaneseq
        %v3591 = vshrl.u32 %v3590, 7
        %v3592 = vsub.s32 %v3589, %v3591
        %v3593 = vrot.slane %v3579, %v3592
        %v3594 = vcombine.high %v3586, %v3586
        %v3595 = vcombine.high %v3593, %v3593
        %v3596 = vcombine.high %v1532, %v1532
        %v3598 = vunpack.c.l.s4 1983009808
        %v3599 = vunpack.c.0.s8 %v3598
        %v3600 = vlaneseq
        %v3601 = vshrl.u32 %v3600, 7
        %v3602 = vsub.s32 %v3599, %v3601
        %v3603 = vrot.slane %v1532, %v3602
        %v3605 = vunpack.c.l.s4 1983009808
        %v3606 = vunpack.c.0.s8 %v3605
        %v3607 = vlaneseq
        %v3608 = vshrl.u32 %v3607, 7
        %v3609 = vsub.s32 %v3606, %v3608
        %v3610 = vrot.slane %v3596, %v3609
        %v3611 = vcombine.high %v3603, %v3603
        %v3612 = vcombine.high %v3610, %v3610
        %v3613 = vcombine.high %v1533, %v1533
        %v3615 = vunpack.c.l.s4 1983009808
        %v3616 = vunpack.c.0.s8 %v3615
        %v3617 = vlaneseq
        %v3618 = vshrl.u32 %v3617, 7
        %v3619 = vsub.s32 %v3616, %v3618
        %v3620 = vrot.slane %v1533, %v3619
        %v3622 = vunpack.c.l.s4 1983009808
        %v3623 = vunpack.c.0.s8 %v3622
        %v3624 = vlaneseq
        %v3625 = vshrl.u32 %v3624, 7
        %v3626 = vsub.s32 %v3623, %v3625
        %v3627 = vrot.slane %v3613, %v3626
        %v3628 = vcombine.high %v3620, %v3620
        %v3629 = vcombine.high %v3627, %v3627
        %v3630 = vcombine.high %v1534, %v1534
        %v3632 = vunpack.c.l.s4 1983009808
        %v3633 = vunpack.c.0.s8 %v3632
        %v3634 = vlaneseq
        %v3635 = vshrl.u32 %v3634, 7
        %v3636 = vsub.s32 %v3633, %v3635
        %v3637 = vrot.slane %v1534, %v3636
        %v3639 = vunpack.c.l.s4 1983009808
        %v3640 = vunpack.c.0.s8 %v3639
        %v3641 = vlaneseq
        %v3642 = vshrl.u32 %v3641, 7
        %v3643 = vsub.s32 %v3640, %v3642
        %v3644 = vrot.slane %v3630, %v3643
        %v3645 = vcombine.high %v3637, %v3637
        %v3646 = vcombine.high %v3644, %v3644
        %v3647 = vcombine.high %v1535, %v1535
        %v3649 = vunpack.c.l.s4 1983009808
        %v3650 = vunpack.c.0.s8 %v3649
        %v3651 = vlaneseq
        %v3652 = vshrl.u32 %v3651, 7
        %v3653 = vsub.s32 %v3650, %v3652
        %v3654 = vrot.slane %v1535, %v3653
        %v3656 = vunpack.c.l.s4 1983009808
        %v3657 = vunpack.c.0.s8 %v3656
        %v3658 = vlaneseq
        %v3659 = vshrl.u32 %v3658, 7
        %v3660 = vsub.s32 %v3657, %v3659
        %v3661 = vrot.slane %v3647, %v3660
        %v3662 = vcombine.high %v3654, %v3654
        %v3663 = vcombine.high %v3661, %v3661
        %v3664 = vcombine.high %v1536, %v1536
        %v3666 = vunpack.c.l.s4 1983009808
        %v3667 = vunpack.c.0.s8 %v3666
        %v3668 = vlaneseq
        %v3669 = vshrl.u32 %v3668, 7
        %v3670 = vsub.s32 %v3667, %v3669
        %v3671 = vrot.slane %v1536, %v3670
        %v3673 = vunpack.c.l.s4 1983009808
        %v3674 = vunpack.c.0.s8 %v3673
        %v3675 = vlaneseq
        %v3676 = vshrl.u32 %v3675, 7
        %v3677 = vsub.s32 %v3674, %v3676
        %v3678 = vrot.slane %v3664, %v3677
        %v3679 = vcombine.high %v3671, %v3671
        %v3680 = vcombine.high %v3678, %v3678
        %v3681 = vcombine.high %v1537, %v1537
        %v3683 = vunpack.c.l.s4 1983009808
        %v3684 = vunpack.c.0.s8 %v3683
        %v3685 = vlaneseq
        %v3686 = vshrl.u32 %v3685, 7
        %v3687 = vsub.s32 %v3684, %v3686
        %v3688 = vrot.slane %v1537, %v3687
        %v3690 = vunpack.c.l.s4 1983009808
        %v3691 = vunpack.c.0.s8 %v3690
        %v3692 = vlaneseq
        %v3693 = vshrl.u32 %v3692, 7
        %v3694 = vsub.s32 %v3691, %v3693
        %v3695 = vrot.slane %v3681, %v3694
        %v3696 = vcombine.high %v3688, %v3688
        %v3697 = vcombine.high %v3695, %v3695
        %v3698 = vcombine.high %v1538, %v1538
        %v3700 = vunpack.c.l.s4 1983009808
        %v3701 = vunpack.c.0.s8 %v3700
        %v3702 = vlaneseq
        %v3703 = vshrl.u32 %v3702, 7
        %v3704 = vsub.s32 %v3701, %v3703
        %v3705 = vrot.slane %v1538, %v3704
        %v3707 = vunpack.c.l.s4 1983009808
        %v3708 = vunpack.c.0.s8 %v3707
        %v3709 = vlaneseq
        %v3710 = vshrl.u32 %v3709, 7
        %v3711 = vsub.s32 %v3708, %v3710
        %v3712 = vrot.slane %v3698, %v3711
        %v3713 = vcombine.high %v3705, %v3705
        %v3714 = vcombine.high %v3712, %v3712
        %v3715 = vcombine.high %v1539, %v1539
        %v3717 = vunpack.c.l.s4 1983009808
        %v3718 = vunpack.c.0.s8 %v3717
        %v3719 = vlaneseq
        %v3720 = vshrl.u32 %v3719, 7
        %v3721 = vsub.s32 %v3718, %v3720
        %v3722 = vrot.slane %v1539, %v3721
        %v3724 = vunpack.c.l.s4 1983009808
        %v3725 = vunpack.c.0.s8 %v3724
        %v3726 = vlaneseq
        %v3727 = vshrl.u32 %v3726, 7
        %v3728 = vsub.s32 %v3725, %v3727
        %v3729 = vrot.slane %v3715, %v3728
        %v3730 = vcombine.high %v3722, %v3722
        %v3731 = vcombine.high %v3729, %v3729
        %v3732 = vcombine.high %v1540, %v1540
        %v3734 = vunpack.c.l.s4 1983009808
        %v3735 = vunpack.c.0.s8 %v3734
        %v3736 = vlaneseq
        %v3737 = vshrl.u32 %v3736, 7
        %v3738 = vsub.s32 %v3735, %v3737
        %v3739 = vrot.slane %v1540, %v3738
        %v3741 = vunpack.c.l.s4 1983009808
        %v3742 = vunpack.c.0.s8 %v3741
        %v3743 = vlaneseq
        %v3744 = vshrl.u32 %v3743, 7
        %v3745 = vsub.s32 %v3742, %v3744
        %v3746 = vrot.slane %v3732, %v3745
        %v3747 = vcombine.high %v3739, %v3739
        %v3748 = vcombine.high %v3746, %v3746
        %v3749 = vcombine.high %v1541, %v1541
        %v3751 = vunpack.c.l.s4 1983009808
        %v3752 = vunpack.c.0.s8 %v3751
        %v3753 = vlaneseq
        %v3754 = vshrl.u32 %v3753, 7
        %v3755 = vsub.s32 %v3752, %v3754
        %v3756 = vrot.slane %v1541, %v3755
        %v3758 = vunpack.c.l.s4 1983009808
        %v3759 = vunpack.c.0.s8 %v3758
        %v3760 = vlaneseq
        %v3761 = vshrl.u32 %v3760, 7
        %v3762 = vsub.s32 %v3759, %v3761
        %v3763 = vrot.slane %v3749, %v3762
        %v3764 = vcombine.high %v3756, %v3756
        %v3765 = vcombine.high %v3763, %v3763
        %v3766 = vcombine.high %v1542, %v1542
        %v3768 = vunpack.c.l.s4 1983009808
        %v3769 = vunpack.c.0.s8 %v3768
        %v3770 = vlaneseq
        %v3771 = vshrl.u32 %v3770, 7
        %v3772 = vsub.s32 %v3769, %v3771
        %v3773 = vrot.slane %v1542, %v3772
        %v3775 = vunpack.c.l.s4 1983009808
        %v3776 = vunpack.c.0.s8 %v3775
        %v3777 = vlaneseq
        %v3778 = vshrl.u32 %v3777, 7
        %v3779 = vsub.s32 %v3776, %v3778
        %v3780 = vrot.slane %v3766, %v3779
        %v3781 = vcombine.high %v3773, %v3773
        %v3782 = vcombine.high %v3780, %v3780
        %v3783 = vcombine.high %v1543, %v1543
        %v3785 = vunpack.c.l.s4 1983009808
        %v3786 = vunpack.c.0.s8 %v3785
        %v3787 = vlaneseq
        %v3788 = vshrl.u32 %v3787, 7
        %v3789 = vsub.s32 %v3786, %v3788
        %v3790 = vrot.slane %v1543, %v3789
        %v3792 = vunpack.c.l.s4 1983009808
        %v3793 = vunpack.c.0.s8 %v3792
        %v3794 = vlaneseq
        %v3795 = vshrl.u32 %v3794, 7
        %v3796 = vsub.s32 %v3793, %v3795
        %v3797 = vrot.slane %v3783, %v3796
        %v3798 = vcombine.high %v3790, %v3790
        %v3799 = vcombine.high %v3797, %v3797
        %v3800 = vcombine.high %v1544, %v1544
        %v3802 = vunpack.c.l.s4 1983009808
        %v3803 = vunpack.c.0.s8 %v3802
        %v3804 = vlaneseq
        %v3805 = vshrl.u32 %v3804, 7
        %v3806 = vsub.s32 %v3803, %v3805
        %v3807 = vrot.slane %v1544, %v3806
        %v3809 = vunpack.c.l.s4 1983009808
        %v3810 = vunpack.c.0.s8 %v3809
        %v3811 = vlaneseq
        %v3812 = vshrl.u32 %v3811, 7
        %v3813 = vsub.s32 %v3810, %v3812
        %v3814 = vrot.slane %v3800, %v3813
        %v3815 = vcombine.high %v3807, %v3807
        %v3816 = vcombine.high %v3814, %v3814
        %v3817 = vcombine.high %v1545, %v1545
        %v3819 = vunpack.c.l.s4 1983009808
        %v3820 = vunpack.c.0.s8 %v3819
        %v3821 = vlaneseq
        %v3822 = vshrl.u32 %v3821, 7
        %v3823 = vsub.s32 %v3820, %v3822
        %v3824 = vrot.slane %v1545, %v3823
        %v3826 = vunpack.c.l.s4 1983009808
        %v3827 = vunpack.c.0.s8 %v3826
        %v3828 = vlaneseq
        %v3829 = vshrl.u32 %v3828, 7
        %v3830 = vsub.s32 %v3827, %v3829
        %v3831 = vrot.slane %v3817, %v3830
        %v3832 = vcombine.high %v3824, %v3824
        %v3833 = vcombine.high %v3831, %v3831
        %v3834 = vcombine.high %v1546, %v1546
        %v3836 = vunpack.c.l.s4 1983009808
        %v3837 = vunpack.c.0.s8 %v3836
        %v3838 = vlaneseq
        %v3839 = vshrl.u32 %v3838, 7
        %v3840 = vsub.s32 %v3837, %v3839
        %v3841 = vrot.slane %v1546, %v3840
        %v3843 = vunpack.c.l.s4 1983009808
        %v3844 = vunpack.c.0.s8 %v3843
        %v3845 = vlaneseq
        %v3846 = vshrl.u32 %v3845, 7
        %v3847 = vsub.s32 %v3844, %v3846
        %v3848 = vrot.slane %v3834, %v3847
        %v3849 = vcombine.high %v3841, %v3841
        %v3850 = vcombine.high %v3848, %v3848
        %vm4363 = vcmask 517120
        %v4364 = vsel %vm4363, %v1682, -inf
        %v4365 = vrot.slane %v4364, 4
        %v4366 = vmax.f32 %v4364, %v4365
        %v4367 = vrot.slane %v4366, 2
        %v4368 = vmax.f32 %v4366, %v4367
        %v4369 = vrot.slane %v4368, 1
        %v4370 = vmax.f32 %v4368, %v4369
        %v4371 = vsel %vm4363, %v1690, -inf
        %v4372 = vrot.slane %v4371, 4
        %v4373 = vmax.f32 %v4371, %v4372
        %v4374 = vrot.slane %v4373, 2
        %v4375 = vmax.f32 %v4373, %v4374
        %v4376 = vrot.slane %v4375, 1
        %v4377 = vmax.f32 %v4375, %v4376
        %v4378 = vsel %vm4363, %v1689, -inf
        %v4379 = vrot.slane %v4378, 4
        %v4380 = vmax.f32 %v4378, %v4379
        %v4381 = vrot.slane %v4380, 2
        %v4382 = vmax.f32 %v4380, %v4381
        %v4383 = vrot.slane %v4382, 1
        %v4384 = vmax.f32 %v4382, %v4383
        %v4385 = vsel %vm4363, %v1691, -inf
        %v4386 = vrot.slane %v4385, 4
        %v4387 = vmax.f32 %v4385, %v4386
        %v4388 = vrot.slane %v4387, 2
        %v4389 = vmax.f32 %v4387, %v4388
        %v4390 = vrot.slane %v4389, 1
        %v4391 = vmax.f32 %v4389, %v4390
        %v4392 = vsel %vm4363, %v1699, -inf
        %v4393 = vrot.slane %v4392, 4
        %v4394 = vmax.f32 %v4392, %v4393
        %v4395 = vrot.slane %v4394, 2
        %v4396 = vmax.f32 %v4394, %v4395
        %v4397 = vrot.slane %v4396, 1
        %v4398 = vmax.f32 %v4396, %v4397
        %v4399 = vsel %vm4363, %v1707, -inf
        %v4400 = vrot.slane %v4399, 4
        %v4401 = vmax.f32 %v4399, %v4400
        %v4402 = vrot.slane %v4401, 2
        %v4403 = vmax.f32 %v4401, %v4402
        %v4404 = vrot.slane %v4403, 1
        %v4405 = vmax.f32 %v4403, %v4404
        %v4406 = vsel %vm4363, %v1706, -inf
        %v4407 = vrot.slane %v4406, 4
        %v4408 = vmax.f32 %v4406, %v4407
        %v4409 = vrot.slane %v4408, 2
        %v4410 = vmax.f32 %v4408, %v4409
        %v4411 = vrot.slane %v4410, 1
        %v4412 = vmax.f32 %v4410, %v4411
        %v4413 = vsel %vm4363, %v1708, -inf
        %v4414 = vrot.slane %v4413, 4
        %v4415 = vmax.f32 %v4413, %v4414
        %v4416 = vrot.slane %v4415, 2
        %v4417 = vmax.f32 %v4415, %v4416
        %v4418 = vrot.slane %v4417, 1
        %v4419 = vmax.f32 %v4417, %v4418
        %v4420 = vsel %vm4363, %v1716, -inf
        %v4421 = vrot.slane %v4420, 4
        %v4422 = vmax.f32 %v4420, %v4421
        %v4423 = vrot.slane %v4422, 2
        %v4424 = vmax.f32 %v4422, %v4423
        %v4425 = vrot.slane %v4424, 1
        %v4426 = vmax.f32 %v4424, %v4425
        %v4427 = vsel %vm4363, %v1724, -inf
        %v4428 = vrot.slane %v4427, 4
        %v4429 = vmax.f32 %v4427, %v4428
        %v4430 = vrot.slane %v4429, 2
        %v4431 = vmax.f32 %v4429, %v4430
        %v4432 = vrot.slane %v4431, 1
        %v4433 = vmax.f32 %v4431, %v4432
        %v4434 = vsel %vm4363, %v1723, -inf
        %v4435 = vrot.slane %v4434, 4
        %v4436 = vmax.f32 %v4434, %v4435
        %v4437 = vrot.slane %v4436, 2
        %v4438 = vmax.f32 %v4436, %v4437
        %v4439 = vrot.slane %v4438, 1
        %v4440 = vmax.f32 %v4438, %v4439
        %v4441 = vsel %vm4363, %v1725, -inf
        %v4442 = vrot.slane %v4441, 4
        %v4443 = vmax.f32 %v4441, %v4442
        %v4444 = vrot.slane %v4443, 2
        %v4445 = vmax.f32 %v4443, %v4444
        %v4446 = vrot.slane %v4445, 1
        %v4447 = vmax.f32 %v4445, %v4446
        %v4448 = vsel %vm4363, %v1733, -inf
        %v4449 = vrot.slane %v4448, 4
        %v4450 = vmax.f32 %v4448, %v4449
        %v4451 = vrot.slane %v4450, 2
        %v4452 = vmax.f32 %v4450, %v4451
        %v4453 = vrot.slane %v4452, 1
        %v4454 = vmax.f32 %v4452, %v4453
        %v4455 = vsel %vm4363, %v1741, -inf
        %v4456 = vrot.slane %v4455, 4
        %v4457 = vmax.f32 %v4455, %v4456
        %v4458 = vrot.slane %v4457, 2
        %v4459 = vmax.f32 %v4457, %v4458
        %v4460 = vrot.slane %v4459, 1
        %v4461 = vmax.f32 %v4459, %v4460
        %v4462 = vsel %vm4363, %v1740, -inf
        %v4463 = vrot.slane %v4462, 4
        %v4464 = vmax.f32 %v4462, %v4463
        %v4465 = vrot.slane %v4464, 2
        %v4466 = vmax.f32 %v4464, %v4465
        %v4467 = vrot.slane %v4466, 1
        %v4468 = vmax.f32 %v4466, %v4467
        %v4469 = vsel %vm4363, %v1742, -inf
        %v4470 = vrot.slane %v4469, 4
        %v4471 = vmax.f32 %v4469, %v4470
        %v4472 = vrot.slane %v4471, 2
        %v4473 = vmax.f32 %v4471, %v4472
        %v4474 = vrot.slane %v4473, 1
        %v4475 = vmax.f32 %v4473, %v4474
        %v4476 = vsel %vm4363, %v1750, -inf
        %v4477 = vrot.slane %v4476, 4
        %v4478 = vmax.f32 %v4476, %v4477
        %v4479 = vrot.slane %v4478, 2
        %v4480 = vmax.f32 %v4478, %v4479
        %v4481 = vrot.slane %v4480, 1
        %v4482 = vmax.f32 %v4480, %v4481
        %v4483 = vsel %vm4363, %v1758, -inf
        %v4484 = vrot.slane %v4483, 4
        %v4485 = vmax.f32 %v4483, %v4484
        %v4486 = vrot.slane %v4485, 2
        %v4487 = vmax.f32 %v4485, %v4486
        %v4488 = vrot.slane %v4487, 1
        %v4489 = vmax.f32 %v4487, %v4488
        %v4490 = vsel %vm4363, %v1757, -inf
        %v4491 = vrot.slane %v4490, 4
        %v4492 = vmax.f32 %v4490, %v4491
        %v4493 = vrot.slane %v4492, 2
        %v4494 = vmax.f32 %v4492, %v4493
        %v4495 = vrot.slane %v4494, 1
        %v4496 = vmax.f32 %v4494, %v4495
        %v4497 = vsel %vm4363, %v1759, -inf
        %v4498 = vrot.slane %v4497, 4
        %v4499 = vmax.f32 %v4497, %v4498
        %v4500 = vrot.slane %v4499, 2
        %v4501 = vmax.f32 %v4499, %v4500
        %v4502 = vrot.slane %v4501, 1
        %v4503 = vmax.f32 %v4501, %v4502
        %v4504 = vsel %vm4363, %v1767, -inf
        %v4505 = vrot.slane %v4504, 4
        %v4506 = vmax.f32 %v4504, %v4505
        %v4507 = vrot.slane %v4506, 2
        %v4508 = vmax.f32 %v4506, %v4507
        %v4509 = vrot.slane %v4508, 1
        %v4510 = vmax.f32 %v4508, %v4509
        %v4511 = vsel %vm4363, %v1775, -inf
        %v4512 = vrot.slane %v4511, 4
        %v4513 = vmax.f32 %v4511, %v4512
        %v4514 = vrot.slane %v4513, 2
        %v4515 = vmax.f32 %v4513, %v4514
        %v4516 = vrot.slane %v4515, 1
        %v4517 = vmax.f32 %v4515, %v4516
        %v4518 = vsel %vm4363, %v1774, -inf
        %v4519 = vrot.slane %v4518, 4
        %v4520 = vmax.f32 %v4518, %v4519
        %v4521 = vrot.slane %v4520, 2
        %v4522 = vmax.f32 %v4520, %v4521
        %v4523 = vrot.slane %v4522, 1
        %v4524 = vmax.f32 %v4522, %v4523
        %v4525 = vsel %vm4363, %v1776, -inf
        %v4526 = vrot.slane %v4525, 4
        %v4527 = vmax.f32 %v4525, %v4526
        %v4528 = vrot.slane %v4527, 2
        %v4529 = vmax.f32 %v4527, %v4528
        %v4530 = vrot.slane %v4529, 1
        %v4531 = vmax.f32 %v4529, %v4530
        %v4532 = vsel %vm4363, %v1784, -inf
        %v4533 = vrot.slane %v4532, 4
        %v4534 = vmax.f32 %v4532, %v4533
        %v4535 = vrot.slane %v4534, 2
        %v4536 = vmax.f32 %v4534, %v4535
        %v4537 = vrot.slane %v4536, 1
        %v4538 = vmax.f32 %v4536, %v4537
        %v4539 = vsel %vm4363, %v1792, -inf
        %v4540 = vrot.slane %v4539, 4
        %v4541 = vmax.f32 %v4539, %v4540
        %v4542 = vrot.slane %v4541, 2
        %v4543 = vmax.f32 %v4541, %v4542
        %v4544 = vrot.slane %v4543, 1
        %v4545 = vmax.f32 %v4543, %v4544
        %v4546 = vsel %vm4363, %v1791, -inf
        %v4547 = vrot.slane %v4546, 4
        %v4548 = vmax.f32 %v4546, %v4547
        %v4549 = vrot.slane %v4548, 2
        %v4550 = vmax.f32 %v4548, %v4549
        %v4551 = vrot.slane %v4550, 1
        %v4552 = vmax.f32 %v4550, %v4551
        %v4553 = vsel %vm4363, %v1793, -inf
        %v4554 = vrot.slane %v4553, 4
        %v4555 = vmax.f32 %v4553, %v4554
        %v4556 = vrot.slane %v4555, 2
        %v4557 = vmax.f32 %v4555, %v4556
        %v4558 = vrot.slane %v4557, 1
        %v4559 = vmax.f32 %v4557, %v4558
        %v4560 = vsel %vm4363, %v1801, -inf
        %v4561 = vrot.slane %v4560, 4
        %v4562 = vmax.f32 %v4560, %v4561
        %v4563 = vrot.slane %v4562, 2
        %v4564 = vmax.f32 %v4562, %v4563
        %v4565 = vrot.slane %v4564, 1
        %v4566 = vmax.f32 %v4564, %v4565
        %v4567 = vsel %vm4363, %v1809, -inf
        %v4568 = vrot.slane %v4567, 4
        %v4569 = vmax.f32 %v4567, %v4568
        %v4570 = vrot.slane %v4569, 2
        %v4571 = vmax.f32 %v4569, %v4570
        %v4572 = vrot.slane %v4571, 1
        %v4573 = vmax.f32 %v4571, %v4572
        %v4574 = vsel %vm4363, %v1808, -inf
        %v4575 = vrot.slane %v4574, 4
        %v4576 = vmax.f32 %v4574, %v4575
        %v4577 = vrot.slane %v4576, 2
        %v4578 = vmax.f32 %v4576, %v4577
        %v4579 = vrot.slane %v4578, 1
        %v4580 = vmax.f32 %v4578, %v4579
        %v4581 = vsel %vm4363, %v1810, -inf
        %v4582 = vrot.slane %v4581, 4
        %v4583 = vmax.f32 %v4581, %v4582
        %v4584 = vrot.slane %v4583, 2
        %v4585 = vmax.f32 %v4583, %v4584
        %v4586 = vrot.slane %v4585, 1
        %v4587 = vmax.f32 %v4585, %v4586
        %v4588 = vsel %vm4363, %v1818, -inf
        %v4589 = vrot.slane %v4588, 4
        %v4590 = vmax.f32 %v4588, %v4589
        %v4591 = vrot.slane %v4590, 2
        %v4592 = vmax.f32 %v4590, %v4591
        %v4593 = vrot.slane %v4592, 1
        %v4594 = vmax.f32 %v4592, %v4593
        %v4595 = vsel %vm4363, %v1826, -inf
        %v4596 = vrot.slane %v4595, 4
        %v4597 = vmax.f32 %v4595, %v4596
        %v4598 = vrot.slane %v4597, 2
        %v4599 = vmax.f32 %v4597, %v4598
        %v4600 = vrot.slane %v4599, 1
        %v4601 = vmax.f32 %v4599, %v4600
        %v4602 = vsel %vm4363, %v1825, -inf
        %v4603 = vrot.slane %v4602, 4
        %v4604 = vmax.f32 %v4602, %v4603
        %v4605 = vrot.slane %v4604, 2
        %v4606 = vmax.f32 %v4604, %v4605
        %v4607 = vrot.slane %v4606, 1
        %v4608 = vmax.f32 %v4606, %v4607
        %v4609 = vsel %vm4363, %v1827, -inf
        %v4610 = vrot.slane %v4609, 4
        %v4611 = vmax.f32 %v4609, %v4610
        %v4612 = vrot.slane %v4611, 2
        %v4613 = vmax.f32 %v4611, %v4612
        %v4614 = vrot.slane %v4613, 1
        %v4615 = vmax.f32 %v4613, %v4614
        %v4616 = vsel %vm4363, %v1835, -inf
        %v4617 = vrot.slane %v4616, 4
        %v4618 = vmax.f32 %v4616, %v4617
        %v4619 = vrot.slane %v4618, 2
        %v4620 = vmax.f32 %v4618, %v4619
        %v4621 = vrot.slane %v4620, 1
        %v4622 = vmax.f32 %v4620, %v4621
        %v4623 = vsel %vm4363, %v1843, -inf
        %v4624 = vrot.slane %v4623, 4
        %v4625 = vmax.f32 %v4623, %v4624
        %v4626 = vrot.slane %v4625, 2
        %v4627 = vmax.f32 %v4625, %v4626
        %v4628 = vrot.slane %v4627, 1
        %v4629 = vmax.f32 %v4627, %v4628
        %v4630 = vsel %vm4363, %v1842, -inf
        %v4631 = vrot.slane %v4630, 4
        %v4632 = vmax.f32 %v4630, %v4631
        %v4633 = vrot.slane %v4632, 2
        %v4634 = vmax.f32 %v4632, %v4633
        %v4635 = vrot.slane %v4634, 1
        %v4636 = vmax.f32 %v4634, %v4635
        %v4637 = vsel %vm4363, %v1844, -inf
        %v4638 = vrot.slane %v4637, 4
        %v4639 = vmax.f32 %v4637, %v4638
        %v4640 = vrot.slane %v4639, 2
        %v4641 = vmax.f32 %v4639, %v4640
        %v4642 = vrot.slane %v4641, 1
        %v4643 = vmax.f32 %v4641, %v4642
        %v4644 = vsel %vm4363, %v1852, -inf
        %v4645 = vrot.slane %v4644, 4
        %v4646 = vmax.f32 %v4644, %v4645
        %v4647 = vrot.slane %v4646, 2
        %v4648 = vmax.f32 %v4646, %v4647
        %v4649 = vrot.slane %v4648, 1
        %v4650 = vmax.f32 %v4648, %v4649
        %v4651 = vsel %vm4363, %v1860, -inf
        %v4652 = vrot.slane %v4651, 4
        %v4653 = vmax.f32 %v4651, %v4652
        %v4654 = vrot.slane %v4653, 2
        %v4655 = vmax.f32 %v4653, %v4654
        %v4656 = vrot.slane %v4655, 1
        %v4657 = vmax.f32 %v4655, %v4656
        %v4658 = vsel %vm4363, %v1859, -inf
        %v4659 = vrot.slane %v4658, 4
        %v4660 = vmax.f32 %v4658, %v4659
        %v4661 = vrot.slane %v4660, 2
        %v4662 = vmax.f32 %v4660, %v4661
        %v4663 = vrot.slane %v4662, 1
        %v4664 = vmax.f32 %v4662, %v4663
        %v4665 = vsel %vm4363, %v1861, -inf
        %v4666 = vrot.slane %v4665, 4
        %v4667 = vmax.f32 %v4665, %v4666
        %v4668 = vrot.slane %v4667, 2
        %v4669 = vmax.f32 %v4667, %v4668
        %v4670 = vrot.slane %v4669, 1
        %v4671 = vmax.f32 %v4669, %v4670
        %v4672 = vsel %vm4363, %v1869, -inf
        %v4673 = vrot.slane %v4672, 4
        %v4674 = vmax.f32 %v4672, %v4673
        %v4675 = vrot.slane %v4674, 2
        %v4676 = vmax.f32 %v4674, %v4675
        %v4677 = vrot.slane %v4676, 1
        %v4678 = vmax.f32 %v4676, %v4677
        %v4679 = vsel %vm4363, %v1877, -inf
        %v4680 = vrot.slane %v4679, 4
        %v4681 = vmax.f32 %v4679, %v4680
        %v4682 = vrot.slane %v4681, 2
        %v4683 = vmax.f32 %v4681, %v4682
        %v4684 = vrot.slane %v4683, 1
        %v4685 = vmax.f32 %v4683, %v4684
        %v4686 = vsel %vm4363, %v1876, -inf
        %v4687 = vrot.slane %v4686, 4
        %v4688 = vmax.f32 %v4686, %v4687
        %v4689 = vrot.slane %v4688, 2
        %v4690 = vmax.f32 %v4688, %v4689
        %v4691 = vrot.slane %v4690, 1
        %v4692 = vmax.f32 %v4690, %v4691
        %v4693 = vsel %vm4363, %v1878, -inf
        %v4694 = vrot.slane %v4693, 4
        %v4695 = vmax.f32 %v4693, %v4694
        %v4696 = vrot.slane %v4695, 2
        %v4697 = vmax.f32 %v4695, %v4696
        %v4698 = vrot.slane %v4697, 1
        %v4699 = vmax.f32 %v4697, %v4698
        %v4700 = vsel %vm4363, %v1886, -inf
        %v4701 = vrot.slane %v4700, 4
        %v4702 = vmax.f32 %v4700, %v4701
        %v4703 = vrot.slane %v4702, 2
        %v4704 = vmax.f32 %v4702, %v4703
        %v4705 = vrot.slane %v4704, 1
        %v4706 = vmax.f32 %v4704, %v4705
        %v4707 = vsel %vm4363, %v1894, -inf
        %v4708 = vrot.slane %v4707, 4
        %v4709 = vmax.f32 %v4707, %v4708
        %v4710 = vrot.slane %v4709, 2
        %v4711 = vmax.f32 %v4709, %v4710
        %v4712 = vrot.slane %v4711, 1
        %v4713 = vmax.f32 %v4711, %v4712
        %v4714 = vsel %vm4363, %v1893, -inf
        %v4715 = vrot.slane %v4714, 4
        %v4716 = vmax.f32 %v4714, %v4715
        %v4717 = vrot.slane %v4716, 2
        %v4718 = vmax.f32 %v4716, %v4717
        %v4719 = vrot.slane %v4718, 1
        %v4720 = vmax.f32 %v4718, %v4719
        %v4721 = vsel %vm4363, %v1895, -inf
        %v4722 = vrot.slane %v4721, 4
        %v4723 = vmax.f32 %v4721, %v4722
        %v4724 = vrot.slane %v4723, 2
        %v4725 = vmax.f32 %v4723, %v4724
        %v4726 = vrot.slane %v4725, 1
        %v4727 = vmax.f32 %v4725, %v4726
        %v4728 = vsel %vm4363, %v1903, -inf
        %v4729 = vrot.slane %v4728, 4
        %v4730 = vmax.f32 %v4728, %v4729
        %v4731 = vrot.slane %v4730, 2
        %v4732 = vmax.f32 %v4730, %v4731
        %v4733 = vrot.slane %v4732, 1
        %v4734 = vmax.f32 %v4732, %v4733
        %v4735 = vsel %vm4363, %v1911, -inf
        %v4736 = vrot.slane %v4735, 4
        %v4737 = vmax.f32 %v4735, %v4736
        %v4738 = vrot.slane %v4737, 2
        %v4739 = vmax.f32 %v4737, %v4738
        %v4740 = vrot.slane %v4739, 1
        %v4741 = vmax.f32 %v4739, %v4740
        %v4742 = vsel %vm4363, %v1910, -inf
        %v4743 = vrot.slane %v4742, 4
        %v4744 = vmax.f32 %v4742, %v4743
        %v4745 = vrot.slane %v4744, 2
        %v4746 = vmax.f32 %v4744, %v4745
        %v4747 = vrot.slane %v4746, 1
        %v4748 = vmax.f32 %v4746, %v4747
        %v4749 = vsel %vm4363, %v1912, -inf
        %v4750 = vrot.slane %v4749, 4
        %v4751 = vmax.f32 %v4749, %v4750
        %v4752 = vrot.slane %v4751, 2
        %v4753 = vmax.f32 %v4751, %v4752
        %v4754 = vrot.slane %v4753, 1
        %v4755 = vmax.f32 %v4753, %v4754
        %v4756 = vsel %vm4363, %v1920, -inf
        %v4757 = vrot.slane %v4756, 4
        %v4758 = vmax.f32 %v4756, %v4757
        %v4759 = vrot.slane %v4758, 2
        %v4760 = vmax.f32 %v4758, %v4759
        %v4761 = vrot.slane %v4760, 1
        %v4762 = vmax.f32 %v4760, %v4761
        %v4763 = vsel %vm4363, %v1928, -inf
        %v4764 = vrot.slane %v4763, 4
        %v4765 = vmax.f32 %v4763, %v4764
        %v4766 = vrot.slane %v4765, 2
        %v4767 = vmax.f32 %v4765, %v4766
        %v4768 = vrot.slane %v4767, 1
        %v4769 = vmax.f32 %v4767, %v4768
        %v4770 = vsel %vm4363, %v1927, -inf
        %v4771 = vrot.slane %v4770, 4
        %v4772 = vmax.f32 %v4770, %v4771
        %v4773 = vrot.slane %v4772, 2
        %v4774 = vmax.f32 %v4772, %v4773
        %v4775 = vrot.slane %v4774, 1
        %v4776 = vmax.f32 %v4774, %v4775
        %v4777 = vsel %vm4363, %v1929, -inf
        %v4778 = vrot.slane %v4777, 4
        %v4779 = vmax.f32 %v4777, %v4778
        %v4780 = vrot.slane %v4779, 2
        %v4781 = vmax.f32 %v4779, %v4780
        %v4782 = vrot.slane %v4781, 1
        %v4783 = vmax.f32 %v4781, %v4782
        %v4784 = vsel %vm4363, %v1937, -inf
        %v4785 = vrot.slane %v4784, 4
        %v4786 = vmax.f32 %v4784, %v4785
        %v4787 = vrot.slane %v4786, 2
        %v4788 = vmax.f32 %v4786, %v4787
        %v4789 = vrot.slane %v4788, 1
        %v4790 = vmax.f32 %v4788, %v4789
        %v4791 = vsel %vm4363, %v1945, -inf
        %v4792 = vrot.slane %v4791, 4
        %v4793 = vmax.f32 %v4791, %v4792
        %v4794 = vrot.slane %v4793, 2
        %v4795 = vmax.f32 %v4793, %v4794
        %v4796 = vrot.slane %v4795, 1
        %v4797 = vmax.f32 %v4795, %v4796
        %v4798 = vsel %vm4363, %v1944, -inf
        %v4799 = vrot.slane %v4798, 4
        %v4800 = vmax.f32 %v4798, %v4799
        %v4801 = vrot.slane %v4800, 2
        %v4802 = vmax.f32 %v4800, %v4801
        %v4803 = vrot.slane %v4802, 1
        %v4804 = vmax.f32 %v4802, %v4803
        %v4805 = vsel %vm4363, %v1946, -inf
        %v4806 = vrot.slane %v4805, 4
        %v4807 = vmax.f32 %v4805, %v4806
        %v4808 = vrot.slane %v4807, 2
        %v4809 = vmax.f32 %v4807, %v4808
        %v4810 = vrot.slane %v4809, 1
        %v4811 = vmax.f32 %v4809, %v4810
        %v4812 = vsel %vm4363, %v1954, -inf
        %v4813 = vrot.slane %v4812, 4
        %v4814 = vmax.f32 %v4812, %v4813
        %v4815 = vrot.slane %v4814, 2
        %v4816 = vmax.f32 %v4814, %v4815
        %v4817 = vrot.slane %v4816, 1
        %v4818 = vmax.f32 %v4816, %v4817
        %v4819 = vsel %vm4363, %v1962, -inf
        %v4820 = vrot.slane %v4819, 4
        %v4821 = vmax.f32 %v4819, %v4820
        %v4822 = vrot.slane %v4821, 2
        %v4823 = vmax.f32 %v4821, %v4822
        %v4824 = vrot.slane %v4823, 1
        %v4825 = vmax.f32 %v4823, %v4824
        %v4826 = vsel %vm4363, %v1961, -inf
        %v4827 = vrot.slane %v4826, 4
        %v4828 = vmax.f32 %v4826, %v4827
        %v4829 = vrot.slane %v4828, 2
        %v4830 = vmax.f32 %v4828, %v4829
        %v4831 = vrot.slane %v4830, 1
        %v4832 = vmax.f32 %v4830, %v4831
        %v4833 = vsel %vm4363, %v1963, -inf
        %v4834 = vrot.slane %v4833, 4
        %v4835 = vmax.f32 %v4833, %v4834
        %v4836 = vrot.slane %v4835, 2
        %v4837 = vmax.f32 %v4835, %v4836
        %v4838 = vrot.slane %v4837, 1
        %v4839 = vmax.f32 %v4837, %v4838
        %v4840 = vsel %vm4363, %v1971, -inf
        %v4841 = vrot.slane %v4840, 4
        %v4842 = vmax.f32 %v4840, %v4841
        %v4843 = vrot.slane %v4842, 2
        %v4844 = vmax.f32 %v4842, %v4843
        %v4845 = vrot.slane %v4844, 1
        %v4846 = vmax.f32 %v4844, %v4845
        %v4847 = vsel %vm4363, %v1979, -inf
        %v4848 = vrot.slane %v4847, 4
        %v4849 = vmax.f32 %v4847, %v4848
        %v4850 = vrot.slane %v4849, 2
        %v4851 = vmax.f32 %v4849, %v4850
        %v4852 = vrot.slane %v4851, 1
        %v4853 = vmax.f32 %v4851, %v4852
        %v4854 = vsel %vm4363, %v1978, -inf
        %v4855 = vrot.slane %v4854, 4
        %v4856 = vmax.f32 %v4854, %v4855
        %v4857 = vrot.slane %v4856, 2
        %v4858 = vmax.f32 %v4856, %v4857
        %v4859 = vrot.slane %v4858, 1
        %v4860 = vmax.f32 %v4858, %v4859
        %v4861 = vsel %vm4363, %v1980, -inf
        %v4862 = vrot.slane %v4861, 4
        %v4863 = vmax.f32 %v4861, %v4862
        %v4864 = vrot.slane %v4863, 2
        %v4865 = vmax.f32 %v4863, %v4864
        %v4866 = vrot.slane %v4865, 1
        %v4867 = vmax.f32 %v4865, %v4866
        %v4868 = vsel %vm4363, %v1988, -inf
        %v4869 = vrot.slane %v4868, 4
        %v4870 = vmax.f32 %v4868, %v4869
        %v4871 = vrot.slane %v4870, 2
        %v4872 = vmax.f32 %v4870, %v4871
        %v4873 = vrot.slane %v4872, 1
        %v4874 = vmax.f32 %v4872, %v4873
        %v4875 = vsel %vm4363, %v1996, -inf
        %v4876 = vrot.slane %v4875, 4
        %v4877 = vmax.f32 %v4875, %v4876
        %v4878 = vrot.slane %v4877, 2
        %v4879 = vmax.f32 %v4877, %v4878
        %v4880 = vrot.slane %v4879, 1
        %v4881 = vmax.f32 %v4879, %v4880
        %v4882 = vsel %vm4363, %v1995, -inf
        %v4883 = vrot.slane %v4882, 4
        %v4884 = vmax.f32 %v4882, %v4883
        %v4885 = vrot.slane %v4884, 2
        %v4886 = vmax.f32 %v4884, %v4885
        %v4887 = vrot.slane %v4886, 1
        %v4888 = vmax.f32 %v4886, %v4887
        %v4889 = vsel %vm4363, %v1997, -inf
        %v4890 = vrot.slane %v4889, 4
        %v4891 = vmax.f32 %v4889, %v4890
        %v4892 = vrot.slane %v4891, 2
        %v4893 = vmax.f32 %v4891, %v4892
        %v4894 = vrot.slane %v4893, 1
        %v4895 = vmax.f32 %v4893, %v4894
        %v4896 = vsel %vm4363, %v2005, -inf
        %v4897 = vrot.slane %v4896, 4
        %v4898 = vmax.f32 %v4896, %v4897
        %v4899 = vrot.slane %v4898, 2
        %v4900 = vmax.f32 %v4898, %v4899
        %v4901 = vrot.slane %v4900, 1
        %v4902 = vmax.f32 %v4900, %v4901
        %v4903 = vsel %vm4363, %v2013, -inf
        %v4904 = vrot.slane %v4903, 4
        %v4905 = vmax.f32 %v4903, %v4904
        %v4906 = vrot.slane %v4905, 2
        %v4907 = vmax.f32 %v4905, %v4906
        %v4908 = vrot.slane %v4907, 1
        %v4909 = vmax.f32 %v4907, %v4908
        %v4910 = vsel %vm4363, %v2012, -inf
        %v4911 = vrot.slane %v4910, 4
        %v4912 = vmax.f32 %v4910, %v4911
        %v4913 = vrot.slane %v4912, 2
        %v4914 = vmax.f32 %v4912, %v4913
        %v4915 = vrot.slane %v4914, 1
        %v4916 = vmax.f32 %v4914, %v4915
        %v4917 = vsel %vm4363, %v2014, -inf
        %v4918 = vrot.slane %v4917, 4
        %v4919 = vmax.f32 %v4917, %v4918
        %v4920 = vrot.slane %v4919, 2
        %v4921 = vmax.f32 %v4919, %v4920
        %v4922 = vrot.slane %v4921, 1
        %v4923 = vmax.f32 %v4921, %v4922
        %v4924 = vsel %vm4363, %v2022, -inf
        %v4925 = vrot.slane %v4924, 4
        %v4926 = vmax.f32 %v4924, %v4925
        %v4927 = vrot.slane %v4926, 2
        %v4928 = vmax.f32 %v4926, %v4927
        %v4929 = vrot.slane %v4928, 1
        %v4930 = vmax.f32 %v4928, %v4929
        %v4931 = vsel %vm4363, %v2030, -inf
        %v4932 = vrot.slane %v4931, 4
        %v4933 = vmax.f32 %v4931, %v4932
        %v4934 = vrot.slane %v4933, 2
        %v4935 = vmax.f32 %v4933, %v4934
        %v4936 = vrot.slane %v4935, 1
        %v4937 = vmax.f32 %v4935, %v4936
        %v4938 = vsel %vm4363, %v2029, -inf
        %v4939 = vrot.slane %v4938, 4
        %v4940 = vmax.f32 %v4938, %v4939
        %v4941 = vrot.slane %v4940, 2
        %v4942 = vmax.f32 %v4940, %v4941
        %v4943 = vrot.slane %v4942, 1
        %v4944 = vmax.f32 %v4942, %v4943
        %v4945 = vsel %vm4363, %v2031, -inf
        %v4946 = vrot.slane %v4945, 4
        %v4947 = vmax.f32 %v4945, %v4946
        %v4948 = vrot.slane %v4947, 2
        %v4949 = vmax.f32 %v4947, %v4948
        %v4950 = vrot.slane %v4949, 1
        %v4951 = vmax.f32 %v4949, %v4950
        %v4952 = vsel %vm4363, %v2039, -inf
        %v4953 = vrot.slane %v4952, 4
        %v4954 = vmax.f32 %v4952, %v4953
        %v4955 = vrot.slane %v4954, 2
        %v4956 = vmax.f32 %v4954, %v4955
        %v4957 = vrot.slane %v4956, 1
        %v4958 = vmax.f32 %v4956, %v4957
        %v4959 = vsel %vm4363, %v2047, -inf
        %v4960 = vrot.slane %v4959, 4
        %v4961 = vmax.f32 %v4959, %v4960
        %v4962 = vrot.slane %v4961, 2
        %v4963 = vmax.f32 %v4961, %v4962
        %v4964 = vrot.slane %v4963, 1
        %v4965 = vmax.f32 %v4963, %v4964
        %v4966 = vsel %vm4363, %v2046, -inf
        %v4967 = vrot.slane %v4966, 4
        %v4968 = vmax.f32 %v4966, %v4967
        %v4969 = vrot.slane %v4968, 2
        %v4970 = vmax.f32 %v4968, %v4969
        %v4971 = vrot.slane %v4970, 1
        %v4972 = vmax.f32 %v4970, %v4971
        %v4973 = vsel %vm4363, %v2048, -inf
        %v4974 = vrot.slane %v4973, 4
        %v4975 = vmax.f32 %v4973, %v4974
        %v4976 = vrot.slane %v4975, 2
        %v4977 = vmax.f32 %v4975, %v4976
        %v4978 = vrot.slane %v4977, 1
        %v4979 = vmax.f32 %v4977, %v4978
        %v4980 = vsel %vm4363, %v2056, -inf
        %v4981 = vrot.slane %v4980, 4
        %v4982 = vmax.f32 %v4980, %v4981
        %v4983 = vrot.slane %v4982, 2
        %v4984 = vmax.f32 %v4982, %v4983
        %v4985 = vrot.slane %v4984, 1
        %v4986 = vmax.f32 %v4984, %v4985
        %v4987 = vsel %vm4363, %v2064, -inf
        %v4988 = vrot.slane %v4987, 4
        %v4989 = vmax.f32 %v4987, %v4988
        %v4990 = vrot.slane %v4989, 2
        %v4991 = vmax.f32 %v4989, %v4990
        %v4992 = vrot.slane %v4991, 1
        %v4993 = vmax.f32 %v4991, %v4992
        %v4994 = vsel %vm4363, %v2063, -inf
        %v4995 = vrot.slane %v4994, 4
        %v4996 = vmax.f32 %v4994, %v4995
        %v4997 = vrot.slane %v4996, 2
        %v4998 = vmax.f32 %v4996, %v4997
        %v4999 = vrot.slane %v4998, 1
        %v5000 = vmax.f32 %v4998, %v4999
        %v5001 = vsel %vm4363, %v2065, -inf
        %v5002 = vrot.slane %v5001, 4
        %v5003 = vmax.f32 %v5001, %v5002
        %v5004 = vrot.slane %v5003, 2
        %v5005 = vmax.f32 %v5003, %v5004
        %v5006 = vrot.slane %v5005, 1
        %v5007 = vmax.f32 %v5005, %v5006
        %v5008 = vsel %vm4363, %v2073, -inf
        %v5009 = vrot.slane %v5008, 4
        %v5010 = vmax.f32 %v5008, %v5009
        %v5011 = vrot.slane %v5010, 2
        %v5012 = vmax.f32 %v5010, %v5011
        %v5013 = vrot.slane %v5012, 1
        %v5014 = vmax.f32 %v5012, %v5013
        %v5015 = vsel %vm4363, %v2081, -inf
        %v5016 = vrot.slane %v5015, 4
        %v5017 = vmax.f32 %v5015, %v5016
        %v5018 = vrot.slane %v5017, 2
        %v5019 = vmax.f32 %v5017, %v5018
        %v5020 = vrot.slane %v5019, 1
        %v5021 = vmax.f32 %v5019, %v5020
        %v5022 = vsel %vm4363, %v2080, -inf
        %v5023 = vrot.slane %v5022, 4
        %v5024 = vmax.f32 %v5022, %v5023
        %v5025 = vrot.slane %v5024, 2
        %v5026 = vmax.f32 %v5024, %v5025
        %v5027 = vrot.slane %v5026, 1
        %v5028 = vmax.f32 %v5026, %v5027
        %v5029 = vsel %vm4363, %v2082, -inf
        %v5030 = vrot.slane %v5029, 4
        %v5031 = vmax.f32 %v5029, %v5030
        %v5032 = vrot.slane %v5031, 2
        %v5033 = vmax.f32 %v5031, %v5032
        %v5034 = vrot.slane %v5033, 1
        %v5035 = vmax.f32 %v5033, %v5034
        %v5036 = vsel %vm4363, %v2090, -inf
        %v5037 = vrot.slane %v5036, 4
        %v5038 = vmax.f32 %v5036, %v5037
        %v5039 = vrot.slane %v5038, 2
        %v5040 = vmax.f32 %v5038, %v5039
        %v5041 = vrot.slane %v5040, 1
        %v5042 = vmax.f32 %v5040, %v5041
        %v5043 = vsel %vm4363, %v2098, -inf
        %v5044 = vrot.slane %v5043, 4
        %v5045 = vmax.f32 %v5043, %v5044
        %v5046 = vrot.slane %v5045, 2
        %v5047 = vmax.f32 %v5045, %v5046
        %v5048 = vrot.slane %v5047, 1
        %v5049 = vmax.f32 %v5047, %v5048
        %v5050 = vsel %vm4363, %v2097, -inf
        %v5051 = vrot.slane %v5050, 4
        %v5052 = vmax.f32 %v5050, %v5051
        %v5053 = vrot.slane %v5052, 2
        %v5054 = vmax.f32 %v5052, %v5053
        %v5055 = vrot.slane %v5054, 1
        %v5056 = vmax.f32 %v5054, %v5055
        %v5057 = vsel %vm4363, %v2099, -inf
        %v5058 = vrot.slane %v5057, 4
        %v5059 = vmax.f32 %v5057, %v5058
        %v5060 = vrot.slane %v5059, 2
        %v5061 = vmax.f32 %v5059, %v5060
        %v5062 = vrot.slane %v5061, 1
        %v5063 = vmax.f32 %v5061, %v5062
        %v5064 = vsel %vm4363, %v2107, -inf
        %v5065 = vrot.slane %v5064, 4
        %v5066 = vmax.f32 %v5064, %v5065
        %v5067 = vrot.slane %v5066, 2
        %v5068 = vmax.f32 %v5066, %v5067
        %v5069 = vrot.slane %v5068, 1
        %v5070 = vmax.f32 %v5068, %v5069
        %v5071 = vsel %vm4363, %v2115, -inf
        %v5072 = vrot.slane %v5071, 4
        %v5073 = vmax.f32 %v5071, %v5072
        %v5074 = vrot.slane %v5073, 2
        %v5075 = vmax.f32 %v5073, %v5074
        %v5076 = vrot.slane %v5075, 1
        %v5077 = vmax.f32 %v5075, %v5076
        %v5078 = vsel %vm4363, %v2114, -inf
        %v5079 = vrot.slane %v5078, 4
        %v5080 = vmax.f32 %v5078, %v5079
        %v5081 = vrot.slane %v5080, 2
        %v5082 = vmax.f32 %v5080, %v5081
        %v5083 = vrot.slane %v5082, 1
        %v5084 = vmax.f32 %v5082, %v5083
        %v5085 = vsel %vm4363, %v2116, -inf
        %v5086 = vrot.slane %v5085, 4
        %v5087 = vmax.f32 %v5085, %v5086
        %v5088 = vrot.slane %v5087, 2
        %v5089 = vmax.f32 %v5087, %v5088
        %v5090 = vrot.slane %v5089, 1
        %v5091 = vmax.f32 %v5089, %v5090
        %v5092 = vsel %vm4363, %v2124, -inf
        %v5093 = vrot.slane %v5092, 4
        %v5094 = vmax.f32 %v5092, %v5093
        %v5095 = vrot.slane %v5094, 2
        %v5096 = vmax.f32 %v5094, %v5095
        %v5097 = vrot.slane %v5096, 1
        %v5098 = vmax.f32 %v5096, %v5097
        %v5099 = vsel %vm4363, %v2132, -inf
        %v5100 = vrot.slane %v5099, 4
        %v5101 = vmax.f32 %v5099, %v5100
        %v5102 = vrot.slane %v5101, 2
        %v5103 = vmax.f32 %v5101, %v5102
        %v5104 = vrot.slane %v5103, 1
        %v5105 = vmax.f32 %v5103, %v5104
        %v5106 = vsel %vm4363, %v2131, -inf
        %v5107 = vrot.slane %v5106, 4
        %v5108 = vmax.f32 %v5106, %v5107
        %v5109 = vrot.slane %v5108, 2
        %v5110 = vmax.f32 %v5108, %v5109
        %v5111 = vrot.slane %v5110, 1
        %v5112 = vmax.f32 %v5110, %v5111
        %v5113 = vsel %vm4363, %v2133, -inf
        %v5114 = vrot.slane %v5113, 4
        %v5115 = vmax.f32 %v5113, %v5114
        %v5116 = vrot.slane %v5115, 2
        %v5117 = vmax.f32 %v5115, %v5116
        %v5118 = vrot.slane %v5117, 1
        %v5119 = vmax.f32 %v5117, %v5118
        %v5120 = vsel %vm4363, %v2141, -inf
        %v5121 = vrot.slane %v5120, 4
        %v5122 = vmax.f32 %v5120, %v5121
        %v5123 = vrot.slane %v5122, 2
        %v5124 = vmax.f32 %v5122, %v5123
        %v5125 = vrot.slane %v5124, 1
        %v5126 = vmax.f32 %v5124, %v5125
        %v5127 = vsel %vm4363, %v2149, -inf
        %v5128 = vrot.slane %v5127, 4
        %v5129 = vmax.f32 %v5127, %v5128
        %v5130 = vrot.slane %v5129, 2
        %v5131 = vmax.f32 %v5129, %v5130
        %v5132 = vrot.slane %v5131, 1
        %v5133 = vmax.f32 %v5131, %v5132
        %v5134 = vsel %vm4363, %v2148, -inf
        %v5135 = vrot.slane %v5134, 4
        %v5136 = vmax.f32 %v5134, %v5135
        %v5137 = vrot.slane %v5136, 2
        %v5138 = vmax.f32 %v5136, %v5137
        %v5139 = vrot.slane %v5138, 1
        %v5140 = vmax.f32 %v5138, %v5139
        %v5141 = vsel %vm4363, %v2150, -inf
        %v5142 = vrot.slane %v5141, 4
        %v5143 = vmax.f32 %v5141, %v5142
        %v5144 = vrot.slane %v5143, 2
        %v5145 = vmax.f32 %v5143, %v5144
        %v5146 = vrot.slane %v5145, 1
        %v5147 = vmax.f32 %v5145, %v5146
        %v5148 = vsel %vm4363, %v2158, -inf
        %v5149 = vrot.slane %v5148, 4
        %v5150 = vmax.f32 %v5148, %v5149
        %v5151 = vrot.slane %v5150, 2
        %v5152 = vmax.f32 %v5150, %v5151
        %v5153 = vrot.slane %v5152, 1
        %v5154 = vmax.f32 %v5152, %v5153
        %v5155 = vsel %vm4363, %v2166, -inf
        %v5156 = vrot.slane %v5155, 4
        %v5157 = vmax.f32 %v5155, %v5156
        %v5158 = vrot.slane %v5157, 2
        %v5159 = vmax.f32 %v5157, %v5158
        %v5160 = vrot.slane %v5159, 1
        %v5161 = vmax.f32 %v5159, %v5160
        %v5162 = vsel %vm4363, %v2165, -inf
        %v5163 = vrot.slane %v5162, 4
        %v5164 = vmax.f32 %v5162, %v5163
        %v5165 = vrot.slane %v5164, 2
        %v5166 = vmax.f32 %v5164, %v5165
        %v5167 = vrot.slane %v5166, 1
        %v5168 = vmax.f32 %v5166, %v5167
        %v5169 = vsel %vm4363, %v2167, -inf
        %v5170 = vrot.slane %v5169, 4
        %v5171 = vmax.f32 %v5169, %v5170
        %v5172 = vrot.slane %v5171, 2
        %v5173 = vmax.f32 %v5171, %v5172
        %v5174 = vrot.slane %v5173, 1
        %v5175 = vmax.f32 %v5173, %v5174
        %v5176 = vsel %vm4363, %v2175, -inf
        %v5177 = vrot.slane %v5176, 4
        %v5178 = vmax.f32 %v5176, %v5177
        %v5179 = vrot.slane %v5178, 2
        %v5180 = vmax.f32 %v5178, %v5179
        %v5181 = vrot.slane %v5180, 1
        %v5182 = vmax.f32 %v5180, %v5181
        %v5183 = vsel %vm4363, %v2183, -inf
        %v5184 = vrot.slane %v5183, 4
        %v5185 = vmax.f32 %v5183, %v5184
        %v5186 = vrot.slane %v5185, 2
        %v5187 = vmax.f32 %v5185, %v5186
        %v5188 = vrot.slane %v5187, 1
        %v5189 = vmax.f32 %v5187, %v5188
        %v5190 = vsel %vm4363, %v2182, -inf
        %v5191 = vrot.slane %v5190, 4
        %v5192 = vmax.f32 %v5190, %v5191
        %v5193 = vrot.slane %v5192, 2
        %v5194 = vmax.f32 %v5192, %v5193
        %v5195 = vrot.slane %v5194, 1
        %v5196 = vmax.f32 %v5194, %v5195
        %v5197 = vsel %vm4363, %v2184, -inf
        %v5198 = vrot.slane %v5197, 4
        %v5199 = vmax.f32 %v5197, %v5198
        %v5200 = vrot.slane %v5199, 2
        %v5201 = vmax.f32 %v5199, %v5200
        %v5202 = vrot.slane %v5201, 1
        %v5203 = vmax.f32 %v5201, %v5202
        %v5204 = vsel %vm4363, %v2192, -inf
        %v5205 = vrot.slane %v5204, 4
        %v5206 = vmax.f32 %v5204, %v5205
        %v5207 = vrot.slane %v5206, 2
        %v5208 = vmax.f32 %v5206, %v5207
        %v5209 = vrot.slane %v5208, 1
        %v5210 = vmax.f32 %v5208, %v5209
        %v5211 = vsel %vm4363, %v2200, -inf
        %v5212 = vrot.slane %v5211, 4
        %v5213 = vmax.f32 %v5211, %v5212
        %v5214 = vrot.slane %v5213, 2
        %v5215 = vmax.f32 %v5213, %v5214
        %v5216 = vrot.slane %v5215, 1
        %v5217 = vmax.f32 %v5215, %v5216
        %v5218 = vsel %vm4363, %v2199, -inf
        %v5219 = vrot.slane %v5218, 4
        %v5220 = vmax.f32 %v5218, %v5219
        %v5221 = vrot.slane %v5220, 2
        %v5222 = vmax.f32 %v5220, %v5221
        %v5223 = vrot.slane %v5222, 1
        %v5224 = vmax.f32 %v5222, %v5223
        %v5225 = vsel %vm4363, %v2201, -inf
        %v5226 = vrot.slane %v5225, 4
        %v5227 = vmax.f32 %v5225, %v5226
        %v5228 = vrot.slane %v5227, 2
        %v5229 = vmax.f32 %v5227, %v5228
        %v5230 = vrot.slane %v5229, 1
        %v5231 = vmax.f32 %v5229, %v5230
        %v5232 = vsel %vm4363, %v2209, -inf
        %v5233 = vrot.slane %v5232, 4
        %v5234 = vmax.f32 %v5232, %v5233
        %v5235 = vrot.slane %v5234, 2
        %v5236 = vmax.f32 %v5234, %v5235
        %v5237 = vrot.slane %v5236, 1
        %v5238 = vmax.f32 %v5236, %v5237
        %v5239 = vsel %vm4363, %v2217, -inf
        %v5240 = vrot.slane %v5239, 4
        %v5241 = vmax.f32 %v5239, %v5240
        %v5242 = vrot.slane %v5241, 2
        %v5243 = vmax.f32 %v5241, %v5242
        %v5244 = vrot.slane %v5243, 1
        %v5245 = vmax.f32 %v5243, %v5244
        %v5246 = vsel %vm4363, %v2216, -inf
        %v5247 = vrot.slane %v5246, 4
        %v5248 = vmax.f32 %v5246, %v5247
        %v5249 = vrot.slane %v5248, 2
        %v5250 = vmax.f32 %v5248, %v5249
        %v5251 = vrot.slane %v5250, 1
        %v5252 = vmax.f32 %v5250, %v5251
        %v5253 = vsel %vm4363, %v2218, -inf
        %v5254 = vrot.slane %v5253, 4
        %v5255 = vmax.f32 %v5253, %v5254
        %v5256 = vrot.slane %v5255, 2
        %v5257 = vmax.f32 %v5255, %v5256
        %v5258 = vrot.slane %v5257, 1
        %v5259 = vmax.f32 %v5257, %v5258
        %v5260 = vsel %vm4363, %v2226, -inf
        %v5261 = vrot.slane %v5260, 4
        %v5262 = vmax.f32 %v5260, %v5261
        %v5263 = vrot.slane %v5262, 2
        %v5264 = vmax.f32 %v5262, %v5263
        %v5265 = vrot.slane %v5264, 1
        %v5266 = vmax.f32 %v5264, %v5265
        %v5267 = vsel %vm4363, %v2234, -inf
        %v5268 = vrot.slane %v5267, 4
        %v5269 = vmax.f32 %v5267, %v5268
        %v5270 = vrot.slane %v5269, 2
        %v5271 = vmax.f32 %v5269, %v5270
        %v5272 = vrot.slane %v5271, 1
        %v5273 = vmax.f32 %v5271, %v5272
        %v5274 = vsel %vm4363, %v2233, -inf
        %v5275 = vrot.slane %v5274, 4
        %v5276 = vmax.f32 %v5274, %v5275
        %v5277 = vrot.slane %v5276, 2
        %v5278 = vmax.f32 %v5276, %v5277
        %v5279 = vrot.slane %v5278, 1
        %v5280 = vmax.f32 %v5278, %v5279
        %v5281 = vsel %vm4363, %v2235, -inf
        %v5282 = vrot.slane %v5281, 4
        %v5283 = vmax.f32 %v5281, %v5282
        %v5284 = vrot.slane %v5283, 2
        %v5285 = vmax.f32 %v5283, %v5284
        %v5286 = vrot.slane %v5285, 1
        %v5287 = vmax.f32 %v5285, %v5286
        %v5288 = vsel %vm4363, %v2243, -inf
        %v5289 = vrot.slane %v5288, 4
        %v5290 = vmax.f32 %v5288, %v5289
        %v5291 = vrot.slane %v5290, 2
        %v5292 = vmax.f32 %v5290, %v5291
        %v5293 = vrot.slane %v5292, 1
        %v5294 = vmax.f32 %v5292, %v5293
        %v5295 = vsel %vm4363, %v2251, -inf
        %v5296 = vrot.slane %v5295, 4
        %v5297 = vmax.f32 %v5295, %v5296
        %v5298 = vrot.slane %v5297, 2
        %v5299 = vmax.f32 %v5297, %v5298
        %v5300 = vrot.slane %v5299, 1
        %v5301 = vmax.f32 %v5299, %v5300
        %v5302 = vsel %vm4363, %v2250, -inf
        %v5303 = vrot.slane %v5302, 4
        %v5304 = vmax.f32 %v5302, %v5303
        %v5305 = vrot.slane %v5304, 2
        %v5306 = vmax.f32 %v5304, %v5305
        %v5307 = vrot.slane %v5306, 1
        %v5308 = vmax.f32 %v5306, %v5307
        %v5309 = vsel %vm4363, %v2252, -inf
        %v5310 = vrot.slane %v5309, 4
        %v5311 = vmax.f32 %v5309, %v5310
        %v5312 = vrot.slane %v5311, 2
        %v5313 = vmax.f32 %v5311, %v5312
        %v5314 = vrot.slane %v5313, 1
        %v5315 = vmax.f32 %v5313, %v5314
        %v5316 = vsel %vm4363, %v2260, -inf
        %v5317 = vrot.slane %v5316, 4
        %v5318 = vmax.f32 %v5316, %v5317
        %v5319 = vrot.slane %v5318, 2
        %v5320 = vmax.f32 %v5318, %v5319
        %v5321 = vrot.slane %v5320, 1
        %v5322 = vmax.f32 %v5320, %v5321
        %v5323 = vsel %vm4363, %v2268, -inf
        %v5324 = vrot.slane %v5323, 4
        %v5325 = vmax.f32 %v5323, %v5324
        %v5326 = vrot.slane %v5325, 2
        %v5327 = vmax.f32 %v5325, %v5326
        %v5328 = vrot.slane %v5327, 1
        %v5329 = vmax.f32 %v5327, %v5328
        %v5330 = vsel %vm4363, %v2267, -inf
        %v5331 = vrot.slane %v5330, 4
        %v5332 = vmax.f32 %v5330, %v5331
        %v5333 = vrot.slane %v5332, 2
        %v5334 = vmax.f32 %v5332, %v5333
        %v5335 = vrot.slane %v5334, 1
        %v5336 = vmax.f32 %v5334, %v5335
        %v5337 = vsel %vm4363, %v2269, -inf
        %v5338 = vrot.slane %v5337, 4
        %v5339 = vmax.f32 %v5337, %v5338
        %v5340 = vrot.slane %v5339, 2
        %v5341 = vmax.f32 %v5339, %v5340
        %v5342 = vrot.slane %v5341, 1
        %v5343 = vmax.f32 %v5341, %v5342
        %v5344 = vsel %vm4363, %v2277, -inf
        %v5345 = vrot.slane %v5344, 4
        %v5346 = vmax.f32 %v5344, %v5345
        %v5347 = vrot.slane %v5346, 2
        %v5348 = vmax.f32 %v5346, %v5347
        %v5349 = vrot.slane %v5348, 1
        %v5350 = vmax.f32 %v5348, %v5349
        %v5351 = vsel %vm4363, %v2285, -inf
        %v5352 = vrot.slane %v5351, 4
        %v5353 = vmax.f32 %v5351, %v5352
        %v5354 = vrot.slane %v5353, 2
        %v5355 = vmax.f32 %v5353, %v5354
        %v5356 = vrot.slane %v5355, 1
        %v5357 = vmax.f32 %v5355, %v5356
        %v5358 = vsel %vm4363, %v2284, -inf
        %v5359 = vrot.slane %v5358, 4
        %v5360 = vmax.f32 %v5358, %v5359
        %v5361 = vrot.slane %v5360, 2
        %v5362 = vmax.f32 %v5360, %v5361
        %v5363 = vrot.slane %v5362, 1
        %v5364 = vmax.f32 %v5362, %v5363
        %v5365 = vsel %vm4363, %v2286, -inf
        %v5366 = vrot.slane %v5365, 4
        %v5367 = vmax.f32 %v5365, %v5366
        %v5368 = vrot.slane %v5367, 2
        %v5369 = vmax.f32 %v5367, %v5368
        %v5370 = vrot.slane %v5369, 1
        %v5371 = vmax.f32 %v5369, %v5370
        %v5372 = vsel %vm4363, %v2294, -inf
        %v5373 = vrot.slane %v5372, 4
        %v5374 = vmax.f32 %v5372, %v5373
        %v5375 = vrot.slane %v5374, 2
        %v5376 = vmax.f32 %v5374, %v5375
        %v5377 = vrot.slane %v5376, 1
        %v5378 = vmax.f32 %v5376, %v5377
        %v5379 = vsel %vm4363, %v2302, -inf
        %v5380 = vrot.slane %v5379, 4
        %v5381 = vmax.f32 %v5379, %v5380
        %v5382 = vrot.slane %v5381, 2
        %v5383 = vmax.f32 %v5381, %v5382
        %v5384 = vrot.slane %v5383, 1
        %v5385 = vmax.f32 %v5383, %v5384
        %v5386 = vsel %vm4363, %v2301, -inf
        %v5387 = vrot.slane %v5386, 4
        %v5388 = vmax.f32 %v5386, %v5387
        %v5389 = vrot.slane %v5388, 2
        %v5390 = vmax.f32 %v5388, %v5389
        %v5391 = vrot.slane %v5390, 1
        %v5392 = vmax.f32 %v5390, %v5391
        %v5393 = vsel %vm4363, %v2303, -inf
        %v5394 = vrot.slane %v5393, 4
        %v5395 = vmax.f32 %v5393, %v5394
        %v5396 = vrot.slane %v5395, 2
        %v5397 = vmax.f32 %v5395, %v5396
        %v5398 = vrot.slane %v5397, 1
        %v5399 = vmax.f32 %v5397, %v5398
        %v5400 = vsel %vm4363, %v2311, -inf
        %v5401 = vrot.slane %v5400, 4
        %v5402 = vmax.f32 %v5400, %v5401
        %v5403 = vrot.slane %v5402, 2
        %v5404 = vmax.f32 %v5402, %v5403
        %v5405 = vrot.slane %v5404, 1
        %v5406 = vmax.f32 %v5404, %v5405
        %v5407 = vsel %vm4363, %v2319, -inf
        %v5408 = vrot.slane %v5407, 4
        %v5409 = vmax.f32 %v5407, %v5408
        %v5410 = vrot.slane %v5409, 2
        %v5411 = vmax.f32 %v5409, %v5410
        %v5412 = vrot.slane %v5411, 1
        %v5413 = vmax.f32 %v5411, %v5412
        %v5414 = vsel %vm4363, %v2318, -inf
        %v5415 = vrot.slane %v5414, 4
        %v5416 = vmax.f32 %v5414, %v5415
        %v5417 = vrot.slane %v5416, 2
        %v5418 = vmax.f32 %v5416, %v5417
        %v5419 = vrot.slane %v5418, 1
        %v5420 = vmax.f32 %v5418, %v5419
        %v5421 = vsel %vm4363, %v2320, -inf
        %v5422 = vrot.slane %v5421, 4
        %v5423 = vmax.f32 %v5421, %v5422
        %v5424 = vrot.slane %v5423, 2
        %v5425 = vmax.f32 %v5423, %v5424
        %v5426 = vrot.slane %v5425, 1
        %v5427 = vmax.f32 %v5425, %v5426
        %v5428 = vsel %vm4363, %v2328, -inf
        %v5429 = vrot.slane %v5428, 4
        %v5430 = vmax.f32 %v5428, %v5429
        %v5431 = vrot.slane %v5430, 2
        %v5432 = vmax.f32 %v5430, %v5431
        %v5433 = vrot.slane %v5432, 1
        %v5434 = vmax.f32 %v5432, %v5433
        %v5435 = vsel %vm4363, %v2336, -inf
        %v5436 = vrot.slane %v5435, 4
        %v5437 = vmax.f32 %v5435, %v5436
        %v5438 = vrot.slane %v5437, 2
        %v5439 = vmax.f32 %v5437, %v5438
        %v5440 = vrot.slane %v5439, 1
        %v5441 = vmax.f32 %v5439, %v5440
        %v5442 = vsel %vm4363, %v2335, -inf
        %v5443 = vrot.slane %v5442, 4
        %v5444 = vmax.f32 %v5442, %v5443
        %v5445 = vrot.slane %v5444, 2
        %v5446 = vmax.f32 %v5444, %v5445
        %v5447 = vrot.slane %v5446, 1
        %v5448 = vmax.f32 %v5446, %v5447
        %v5449 = vsel %vm4363, %v2337, -inf
        %v5450 = vrot.slane %v5449, 4
        %v5451 = vmax.f32 %v5449, %v5450
        %v5452 = vrot.slane %v5451, 2
        %v5453 = vmax.f32 %v5451, %v5452
        %v5454 = vrot.slane %v5453, 1
        %v5455 = vmax.f32 %v5453, %v5454
        %v5456 = vsel %vm4363, %v2345, -inf
        %v5457 = vrot.slane %v5456, 4
        %v5458 = vmax.f32 %v5456, %v5457
        %v5459 = vrot.slane %v5458, 2
        %v5460 = vmax.f32 %v5458, %v5459
        %v5461 = vrot.slane %v5460, 1
        %v5462 = vmax.f32 %v5460, %v5461
        %v5463 = vsel %vm4363, %v2353, -inf
        %v5464 = vrot.slane %v5463, 4
        %v5465 = vmax.f32 %v5463, %v5464
        %v5466 = vrot.slane %v5465, 2
        %v5467 = vmax.f32 %v5465, %v5466
        %v5468 = vrot.slane %v5467, 1
        %v5469 = vmax.f32 %v5467, %v5468
        %v5470 = vsel %vm4363, %v2352, -inf
        %v5471 = vrot.slane %v5470, 4
        %v5472 = vmax.f32 %v5470, %v5471
        %v5473 = vrot.slane %v5472, 2
        %v5474 = vmax.f32 %v5472, %v5473
        %v5475 = vrot.slane %v5474, 1
        %v5476 = vmax.f32 %v5474, %v5475
        %v5477 = vsel %vm4363, %v2354, -inf
        %v5478 = vrot.slane %v5477, 4
        %v5479 = vmax.f32 %v5477, %v5478
        %v5480 = vrot.slane %v5479, 2
        %v5481 = vmax.f32 %v5479, %v5480
        %v5482 = vrot.slane %v5481, 1
        %v5483 = vmax.f32 %v5481, %v5482
        %v5484 = vsel %vm4363, %v2362, -inf
        %v5485 = vrot.slane %v5484, 4
        %v5486 = vmax.f32 %v5484, %v5485
        %v5487 = vrot.slane %v5486, 2
        %v5488 = vmax.f32 %v5486, %v5487
        %v5489 = vrot.slane %v5488, 1
        %v5490 = vmax.f32 %v5488, %v5489
        %v5491 = vsel %vm4363, %v2370, -inf
        %v5492 = vrot.slane %v5491, 4
        %v5493 = vmax.f32 %v5491, %v5492
        %v5494 = vrot.slane %v5493, 2
        %v5495 = vmax.f32 %v5493, %v5494
        %v5496 = vrot.slane %v5495, 1
        %v5497 = vmax.f32 %v5495, %v5496
        %v5498 = vsel %vm4363, %v2369, -inf
        %v5499 = vrot.slane %v5498, 4
        %v5500 = vmax.f32 %v5498, %v5499
        %v5501 = vrot.slane %v5500, 2
        %v5502 = vmax.f32 %v5500, %v5501
        %v5503 = vrot.slane %v5502, 1
        %v5504 = vmax.f32 %v5502, %v5503
        %v5505 = vsel %vm4363, %v2371, -inf
        %v5506 = vrot.slane %v5505, 4
        %v5507 = vmax.f32 %v5505, %v5506
        %v5508 = vrot.slane %v5507, 2
        %v5509 = vmax.f32 %v5507, %v5508
        %v5510 = vrot.slane %v5509, 1
        %v5511 = vmax.f32 %v5509, %v5510
        %v5512 = vsel %vm4363, %v2379, -inf
        %v5513 = vrot.slane %v5512, 4
        %v5514 = vmax.f32 %v5512, %v5513
        %v5515 = vrot.slane %v5514, 2
        %v5516 = vmax.f32 %v5514, %v5515
        %v5517 = vrot.slane %v5516, 1
        %v5518 = vmax.f32 %v5516, %v5517
        %v5519 = vsel %vm4363, %v2387, -inf
        %v5520 = vrot.slane %v5519, 4
        %v5521 = vmax.f32 %v5519, %v5520
        %v5522 = vrot.slane %v5521, 2
        %v5523 = vmax.f32 %v5521, %v5522
        %v5524 = vrot.slane %v5523, 1
        %v5525 = vmax.f32 %v5523, %v5524
        %v5526 = vsel %vm4363, %v2386, -inf
        %v5527 = vrot.slane %v5526, 4
        %v5528 = vmax.f32 %v5526, %v5527
        %v5529 = vrot.slane %v5528, 2
        %v5530 = vmax.f32 %v5528, %v5529
        %v5531 = vrot.slane %v5530, 1
        %v5532 = vmax.f32 %v5530, %v5531
        %v5533 = vsel %vm4363, %v2388, -inf
        %v5534 = vrot.slane %v5533, 4
        %v5535 = vmax.f32 %v5533, %v5534
        %v5536 = vrot.slane %v5535, 2
        %v5537 = vmax.f32 %v5535, %v5536
        %v5538 = vrot.slane %v5537, 1
        %v5539 = vmax.f32 %v5537, %v5538
        %v5540 = vsel %vm4363, %v2396, -inf
        %v5541 = vrot.slane %v5540, 4
        %v5542 = vmax.f32 %v5540, %v5541
        %v5543 = vrot.slane %v5542, 2
        %v5544 = vmax.f32 %v5542, %v5543
        %v5545 = vrot.slane %v5544, 1
        %v5546 = vmax.f32 %v5544, %v5545
        %v5547 = vsel %vm4363, %v2404, -inf
        %v5548 = vrot.slane %v5547, 4
        %v5549 = vmax.f32 %v5547, %v5548
        %v5550 = vrot.slane %v5549, 2
        %v5551 = vmax.f32 %v5549, %v5550
        %v5552 = vrot.slane %v5551, 1
        %v5553 = vmax.f32 %v5551, %v5552
        %v5554 = vsel %vm4363, %v2403, -inf
        %v5555 = vrot.slane %v5554, 4
        %v5556 = vmax.f32 %v5554, %v5555
        %v5557 = vrot.slane %v5556, 2
        %v5558 = vmax.f32 %v5556, %v5557
        %v5559 = vrot.slane %v5558, 1
        %v5560 = vmax.f32 %v5558, %v5559
        %v5561 = vsel %vm4363, %v2405, -inf
        %v5562 = vrot.slane %v5561, 4
        %v5563 = vmax.f32 %v5561, %v5562
        %v5564 = vrot.slane %v5563, 2
        %v5565 = vmax.f32 %v5563, %v5564
        %v5566 = vrot.slane %v5565, 1
        %v5567 = vmax.f32 %v5565, %v5566
        %v5568 = vsel %vm4363, %v2413, -inf
        %v5569 = vrot.slane %v5568, 4
        %v5570 = vmax.f32 %v5568, %v5569
        %v5571 = vrot.slane %v5570, 2
        %v5572 = vmax.f32 %v5570, %v5571
        %v5573 = vrot.slane %v5572, 1
        %v5574 = vmax.f32 %v5572, %v5573
        %v5575 = vsel %vm4363, %v2421, -inf
        %v5576 = vrot.slane %v5575, 4
        %v5577 = vmax.f32 %v5575, %v5576
        %v5578 = vrot.slane %v5577, 2
        %v5579 = vmax.f32 %v5577, %v5578
        %v5580 = vrot.slane %v5579, 1
        %v5581 = vmax.f32 %v5579, %v5580
        %v5582 = vsel %vm4363, %v2420, -inf
        %v5583 = vrot.slane %v5582, 4
        %v5584 = vmax.f32 %v5582, %v5583
        %v5585 = vrot.slane %v5584, 2
        %v5586 = vmax.f32 %v5584, %v5585
        %v5587 = vrot.slane %v5586, 1
        %v5588 = vmax.f32 %v5586, %v5587
        %v5589 = vsel %vm4363, %v2422, -inf
        %v5590 = vrot.slane %v5589, 4
        %v5591 = vmax.f32 %v5589, %v5590
        %v5592 = vrot.slane %v5591, 2
        %v5593 = vmax.f32 %v5591, %v5592
        %v5594 = vrot.slane %v5593, 1
        %v5595 = vmax.f32 %v5593, %v5594
        %v5596 = vsel %vm4363, %v2430, -inf
        %v5597 = vrot.slane %v5596, 4
        %v5598 = vmax.f32 %v5596, %v5597
        %v5599 = vrot.slane %v5598, 2
        %v5600 = vmax.f32 %v5598, %v5599
        %v5601 = vrot.slane %v5600, 1
        %v5602 = vmax.f32 %v5600, %v5601
        %v5603 = vsel %vm4363, %v2438, -inf
        %v5604 = vrot.slane %v5603, 4
        %v5605 = vmax.f32 %v5603, %v5604
        %v5606 = vrot.slane %v5605, 2
        %v5607 = vmax.f32 %v5605, %v5606
        %v5608 = vrot.slane %v5607, 1
        %v5609 = vmax.f32 %v5607, %v5608
        %v5610 = vsel %vm4363, %v2437, -inf
        %v5611 = vrot.slane %v5610, 4
        %v5612 = vmax.f32 %v5610, %v5611
        %v5613 = vrot.slane %v5612, 2
        %v5614 = vmax.f32 %v5612, %v5613
        %v5615 = vrot.slane %v5614, 1
        %v5616 = vmax.f32 %v5614, %v5615
        %v5617 = vsel %vm4363, %v2439, -inf
        %v5618 = vrot.slane %v5617, 4
        %v5619 = vmax.f32 %v5617, %v5618
        %v5620 = vrot.slane %v5619, 2
        %v5621 = vmax.f32 %v5619, %v5620
        %v5622 = vrot.slane %v5621, 1
        %v5623 = vmax.f32 %v5621, %v5622
        %v5624 = vsel %vm4363, %v2447, -inf
        %v5625 = vrot.slane %v5624, 4
        %v5626 = vmax.f32 %v5624, %v5625
        %v5627 = vrot.slane %v5626, 2
        %v5628 = vmax.f32 %v5626, %v5627
        %v5629 = vrot.slane %v5628, 1
        %v5630 = vmax.f32 %v5628, %v5629
        %v5631 = vsel %vm4363, %v2455, -inf
        %v5632 = vrot.slane %v5631, 4
        %v5633 = vmax.f32 %v5631, %v5632
        %v5634 = vrot.slane %v5633, 2
        %v5635 = vmax.f32 %v5633, %v5634
        %v5636 = vrot.slane %v5635, 1
        %v5637 = vmax.f32 %v5635, %v5636
        %v5638 = vsel %vm4363, %v2454, -inf
        %v5639 = vrot.slane %v5638, 4
        %v5640 = vmax.f32 %v5638, %v5639
        %v5641 = vrot.slane %v5640, 2
        %v5642 = vmax.f32 %v5640, %v5641
        %v5643 = vrot.slane %v5642, 1
        %v5644 = vmax.f32 %v5642, %v5643
        %v5645 = vsel %vm4363, %v2456, -inf
        %v5646 = vrot.slane %v5645, 4
        %v5647 = vmax.f32 %v5645, %v5646
        %v5648 = vrot.slane %v5647, 2
        %v5649 = vmax.f32 %v5647, %v5648
        %v5650 = vrot.slane %v5649, 1
        %v5651 = vmax.f32 %v5649, %v5650
        %v5652 = vsel %vm4363, %v2464, -inf
        %v5653 = vrot.slane %v5652, 4
        %v5654 = vmax.f32 %v5652, %v5653
        %v5655 = vrot.slane %v5654, 2
        %v5656 = vmax.f32 %v5654, %v5655
        %v5657 = vrot.slane %v5656, 1
        %v5658 = vmax.f32 %v5656, %v5657
        %v5659 = vsel %vm4363, %v2472, -inf
        %v5660 = vrot.slane %v5659, 4
        %v5661 = vmax.f32 %v5659, %v5660
        %v5662 = vrot.slane %v5661, 2
        %v5663 = vmax.f32 %v5661, %v5662
        %v5664 = vrot.slane %v5663, 1
        %v5665 = vmax.f32 %v5663, %v5664
        %v5666 = vsel %vm4363, %v2471, -inf
        %v5667 = vrot.slane %v5666, 4
        %v5668 = vmax.f32 %v5666, %v5667
        %v5669 = vrot.slane %v5668, 2
        %v5670 = vmax.f32 %v5668, %v5669
        %v5671 = vrot.slane %v5670, 1
        %v5672 = vmax.f32 %v5670, %v5671
        %v5673 = vsel %vm4363, %v2473, -inf
        %v5674 = vrot.slane %v5673, 4
        %v5675 = vmax.f32 %v5673, %v5674
        %v5676 = vrot.slane %v5675, 2
        %v5677 = vmax.f32 %v5675, %v5676
        %v5678 = vrot.slane %v5677, 1
        %v5679 = vmax.f32 %v5677, %v5678
        %v5680 = vsel %vm4363, %v2481, -inf
        %v5681 = vrot.slane %v5680, 4
        %v5682 = vmax.f32 %v5680, %v5681
        %v5683 = vrot.slane %v5682, 2
        %v5684 = vmax.f32 %v5682, %v5683
        %v5685 = vrot.slane %v5684, 1
        %v5686 = vmax.f32 %v5684, %v5685
        %v5687 = vsel %vm4363, %v2489, -inf
        %v5688 = vrot.slane %v5687, 4
        %v5689 = vmax.f32 %v5687, %v5688
        %v5690 = vrot.slane %v5689, 2
        %v5691 = vmax.f32 %v5689, %v5690
        %v5692 = vrot.slane %v5691, 1
        %v5693 = vmax.f32 %v5691, %v5692
        %v5694 = vsel %vm4363, %v2488, -inf
        %v5695 = vrot.slane %v5694, 4
        %v5696 = vmax.f32 %v5694, %v5695
        %v5697 = vrot.slane %v5696, 2
        %v5698 = vmax.f32 %v5696, %v5697
        %v5699 = vrot.slane %v5698, 1
        %v5700 = vmax.f32 %v5698, %v5699
        %v5701 = vsel %vm4363, %v2490, -inf
        %v5702 = vrot.slane %v5701, 4
        %v5703 = vmax.f32 %v5701, %v5702
        %v5704 = vrot.slane %v5703, 2
        %v5705 = vmax.f32 %v5703, %v5704
        %v5706 = vrot.slane %v5705, 1
        %v5707 = vmax.f32 %v5705, %v5706
        %v5708 = vsel %vm4363, %v2498, -inf
        %v5709 = vrot.slane %v5708, 4
        %v5710 = vmax.f32 %v5708, %v5709
        %v5711 = vrot.slane %v5710, 2
        %v5712 = vmax.f32 %v5710, %v5711
        %v5713 = vrot.slane %v5712, 1
        %v5714 = vmax.f32 %v5712, %v5713
        %v5715 = vsel %vm4363, %v2506, -inf
        %v5716 = vrot.slane %v5715, 4
        %v5717 = vmax.f32 %v5715, %v5716
        %v5718 = vrot.slane %v5717, 2
        %v5719 = vmax.f32 %v5717, %v5718
        %v5720 = vrot.slane %v5719, 1
        %v5721 = vmax.f32 %v5719, %v5720
        %v5722 = vsel %vm4363, %v2505, -inf
        %v5723 = vrot.slane %v5722, 4
        %v5724 = vmax.f32 %v5722, %v5723
        %v5725 = vrot.slane %v5724, 2
        %v5726 = vmax.f32 %v5724, %v5725
        %v5727 = vrot.slane %v5726, 1
        %v5728 = vmax.f32 %v5726, %v5727
        %v5729 = vsel %vm4363, %v2507, -inf
        %v5730 = vrot.slane %v5729, 4
        %v5731 = vmax.f32 %v5729, %v5730
        %v5732 = vrot.slane %v5731, 2
        %v5733 = vmax.f32 %v5731, %v5732
        %v5734 = vrot.slane %v5733, 1
        %v5735 = vmax.f32 %v5733, %v5734
        %v5736 = vsel %vm4363, %v2515, -inf
        %v5737 = vrot.slane %v5736, 4
        %v5738 = vmax.f32 %v5736, %v5737
        %v5739 = vrot.slane %v5738, 2
        %v5740 = vmax.f32 %v5738, %v5739
        %v5741 = vrot.slane %v5740, 1
        %v5742 = vmax.f32 %v5740, %v5741
        %v5743 = vsel %vm4363, %v2523, -inf
        %v5744 = vrot.slane %v5743, 4
        %v5745 = vmax.f32 %v5743, %v5744
        %v5746 = vrot.slane %v5745, 2
        %v5747 = vmax.f32 %v5745, %v5746
        %v5748 = vrot.slane %v5747, 1
        %v5749 = vmax.f32 %v5747, %v5748
        %v5750 = vsel %vm4363, %v2522, -inf
        %v5751 = vrot.slane %v5750, 4
        %v5752 = vmax.f32 %v5750, %v5751
        %v5753 = vrot.slane %v5752, 2
        %v5754 = vmax.f32 %v5752, %v5753
        %v5755 = vrot.slane %v5754, 1
        %v5756 = vmax.f32 %v5754, %v5755
        %v5757 = vsel %vm4363, %v2524, -inf
        %v5758 = vrot.slane %v5757, 4
        %v5759 = vmax.f32 %v5757, %v5758
        %v5760 = vrot.slane %v5759, 2
        %v5761 = vmax.f32 %v5759, %v5760
        %v5762 = vrot.slane %v5761, 1
        %v5763 = vmax.f32 %v5761, %v5762
        %v5764 = vsel %vm4363, %v2532, -inf
        %v5765 = vrot.slane %v5764, 4
        %v5766 = vmax.f32 %v5764, %v5765
        %v5767 = vrot.slane %v5766, 2
        %v5768 = vmax.f32 %v5766, %v5767
        %v5769 = vrot.slane %v5768, 1
        %v5770 = vmax.f32 %v5768, %v5769
        %v5771 = vsel %vm4363, %v2540, -inf
        %v5772 = vrot.slane %v5771, 4
        %v5773 = vmax.f32 %v5771, %v5772
        %v5774 = vrot.slane %v5773, 2
        %v5775 = vmax.f32 %v5773, %v5774
        %v5776 = vrot.slane %v5775, 1
        %v5777 = vmax.f32 %v5775, %v5776
        %v5778 = vsel %vm4363, %v2539, -inf
        %v5779 = vrot.slane %v5778, 4
        %v5780 = vmax.f32 %v5778, %v5779
        %v5781 = vrot.slane %v5780, 2
        %v5782 = vmax.f32 %v5780, %v5781
        %v5783 = vrot.slane %v5782, 1
        %v5784 = vmax.f32 %v5782, %v5783
        %v5785 = vsel %vm4363, %v2541, -inf
        %v5786 = vrot.slane %v5785, 4
        %v5787 = vmax.f32 %v5785, %v5786
        %v5788 = vrot.slane %v5787, 2
        %v5789 = vmax.f32 %v5787, %v5788
        %v5790 = vrot.slane %v5789, 1
        %v5791 = vmax.f32 %v5789, %v5790
        %v5792 = vsel %vm4363, %v2549, -inf
        %v5793 = vrot.slane %v5792, 4
        %v5794 = vmax.f32 %v5792, %v5793
        %v5795 = vrot.slane %v5794, 2
        %v5796 = vmax.f32 %v5794, %v5795
        %v5797 = vrot.slane %v5796, 1
        %v5798 = vmax.f32 %v5796, %v5797
        %v5799 = vsel %vm4363, %v2557, -inf
        %v5800 = vrot.slane %v5799, 4
        %v5801 = vmax.f32 %v5799, %v5800
        %v5802 = vrot.slane %v5801, 2
        %v5803 = vmax.f32 %v5801, %v5802
        %v5804 = vrot.slane %v5803, 1
        %v5805 = vmax.f32 %v5803, %v5804
        %v5806 = vsel %vm4363, %v2556, -inf
        %v5807 = vrot.slane %v5806, 4
        %v5808 = vmax.f32 %v5806, %v5807
        %v5809 = vrot.slane %v5808, 2
        %v5810 = vmax.f32 %v5808, %v5809
        %v5811 = vrot.slane %v5810, 1
        %v5812 = vmax.f32 %v5810, %v5811
        %v5813 = vsel %vm4363, %v2558, -inf
        %v5814 = vrot.slane %v5813, 4
        %v5815 = vmax.f32 %v5813, %v5814
        %v5816 = vrot.slane %v5815, 2
        %v5817 = vmax.f32 %v5815, %v5816
        %v5818 = vrot.slane %v5817, 1
        %v5819 = vmax.f32 %v5817, %v5818
        %v5820 = vsel %vm4363, %v2566, -inf
        %v5821 = vrot.slane %v5820, 4
        %v5822 = vmax.f32 %v5820, %v5821
        %v5823 = vrot.slane %v5822, 2
        %v5824 = vmax.f32 %v5822, %v5823
        %v5825 = vrot.slane %v5824, 1
        %v5826 = vmax.f32 %v5824, %v5825
        %v5827 = vsel %vm4363, %v2574, -inf
        %v5828 = vrot.slane %v5827, 4
        %v5829 = vmax.f32 %v5827, %v5828
        %v5830 = vrot.slane %v5829, 2
        %v5831 = vmax.f32 %v5829, %v5830
        %v5832 = vrot.slane %v5831, 1
        %v5833 = vmax.f32 %v5831, %v5832
        %v5834 = vsel %vm4363, %v2573, -inf
        %v5835 = vrot.slane %v5834, 4
        %v5836 = vmax.f32 %v5834, %v5835
        %v5837 = vrot.slane %v5836, 2
        %v5838 = vmax.f32 %v5836, %v5837
        %v5839 = vrot.slane %v5838, 1
        %v5840 = vmax.f32 %v5838, %v5839
        %v5841 = vsel %vm4363, %v2575, -inf
        %v5842 = vrot.slane %v5841, 4
        %v5843 = vmax.f32 %v5841, %v5842
        %v5844 = vrot.slane %v5843, 2
        %v5845 = vmax.f32 %v5843, %v5844
        %v5846 = vrot.slane %v5845, 1
        %v5847 = vmax.f32 %v5845, %v5846
        %v5848 = vsel %vm4363, %v2583, -inf
        %v5849 = vrot.slane %v5848, 4
        %v5850 = vmax.f32 %v5848, %v5849
        %v5851 = vrot.slane %v5850, 2
        %v5852 = vmax.f32 %v5850, %v5851
        %v5853 = vrot.slane %v5852, 1
        %v5854 = vmax.f32 %v5852, %v5853
        %v5855 = vsel %vm4363, %v2591, -inf
        %v5856 = vrot.slane %v5855, 4
        %v5857 = vmax.f32 %v5855, %v5856
        %v5858 = vrot.slane %v5857, 2
        %v5859 = vmax.f32 %v5857, %v5858
        %v5860 = vrot.slane %v5859, 1
        %v5861 = vmax.f32 %v5859, %v5860
        %v5862 = vsel %vm4363, %v2590, -inf
        %v5863 = vrot.slane %v5862, 4
        %v5864 = vmax.f32 %v5862, %v5863
        %v5865 = vrot.slane %v5864, 2
        %v5866 = vmax.f32 %v5864, %v5865
        %v5867 = vrot.slane %v5866, 1
        %v5868 = vmax.f32 %v5866, %v5867
        %v5869 = vsel %vm4363, %v2592, -inf
        %v5870 = vrot.slane %v5869, 4
        %v5871 = vmax.f32 %v5869, %v5870
        %v5872 = vrot.slane %v5871, 2
        %v5873 = vmax.f32 %v5871, %v5872
        %v5874 = vrot.slane %v5873, 1
        %v5875 = vmax.f32 %v5873, %v5874
        %v5876 = vsel %vm4363, %v2600, -inf
        %v5877 = vrot.slane %v5876, 4
        %v5878 = vmax.f32 %v5876, %v5877
        %v5879 = vrot.slane %v5878, 2
        %v5880 = vmax.f32 %v5878, %v5879
        %v5881 = vrot.slane %v5880, 1
        %v5882 = vmax.f32 %v5880, %v5881
        %v5883 = vsel %vm4363, %v2608, -inf
        %v5884 = vrot.slane %v5883, 4
        %v5885 = vmax.f32 %v5883, %v5884
        %v5886 = vrot.slane %v5885, 2
        %v5887 = vmax.f32 %v5885, %v5886
        %v5888 = vrot.slane %v5887, 1
        %v5889 = vmax.f32 %v5887, %v5888
        %v5890 = vsel %vm4363, %v2607, -inf
        %v5891 = vrot.slane %v5890, 4
        %v5892 = vmax.f32 %v5890, %v5891
        %v5893 = vrot.slane %v5892, 2
        %v5894 = vmax.f32 %v5892, %v5893
        %v5895 = vrot.slane %v5894, 1
        %v5896 = vmax.f32 %v5894, %v5895
        %v5897 = vsel %vm4363, %v2609, -inf
        %v5898 = vrot.slane %v5897, 4
        %v5899 = vmax.f32 %v5897, %v5898
        %v5900 = vrot.slane %v5899, 2
        %v5901 = vmax.f32 %v5899, %v5900
        %v5902 = vrot.slane %v5901, 1
        %v5903 = vmax.f32 %v5901, %v5902
        %v5904 = vsel %vm4363, %v2617, -inf
        %v5905 = vrot.slane %v5904, 4
        %v5906 = vmax.f32 %v5904, %v5905
        %v5907 = vrot.slane %v5906, 2
        %v5908 = vmax.f32 %v5906, %v5907
        %v5909 = vrot.slane %v5908, 1
        %v5910 = vmax.f32 %v5908, %v5909
        %v5911 = vsel %vm4363, %v2625, -inf
        %v5912 = vrot.slane %v5911, 4
        %v5913 = vmax.f32 %v5911, %v5912
        %v5914 = vrot.slane %v5913, 2
        %v5915 = vmax.f32 %v5913, %v5914
        %v5916 = vrot.slane %v5915, 1
        %v5917 = vmax.f32 %v5915, %v5916
        %v5918 = vsel %vm4363, %v2624, -inf
        %v5919 = vrot.slane %v5918, 4
        %v5920 = vmax.f32 %v5918, %v5919
        %v5921 = vrot.slane %v5920, 2
        %v5922 = vmax.f32 %v5920, %v5921
        %v5923 = vrot.slane %v5922, 1
        %v5924 = vmax.f32 %v5922, %v5923
        %v5925 = vsel %vm4363, %v2626, -inf
        %v5926 = vrot.slane %v5925, 4
        %v5927 = vmax.f32 %v5925, %v5926
        %v5928 = vrot.slane %v5927, 2
        %v5929 = vmax.f32 %v5927, %v5928
        %v5930 = vrot.slane %v5929, 1
        %v5931 = vmax.f32 %v5929, %v5930
        %v5932 = vsel %vm4363, %v2634, -inf
        %v5933 = vrot.slane %v5932, 4
        %v5934 = vmax.f32 %v5932, %v5933
        %v5935 = vrot.slane %v5934, 2
        %v5936 = vmax.f32 %v5934, %v5935
        %v5937 = vrot.slane %v5936, 1
        %v5938 = vmax.f32 %v5936, %v5937
        %v5939 = vsel %vm4363, %v2642, -inf
        %v5940 = vrot.slane %v5939, 4
        %v5941 = vmax.f32 %v5939, %v5940
        %v5942 = vrot.slane %v5941, 2
        %v5943 = vmax.f32 %v5941, %v5942
        %v5944 = vrot.slane %v5943, 1
        %v5945 = vmax.f32 %v5943, %v5944
        %v5946 = vsel %vm4363, %v2641, -inf
        %v5947 = vrot.slane %v5946, 4
        %v5948 = vmax.f32 %v5946, %v5947
        %v5949 = vrot.slane %v5948, 2
        %v5950 = vmax.f32 %v5948, %v5949
        %v5951 = vrot.slane %v5950, 1
        %v5952 = vmax.f32 %v5950, %v5951
        %v5953 = vsel %vm4363, %v2643, -inf
        %v5954 = vrot.slane %v5953, 4
        %v5955 = vmax.f32 %v5953, %v5954
        %v5956 = vrot.slane %v5955, 2
        %v5957 = vmax.f32 %v5955, %v5956
        %v5958 = vrot.slane %v5957, 1
        %v5959 = vmax.f32 %v5957, %v5958
        %v5960 = vsel %vm4363, %v2651, -inf
        %v5961 = vrot.slane %v5960, 4
        %v5962 = vmax.f32 %v5960, %v5961
        %v5963 = vrot.slane %v5962, 2
        %v5964 = vmax.f32 %v5962, %v5963
        %v5965 = vrot.slane %v5964, 1
        %v5966 = vmax.f32 %v5964, %v5965
        %v5967 = vsel %vm4363, %v2659, -inf
        %v5968 = vrot.slane %v5967, 4
        %v5969 = vmax.f32 %v5967, %v5968
        %v5970 = vrot.slane %v5969, 2
        %v5971 = vmax.f32 %v5969, %v5970
        %v5972 = vrot.slane %v5971, 1
        %v5973 = vmax.f32 %v5971, %v5972
        %v5974 = vsel %vm4363, %v2658, -inf
        %v5975 = vrot.slane %v5974, 4
        %v5976 = vmax.f32 %v5974, %v5975
        %v5977 = vrot.slane %v5976, 2
        %v5978 = vmax.f32 %v5976, %v5977
        %v5979 = vrot.slane %v5978, 1
        %v5980 = vmax.f32 %v5978, %v5979
        %v5981 = vsel %vm4363, %v2660, -inf
        %v5982 = vrot.slane %v5981, 4
        %v5983 = vmax.f32 %v5981, %v5982
        %v5984 = vrot.slane %v5983, 2
        %v5985 = vmax.f32 %v5983, %v5984
        %v5986 = vrot.slane %v5985, 1
        %v5987 = vmax.f32 %v5985, %v5986
        %v5988 = vsel %vm4363, %v2668, -inf
        %v5989 = vrot.slane %v5988, 4
        %v5990 = vmax.f32 %v5988, %v5989
        %v5991 = vrot.slane %v5990, 2
        %v5992 = vmax.f32 %v5990, %v5991
        %v5993 = vrot.slane %v5992, 1
        %v5994 = vmax.f32 %v5992, %v5993
        %v5995 = vsel %vm4363, %v2676, -inf
        %v5996 = vrot.slane %v5995, 4
        %v5997 = vmax.f32 %v5995, %v5996
        %v5998 = vrot.slane %v5997, 2
        %v5999 = vmax.f32 %v5997, %v5998
        %v6000 = vrot.slane %v5999, 1
        %v6001 = vmax.f32 %v5999, %v6000
        %v6002 = vsel %vm4363, %v2675, -inf
        %v6003 = vrot.slane %v6002, 4
        %v6004 = vmax.f32 %v6002, %v6003
        %v6005 = vrot.slane %v6004, 2
        %v6006 = vmax.f32 %v6004, %v6005
        %v6007 = vrot.slane %v6006, 1
        %v6008 = vmax.f32 %v6006, %v6007
        %v6009 = vsel %vm4363, %v2677, -inf
        %v6010 = vrot.slane %v6009, 4
        %v6011 = vmax.f32 %v6009, %v6010
        %v6012 = vrot.slane %v6011, 2
        %v6013 = vmax.f32 %v6011, %v6012
        %v6014 = vrot.slane %v6013, 1
        %v6015 = vmax.f32 %v6013, %v6014
        %v6016 = vsel %vm4363, %v2685, -inf
        %v6017 = vrot.slane %v6016, 4
        %v6018 = vmax.f32 %v6016, %v6017
        %v6019 = vrot.slane %v6018, 2
        %v6020 = vmax.f32 %v6018, %v6019
        %v6021 = vrot.slane %v6020, 1
        %v6022 = vmax.f32 %v6020, %v6021
        %v6023 = vsel %vm4363, %v2693, -inf
        %v6024 = vrot.slane %v6023, 4
        %v6025 = vmax.f32 %v6023, %v6024
        %v6026 = vrot.slane %v6025, 2
        %v6027 = vmax.f32 %v6025, %v6026
        %v6028 = vrot.slane %v6027, 1
        %v6029 = vmax.f32 %v6027, %v6028
        %v6030 = vsel %vm4363, %v2692, -inf
        %v6031 = vrot.slane %v6030, 4
        %v6032 = vmax.f32 %v6030, %v6031
        %v6033 = vrot.slane %v6032, 2
        %v6034 = vmax.f32 %v6032, %v6033
        %v6035 = vrot.slane %v6034, 1
        %v6036 = vmax.f32 %v6034, %v6035
        %v6037 = vsel %vm4363, %v2694, -inf
        %v6038 = vrot.slane %v6037, 4
        %v6039 = vmax.f32 %v6037, %v6038
        %v6040 = vrot.slane %v6039, 2
        %v6041 = vmax.f32 %v6039, %v6040
        %v6042 = vrot.slane %v6041, 1
        %v6043 = vmax.f32 %v6041, %v6042
        %v6044 = vsel %vm4363, %v2702, -inf
        %v6045 = vrot.slane %v6044, 4
        %v6046 = vmax.f32 %v6044, %v6045
        %v6047 = vrot.slane %v6046, 2
        %v6048 = vmax.f32 %v6046, %v6047
        %v6049 = vrot.slane %v6048, 1
        %v6050 = vmax.f32 %v6048, %v6049
        %v6051 = vsel %vm4363, %v2710, -inf
        %v6052 = vrot.slane %v6051, 4
        %v6053 = vmax.f32 %v6051, %v6052
        %v6054 = vrot.slane %v6053, 2
        %v6055 = vmax.f32 %v6053, %v6054
        %v6056 = vrot.slane %v6055, 1
        %v6057 = vmax.f32 %v6055, %v6056
        %v6058 = vsel %vm4363, %v2709, -inf
        %v6059 = vrot.slane %v6058, 4
        %v6060 = vmax.f32 %v6058, %v6059
        %v6061 = vrot.slane %v6060, 2
        %v6062 = vmax.f32 %v6060, %v6061
        %v6063 = vrot.slane %v6062, 1
        %v6064 = vmax.f32 %v6062, %v6063
        %v6065 = vsel %vm4363, %v2711, -inf
        %v6066 = vrot.slane %v6065, 4
        %v6067 = vmax.f32 %v6065, %v6066
        %v6068 = vrot.slane %v6067, 2
        %v6069 = vmax.f32 %v6067, %v6068
        %v6070 = vrot.slane %v6069, 1
        %v6071 = vmax.f32 %v6069, %v6070
        %v6072 = vsel %vm4363, %v2719, -inf
        %v6073 = vrot.slane %v6072, 4
        %v6074 = vmax.f32 %v6072, %v6073
        %v6075 = vrot.slane %v6074, 2
        %v6076 = vmax.f32 %v6074, %v6075
        %v6077 = vrot.slane %v6076, 1
        %v6078 = vmax.f32 %v6076, %v6077
        %v6079 = vsel %vm4363, %v2727, -inf
        %v6080 = vrot.slane %v6079, 4
        %v6081 = vmax.f32 %v6079, %v6080
        %v6082 = vrot.slane %v6081, 2
        %v6083 = vmax.f32 %v6081, %v6082
        %v6084 = vrot.slane %v6083, 1
        %v6085 = vmax.f32 %v6083, %v6084
        %v6086 = vsel %vm4363, %v2726, -inf
        %v6087 = vrot.slane %v6086, 4
        %v6088 = vmax.f32 %v6086, %v6087
        %v6089 = vrot.slane %v6088, 2
        %v6090 = vmax.f32 %v6088, %v6089
        %v6091 = vrot.slane %v6090, 1
        %v6092 = vmax.f32 %v6090, %v6091
        %v6093 = vsel %vm4363, %v2728, -inf
        %v6094 = vrot.slane %v6093, 4
        %v6095 = vmax.f32 %v6093, %v6094
        %v6096 = vrot.slane %v6095, 2
        %v6097 = vmax.f32 %v6095, %v6096
        %v6098 = vrot.slane %v6097, 1
        %v6099 = vmax.f32 %v6097, %v6098
        %v6100 = vsel %vm4363, %v2736, -inf
        %v6101 = vrot.slane %v6100, 4
        %v6102 = vmax.f32 %v6100, %v6101
        %v6103 = vrot.slane %v6102, 2
        %v6104 = vmax.f32 %v6102, %v6103
        %v6105 = vrot.slane %v6104, 1
        %v6106 = vmax.f32 %v6104, %v6105
        %v6107 = vsel %vm4363, %v2744, -inf
        %v6108 = vrot.slane %v6107, 4
        %v6109 = vmax.f32 %v6107, %v6108
        %v6110 = vrot.slane %v6109, 2
        %v6111 = vmax.f32 %v6109, %v6110
        %v6112 = vrot.slane %v6111, 1
        %v6113 = vmax.f32 %v6111, %v6112
        %v6114 = vsel %vm4363, %v2743, -inf
        %v6115 = vrot.slane %v6114, 4
        %v6116 = vmax.f32 %v6114, %v6115
        %v6117 = vrot.slane %v6116, 2
        %v6118 = vmax.f32 %v6116, %v6117
        %v6119 = vrot.slane %v6118, 1
        %v6120 = vmax.f32 %v6118, %v6119
        %v6121 = vsel %vm4363, %v2745, -inf
        %v6122 = vrot.slane %v6121, 4
        %v6123 = vmax.f32 %v6121, %v6122
        %v6124 = vrot.slane %v6123, 2
        %v6125 = vmax.f32 %v6123, %v6124
        %v6126 = vrot.slane %v6125, 1
        %v6127 = vmax.f32 %v6125, %v6126
        %v6128 = vsel %vm4363, %v2753, -inf
        %v6129 = vrot.slane %v6128, 4
        %v6130 = vmax.f32 %v6128, %v6129
        %v6131 = vrot.slane %v6130, 2
        %v6132 = vmax.f32 %v6130, %v6131
        %v6133 = vrot.slane %v6132, 1
        %v6134 = vmax.f32 %v6132, %v6133
        %v6135 = vsel %vm4363, %v2761, -inf
        %v6136 = vrot.slane %v6135, 4
        %v6137 = vmax.f32 %v6135, %v6136
        %v6138 = vrot.slane %v6137, 2
        %v6139 = vmax.f32 %v6137, %v6138
        %v6140 = vrot.slane %v6139, 1
        %v6141 = vmax.f32 %v6139, %v6140
        %v6142 = vsel %vm4363, %v2760, -inf
        %v6143 = vrot.slane %v6142, 4
        %v6144 = vmax.f32 %v6142, %v6143
        %v6145 = vrot.slane %v6144, 2
        %v6146 = vmax.f32 %v6144, %v6145
        %v6147 = vrot.slane %v6146, 1
        %v6148 = vmax.f32 %v6146, %v6147
        %v6149 = vsel %vm4363, %v2762, -inf
        %v6150 = vrot.slane %v6149, 4
        %v6151 = vmax.f32 %v6149, %v6150
        %v6152 = vrot.slane %v6151, 2
        %v6153 = vmax.f32 %v6151, %v6152
        %v6154 = vrot.slane %v6153, 1
        %v6155 = vmax.f32 %v6153, %v6154
        %v6156 = vsel %vm4363, %v2770, -inf
        %v6157 = vrot.slane %v6156, 4
        %v6158 = vmax.f32 %v6156, %v6157
        %v6159 = vrot.slane %v6158, 2
        %v6160 = vmax.f32 %v6158, %v6159
        %v6161 = vrot.slane %v6160, 1
        %v6162 = vmax.f32 %v6160, %v6161
        %v6163 = vsel %vm4363, %v2778, -inf
        %v6164 = vrot.slane %v6163, 4
        %v6165 = vmax.f32 %v6163, %v6164
        %v6166 = vrot.slane %v6165, 2
        %v6167 = vmax.f32 %v6165, %v6166
        %v6168 = vrot.slane %v6167, 1
        %v6169 = vmax.f32 %v6167, %v6168
        %v6170 = vsel %vm4363, %v2777, -inf
        %v6171 = vrot.slane %v6170, 4
        %v6172 = vmax.f32 %v6170, %v6171
        %v6173 = vrot.slane %v6172, 2
        %v6174 = vmax.f32 %v6172, %v6173
        %v6175 = vrot.slane %v6174, 1
        %v6176 = vmax.f32 %v6174, %v6175
        %v6177 = vsel %vm4363, %v2779, -inf
        %v6178 = vrot.slane %v6177, 4
        %v6179 = vmax.f32 %v6177, %v6178
        %v6180 = vrot.slane %v6179, 2
        %v6181 = vmax.f32 %v6179, %v6180
        %v6182 = vrot.slane %v6181, 1
        %v6183 = vmax.f32 %v6181, %v6182
        %v6184 = vsel %vm4363, %v2787, -inf
        %v6185 = vrot.slane %v6184, 4
        %v6186 = vmax.f32 %v6184, %v6185
        %v6187 = vrot.slane %v6186, 2
        %v6188 = vmax.f32 %v6186, %v6187
        %v6189 = vrot.slane %v6188, 1
        %v6190 = vmax.f32 %v6188, %v6189
        %v6191 = vsel %vm4363, %v2795, -inf
        %v6192 = vrot.slane %v6191, 4
        %v6193 = vmax.f32 %v6191, %v6192
        %v6194 = vrot.slane %v6193, 2
        %v6195 = vmax.f32 %v6193, %v6194
        %v6196 = vrot.slane %v6195, 1
        %v6197 = vmax.f32 %v6195, %v6196
        %v6198 = vsel %vm4363, %v2794, -inf
        %v6199 = vrot.slane %v6198, 4
        %v6200 = vmax.f32 %v6198, %v6199
        %v6201 = vrot.slane %v6200, 2
        %v6202 = vmax.f32 %v6200, %v6201
        %v6203 = vrot.slane %v6202, 1
        %v6204 = vmax.f32 %v6202, %v6203
        %v6205 = vsel %vm4363, %v2796, -inf
        %v6206 = vrot.slane %v6205, 4
        %v6207 = vmax.f32 %v6205, %v6206
        %v6208 = vrot.slane %v6207, 2
        %v6209 = vmax.f32 %v6207, %v6208
        %v6210 = vrot.slane %v6209, 1
        %v6211 = vmax.f32 %v6209, %v6210
        %v6212 = vsel %vm4363, %v2804, -inf
        %v6213 = vrot.slane %v6212, 4
        %v6214 = vmax.f32 %v6212, %v6213
        %v6215 = vrot.slane %v6214, 2
        %v6216 = vmax.f32 %v6214, %v6215
        %v6217 = vrot.slane %v6216, 1
        %v6218 = vmax.f32 %v6216, %v6217
        %v6219 = vsel %vm4363, %v2812, -inf
        %v6220 = vrot.slane %v6219, 4
        %v6221 = vmax.f32 %v6219, %v6220
        %v6222 = vrot.slane %v6221, 2
        %v6223 = vmax.f32 %v6221, %v6222
        %v6224 = vrot.slane %v6223, 1
        %v6225 = vmax.f32 %v6223, %v6224
        %v6226 = vsel %vm4363, %v2811, -inf
        %v6227 = vrot.slane %v6226, 4
        %v6228 = vmax.f32 %v6226, %v6227
        %v6229 = vrot.slane %v6228, 2
        %v6230 = vmax.f32 %v6228, %v6229
        %v6231 = vrot.slane %v6230, 1
        %v6232 = vmax.f32 %v6230, %v6231
        %v6233 = vsel %vm4363, %v2813, -inf
        %v6234 = vrot.slane %v6233, 4
        %v6235 = vmax.f32 %v6233, %v6234
        %v6236 = vrot.slane %v6235, 2
        %v6237 = vmax.f32 %v6235, %v6236
        %v6238 = vrot.slane %v6237, 1
        %v6239 = vmax.f32 %v6237, %v6238
        %v6240 = vsel %vm4363, %v2821, -inf
        %v6241 = vrot.slane %v6240, 4
        %v6242 = vmax.f32 %v6240, %v6241
        %v6243 = vrot.slane %v6242, 2
        %v6244 = vmax.f32 %v6242, %v6243
        %v6245 = vrot.slane %v6244, 1
        %v6246 = vmax.f32 %v6244, %v6245
        %v6247 = vsel %vm4363, %v2829, -inf
        %v6248 = vrot.slane %v6247, 4
        %v6249 = vmax.f32 %v6247, %v6248
        %v6250 = vrot.slane %v6249, 2
        %v6251 = vmax.f32 %v6249, %v6250
        %v6252 = vrot.slane %v6251, 1
        %v6253 = vmax.f32 %v6251, %v6252
        %v6254 = vsel %vm4363, %v2828, -inf
        %v6255 = vrot.slane %v6254, 4
        %v6256 = vmax.f32 %v6254, %v6255
        %v6257 = vrot.slane %v6256, 2
        %v6258 = vmax.f32 %v6256, %v6257
        %v6259 = vrot.slane %v6258, 1
        %v6260 = vmax.f32 %v6258, %v6259
        %v6261 = vsel %vm4363, %v2830, -inf
        %v6262 = vrot.slane %v6261, 4
        %v6263 = vmax.f32 %v6261, %v6262
        %v6264 = vrot.slane %v6263, 2
        %v6265 = vmax.f32 %v6263, %v6264
        %v6266 = vrot.slane %v6265, 1
        %v6267 = vmax.f32 %v6265, %v6266
        %v6268 = vsel %vm4363, %v2838, -inf
        %v6269 = vrot.slane %v6268, 4
        %v6270 = vmax.f32 %v6268, %v6269
        %v6271 = vrot.slane %v6270, 2
        %v6272 = vmax.f32 %v6270, %v6271
        %v6273 = vrot.slane %v6272, 1
        %v6274 = vmax.f32 %v6272, %v6273
        %v6275 = vsel %vm4363, %v2846, -inf
        %v6276 = vrot.slane %v6275, 4
        %v6277 = vmax.f32 %v6275, %v6276
        %v6278 = vrot.slane %v6277, 2
        %v6279 = vmax.f32 %v6277, %v6278
        %v6280 = vrot.slane %v6279, 1
        %v6281 = vmax.f32 %v6279, %v6280
        %v6282 = vsel %vm4363, %v2845, -inf
        %v6283 = vrot.slane %v6282, 4
        %v6284 = vmax.f32 %v6282, %v6283
        %v6285 = vrot.slane %v6284, 2
        %v6286 = vmax.f32 %v6284, %v6285
        %v6287 = vrot.slane %v6286, 1
        %v6288 = vmax.f32 %v6286, %v6287
        %v6289 = vsel %vm4363, %v2847, -inf
        %v6290 = vrot.slane %v6289, 4
        %v6291 = vmax.f32 %v6289, %v6290
        %v6292 = vrot.slane %v6291, 2
        %v6293 = vmax.f32 %v6291, %v6292
        %v6294 = vrot.slane %v6293, 1
        %v6295 = vmax.f32 %v6293, %v6294
        %v6296 = vsel %vm4363, %v2855, -inf
        %v6297 = vrot.slane %v6296, 4
        %v6298 = vmax.f32 %v6296, %v6297
        %v6299 = vrot.slane %v6298, 2
        %v6300 = vmax.f32 %v6298, %v6299
        %v6301 = vrot.slane %v6300, 1
        %v6302 = vmax.f32 %v6300, %v6301
        %v6303 = vsel %vm4363, %v2863, -inf
        %v6304 = vrot.slane %v6303, 4
        %v6305 = vmax.f32 %v6303, %v6304
        %v6306 = vrot.slane %v6305, 2
        %v6307 = vmax.f32 %v6305, %v6306
        %v6308 = vrot.slane %v6307, 1
        %v6309 = vmax.f32 %v6307, %v6308
        %v6310 = vsel %vm4363, %v2862, -inf
        %v6311 = vrot.slane %v6310, 4
        %v6312 = vmax.f32 %v6310, %v6311
        %v6313 = vrot.slane %v6312, 2
        %v6314 = vmax.f32 %v6312, %v6313
        %v6315 = vrot.slane %v6314, 1
        %v6316 = vmax.f32 %v6314, %v6315
        %v6317 = vsel %vm4363, %v2864, -inf
        %v6318 = vrot.slane %v6317, 4
        %v6319 = vmax.f32 %v6317, %v6318
        %v6320 = vrot.slane %v6319, 2
        %v6321 = vmax.f32 %v6319, %v6320
        %v6322 = vrot.slane %v6321, 1
        %v6323 = vmax.f32 %v6321, %v6322
        %v6324 = vsel %vm4363, %v2872, -inf
        %v6325 = vrot.slane %v6324, 4
        %v6326 = vmax.f32 %v6324, %v6325
        %v6327 = vrot.slane %v6326, 2
        %v6328 = vmax.f32 %v6326, %v6327
        %v6329 = vrot.slane %v6328, 1
        %v6330 = vmax.f32 %v6328, %v6329
        %v6331 = vsel %vm4363, %v2880, -inf
        %v6332 = vrot.slane %v6331, 4
        %v6333 = vmax.f32 %v6331, %v6332
        %v6334 = vrot.slane %v6333, 2
        %v6335 = vmax.f32 %v6333, %v6334
        %v6336 = vrot.slane %v6335, 1
        %v6337 = vmax.f32 %v6335, %v6336
        %v6338 = vsel %vm4363, %v2879, -inf
        %v6339 = vrot.slane %v6338, 4
        %v6340 = vmax.f32 %v6338, %v6339
        %v6341 = vrot.slane %v6340, 2
        %v6342 = vmax.f32 %v6340, %v6341
        %v6343 = vrot.slane %v6342, 1
        %v6344 = vmax.f32 %v6342, %v6343
        %v6345 = vsel %vm4363, %v2881, -inf
        %v6346 = vrot.slane %v6345, 4
        %v6347 = vmax.f32 %v6345, %v6346
        %v6348 = vrot.slane %v6347, 2
        %v6349 = vmax.f32 %v6347, %v6348
        %v6350 = vrot.slane %v6349, 1
        %v6351 = vmax.f32 %v6349, %v6350
        %v6352 = vsel %vm4363, %v2889, -inf
        %v6353 = vrot.slane %v6352, 4
        %v6354 = vmax.f32 %v6352, %v6353
        %v6355 = vrot.slane %v6354, 2
        %v6356 = vmax.f32 %v6354, %v6355
        %v6357 = vrot.slane %v6356, 1
        %v6358 = vmax.f32 %v6356, %v6357
        %v6359 = vsel %vm4363, %v2897, -inf
        %v6360 = vrot.slane %v6359, 4
        %v6361 = vmax.f32 %v6359, %v6360
        %v6362 = vrot.slane %v6361, 2
        %v6363 = vmax.f32 %v6361, %v6362
        %v6364 = vrot.slane %v6363, 1
        %v6365 = vmax.f32 %v6363, %v6364
        %v6366 = vsel %vm4363, %v2896, -inf
        %v6367 = vrot.slane %v6366, 4
        %v6368 = vmax.f32 %v6366, %v6367
        %v6369 = vrot.slane %v6368, 2
        %v6370 = vmax.f32 %v6368, %v6369
        %v6371 = vrot.slane %v6370, 1
        %v6372 = vmax.f32 %v6370, %v6371
        %v6373 = vsel %vm4363, %v2898, -inf
        %v6374 = vrot.slane %v6373, 4
        %v6375 = vmax.f32 %v6373, %v6374
        %v6376 = vrot.slane %v6375, 2
        %v6377 = vmax.f32 %v6375, %v6376
        %v6378 = vrot.slane %v6377, 1
        %v6379 = vmax.f32 %v6377, %v6378
        %v6380 = vsel %vm4363, %v2906, -inf
        %v6381 = vrot.slane %v6380, 4
        %v6382 = vmax.f32 %v6380, %v6381
        %v6383 = vrot.slane %v6382, 2
        %v6384 = vmax.f32 %v6382, %v6383
        %v6385 = vrot.slane %v6384, 1
        %v6386 = vmax.f32 %v6384, %v6385
        %v6387 = vsel %vm4363, %v2914, -inf
        %v6388 = vrot.slane %v6387, 4
        %v6389 = vmax.f32 %v6387, %v6388
        %v6390 = vrot.slane %v6389, 2
        %v6391 = vmax.f32 %v6389, %v6390
        %v6392 = vrot.slane %v6391, 1
        %v6393 = vmax.f32 %v6391, %v6392
        %v6394 = vsel %vm4363, %v2913, -inf
        %v6395 = vrot.slane %v6394, 4
        %v6396 = vmax.f32 %v6394, %v6395
        %v6397 = vrot.slane %v6396, 2
        %v6398 = vmax.f32 %v6396, %v6397
        %v6399 = vrot.slane %v6398, 1
        %v6400 = vmax.f32 %v6398, %v6399
        %v6401 = vsel %vm4363, %v2915, -inf
        %v6402 = vrot.slane %v6401, 4
        %v6403 = vmax.f32 %v6401, %v6402
        %v6404 = vrot.slane %v6403, 2
        %v6405 = vmax.f32 %v6403, %v6404
        %v6406 = vrot.slane %v6405, 1
        %v6407 = vmax.f32 %v6405, %v6406
        %v6408 = vsel %vm4363, %v2923, -inf
        %v6409 = vrot.slane %v6408, 4
        %v6410 = vmax.f32 %v6408, %v6409
        %v6411 = vrot.slane %v6410, 2
        %v6412 = vmax.f32 %v6410, %v6411
        %v6413 = vrot.slane %v6412, 1
        %v6414 = vmax.f32 %v6412, %v6413
        %v6415 = vsel %vm4363, %v2931, -inf
        %v6416 = vrot.slane %v6415, 4
        %v6417 = vmax.f32 %v6415, %v6416
        %v6418 = vrot.slane %v6417, 2
        %v6419 = vmax.f32 %v6417, %v6418
        %v6420 = vrot.slane %v6419, 1
        %v6421 = vmax.f32 %v6419, %v6420
        %v6422 = vsel %vm4363, %v2930, -inf
        %v6423 = vrot.slane %v6422, 4
        %v6424 = vmax.f32 %v6422, %v6423
        %v6425 = vrot.slane %v6424, 2
        %v6426 = vmax.f32 %v6424, %v6425
        %v6427 = vrot.slane %v6426, 1
        %v6428 = vmax.f32 %v6426, %v6427
        %v6429 = vsel %vm4363, %v2932, -inf
        %v6430 = vrot.slane %v6429, 4
        %v6431 = vmax.f32 %v6429, %v6430
        %v6432 = vrot.slane %v6431, 2
        %v6433 = vmax.f32 %v6431, %v6432
        %v6434 = vrot.slane %v6433, 1
        %v6435 = vmax.f32 %v6433, %v6434
        %v6436 = vsel %vm4363, %v2940, -inf
        %v6437 = vrot.slane %v6436, 4
        %v6438 = vmax.f32 %v6436, %v6437
        %v6439 = vrot.slane %v6438, 2
        %v6440 = vmax.f32 %v6438, %v6439
        %v6441 = vrot.slane %v6440, 1
        %v6442 = vmax.f32 %v6440, %v6441
        %v6443 = vsel %vm4363, %v2948, -inf
        %v6444 = vrot.slane %v6443, 4
        %v6445 = vmax.f32 %v6443, %v6444
        %v6446 = vrot.slane %v6445, 2
        %v6447 = vmax.f32 %v6445, %v6446
        %v6448 = vrot.slane %v6447, 1
        %v6449 = vmax.f32 %v6447, %v6448
        %v6450 = vsel %vm4363, %v2947, -inf
        %v6451 = vrot.slane %v6450, 4
        %v6452 = vmax.f32 %v6450, %v6451
        %v6453 = vrot.slane %v6452, 2
        %v6454 = vmax.f32 %v6452, %v6453
        %v6455 = vrot.slane %v6454, 1
        %v6456 = vmax.f32 %v6454, %v6455
        %v6457 = vsel %vm4363, %v2949, -inf
        %v6458 = vrot.slane %v6457, 4
        %v6459 = vmax.f32 %v6457, %v6458
        %v6460 = vrot.slane %v6459, 2
        %v6461 = vmax.f32 %v6459, %v6460
        %v6462 = vrot.slane %v6461, 1
        %v6463 = vmax.f32 %v6461, %v6462
        %v6464 = vsel %vm4363, %v2957, -inf
        %v6465 = vrot.slane %v6464, 4
        %v6466 = vmax.f32 %v6464, %v6465
        %v6467 = vrot.slane %v6466, 2
        %v6468 = vmax.f32 %v6466, %v6467
        %v6469 = vrot.slane %v6468, 1
        %v6470 = vmax.f32 %v6468, %v6469
        %v6471 = vsel %vm4363, %v2965, -inf
        %v6472 = vrot.slane %v6471, 4
        %v6473 = vmax.f32 %v6471, %v6472
        %v6474 = vrot.slane %v6473, 2
        %v6475 = vmax.f32 %v6473, %v6474
        %v6476 = vrot.slane %v6475, 1
        %v6477 = vmax.f32 %v6475, %v6476
        %v6478 = vsel %vm4363, %v2964, -inf
        %v6479 = vrot.slane %v6478, 4
        %v6480 = vmax.f32 %v6478, %v6479
        %v6481 = vrot.slane %v6480, 2
        %v6482 = vmax.f32 %v6480, %v6481
        %v6483 = vrot.slane %v6482, 1
        %v6484 = vmax.f32 %v6482, %v6483
        %v6485 = vsel %vm4363, %v2966, -inf
        %v6486 = vrot.slane %v6485, 4
        %v6487 = vmax.f32 %v6485, %v6486
        %v6488 = vrot.slane %v6487, 2
        %v6489 = vmax.f32 %v6487, %v6488
        %v6490 = vrot.slane %v6489, 1
        %v6491 = vmax.f32 %v6489, %v6490
        %v6492 = vsel %vm4363, %v2974, -inf
        %v6493 = vrot.slane %v6492, 4
        %v6494 = vmax.f32 %v6492, %v6493
        %v6495 = vrot.slane %v6494, 2
        %v6496 = vmax.f32 %v6494, %v6495
        %v6497 = vrot.slane %v6496, 1
        %v6498 = vmax.f32 %v6496, %v6497
        %v6499 = vsel %vm4363, %v2982, -inf
        %v6500 = vrot.slane %v6499, 4
        %v6501 = vmax.f32 %v6499, %v6500
        %v6502 = vrot.slane %v6501, 2
        %v6503 = vmax.f32 %v6501, %v6502
        %v6504 = vrot.slane %v6503, 1
        %v6505 = vmax.f32 %v6503, %v6504
        %v6506 = vsel %vm4363, %v2981, -inf
        %v6507 = vrot.slane %v6506, 4
        %v6508 = vmax.f32 %v6506, %v6507
        %v6509 = vrot.slane %v6508, 2
        %v6510 = vmax.f32 %v6508, %v6509
        %v6511 = vrot.slane %v6510, 1
        %v6512 = vmax.f32 %v6510, %v6511
        %v6513 = vsel %vm4363, %v2983, -inf
        %v6514 = vrot.slane %v6513, 4
        %v6515 = vmax.f32 %v6513, %v6514
        %v6516 = vrot.slane %v6515, 2
        %v6517 = vmax.f32 %v6515, %v6516
        %v6518 = vrot.slane %v6517, 1
        %v6519 = vmax.f32 %v6517, %v6518
        %v6520 = vsel %vm4363, %v2991, -inf
        %v6521 = vrot.slane %v6520, 4
        %v6522 = vmax.f32 %v6520, %v6521
        %v6523 = vrot.slane %v6522, 2
        %v6524 = vmax.f32 %v6522, %v6523
        %v6525 = vrot.slane %v6524, 1
        %v6526 = vmax.f32 %v6524, %v6525
        %v6527 = vsel %vm4363, %v2999, -inf
        %v6528 = vrot.slane %v6527, 4
        %v6529 = vmax.f32 %v6527, %v6528
        %v6530 = vrot.slane %v6529, 2
        %v6531 = vmax.f32 %v6529, %v6530
        %v6532 = vrot.slane %v6531, 1
        %v6533 = vmax.f32 %v6531, %v6532
        %v6534 = vsel %vm4363, %v2998, -inf
        %v6535 = vrot.slane %v6534, 4
        %v6536 = vmax.f32 %v6534, %v6535
        %v6537 = vrot.slane %v6536, 2
        %v6538 = vmax.f32 %v6536, %v6537
        %v6539 = vrot.slane %v6538, 1
        %v6540 = vmax.f32 %v6538, %v6539
        %v6541 = vsel %vm4363, %v3000, -inf
        %v6542 = vrot.slane %v6541, 4
        %v6543 = vmax.f32 %v6541, %v6542
        %v6544 = vrot.slane %v6543, 2
        %v6545 = vmax.f32 %v6543, %v6544
        %v6546 = vrot.slane %v6545, 1
        %v6547 = vmax.f32 %v6545, %v6546
        %v6548 = vsel %vm4363, %v3008, -inf
        %v6549 = vrot.slane %v6548, 4
        %v6550 = vmax.f32 %v6548, %v6549
        %v6551 = vrot.slane %v6550, 2
        %v6552 = vmax.f32 %v6550, %v6551
        %v6553 = vrot.slane %v6552, 1
        %v6554 = vmax.f32 %v6552, %v6553
        %v6555 = vsel %vm4363, %v3016, -inf
        %v6556 = vrot.slane %v6555, 4
        %v6557 = vmax.f32 %v6555, %v6556
        %v6558 = vrot.slane %v6557, 2
        %v6559 = vmax.f32 %v6557, %v6558
        %v6560 = vrot.slane %v6559, 1
        %v6561 = vmax.f32 %v6559, %v6560
        %v6562 = vsel %vm4363, %v3015, -inf
        %v6563 = vrot.slane %v6562, 4
        %v6564 = vmax.f32 %v6562, %v6563
        %v6565 = vrot.slane %v6564, 2
        %v6566 = vmax.f32 %v6564, %v6565
        %v6567 = vrot.slane %v6566, 1
        %v6568 = vmax.f32 %v6566, %v6567
        %v6569 = vsel %vm4363, %v3017, -inf
        %v6570 = vrot.slane %v6569, 4
        %v6571 = vmax.f32 %v6569, %v6570
        %v6572 = vrot.slane %v6571, 2
        %v6573 = vmax.f32 %v6571, %v6572
        %v6574 = vrot.slane %v6573, 1
        %v6575 = vmax.f32 %v6573, %v6574
        %v6576 = vsel %vm4363, %v3025, -inf
        %v6577 = vrot.slane %v6576, 4
        %v6578 = vmax.f32 %v6576, %v6577
        %v6579 = vrot.slane %v6578, 2
        %v6580 = vmax.f32 %v6578, %v6579
        %v6581 = vrot.slane %v6580, 1
        %v6582 = vmax.f32 %v6580, %v6581
        %v6583 = vsel %vm4363, %v3033, -inf
        %v6584 = vrot.slane %v6583, 4
        %v6585 = vmax.f32 %v6583, %v6584
        %v6586 = vrot.slane %v6585, 2
        %v6587 = vmax.f32 %v6585, %v6586
        %v6588 = vrot.slane %v6587, 1
        %v6589 = vmax.f32 %v6587, %v6588
        %v6590 = vsel %vm4363, %v3032, -inf
        %v6591 = vrot.slane %v6590, 4
        %v6592 = vmax.f32 %v6590, %v6591
        %v6593 = vrot.slane %v6592, 2
        %v6594 = vmax.f32 %v6592, %v6593
        %v6595 = vrot.slane %v6594, 1
        %v6596 = vmax.f32 %v6594, %v6595
        %v6597 = vsel %vm4363, %v3034, -inf
        %v6598 = vrot.slane %v6597, 4
        %v6599 = vmax.f32 %v6597, %v6598
        %v6600 = vrot.slane %v6599, 2
        %v6601 = vmax.f32 %v6599, %v6600
        %v6602 = vrot.slane %v6601, 1
        %v6603 = vmax.f32 %v6601, %v6602
        %v6604 = vsel %vm4363, %v3042, -inf
        %v6605 = vrot.slane %v6604, 4
        %v6606 = vmax.f32 %v6604, %v6605
        %v6607 = vrot.slane %v6606, 2
        %v6608 = vmax.f32 %v6606, %v6607
        %v6609 = vrot.slane %v6608, 1
        %v6610 = vmax.f32 %v6608, %v6609
        %v6611 = vsel %vm4363, %v3050, -inf
        %v6612 = vrot.slane %v6611, 4
        %v6613 = vmax.f32 %v6611, %v6612
        %v6614 = vrot.slane %v6613, 2
        %v6615 = vmax.f32 %v6613, %v6614
        %v6616 = vrot.slane %v6615, 1
        %v6617 = vmax.f32 %v6615, %v6616
        %v6618 = vsel %vm4363, %v3049, -inf
        %v6619 = vrot.slane %v6618, 4
        %v6620 = vmax.f32 %v6618, %v6619
        %v6621 = vrot.slane %v6620, 2
        %v6622 = vmax.f32 %v6620, %v6621
        %v6623 = vrot.slane %v6622, 1
        %v6624 = vmax.f32 %v6622, %v6623
        %v6625 = vsel %vm4363, %v3051, -inf
        %v6626 = vrot.slane %v6625, 4
        %v6627 = vmax.f32 %v6625, %v6626
        %v6628 = vrot.slane %v6627, 2
        %v6629 = vmax.f32 %v6627, %v6628
        %v6630 = vrot.slane %v6629, 1
        %v6631 = vmax.f32 %v6629, %v6630
        %v6632 = vsel %vm4363, %v3059, -inf
        %v6633 = vrot.slane %v6632, 4
        %v6634 = vmax.f32 %v6632, %v6633
        %v6635 = vrot.slane %v6634, 2
        %v6636 = vmax.f32 %v6634, %v6635
        %v6637 = vrot.slane %v6636, 1
        %v6638 = vmax.f32 %v6636, %v6637
        %v6639 = vsel %vm4363, %v3067, -inf
        %v6640 = vrot.slane %v6639, 4
        %v6641 = vmax.f32 %v6639, %v6640
        %v6642 = vrot.slane %v6641, 2
        %v6643 = vmax.f32 %v6641, %v6642
        %v6644 = vrot.slane %v6643, 1
        %v6645 = vmax.f32 %v6643, %v6644
        %v6646 = vsel %vm4363, %v3066, -inf
        %v6647 = vrot.slane %v6646, 4
        %v6648 = vmax.f32 %v6646, %v6647
        %v6649 = vrot.slane %v6648, 2
        %v6650 = vmax.f32 %v6648, %v6649
        %v6651 = vrot.slane %v6650, 1
        %v6652 = vmax.f32 %v6650, %v6651
        %v6653 = vsel %vm4363, %v3068, -inf
        %v6654 = vrot.slane %v6653, 4
        %v6655 = vmax.f32 %v6653, %v6654
        %v6656 = vrot.slane %v6655, 2
        %v6657 = vmax.f32 %v6655, %v6656
        %v6658 = vrot.slane %v6657, 1
        %v6659 = vmax.f32 %v6657, %v6658
        %v6660 = vsel %vm4363, %v3076, -inf
        %v6661 = vrot.slane %v6660, 4
        %v6662 = vmax.f32 %v6660, %v6661
        %v6663 = vrot.slane %v6662, 2
        %v6664 = vmax.f32 %v6662, %v6663
        %v6665 = vrot.slane %v6664, 1
        %v6666 = vmax.f32 %v6664, %v6665
        %v6667 = vsel %vm4363, %v3084, -inf
        %v6668 = vrot.slane %v6667, 4
        %v6669 = vmax.f32 %v6667, %v6668
        %v6670 = vrot.slane %v6669, 2
        %v6671 = vmax.f32 %v6669, %v6670
        %v6672 = vrot.slane %v6671, 1
        %v6673 = vmax.f32 %v6671, %v6672
        %v6674 = vsel %vm4363, %v3083, -inf
        %v6675 = vrot.slane %v6674, 4
        %v6676 = vmax.f32 %v6674, %v6675
        %v6677 = vrot.slane %v6676, 2
        %v6678 = vmax.f32 %v6676, %v6677
        %v6679 = vrot.slane %v6678, 1
        %v6680 = vmax.f32 %v6678, %v6679
        %v6681 = vsel %vm4363, %v3085, -inf
        %v6682 = vrot.slane %v6681, 4
        %v6683 = vmax.f32 %v6681, %v6682
        %v6684 = vrot.slane %v6683, 2
        %v6685 = vmax.f32 %v6683, %v6684
        %v6686 = vrot.slane %v6685, 1
        %v6687 = vmax.f32 %v6685, %v6686
        %v6688 = vsel %vm4363, %v3093, -inf
        %v6689 = vrot.slane %v6688, 4
        %v6690 = vmax.f32 %v6688, %v6689
        %v6691 = vrot.slane %v6690, 2
        %v6692 = vmax.f32 %v6690, %v6691
        %v6693 = vrot.slane %v6692, 1
        %v6694 = vmax.f32 %v6692, %v6693
        %v6695 = vsel %vm4363, %v3101, -inf
        %v6696 = vrot.slane %v6695, 4
        %v6697 = vmax.f32 %v6695, %v6696
        %v6698 = vrot.slane %v6697, 2
        %v6699 = vmax.f32 %v6697, %v6698
        %v6700 = vrot.slane %v6699, 1
        %v6701 = vmax.f32 %v6699, %v6700
        %v6702 = vsel %vm4363, %v3100, -inf
        %v6703 = vrot.slane %v6702, 4
        %v6704 = vmax.f32 %v6702, %v6703
        %v6705 = vrot.slane %v6704, 2
        %v6706 = vmax.f32 %v6704, %v6705
        %v6707 = vrot.slane %v6706, 1
        %v6708 = vmax.f32 %v6706, %v6707
        %v6709 = vsel %vm4363, %v3102, -inf
        %v6710 = vrot.slane %v6709, 4
        %v6711 = vmax.f32 %v6709, %v6710
        %v6712 = vrot.slane %v6711, 2
        %v6713 = vmax.f32 %v6711, %v6712
        %v6714 = vrot.slane %v6713, 1
        %v6715 = vmax.f32 %v6713, %v6714
        %v6716 = vsel %vm4363, %v3110, -inf
        %v6717 = vrot.slane %v6716, 4
        %v6718 = vmax.f32 %v6716, %v6717
        %v6719 = vrot.slane %v6718, 2
        %v6720 = vmax.f32 %v6718, %v6719
        %v6721 = vrot.slane %v6720, 1
        %v6722 = vmax.f32 %v6720, %v6721
        %v6723 = vsel %vm4363, %v3118, -inf
        %v6724 = vrot.slane %v6723, 4
        %v6725 = vmax.f32 %v6723, %v6724
        %v6726 = vrot.slane %v6725, 2
        %v6727 = vmax.f32 %v6725, %v6726
        %v6728 = vrot.slane %v6727, 1
        %v6729 = vmax.f32 %v6727, %v6728
        %v6730 = vsel %vm4363, %v3117, -inf
        %v6731 = vrot.slane %v6730, 4
        %v6732 = vmax.f32 %v6730, %v6731
        %v6733 = vrot.slane %v6732, 2
        %v6734 = vmax.f32 %v6732, %v6733
        %v6735 = vrot.slane %v6734, 1
        %v6736 = vmax.f32 %v6734, %v6735
        %v6737 = vsel %vm4363, %v3119, -inf
        %v6738 = vrot.slane %v6737, 4
        %v6739 = vmax.f32 %v6737, %v6738
        %v6740 = vrot.slane %v6739, 2
        %v6741 = vmax.f32 %v6739, %v6740
        %v6742 = vrot.slane %v6741, 1
        %v6743 = vmax.f32 %v6741, %v6742
        %v6744 = vsel %vm4363, %v3127, -inf
        %v6745 = vrot.slane %v6744, 4
        %v6746 = vmax.f32 %v6744, %v6745
        %v6747 = vrot.slane %v6746, 2
        %v6748 = vmax.f32 %v6746, %v6747
        %v6749 = vrot.slane %v6748, 1
        %v6750 = vmax.f32 %v6748, %v6749
        %v6751 = vsel %vm4363, %v3135, -inf
        %v6752 = vrot.slane %v6751, 4
        %v6753 = vmax.f32 %v6751, %v6752
        %v6754 = vrot.slane %v6753, 2
        %v6755 = vmax.f32 %v6753, %v6754
        %v6756 = vrot.slane %v6755, 1
        %v6757 = vmax.f32 %v6755, %v6756
        %v6758 = vsel %vm4363, %v3134, -inf
        %v6759 = vrot.slane %v6758, 4
        %v6760 = vmax.f32 %v6758, %v6759
        %v6761 = vrot.slane %v6760, 2
        %v6762 = vmax.f32 %v6760, %v6761
        %v6763 = vrot.slane %v6762, 1
        %v6764 = vmax.f32 %v6762, %v6763
        %v6765 = vsel %vm4363, %v3136, -inf
        %v6766 = vrot.slane %v6765, 4
        %v6767 = vmax.f32 %v6765, %v6766
        %v6768 = vrot.slane %v6767, 2
        %v6769 = vmax.f32 %v6767, %v6768
        %v6770 = vrot.slane %v6769, 1
        %v6771 = vmax.f32 %v6769, %v6770
        %v6772 = vsel %vm4363, %v3144, -inf
        %v6773 = vrot.slane %v6772, 4
        %v6774 = vmax.f32 %v6772, %v6773
        %v6775 = vrot.slane %v6774, 2
        %v6776 = vmax.f32 %v6774, %v6775
        %v6777 = vrot.slane %v6776, 1
        %v6778 = vmax.f32 %v6776, %v6777
        %v6779 = vsel %vm4363, %v3152, -inf
        %v6780 = vrot.slane %v6779, 4
        %v6781 = vmax.f32 %v6779, %v6780
        %v6782 = vrot.slane %v6781, 2
        %v6783 = vmax.f32 %v6781, %v6782
        %v6784 = vrot.slane %v6783, 1
        %v6785 = vmax.f32 %v6783, %v6784
        %v6786 = vsel %vm4363, %v3151, -inf
        %v6787 = vrot.slane %v6786, 4
        %v6788 = vmax.f32 %v6786, %v6787
        %v6789 = vrot.slane %v6788, 2
        %v6790 = vmax.f32 %v6788, %v6789
        %v6791 = vrot.slane %v6790, 1
        %v6792 = vmax.f32 %v6790, %v6791
        %v6793 = vsel %vm4363, %v3153, -inf
        %v6794 = vrot.slane %v6793, 4
        %v6795 = vmax.f32 %v6793, %v6794
        %v6796 = vrot.slane %v6795, 2
        %v6797 = vmax.f32 %v6795, %v6796
        %v6798 = vrot.slane %v6797, 1
        %v6799 = vmax.f32 %v6797, %v6798
        %v6800 = vsel %vm4363, %v3161, -inf
        %v6801 = vrot.slane %v6800, 4
        %v6802 = vmax.f32 %v6800, %v6801
        %v6803 = vrot.slane %v6802, 2
        %v6804 = vmax.f32 %v6802, %v6803
        %v6805 = vrot.slane %v6804, 1
        %v6806 = vmax.f32 %v6804, %v6805
        %v6807 = vsel %vm4363, %v3169, -inf
        %v6808 = vrot.slane %v6807, 4
        %v6809 = vmax.f32 %v6807, %v6808
        %v6810 = vrot.slane %v6809, 2
        %v6811 = vmax.f32 %v6809, %v6810
        %v6812 = vrot.slane %v6811, 1
        %v6813 = vmax.f32 %v6811, %v6812
        %v6814 = vsel %vm4363, %v3168, -inf
        %v6815 = vrot.slane %v6814, 4
        %v6816 = vmax.f32 %v6814, %v6815
        %v6817 = vrot.slane %v6816, 2
        %v6818 = vmax.f32 %v6816, %v6817
        %v6819 = vrot.slane %v6818, 1
        %v6820 = vmax.f32 %v6818, %v6819
        %v6821 = vsel %vm4363, %v3170, -inf
        %v6822 = vrot.slane %v6821, 4
        %v6823 = vmax.f32 %v6821, %v6822
        %v6824 = vrot.slane %v6823, 2
        %v6825 = vmax.f32 %v6823, %v6824
        %v6826 = vrot.slane %v6825, 1
        %v6827 = vmax.f32 %v6825, %v6826
        %v6828 = vsel %vm4363, %v3178, -inf
        %v6829 = vrot.slane %v6828, 4
        %v6830 = vmax.f32 %v6828, %v6829
        %v6831 = vrot.slane %v6830, 2
        %v6832 = vmax.f32 %v6830, %v6831
        %v6833 = vrot.slane %v6832, 1
        %v6834 = vmax.f32 %v6832, %v6833
        %v6835 = vsel %vm4363, %v3186, -inf
        %v6836 = vrot.slane %v6835, 4
        %v6837 = vmax.f32 %v6835, %v6836
        %v6838 = vrot.slane %v6837, 2
        %v6839 = vmax.f32 %v6837, %v6838
        %v6840 = vrot.slane %v6839, 1
        %v6841 = vmax.f32 %v6839, %v6840
        %v6842 = vsel %vm4363, %v3185, -inf
        %v6843 = vrot.slane %v6842, 4
        %v6844 = vmax.f32 %v6842, %v6843
        %v6845 = vrot.slane %v6844, 2
        %v6846 = vmax.f32 %v6844, %v6845
        %v6847 = vrot.slane %v6846, 1
        %v6848 = vmax.f32 %v6846, %v6847
        %v6849 = vsel %vm4363, %v3187, -inf
        %v6850 = vrot.slane %v6849, 4
        %v6851 = vmax.f32 %v6849, %v6850
        %v6852 = vrot.slane %v6851, 2
        %v6853 = vmax.f32 %v6851, %v6852
        %v6854 = vrot.slane %v6853, 1
        %v6855 = vmax.f32 %v6853, %v6854
        %v6856 = vsel %vm4363, %v3195, -inf
        %v6857 = vrot.slane %v6856, 4
        %v6858 = vmax.f32 %v6856, %v6857
        %v6859 = vrot.slane %v6858, 2
        %v6860 = vmax.f32 %v6858, %v6859
        %v6861 = vrot.slane %v6860, 1
        %v6862 = vmax.f32 %v6860, %v6861
        %v6863 = vsel %vm4363, %v3203, -inf
        %v6864 = vrot.slane %v6863, 4
        %v6865 = vmax.f32 %v6863, %v6864
        %v6866 = vrot.slane %v6865, 2
        %v6867 = vmax.f32 %v6865, %v6866
        %v6868 = vrot.slane %v6867, 1
        %v6869 = vmax.f32 %v6867, %v6868
        %v6870 = vsel %vm4363, %v3202, -inf
        %v6871 = vrot.slane %v6870, 4
        %v6872 = vmax.f32 %v6870, %v6871
        %v6873 = vrot.slane %v6872, 2
        %v6874 = vmax.f32 %v6872, %v6873
        %v6875 = vrot.slane %v6874, 1
        %v6876 = vmax.f32 %v6874, %v6875
        %v6877 = vsel %vm4363, %v3204, -inf
        %v6878 = vrot.slane %v6877, 4
        %v6879 = vmax.f32 %v6877, %v6878
        %v6880 = vrot.slane %v6879, 2
        %v6881 = vmax.f32 %v6879, %v6880
        %v6882 = vrot.slane %v6881, 1
        %v6883 = vmax.f32 %v6881, %v6882
        %v6884 = vsel %vm4363, %v3212, -inf
        %v6885 = vrot.slane %v6884, 4
        %v6886 = vmax.f32 %v6884, %v6885
        %v6887 = vrot.slane %v6886, 2
        %v6888 = vmax.f32 %v6886, %v6887
        %v6889 = vrot.slane %v6888, 1
        %v6890 = vmax.f32 %v6888, %v6889
        %v6891 = vsel %vm4363, %v3220, -inf
        %v6892 = vrot.slane %v6891, 4
        %v6893 = vmax.f32 %v6891, %v6892
        %v6894 = vrot.slane %v6893, 2
        %v6895 = vmax.f32 %v6893, %v6894
        %v6896 = vrot.slane %v6895, 1
        %v6897 = vmax.f32 %v6895, %v6896
        %v6898 = vsel %vm4363, %v3219, -inf
        %v6899 = vrot.slane %v6898, 4
        %v6900 = vmax.f32 %v6898, %v6899
        %v6901 = vrot.slane %v6900, 2
        %v6902 = vmax.f32 %v6900, %v6901
        %v6903 = vrot.slane %v6902, 1
        %v6904 = vmax.f32 %v6902, %v6903
        %v6905 = vsel %vm4363, %v3221, -inf
        %v6906 = vrot.slane %v6905, 4
        %v6907 = vmax.f32 %v6905, %v6906
        %v6908 = vrot.slane %v6907, 2
        %v6909 = vmax.f32 %v6907, %v6908
        %v6910 = vrot.slane %v6909, 1
        %v6911 = vmax.f32 %v6909, %v6910
        %v6912 = vsel %vm4363, %v3229, -inf
        %v6913 = vrot.slane %v6912, 4
        %v6914 = vmax.f32 %v6912, %v6913
        %v6915 = vrot.slane %v6914, 2
        %v6916 = vmax.f32 %v6914, %v6915
        %v6917 = vrot.slane %v6916, 1
        %v6918 = vmax.f32 %v6916, %v6917
        %v6919 = vsel %vm4363, %v3237, -inf
        %v6920 = vrot.slane %v6919, 4
        %v6921 = vmax.f32 %v6919, %v6920
        %v6922 = vrot.slane %v6921, 2
        %v6923 = vmax.f32 %v6921, %v6922
        %v6924 = vrot.slane %v6923, 1
        %v6925 = vmax.f32 %v6923, %v6924
        %v6926 = vsel %vm4363, %v3236, -inf
        %v6927 = vrot.slane %v6926, 4
        %v6928 = vmax.f32 %v6926, %v6927
        %v6929 = vrot.slane %v6928, 2
        %v6930 = vmax.f32 %v6928, %v6929
        %v6931 = vrot.slane %v6930, 1
        %v6932 = vmax.f32 %v6930, %v6931
        %v6933 = vsel %vm4363, %v3238, -inf
        %v6934 = vrot.slane %v6933, 4
        %v6935 = vmax.f32 %v6933, %v6934
        %v6936 = vrot.slane %v6935, 2
        %v6937 = vmax.f32 %v6935, %v6936
        %v6938 = vrot.slane %v6937, 1
        %v6939 = vmax.f32 %v6937, %v6938
        %v6940 = vsel %vm4363, %v3246, -inf
        %v6941 = vrot.slane %v6940, 4
        %v6942 = vmax.f32 %v6940, %v6941
        %v6943 = vrot.slane %v6942, 2
        %v6944 = vmax.f32 %v6942, %v6943
        %v6945 = vrot.slane %v6944, 1
        %v6946 = vmax.f32 %v6944, %v6945
        %v6947 = vsel %vm4363, %v3254, -inf
        %v6948 = vrot.slane %v6947, 4
        %v6949 = vmax.f32 %v6947, %v6948
        %v6950 = vrot.slane %v6949, 2
        %v6951 = vmax.f32 %v6949, %v6950
        %v6952 = vrot.slane %v6951, 1
        %v6953 = vmax.f32 %v6951, %v6952
        %v6954 = vsel %vm4363, %v3253, -inf
        %v6955 = vrot.slane %v6954, 4
        %v6956 = vmax.f32 %v6954, %v6955
        %v6957 = vrot.slane %v6956, 2
        %v6958 = vmax.f32 %v6956, %v6957
        %v6959 = vrot.slane %v6958, 1
        %v6960 = vmax.f32 %v6958, %v6959
        %v6961 = vsel %vm4363, %v3255, -inf
        %v6962 = vrot.slane %v6961, 4
        %v6963 = vmax.f32 %v6961, %v6962
        %v6964 = vrot.slane %v6963, 2
        %v6965 = vmax.f32 %v6963, %v6964
        %v6966 = vrot.slane %v6965, 1
        %v6967 = vmax.f32 %v6965, %v6966
        %v6968 = vsel %vm4363, %v3263, -inf
        %v6969 = vrot.slane %v6968, 4
        %v6970 = vmax.f32 %v6968, %v6969
        %v6971 = vrot.slane %v6970, 2
        %v6972 = vmax.f32 %v6970, %v6971
        %v6973 = vrot.slane %v6972, 1
        %v6974 = vmax.f32 %v6972, %v6973
        %v6975 = vsel %vm4363, %v3271, -inf
        %v6976 = vrot.slane %v6975, 4
        %v6977 = vmax.f32 %v6975, %v6976
        %v6978 = vrot.slane %v6977, 2
        %v6979 = vmax.f32 %v6977, %v6978
        %v6980 = vrot.slane %v6979, 1
        %v6981 = vmax.f32 %v6979, %v6980
        %v6982 = vsel %vm4363, %v3270, -inf
        %v6983 = vrot.slane %v6982, 4
        %v6984 = vmax.f32 %v6982, %v6983
        %v6985 = vrot.slane %v6984, 2
        %v6986 = vmax.f32 %v6984, %v6985
        %v6987 = vrot.slane %v6986, 1
        %v6988 = vmax.f32 %v6986, %v6987
        %v6989 = vsel %vm4363, %v3272, -inf
        %v6990 = vrot.slane %v6989, 4
        %v6991 = vmax.f32 %v6989, %v6990
        %v6992 = vrot.slane %v6991, 2
        %v6993 = vmax.f32 %v6991, %v6992
        %v6994 = vrot.slane %v6993, 1
        %v6995 = vmax.f32 %v6993, %v6994
        %v6996 = vsel %vm4363, %v3280, -inf
        %v6997 = vrot.slane %v6996, 4
        %v6998 = vmax.f32 %v6996, %v6997
        %v6999 = vrot.slane %v6998, 2
        %v7000 = vmax.f32 %v6998, %v6999
        %v7001 = vrot.slane %v7000, 1
        %v7002 = vmax.f32 %v7000, %v7001
        %v7003 = vsel %vm4363, %v3288, -inf
        %v7004 = vrot.slane %v7003, 4
        %v7005 = vmax.f32 %v7003, %v7004
        %v7006 = vrot.slane %v7005, 2
        %v7007 = vmax.f32 %v7005, %v7006
        %v7008 = vrot.slane %v7007, 1
        %v7009 = vmax.f32 %v7007, %v7008
        %v7010 = vsel %vm4363, %v3287, -inf
        %v7011 = vrot.slane %v7010, 4
        %v7012 = vmax.f32 %v7010, %v7011
        %v7013 = vrot.slane %v7012, 2
        %v7014 = vmax.f32 %v7012, %v7013
        %v7015 = vrot.slane %v7014, 1
        %v7016 = vmax.f32 %v7014, %v7015
        %v7017 = vsel %vm4363, %v3289, -inf
        %v7018 = vrot.slane %v7017, 4
        %v7019 = vmax.f32 %v7017, %v7018
        %v7020 = vrot.slane %v7019, 2
        %v7021 = vmax.f32 %v7019, %v7020
        %v7022 = vrot.slane %v7021, 1
        %v7023 = vmax.f32 %v7021, %v7022
        %v7024 = vsel %vm4363, %v3297, -inf
        %v7025 = vrot.slane %v7024, 4
        %v7026 = vmax.f32 %v7024, %v7025
        %v7027 = vrot.slane %v7026, 2
        %v7028 = vmax.f32 %v7026, %v7027
        %v7029 = vrot.slane %v7028, 1
        %v7030 = vmax.f32 %v7028, %v7029
        %v7031 = vsel %vm4363, %v3305, -inf
        %v7032 = vrot.slane %v7031, 4
        %v7033 = vmax.f32 %v7031, %v7032
        %v7034 = vrot.slane %v7033, 2
        %v7035 = vmax.f32 %v7033, %v7034
        %v7036 = vrot.slane %v7035, 1
        %v7037 = vmax.f32 %v7035, %v7036
        %v7038 = vsel %vm4363, %v3304, -inf
        %v7039 = vrot.slane %v7038, 4
        %v7040 = vmax.f32 %v7038, %v7039
        %v7041 = vrot.slane %v7040, 2
        %v7042 = vmax.f32 %v7040, %v7041
        %v7043 = vrot.slane %v7042, 1
        %v7044 = vmax.f32 %v7042, %v7043
        %v7045 = vsel %vm4363, %v3306, -inf
        %v7046 = vrot.slane %v7045, 4
        %v7047 = vmax.f32 %v7045, %v7046
        %v7048 = vrot.slane %v7047, 2
        %v7049 = vmax.f32 %v7047, %v7048
        %v7050 = vrot.slane %v7049, 1
        %v7051 = vmax.f32 %v7049, %v7050
        %v7052 = vsel %vm4363, %v3314, -inf
        %v7053 = vrot.slane %v7052, 4
        %v7054 = vmax.f32 %v7052, %v7053
        %v7055 = vrot.slane %v7054, 2
        %v7056 = vmax.f32 %v7054, %v7055
        %v7057 = vrot.slane %v7056, 1
        %v7058 = vmax.f32 %v7056, %v7057
        %v7059 = vsel %vm4363, %v3322, -inf
        %v7060 = vrot.slane %v7059, 4
        %v7061 = vmax.f32 %v7059, %v7060
        %v7062 = vrot.slane %v7061, 2
        %v7063 = vmax.f32 %v7061, %v7062
        %v7064 = vrot.slane %v7063, 1
        %v7065 = vmax.f32 %v7063, %v7064
        %v7066 = vsel %vm4363, %v3321, -inf
        %v7067 = vrot.slane %v7066, 4
        %v7068 = vmax.f32 %v7066, %v7067
        %v7069 = vrot.slane %v7068, 2
        %v7070 = vmax.f32 %v7068, %v7069
        %v7071 = vrot.slane %v7070, 1
        %v7072 = vmax.f32 %v7070, %v7071
        %v7073 = vsel %vm4363, %v3323, -inf
        %v7074 = vrot.slane %v7073, 4
        %v7075 = vmax.f32 %v7073, %v7074
        %v7076 = vrot.slane %v7075, 2
        %v7077 = vmax.f32 %v7075, %v7076
        %v7078 = vrot.slane %v7077, 1
        %v7079 = vmax.f32 %v7077, %v7078
        %v7080 = vsel %vm4363, %v3331, -inf
        %v7081 = vrot.slane %v7080, 4
        %v7082 = vmax.f32 %v7080, %v7081
        %v7083 = vrot.slane %v7082, 2
        %v7084 = vmax.f32 %v7082, %v7083
        %v7085 = vrot.slane %v7084, 1
        %v7086 = vmax.f32 %v7084, %v7085
        %v7087 = vsel %vm4363, %v3339, -inf
        %v7088 = vrot.slane %v7087, 4
        %v7089 = vmax.f32 %v7087, %v7088
        %v7090 = vrot.slane %v7089, 2
        %v7091 = vmax.f32 %v7089, %v7090
        %v7092 = vrot.slane %v7091, 1
        %v7093 = vmax.f32 %v7091, %v7092
        %v7094 = vsel %vm4363, %v3338, -inf
        %v7095 = vrot.slane %v7094, 4
        %v7096 = vmax.f32 %v7094, %v7095
        %v7097 = vrot.slane %v7096, 2
        %v7098 = vmax.f32 %v7096, %v7097
        %v7099 = vrot.slane %v7098, 1
        %v7100 = vmax.f32 %v7098, %v7099
        %v7101 = vsel %vm4363, %v3340, -inf
        %v7102 = vrot.slane %v7101, 4
        %v7103 = vmax.f32 %v7101, %v7102
        %v7104 = vrot.slane %v7103, 2
        %v7105 = vmax.f32 %v7103, %v7104
        %v7106 = vrot.slane %v7105, 1
        %v7107 = vmax.f32 %v7105, %v7106
        %v7108 = vsel %vm4363, %v3348, -inf
        %v7109 = vrot.slane %v7108, 4
        %v7110 = vmax.f32 %v7108, %v7109
        %v7111 = vrot.slane %v7110, 2
        %v7112 = vmax.f32 %v7110, %v7111
        %v7113 = vrot.slane %v7112, 1
        %v7114 = vmax.f32 %v7112, %v7113
        %v7115 = vsel %vm4363, %v3356, -inf
        %v7116 = vrot.slane %v7115, 4
        %v7117 = vmax.f32 %v7115, %v7116
        %v7118 = vrot.slane %v7117, 2
        %v7119 = vmax.f32 %v7117, %v7118
        %v7120 = vrot.slane %v7119, 1
        %v7121 = vmax.f32 %v7119, %v7120
        %v7122 = vsel %vm4363, %v3355, -inf
        %v7123 = vrot.slane %v7122, 4
        %v7124 = vmax.f32 %v7122, %v7123
        %v7125 = vrot.slane %v7124, 2
        %v7126 = vmax.f32 %v7124, %v7125
        %v7127 = vrot.slane %v7126, 1
        %v7128 = vmax.f32 %v7126, %v7127
        %v7129 = vsel %vm4363, %v3357, -inf
        %v7130 = vrot.slane %v7129, 4
        %v7131 = vmax.f32 %v7129, %v7130
        %v7132 = vrot.slane %v7131, 2
        %v7133 = vmax.f32 %v7131, %v7132
        %v7134 = vrot.slane %v7133, 1
        %v7135 = vmax.f32 %v7133, %v7134
        %v7136 = vsel %vm4363, %v3365, -inf
        %v7137 = vrot.slane %v7136, 4
        %v7138 = vmax.f32 %v7136, %v7137
        %v7139 = vrot.slane %v7138, 2
        %v7140 = vmax.f32 %v7138, %v7139
        %v7141 = vrot.slane %v7140, 1
        %v7142 = vmax.f32 %v7140, %v7141
        %v7143 = vsel %vm4363, %v3373, -inf
        %v7144 = vrot.slane %v7143, 4
        %v7145 = vmax.f32 %v7143, %v7144
        %v7146 = vrot.slane %v7145, 2
        %v7147 = vmax.f32 %v7145, %v7146
        %v7148 = vrot.slane %v7147, 1
        %v7149 = vmax.f32 %v7147, %v7148
        %v7150 = vsel %vm4363, %v3372, -inf
        %v7151 = vrot.slane %v7150, 4
        %v7152 = vmax.f32 %v7150, %v7151
        %v7153 = vrot.slane %v7152, 2
        %v7154 = vmax.f32 %v7152, %v7153
        %v7155 = vrot.slane %v7154, 1
        %v7156 = vmax.f32 %v7154, %v7155
        %v7157 = vsel %vm4363, %v3374, -inf
        %v7158 = vrot.slane %v7157, 4
        %v7159 = vmax.f32 %v7157, %v7158
        %v7160 = vrot.slane %v7159, 2
        %v7161 = vmax.f32 %v7159, %v7160
        %v7162 = vrot.slane %v7161, 1
        %v7163 = vmax.f32 %v7161, %v7162
        %v7164 = vsel %vm4363, %v3382, -inf
        %v7165 = vrot.slane %v7164, 4
        %v7166 = vmax.f32 %v7164, %v7165
        %v7167 = vrot.slane %v7166, 2
        %v7168 = vmax.f32 %v7166, %v7167
        %v7169 = vrot.slane %v7168, 1
        %v7170 = vmax.f32 %v7168, %v7169
        %v7171 = vsel %vm4363, %v3390, -inf
        %v7172 = vrot.slane %v7171, 4
        %v7173 = vmax.f32 %v7171, %v7172
        %v7174 = vrot.slane %v7173, 2
        %v7175 = vmax.f32 %v7173, %v7174
        %v7176 = vrot.slane %v7175, 1
        %v7177 = vmax.f32 %v7175, %v7176
        %v7178 = vsel %vm4363, %v3389, -inf
        %v7179 = vrot.slane %v7178, 4
        %v7180 = vmax.f32 %v7178, %v7179
        %v7181 = vrot.slane %v7180, 2
        %v7182 = vmax.f32 %v7180, %v7181
        %v7183 = vrot.slane %v7182, 1
        %v7184 = vmax.f32 %v7182, %v7183
        %v7185 = vsel %vm4363, %v3391, -inf
        %v7186 = vrot.slane %v7185, 4
        %v7187 = vmax.f32 %v7185, %v7186
        %v7188 = vrot.slane %v7187, 2
        %v7189 = vmax.f32 %v7187, %v7188
        %v7190 = vrot.slane %v7189, 1
        %v7191 = vmax.f32 %v7189, %v7190
        %v7192 = vsel %vm4363, %v3399, -inf
        %v7193 = vrot.slane %v7192, 4
        %v7194 = vmax.f32 %v7192, %v7193
        %v7195 = vrot.slane %v7194, 2
        %v7196 = vmax.f32 %v7194, %v7195
        %v7197 = vrot.slane %v7196, 1
        %v7198 = vmax.f32 %v7196, %v7197
        %v7199 = vsel %vm4363, %v3407, -inf
        %v7200 = vrot.slane %v7199, 4
        %v7201 = vmax.f32 %v7199, %v7200
        %v7202 = vrot.slane %v7201, 2
        %v7203 = vmax.f32 %v7201, %v7202
        %v7204 = vrot.slane %v7203, 1
        %v7205 = vmax.f32 %v7203, %v7204
        %v7206 = vsel %vm4363, %v3406, -inf
        %v7207 = vrot.slane %v7206, 4
        %v7208 = vmax.f32 %v7206, %v7207
        %v7209 = vrot.slane %v7208, 2
        %v7210 = vmax.f32 %v7208, %v7209
        %v7211 = vrot.slane %v7210, 1
        %v7212 = vmax.f32 %v7210, %v7211
        %v7213 = vsel %vm4363, %v3408, -inf
        %v7214 = vrot.slane %v7213, 4
        %v7215 = vmax.f32 %v7213, %v7214
        %v7216 = vrot.slane %v7215, 2
        %v7217 = vmax.f32 %v7215, %v7216
        %v7218 = vrot.slane %v7217, 1
        %v7219 = vmax.f32 %v7217, %v7218
        %v7220 = vsel %vm4363, %v3416, -inf
        %v7221 = vrot.slane %v7220, 4
        %v7222 = vmax.f32 %v7220, %v7221
        %v7223 = vrot.slane %v7222, 2
        %v7224 = vmax.f32 %v7222, %v7223
        %v7225 = vrot.slane %v7224, 1
        %v7226 = vmax.f32 %v7224, %v7225
        %v7227 = vsel %vm4363, %v3424, -inf
        %v7228 = vrot.slane %v7227, 4
        %v7229 = vmax.f32 %v7227, %v7228
        %v7230 = vrot.slane %v7229, 2
        %v7231 = vmax.f32 %v7229, %v7230
        %v7232 = vrot.slane %v7231, 1
        %v7233 = vmax.f32 %v7231, %v7232
        %v7234 = vsel %vm4363, %v3423, -inf
        %v7235 = vrot.slane %v7234, 4
        %v7236 = vmax.f32 %v7234, %v7235
        %v7237 = vrot.slane %v7236, 2
        %v7238 = vmax.f32 %v7236, %v7237
        %v7239 = vrot.slane %v7238, 1
        %v7240 = vmax.f32 %v7238, %v7239
        %v7241 = vsel %vm4363, %v3425, -inf
        %v7242 = vrot.slane %v7241, 4
        %v7243 = vmax.f32 %v7241, %v7242
        %v7244 = vrot.slane %v7243, 2
        %v7245 = vmax.f32 %v7243, %v7244
        %v7246 = vrot.slane %v7245, 1
        %v7247 = vmax.f32 %v7245, %v7246
        %v7248 = vsel %vm4363, %v3433, -inf
        %v7249 = vrot.slane %v7248, 4
        %v7250 = vmax.f32 %v7248, %v7249
        %v7251 = vrot.slane %v7250, 2
        %v7252 = vmax.f32 %v7250, %v7251
        %v7253 = vrot.slane %v7252, 1
        %v7254 = vmax.f32 %v7252, %v7253
        %v7255 = vsel %vm4363, %v3441, -inf
        %v7256 = vrot.slane %v7255, 4
        %v7257 = vmax.f32 %v7255, %v7256
        %v7258 = vrot.slane %v7257, 2
        %v7259 = vmax.f32 %v7257, %v7258
        %v7260 = vrot.slane %v7259, 1
        %v7261 = vmax.f32 %v7259, %v7260
        %v7262 = vsel %vm4363, %v3440, -inf
        %v7263 = vrot.slane %v7262, 4
        %v7264 = vmax.f32 %v7262, %v7263
        %v7265 = vrot.slane %v7264, 2
        %v7266 = vmax.f32 %v7264, %v7265
        %v7267 = vrot.slane %v7266, 1
        %v7268 = vmax.f32 %v7266, %v7267
        %v7269 = vsel %vm4363, %v3442, -inf
        %v7270 = vrot.slane %v7269, 4
        %v7271 = vmax.f32 %v7269, %v7270
        %v7272 = vrot.slane %v7271, 2
        %v7273 = vmax.f32 %v7271, %v7272
        %v7274 = vrot.slane %v7273, 1
        %v7275 = vmax.f32 %v7273, %v7274
        %v7276 = vsel %vm4363, %v3450, -inf
        %v7277 = vrot.slane %v7276, 4
        %v7278 = vmax.f32 %v7276, %v7277
        %v7279 = vrot.slane %v7278, 2
        %v7280 = vmax.f32 %v7278, %v7279
        %v7281 = vrot.slane %v7280, 1
        %v7282 = vmax.f32 %v7280, %v7281
        %v7283 = vsel %vm4363, %v3458, -inf
        %v7284 = vrot.slane %v7283, 4
        %v7285 = vmax.f32 %v7283, %v7284
        %v7286 = vrot.slane %v7285, 2
        %v7287 = vmax.f32 %v7285, %v7286
        %v7288 = vrot.slane %v7287, 1
        %v7289 = vmax.f32 %v7287, %v7288
        %v7290 = vsel %vm4363, %v3457, -inf
        %v7291 = vrot.slane %v7290, 4
        %v7292 = vmax.f32 %v7290, %v7291
        %v7293 = vrot.slane %v7292, 2
        %v7294 = vmax.f32 %v7292, %v7293
        %v7295 = vrot.slane %v7294, 1
        %v7296 = vmax.f32 %v7294, %v7295
        %v7297 = vsel %vm4363, %v3459, -inf
        %v7298 = vrot.slane %v7297, 4
        %v7299 = vmax.f32 %v7297, %v7298
        %v7300 = vrot.slane %v7299, 2
        %v7301 = vmax.f32 %v7299, %v7300
        %v7302 = vrot.slane %v7301, 1
        %v7303 = vmax.f32 %v7301, %v7302
        %v7304 = vsel %vm4363, %v3467, -inf
        %v7305 = vrot.slane %v7304, 4
        %v7306 = vmax.f32 %v7304, %v7305
        %v7307 = vrot.slane %v7306, 2
        %v7308 = vmax.f32 %v7306, %v7307
        %v7309 = vrot.slane %v7308, 1
        %v7310 = vmax.f32 %v7308, %v7309
        %v7311 = vsel %vm4363, %v3475, -inf
        %v7312 = vrot.slane %v7311, 4
        %v7313 = vmax.f32 %v7311, %v7312
        %v7314 = vrot.slane %v7313, 2
        %v7315 = vmax.f32 %v7313, %v7314
        %v7316 = vrot.slane %v7315, 1
        %v7317 = vmax.f32 %v7315, %v7316
        %v7318 = vsel %vm4363, %v3474, -inf
        %v7319 = vrot.slane %v7318, 4
        %v7320 = vmax.f32 %v7318, %v7319
        %v7321 = vrot.slane %v7320, 2
        %v7322 = vmax.f32 %v7320, %v7321
        %v7323 = vrot.slane %v7322, 1
        %v7324 = vmax.f32 %v7322, %v7323
        %v7325 = vsel %vm4363, %v3476, -inf
        %v7326 = vrot.slane %v7325, 4
        %v7327 = vmax.f32 %v7325, %v7326
        %v7328 = vrot.slane %v7327, 2
        %v7329 = vmax.f32 %v7327, %v7328
        %v7330 = vrot.slane %v7329, 1
        %v7331 = vmax.f32 %v7329, %v7330
        %v7332 = vsel %vm4363, %v3484, -inf
        %v7333 = vrot.slane %v7332, 4
        %v7334 = vmax.f32 %v7332, %v7333
        %v7335 = vrot.slane %v7334, 2
        %v7336 = vmax.f32 %v7334, %v7335
        %v7337 = vrot.slane %v7336, 1
        %v7338 = vmax.f32 %v7336, %v7337
        %v7339 = vsel %vm4363, %v3492, -inf
        %v7340 = vrot.slane %v7339, 4
        %v7341 = vmax.f32 %v7339, %v7340
        %v7342 = vrot.slane %v7341, 2
        %v7343 = vmax.f32 %v7341, %v7342
        %v7344 = vrot.slane %v7343, 1
        %v7345 = vmax.f32 %v7343, %v7344
        %v7346 = vsel %vm4363, %v3491, -inf
        %v7347 = vrot.slane %v7346, 4
        %v7348 = vmax.f32 %v7346, %v7347
        %v7349 = vrot.slane %v7348, 2
        %v7350 = vmax.f32 %v7348, %v7349
        %v7351 = vrot.slane %v7350, 1
        %v7352 = vmax.f32 %v7350, %v7351
        %v7353 = vsel %vm4363, %v3493, -inf
        %v7354 = vrot.slane %v7353, 4
        %v7355 = vmax.f32 %v7353, %v7354
        %v7356 = vrot.slane %v7355, 2
        %v7357 = vmax.f32 %v7355, %v7356
        %v7358 = vrot.slane %v7357, 1
        %v7359 = vmax.f32 %v7357, %v7358
        %v7360 = vsel %vm4363, %v3501, -inf
        %v7361 = vrot.slane %v7360, 4
        %v7362 = vmax.f32 %v7360, %v7361
        %v7363 = vrot.slane %v7362, 2
        %v7364 = vmax.f32 %v7362, %v7363
        %v7365 = vrot.slane %v7364, 1
        %v7366 = vmax.f32 %v7364, %v7365
        %v7367 = vsel %vm4363, %v3509, -inf
        %v7368 = vrot.slane %v7367, 4
        %v7369 = vmax.f32 %v7367, %v7368
        %v7370 = vrot.slane %v7369, 2
        %v7371 = vmax.f32 %v7369, %v7370
        %v7372 = vrot.slane %v7371, 1
        %v7373 = vmax.f32 %v7371, %v7372
        %v7374 = vsel %vm4363, %v3508, -inf
        %v7375 = vrot.slane %v7374, 4
        %v7376 = vmax.f32 %v7374, %v7375
        %v7377 = vrot.slane %v7376, 2
        %v7378 = vmax.f32 %v7376, %v7377
        %v7379 = vrot.slane %v7378, 1
        %v7380 = vmax.f32 %v7378, %v7379
        %v7381 = vsel %vm4363, %v3510, -inf
        %v7382 = vrot.slane %v7381, 4
        %v7383 = vmax.f32 %v7381, %v7382
        %v7384 = vrot.slane %v7383, 2
        %v7385 = vmax.f32 %v7383, %v7384
        %v7386 = vrot.slane %v7385, 1
        %v7387 = vmax.f32 %v7385, %v7386
        %v7388 = vsel %vm4363, %v3518, -inf
        %v7389 = vrot.slane %v7388, 4
        %v7390 = vmax.f32 %v7388, %v7389
        %v7391 = vrot.slane %v7390, 2
        %v7392 = vmax.f32 %v7390, %v7391
        %v7393 = vrot.slane %v7392, 1
        %v7394 = vmax.f32 %v7392, %v7393
        %v7395 = vsel %vm4363, %v3526, -inf
        %v7396 = vrot.slane %v7395, 4
        %v7397 = vmax.f32 %v7395, %v7396
        %v7398 = vrot.slane %v7397, 2
        %v7399 = vmax.f32 %v7397, %v7398
        %v7400 = vrot.slane %v7399, 1
        %v7401 = vmax.f32 %v7399, %v7400
        %v7402 = vsel %vm4363, %v3525, -inf
        %v7403 = vrot.slane %v7402, 4
        %v7404 = vmax.f32 %v7402, %v7403
        %v7405 = vrot.slane %v7404, 2
        %v7406 = vmax.f32 %v7404, %v7405
        %v7407 = vrot.slane %v7406, 1
        %v7408 = vmax.f32 %v7406, %v7407
        %v7409 = vsel %vm4363, %v3527, -inf
        %v7410 = vrot.slane %v7409, 4
        %v7411 = vmax.f32 %v7409, %v7410
        %v7412 = vrot.slane %v7411, 2
        %v7413 = vmax.f32 %v7411, %v7412
        %v7414 = vrot.slane %v7413, 1
        %v7415 = vmax.f32 %v7413, %v7414
        %v7416 = vsel %vm4363, %v3535, -inf
        %v7417 = vrot.slane %v7416, 4
        %v7418 = vmax.f32 %v7416, %v7417
        %v7419 = vrot.slane %v7418, 2
        %v7420 = vmax.f32 %v7418, %v7419
        %v7421 = vrot.slane %v7420, 1
        %v7422 = vmax.f32 %v7420, %v7421
        %v7423 = vsel %vm4363, %v3543, -inf
        %v7424 = vrot.slane %v7423, 4
        %v7425 = vmax.f32 %v7423, %v7424
        %v7426 = vrot.slane %v7425, 2
        %v7427 = vmax.f32 %v7425, %v7426
        %v7428 = vrot.slane %v7427, 1
        %v7429 = vmax.f32 %v7427, %v7428
        %v7430 = vsel %vm4363, %v3542, -inf
        %v7431 = vrot.slane %v7430, 4
        %v7432 = vmax.f32 %v7430, %v7431
        %v7433 = vrot.slane %v7432, 2
        %v7434 = vmax.f32 %v7432, %v7433
        %v7435 = vrot.slane %v7434, 1
        %v7436 = vmax.f32 %v7434, %v7435
        %v7437 = vsel %vm4363, %v3544, -inf
        %v7438 = vrot.slane %v7437, 4
        %v7439 = vmax.f32 %v7437, %v7438
        %v7440 = vrot.slane %v7439, 2
        %v7441 = vmax.f32 %v7439, %v7440
        %v7442 = vrot.slane %v7441, 1
        %v7443 = vmax.f32 %v7441, %v7442
        %v7444 = vsel %vm4363, %v3552, -inf
        %v7445 = vrot.slane %v7444, 4
        %v7446 = vmax.f32 %v7444, %v7445
        %v7447 = vrot.slane %v7446, 2
        %v7448 = vmax.f32 %v7446, %v7447
        %v7449 = vrot.slane %v7448, 1
        %v7450 = vmax.f32 %v7448, %v7449
        %v7451 = vsel %vm4363, %v3560, -inf
        %v7452 = vrot.slane %v7451, 4
        %v7453 = vmax.f32 %v7451, %v7452
        %v7454 = vrot.slane %v7453, 2
        %v7455 = vmax.f32 %v7453, %v7454
        %v7456 = vrot.slane %v7455, 1
        %v7457 = vmax.f32 %v7455, %v7456
        %v7458 = vsel %vm4363, %v3559, -inf
        %v7459 = vrot.slane %v7458, 4
        %v7460 = vmax.f32 %v7458, %v7459
        %v7461 = vrot.slane %v7460, 2
        %v7462 = vmax.f32 %v7460, %v7461
        %v7463 = vrot.slane %v7462, 1
        %v7464 = vmax.f32 %v7462, %v7463
        %v7465 = vsel %vm4363, %v3561, -inf
        %v7466 = vrot.slane %v7465, 4
        %v7467 = vmax.f32 %v7465, %v7466
        %v7468 = vrot.slane %v7467, 2
        %v7469 = vmax.f32 %v7467, %v7468
        %v7470 = vrot.slane %v7469, 1
        %v7471 = vmax.f32 %v7469, %v7470
        %v7472 = vsel %vm4363, %v3569, -inf
        %v7473 = vrot.slane %v7472, 4
        %v7474 = vmax.f32 %v7472, %v7473
        %v7475 = vrot.slane %v7474, 2
        %v7476 = vmax.f32 %v7474, %v7475
        %v7477 = vrot.slane %v7476, 1
        %v7478 = vmax.f32 %v7476, %v7477
        %v7479 = vsel %vm4363, %v3577, -inf
        %v7480 = vrot.slane %v7479, 4
        %v7481 = vmax.f32 %v7479, %v7480
        %v7482 = vrot.slane %v7481, 2
        %v7483 = vmax.f32 %v7481, %v7482
        %v7484 = vrot.slane %v7483, 1
        %v7485 = vmax.f32 %v7483, %v7484
        %v7486 = vsel %vm4363, %v3576, -inf
        %v7487 = vrot.slane %v7486, 4
        %v7488 = vmax.f32 %v7486, %v7487
        %v7489 = vrot.slane %v7488, 2
        %v7490 = vmax.f32 %v7488, %v7489
        %v7491 = vrot.slane %v7490, 1
        %v7492 = vmax.f32 %v7490, %v7491
        %v7493 = vsel %vm4363, %v3578, -inf
        %v7494 = vrot.slane %v7493, 4
        %v7495 = vmax.f32 %v7493, %v7494
        %v7496 = vrot.slane %v7495, 2
        %v7497 = vmax.f32 %v7495, %v7496
        %v7498 = vrot.slane %v7497, 1
        %v7499 = vmax.f32 %v7497, %v7498
        %v7500 = vsel %vm4363, %v3586, -inf
        %v7501 = vrot.slane %v7500, 4
        %v7502 = vmax.f32 %v7500, %v7501
        %v7503 = vrot.slane %v7502, 2
        %v7504 = vmax.f32 %v7502, %v7503
        %v7505 = vrot.slane %v7504, 1
        %v7506 = vmax.f32 %v7504, %v7505
        %v7507 = vsel %vm4363, %v3594, -inf
        %v7508 = vrot.slane %v7507, 4
        %v7509 = vmax.f32 %v7507, %v7508
        %v7510 = vrot.slane %v7509, 2
        %v7511 = vmax.f32 %v7509, %v7510
        %v7512 = vrot.slane %v7511, 1
        %v7513 = vmax.f32 %v7511, %v7512
        %v7514 = vsel %vm4363, %v3593, -inf
        %v7515 = vrot.slane %v7514, 4
        %v7516 = vmax.f32 %v7514, %v7515
        %v7517 = vrot.slane %v7516, 2
        %v7518 = vmax.f32 %v7516, %v7517
        %v7519 = vrot.slane %v7518, 1
        %v7520 = vmax.f32 %v7518, %v7519
        %v7521 = vsel %vm4363, %v3595, -inf
        %v7522 = vrot.slane %v7521, 4
        %v7523 = vmax.f32 %v7521, %v7522
        %v7524 = vrot.slane %v7523, 2
        %v7525 = vmax.f32 %v7523, %v7524
        %v7526 = vrot.slane %v7525, 1
        %v7527 = vmax.f32 %v7525, %v7526
        %v7528 = vsel %vm4363, %v3603, -inf
        %v7529 = vrot.slane %v7528, 4
        %v7530 = vmax.f32 %v7528, %v7529
        %v7531 = vrot.slane %v7530, 2
        %v7532 = vmax.f32 %v7530, %v7531
        %v7533 = vrot.slane %v7532, 1
        %v7534 = vmax.f32 %v7532, %v7533
        %v7535 = vsel %vm4363, %v3611, -inf
        %v7536 = vrot.slane %v7535, 4
        %v7537 = vmax.f32 %v7535, %v7536
        %v7538 = vrot.slane %v7537, 2
        %v7539 = vmax.f32 %v7537, %v7538
        %v7540 = vrot.slane %v7539, 1
        %v7541 = vmax.f32 %v7539, %v7540
        %v7542 = vsel %vm4363, %v3610, -inf
        %v7543 = vrot.slane %v7542, 4
        %v7544 = vmax.f32 %v7542, %v7543
        %v7545 = vrot.slane %v7544, 2
        %v7546 = vmax.f32 %v7544, %v7545
        %v7547 = vrot.slane %v7546, 1
        %v7548 = vmax.f32 %v7546, %v7547
        %v7549 = vsel %vm4363, %v3612, -inf
        %v7550 = vrot.slane %v7549, 4
        %v7551 = vmax.f32 %v7549, %v7550
        %v7552 = vrot.slane %v7551, 2
        %v7553 = vmax.f32 %v7551, %v7552
        %v7554 = vrot.slane %v7553, 1
        %v7555 = vmax.f32 %v7553, %v7554
        %v7556 = vsel %vm4363, %v3620, -inf
        %v7557 = vrot.slane %v7556, 4
        %v7558 = vmax.f32 %v7556, %v7557
        %v7559 = vrot.slane %v7558, 2
        %v7560 = vmax.f32 %v7558, %v7559
        %v7561 = vrot.slane %v7560, 1
        %v7562 = vmax.f32 %v7560, %v7561
        %v7563 = vsel %vm4363, %v3628, -inf
        %v7564 = vrot.slane %v7563, 4
        %v7565 = vmax.f32 %v7563, %v7564
        %v7566 = vrot.slane %v7565, 2
        %v7567 = vmax.f32 %v7565, %v7566
        %v7568 = vrot.slane %v7567, 1
        %v7569 = vmax.f32 %v7567, %v7568
        %v7570 = vsel %vm4363, %v3627, -inf
        %v7571 = vrot.slane %v7570, 4
        %v7572 = vmax.f32 %v7570, %v7571
        %v7573 = vrot.slane %v7572, 2
        %v7574 = vmax.f32 %v7572, %v7573
        %v7575 = vrot.slane %v7574, 1
        %v7576 = vmax.f32 %v7574, %v7575
        %v7577 = vsel %vm4363, %v3629, -inf
        %v7578 = vrot.slane %v7577, 4
        %v7579 = vmax.f32 %v7577, %v7578
        %v7580 = vrot.slane %v7579, 2
        %v7581 = vmax.f32 %v7579, %v7580
        %v7582 = vrot.slane %v7581, 1
        %v7583 = vmax.f32 %v7581, %v7582
        %v7584 = vsel %vm4363, %v3637, -inf
        %v7585 = vrot.slane %v7584, 4
        %v7586 = vmax.f32 %v7584, %v7585
        %v7587 = vrot.slane %v7586, 2
        %v7588 = vmax.f32 %v7586, %v7587
        %v7589 = vrot.slane %v7588, 1
        %v7590 = vmax.f32 %v7588, %v7589
        %v7591 = vsel %vm4363, %v3645, -inf
        %v7592 = vrot.slane %v7591, 4
        %v7593 = vmax.f32 %v7591, %v7592
        %v7594 = vrot.slane %v7593, 2
        %v7595 = vmax.f32 %v7593, %v7594
        %v7596 = vrot.slane %v7595, 1
        %v7597 = vmax.f32 %v7595, %v7596
        %v7598 = vsel %vm4363, %v3644, -inf
        %v7599 = vrot.slane %v7598, 4
        %v7600 = vmax.f32 %v7598, %v7599
        %v7601 = vrot.slane %v7600, 2
        %v7602 = vmax.f32 %v7600, %v7601
        %v7603 = vrot.slane %v7602, 1
        %v7604 = vmax.f32 %v7602, %v7603
        %v7605 = vsel %vm4363, %v3646, -inf
        %v7606 = vrot.slane %v7605, 4
        %v7607 = vmax.f32 %v7605, %v7606
        %v7608 = vrot.slane %v7607, 2
        %v7609 = vmax.f32 %v7607, %v7608
        %v7610 = vrot.slane %v7609, 1
        %v7611 = vmax.f32 %v7609, %v7610
        %v7612 = vsel %vm4363, %v3654, -inf
        %v7613 = vrot.slane %v7612, 4
        %v7614 = vmax.f32 %v7612, %v7613
        %v7615 = vrot.slane %v7614, 2
        %v7616 = vmax.f32 %v7614, %v7615
        %v7617 = vrot.slane %v7616, 1
        %v7618 = vmax.f32 %v7616, %v7617
        %v7619 = vsel %vm4363, %v3662, -inf
        %v7620 = vrot.slane %v7619, 4
        %v7621 = vmax.f32 %v7619, %v7620
        %v7622 = vrot.slane %v7621, 2
        %v7623 = vmax.f32 %v7621, %v7622
        %v7624 = vrot.slane %v7623, 1
        %v7625 = vmax.f32 %v7623, %v7624
        %v7626 = vsel %vm4363, %v3661, -inf
        %v7627 = vrot.slane %v7626, 4
        %v7628 = vmax.f32 %v7626, %v7627
        %v7629 = vrot.slane %v7628, 2
        %v7630 = vmax.f32 %v7628, %v7629
        %v7631 = vrot.slane %v7630, 1
        %v7632 = vmax.f32 %v7630, %v7631
        %v7633 = vsel %vm4363, %v3663, -inf
        %v7634 = vrot.slane %v7633, 4
        %v7635 = vmax.f32 %v7633, %v7634
        %v7636 = vrot.slane %v7635, 2
        %v7637 = vmax.f32 %v7635, %v7636
        %v7638 = vrot.slane %v7637, 1
        %v7639 = vmax.f32 %v7637, %v7638
        %v7640 = vsel %vm4363, %v3671, -inf
        %v7641 = vrot.slane %v7640, 4
        %v7642 = vmax.f32 %v7640, %v7641
        %v7643 = vrot.slane %v7642, 2
        %v7644 = vmax.f32 %v7642, %v7643
        %v7645 = vrot.slane %v7644, 1
        %v7646 = vmax.f32 %v7644, %v7645
        %v7647 = vsel %vm4363, %v3679, -inf
        %v7648 = vrot.slane %v7647, 4
        %v7649 = vmax.f32 %v7647, %v7648
        %v7650 = vrot.slane %v7649, 2
        %v7651 = vmax.f32 %v7649, %v7650
        %v7652 = vrot.slane %v7651, 1
        %v7653 = vmax.f32 %v7651, %v7652
        %v7654 = vsel %vm4363, %v3678, -inf
        %v7655 = vrot.slane %v7654, 4
        %v7656 = vmax.f32 %v7654, %v7655
        %v7657 = vrot.slane %v7656, 2
        %v7658 = vmax.f32 %v7656, %v7657
        %v7659 = vrot.slane %v7658, 1
        %v7660 = vmax.f32 %v7658, %v7659
        %v7661 = vsel %vm4363, %v3680, -inf
        %v7662 = vrot.slane %v7661, 4
        %v7663 = vmax.f32 %v7661, %v7662
        %v7664 = vrot.slane %v7663, 2
        %v7665 = vmax.f32 %v7663, %v7664
        %v7666 = vrot.slane %v7665, 1
        %v7667 = vmax.f32 %v7665, %v7666
        %v7668 = vsel %vm4363, %v3688, -inf
        %v7669 = vrot.slane %v7668, 4
        %v7670 = vmax.f32 %v7668, %v7669
        %v7671 = vrot.slane %v7670, 2
        %v7672 = vmax.f32 %v7670, %v7671
        %v7673 = vrot.slane %v7672, 1
        %v7674 = vmax.f32 %v7672, %v7673
        %v7675 = vsel %vm4363, %v3696, -inf
        %v7676 = vrot.slane %v7675, 4
        %v7677 = vmax.f32 %v7675, %v7676
        %v7678 = vrot.slane %v7677, 2
        %v7679 = vmax.f32 %v7677, %v7678
        %v7680 = vrot.slane %v7679, 1
        %v7681 = vmax.f32 %v7679, %v7680
        %v7682 = vsel %vm4363, %v3695, -inf
        %v7683 = vrot.slane %v7682, 4
        %v7684 = vmax.f32 %v7682, %v7683
        %v7685 = vrot.slane %v7684, 2
        %v7686 = vmax.f32 %v7684, %v7685
        %v7687 = vrot.slane %v7686, 1
        %v7688 = vmax.f32 %v7686, %v7687
        %v7689 = vsel %vm4363, %v3697, -inf
        %v7690 = vrot.slane %v7689, 4
        %v7691 = vmax.f32 %v7689, %v7690
        %v7692 = vrot.slane %v7691, 2
        %v7693 = vmax.f32 %v7691, %v7692
        %v7694 = vrot.slane %v7693, 1
        %v7695 = vmax.f32 %v7693, %v7694
        %v7696 = vsel %vm4363, %v3705, -inf
        %v7697 = vrot.slane %v7696, 4
        %v7698 = vmax.f32 %v7696, %v7697
        %v7699 = vrot.slane %v7698, 2
        %v7700 = vmax.f32 %v7698, %v7699
        %v7701 = vrot.slane %v7700, 1
        %v7702 = vmax.f32 %v7700, %v7701
        %v7703 = vsel %vm4363, %v3713, -inf
        %v7704 = vrot.slane %v7703, 4
        %v7705 = vmax.f32 %v7703, %v7704
        %v7706 = vrot.slane %v7705, 2
        %v7707 = vmax.f32 %v7705, %v7706
        %v7708 = vrot.slane %v7707, 1
        %v7709 = vmax.f32 %v7707, %v7708
        %v7710 = vsel %vm4363, %v3712, -inf
        %v7711 = vrot.slane %v7710, 4
        %v7712 = vmax.f32 %v7710, %v7711
        %v7713 = vrot.slane %v7712, 2
        %v7714 = vmax.f32 %v7712, %v7713
        %v7715 = vrot.slane %v7714, 1
        %v7716 = vmax.f32 %v7714, %v7715
        %v7717 = vsel %vm4363, %v3714, -inf
        %v7718 = vrot.slane %v7717, 4
        %v7719 = vmax.f32 %v7717, %v7718
        %v7720 = vrot.slane %v7719, 2
        %v7721 = vmax.f32 %v7719, %v7720
        %v7722 = vrot.slane %v7721, 1
        %v7723 = vmax.f32 %v7721, %v7722
        %v7724 = vsel %vm4363, %v3722, -inf
        %v7725 = vrot.slane %v7724, 4
        %v7726 = vmax.f32 %v7724, %v7725
        %v7727 = vrot.slane %v7726, 2
        %v7728 = vmax.f32 %v7726, %v7727
        %v7729 = vrot.slane %v7728, 1
        %v7730 = vmax.f32 %v7728, %v7729
        %v7731 = vsel %vm4363, %v3730, -inf
        %v7732 = vrot.slane %v7731, 4
        %v7733 = vmax.f32 %v7731, %v7732
        %v7734 = vrot.slane %v7733, 2
        %v7735 = vmax.f32 %v7733, %v7734
        %v7736 = vrot.slane %v7735, 1
        %v7737 = vmax.f32 %v7735, %v7736
        %v7738 = vsel %vm4363, %v3729, -inf
        %v7739 = vrot.slane %v7738, 4
        %v7740 = vmax.f32 %v7738, %v7739
        %v7741 = vrot.slane %v7740, 2
        %v7742 = vmax.f32 %v7740, %v7741
        %v7743 = vrot.slane %v7742, 1
        %v7744 = vmax.f32 %v7742, %v7743
        %v7745 = vsel %vm4363, %v3731, -inf
        %v7746 = vrot.slane %v7745, 4
        %v7747 = vmax.f32 %v7745, %v7746
        %v7748 = vrot.slane %v7747, 2
        %v7749 = vmax.f32 %v7747, %v7748
        %v7750 = vrot.slane %v7749, 1
        %v7751 = vmax.f32 %v7749, %v7750
        %v7752 = vsel %vm4363, %v3739, -inf
        %v7753 = vrot.slane %v7752, 4
        %v7754 = vmax.f32 %v7752, %v7753
        %v7755 = vrot.slane %v7754, 2
        %v7756 = vmax.f32 %v7754, %v7755
        %v7757 = vrot.slane %v7756, 1
        %v7758 = vmax.f32 %v7756, %v7757
        %v7759 = vsel %vm4363, %v3747, -inf
        %v7760 = vrot.slane %v7759, 4
        %v7761 = vmax.f32 %v7759, %v7760
        %v7762 = vrot.slane %v7761, 2
        %v7763 = vmax.f32 %v7761, %v7762
        %v7764 = vrot.slane %v7763, 1
        %v7765 = vmax.f32 %v7763, %v7764
        %v7766 = vsel %vm4363, %v3746, -inf
        %v7767 = vrot.slane %v7766, 4
        %v7768 = vmax.f32 %v7766, %v7767
        %v7769 = vrot.slane %v7768, 2
        %v7770 = vmax.f32 %v7768, %v7769
        %v7771 = vrot.slane %v7770, 1
        %v7772 = vmax.f32 %v7770, %v7771
        %v7773 = vsel %vm4363, %v3748, -inf
        %v7774 = vrot.slane %v7773, 4
        %v7775 = vmax.f32 %v7773, %v7774
        %v7776 = vrot.slane %v7775, 2
        %v7777 = vmax.f32 %v7775, %v7776
        %v7778 = vrot.slane %v7777, 1
        %v7779 = vmax.f32 %v7777, %v7778
        %v7780 = vsel %vm4363, %v3756, -inf
        %v7781 = vrot.slane %v7780, 4
        %v7782 = vmax.f32 %v7780, %v7781
        %v7783 = vrot.slane %v7782, 2
        %v7784 = vmax.f32 %v7782, %v7783
        %v7785 = vrot.slane %v7784, 1
        %v7786 = vmax.f32 %v7784, %v7785
        %v7787 = vsel %vm4363, %v3764, -inf
        %v7788 = vrot.slane %v7787, 4
        %v7789 = vmax.f32 %v7787, %v7788
        %v7790 = vrot.slane %v7789, 2
        %v7791 = vmax.f32 %v7789, %v7790
        %v7792 = vrot.slane %v7791, 1
        %v7793 = vmax.f32 %v7791, %v7792
        %v7794 = vsel %vm4363, %v3763, -inf
        %v7795 = vrot.slane %v7794, 4
        %v7796 = vmax.f32 %v7794, %v7795
        %v7797 = vrot.slane %v7796, 2
        %v7798 = vmax.f32 %v7796, %v7797
        %v7799 = vrot.slane %v7798, 1
        %v7800 = vmax.f32 %v7798, %v7799
        %v7801 = vsel %vm4363, %v3765, -inf
        %v7802 = vrot.slane %v7801, 4
        %v7803 = vmax.f32 %v7801, %v7802
        %v7804 = vrot.slane %v7803, 2
        %v7805 = vmax.f32 %v7803, %v7804
        %v7806 = vrot.slane %v7805, 1
        %v7807 = vmax.f32 %v7805, %v7806
        %v7808 = vsel %vm4363, %v3773, -inf
        %v7809 = vrot.slane %v7808, 4
        %v7810 = vmax.f32 %v7808, %v7809
        %v7811 = vrot.slane %v7810, 2
        %v7812 = vmax.f32 %v7810, %v7811
        %v7813 = vrot.slane %v7812, 1
        %v7814 = vmax.f32 %v7812, %v7813
        %v7815 = vsel %vm4363, %v3781, -inf
        %v7816 = vrot.slane %v7815, 4
        %v7817 = vmax.f32 %v7815, %v7816
        %v7818 = vrot.slane %v7817, 2
        %v7819 = vmax.f32 %v7817, %v7818
        %v7820 = vrot.slane %v7819, 1
        %v7821 = vmax.f32 %v7819, %v7820
        %v7822 = vsel %vm4363, %v3780, -inf
        %v7823 = vrot.slane %v7822, 4
        %v7824 = vmax.f32 %v7822, %v7823
        %v7825 = vrot.slane %v7824, 2
        %v7826 = vmax.f32 %v7824, %v7825
        %v7827 = vrot.slane %v7826, 1
        %v7828 = vmax.f32 %v7826, %v7827
        %v7829 = vsel %vm4363, %v3782, -inf
        %v7830 = vrot.slane %v7829, 4
        %v7831 = vmax.f32 %v7829, %v7830
        %v7832 = vrot.slane %v7831, 2
        %v7833 = vmax.f32 %v7831, %v7832
        %v7834 = vrot.slane %v7833, 1
        %v7835 = vmax.f32 %v7833, %v7834
        %v7836 = vsel %vm4363, %v3790, -inf
        %v7837 = vrot.slane %v7836, 4
        %v7838 = vmax.f32 %v7836, %v7837
        %v7839 = vrot.slane %v7838, 2
        %v7840 = vmax.f32 %v7838, %v7839
        %v7841 = vrot.slane %v7840, 1
        %v7842 = vmax.f32 %v7840, %v7841
        %v7843 = vsel %vm4363, %v3798, -inf
        %v7844 = vrot.slane %v7843, 4
        %v7845 = vmax.f32 %v7843, %v7844
        %v7846 = vrot.slane %v7845, 2
        %v7847 = vmax.f32 %v7845, %v7846
        %v7848 = vrot.slane %v7847, 1
        %v7849 = vmax.f32 %v7847, %v7848
        %v7850 = vsel %vm4363, %v3797, -inf
        %v7851 = vrot.slane %v7850, 4
        %v7852 = vmax.f32 %v7850, %v7851
        %v7853 = vrot.slane %v7852, 2
        %v7854 = vmax.f32 %v7852, %v7853
        %v7855 = vrot.slane %v7854, 1
        %v7856 = vmax.f32 %v7854, %v7855
        %v7857 = vsel %vm4363, %v3799, -inf
        %v7858 = vrot.slane %v7857, 4
        %v7859 = vmax.f32 %v7857, %v7858
        %v7860 = vrot.slane %v7859, 2
        %v7861 = vmax.f32 %v7859, %v7860
        %v7862 = vrot.slane %v7861, 1
        %v7863 = vmax.f32 %v7861, %v7862
        %v7864 = vsel %vm4363, %v3807, -inf
        %v7865 = vrot.slane %v7864, 4
        %v7866 = vmax.f32 %v7864, %v7865
        %v7867 = vrot.slane %v7866, 2
        %v7868 = vmax.f32 %v7866, %v7867
        %v7869 = vrot.slane %v7868, 1
        %v7870 = vmax.f32 %v7868, %v7869
        %v7871 = vsel %vm4363, %v3815, -inf
        %v7872 = vrot.slane %v7871, 4
        %v7873 = vmax.f32 %v7871, %v7872
        %v7874 = vrot.slane %v7873, 2
        %v7875 = vmax.f32 %v7873, %v7874
        %v7876 = vrot.slane %v7875, 1
        %v7877 = vmax.f32 %v7875, %v7876
        %v7878 = vsel %vm4363, %v3814, -inf
        %v7879 = vrot.slane %v7878, 4
        %v7880 = vmax.f32 %v7878, %v7879
        %v7881 = vrot.slane %v7880, 2
        %v7882 = vmax.f32 %v7880, %v7881
        %v7883 = vrot.slane %v7882, 1
        %v7884 = vmax.f32 %v7882, %v7883
        %v7885 = vsel %vm4363, %v3816, -inf
        %v7886 = vrot.slane %v7885, 4
        %v7887 = vmax.f32 %v7885, %v7886
        %v7888 = vrot.slane %v7887, 2
        %v7889 = vmax.f32 %v7887, %v7888
        %v7890 = vrot.slane %v7889, 1
        %v7891 = vmax.f32 %v7889, %v7890
        %v7892 = vsel %vm4363, %v3824, -inf
        %v7893 = vrot.slane %v7892, 4
        %v7894 = vmax.f32 %v7892, %v7893
        %v7895 = vrot.slane %v7894, 2
        %v7896 = vmax.f32 %v7894, %v7895
        %v7897 = vrot.slane %v7896, 1
        %v7898 = vmax.f32 %v7896, %v7897
        %v7899 = vsel %vm4363, %v3832, -inf
        %v7900 = vrot.slane %v7899, 4
        %v7901 = vmax.f32 %v7899, %v7900
        %v7902 = vrot.slane %v7901, 2
        %v7903 = vmax.f32 %v7901, %v7902
        %v7904 = vrot.slane %v7903, 1
        %v7905 = vmax.f32 %v7903, %v7904
        %v7906 = vsel %vm4363, %v3831, -inf
        %v7907 = vrot.slane %v7906, 4
        %v7908 = vmax.f32 %v7906, %v7907
        %v7909 = vrot.slane %v7908, 2
        %v7910 = vmax.f32 %v7908, %v7909
        %v7911 = vrot.slane %v7910, 1
        %v7912 = vmax.f32 %v7910, %v7911
        %v7913 = vsel %vm4363, %v3833, -inf
        %v7914 = vrot.slane %v7913, 4
        %v7915 = vmax.f32 %v7913, %v7914
        %v7916 = vrot.slane %v7915, 2
        %v7917 = vmax.f32 %v7915, %v7916
        %v7918 = vrot.slane %v7917, 1
        %v7919 = vmax.f32 %v7917, %v7918
        %v7920 = vsel %vm4363, %v3841, -inf
        %v7921 = vrot.slane %v7920, 4
        %v7922 = vmax.f32 %v7920, %v7921
        %v7923 = vrot.slane %v7922, 2
        %v7924 = vmax.f32 %v7922, %v7923
        %v7925 = vrot.slane %v7924, 1
        %v7926 = vmax.f32 %v7924, %v7925
        %v7927 = vsel %vm4363, %v3849, -inf
        %v7928 = vrot.slane %v7927, 4
        %v7929 = vmax.f32 %v7927, %v7928
        %v7930 = vrot.slane %v7929, 2
        %v7931 = vmax.f32 %v7929, %v7930
        %v7932 = vrot.slane %v7931, 1
        %v7933 = vmax.f32 %v7931, %v7932
        %v7934 = vsel %vm4363, %v3848, -inf
        %v7935 = vrot.slane %v7934, 4
        %v7936 = vmax.f32 %v7934, %v7935
        %v7937 = vrot.slane %v7936, 2
        %v7938 = vmax.f32 %v7936, %v7937
        %v7939 = vrot.slane %v7938, 1
        %v7940 = vmax.f32 %v7938, %v7939
        %v7941 = vsel %vm4363, %v3850, -inf
        %v7942 = vrot.slane %v7941, 4
        %v7943 = vmax.f32 %v7941, %v7942
        %v7944 = vrot.slane %v7943, 2
        %v7945 = vmax.f32 %v7943, %v7944
        %v7946 = vrot.slane %v7945, 1
        %v7947 = vmax.f32 %v7945, %v7946
        %vm7948 = vcmask 523264
        %v7949 = vsel %vm7948, %v4370, -inf
        %v7950 = vsel %vm7948, %v4482, -inf
        %v7951 = vmax.f32 %v7949, %v7950
        %v7952 = vsel %vm7948, %v4377, -inf
        %v7953 = vsel %vm7948, %v4489, -inf
        %v7954 = vmax.f32 %v7952, %v7953
        %v7955 = vsel %vm7948, %v4384, -inf
        %v7956 = vsel %vm7948, %v4496, -inf
        %v7957 = vmax.f32 %v7955, %v7956
        %v7958 = vsel %vm7948, %v4391, -inf
        %v7959 = vsel %vm7948, %v4503, -inf
        %v7960 = vmax.f32 %v7958, %v7959
        %v7961 = vsel %vm7948, %v4398, -inf
        %v7962 = vsel %vm7948, %v4510, -inf
        %v7963 = vmax.f32 %v7961, %v7962
        %v7964 = vsel %vm7948, %v4405, -inf
        %v7965 = vsel %vm7948, %v4517, -inf
        %v7966 = vmax.f32 %v7964, %v7965
        %v7967 = vsel %vm7948, %v4412, -inf
        %v7968 = vsel %vm7948, %v4524, -inf
        %v7969 = vmax.f32 %v7967, %v7968
        %v7970 = vsel %vm7948, %v4419, -inf
        %v7971 = vsel %vm7948, %v4531, -inf
        %v7972 = vmax.f32 %v7970, %v7971
        %v7973 = vsel %vm7948, %v4426, -inf
        %v7974 = vsel %vm7948, %v4538, -inf
        %v7975 = vmax.f32 %v7973, %v7974
        %v7976 = vsel %vm7948, %v4433, -inf
        %v7977 = vsel %vm7948, %v4545, -inf
        %v7978 = vmax.f32 %v7976, %v7977
        %v7979 = vsel %vm7948, %v4440, -inf
        %v7980 = vsel %vm7948, %v4552, -inf
        %v7981 = vmax.f32 %v7979, %v7980
        %v7982 = vsel %vm7948, %v4447, -inf
        %v7983 = vsel %vm7948, %v4559, -inf
        %v7984 = vmax.f32 %v7982, %v7983
        %v7985 = vsel %vm7948, %v4454, -inf
        %v7986 = vsel %vm7948, %v4566, -inf
        %v7987 = vmax.f32 %v7985, %v7986
        %v7988 = vsel %vm7948, %v4461, -inf
        %v7989 = vsel %vm7948, %v4573, -inf
        %v7990 = vmax.f32 %v7988, %v7989
        %v7991 = vsel %vm7948, %v4468, -inf
        %v7992 = vsel %vm7948, %v4580, -inf
        %v7993 = vmax.f32 %v7991, %v7992
        %v7994 = vsel %vm7948, %v4475, -inf
        %v7995 = vsel %vm7948, %v4587, -inf
        %v7996 = vmax.f32 %v7994, %v7995
        %v7997 = vsel %vm7948, %v4594, -inf
        %v7998 = vsel %vm7948, %v4706, -inf
        %v7999 = vmax.f32 %v7997, %v7998
        %v8000 = vsel %vm7948, %v4601, -inf
        %v8001 = vsel %vm7948, %v4713, -inf
        %v8002 = vmax.f32 %v8000, %v8001
        %v8003 = vsel %vm7948, %v4608, -inf
        %v8004 = vsel %vm7948, %v4720, -inf
        %v8005 = vmax.f32 %v8003, %v8004
        %v8006 = vsel %vm7948, %v4615, -inf
        %v8007 = vsel %vm7948, %v4727, -inf
        %v8008 = vmax.f32 %v8006, %v8007
        %v8009 = vsel %vm7948, %v4622, -inf
        %v8010 = vsel %vm7948, %v4734, -inf
        %v8011 = vmax.f32 %v8009, %v8010
        %v8012 = vsel %vm7948, %v4629, -inf
        %v8013 = vsel %vm7948, %v4741, -inf
        %v8014 = vmax.f32 %v8012, %v8013
        %v8015 = vsel %vm7948, %v4636, -inf
        %v8016 = vsel %vm7948, %v4748, -inf
        %v8017 = vmax.f32 %v8015, %v8016
        %v8018 = vsel %vm7948, %v4643, -inf
        %v8019 = vsel %vm7948, %v4755, -inf
        %v8020 = vmax.f32 %v8018, %v8019
        %v8021 = vsel %vm7948, %v4650, -inf
        %v8022 = vsel %vm7948, %v4762, -inf
        %v8023 = vmax.f32 %v8021, %v8022
        %v8024 = vsel %vm7948, %v4657, -inf
        %v8025 = vsel %vm7948, %v4769, -inf
        %v8026 = vmax.f32 %v8024, %v8025
        %v8027 = vsel %vm7948, %v4664, -inf
        %v8028 = vsel %vm7948, %v4776, -inf
        %v8029 = vmax.f32 %v8027, %v8028
        %v8030 = vsel %vm7948, %v4671, -inf
        %v8031 = vsel %vm7948, %v4783, -inf
        %v8032 = vmax.f32 %v8030, %v8031
        %v8033 = vsel %vm7948, %v4678, -inf
        %v8034 = vsel %vm7948, %v4790, -inf
        %v8035 = vmax.f32 %v8033, %v8034
        %v8036 = vsel %vm7948, %v4685, -inf
        %v8037 = vsel %vm7948, %v4797, -inf
        %v8038 = vmax.f32 %v8036, %v8037
        %v8039 = vsel %vm7948, %v4692, -inf
        %v8040 = vsel %vm7948, %v4804, -inf
        %v8041 = vmax.f32 %v8039, %v8040
        %v8042 = vsel %vm7948, %v4699, -inf
        %v8043 = vsel %vm7948, %v4811, -inf
        %v8044 = vmax.f32 %v8042, %v8043
        %v8045 = vsel %vm7948, %v4818, -inf
        %v8046 = vsel %vm7948, %v4930, -inf
        %v8047 = vmax.f32 %v8045, %v8046
        %v8048 = vsel %vm7948, %v4825, -inf
        %v8049 = vsel %vm7948, %v4937, -inf
        %v8050 = vmax.f32 %v8048, %v8049
        %v8051 = vsel %vm7948, %v4832, -inf
        %v8052 = vsel %vm7948, %v4944, -inf
        %v8053 = vmax.f32 %v8051, %v8052
        %v8054 = vsel %vm7948, %v4839, -inf
        %v8055 = vsel %vm7948, %v4951, -inf
        %v8056 = vmax.f32 %v8054, %v8055
        %v8057 = vsel %vm7948, %v4846, -inf
        %v8058 = vsel %vm7948, %v4958, -inf
        %v8059 = vmax.f32 %v8057, %v8058
        %v8060 = vsel %vm7948, %v4853, -inf
        %v8061 = vsel %vm7948, %v4965, -inf
        %v8062 = vmax.f32 %v8060, %v8061
        %v8063 = vsel %vm7948, %v4860, -inf
        %v8064 = vsel %vm7948, %v4972, -inf
        %v8065 = vmax.f32 %v8063, %v8064
        %v8066 = vsel %vm7948, %v4867, -inf
        %v8067 = vsel %vm7948, %v4979, -inf
        %v8068 = vmax.f32 %v8066, %v8067
        %v8069 = vsel %vm7948, %v4874, -inf
        %v8070 = vsel %vm7948, %v4986, -inf
        %v8071 = vmax.f32 %v8069, %v8070
        %v8072 = vsel %vm7948, %v4881, -inf
        %v8073 = vsel %vm7948, %v4993, -inf
        %v8074 = vmax.f32 %v8072, %v8073
        %v8075 = vsel %vm7948, %v4888, -inf
        %v8076 = vsel %vm7948, %v5000, -inf
        %v8077 = vmax.f32 %v8075, %v8076
        %v8078 = vsel %vm7948, %v4895, -inf
        %v8079 = vsel %vm7948, %v5007, -inf
        %v8080 = vmax.f32 %v8078, %v8079
        %v8081 = vsel %vm7948, %v4902, -inf
        %v8082 = vsel %vm7948, %v5014, -inf
        %v8083 = vmax.f32 %v8081, %v8082
        %v8084 = vsel %vm7948, %v4909, -inf
        %v8085 = vsel %vm7948, %v5021, -inf
        %v8086 = vmax.f32 %v8084, %v8085
        %v8087 = vsel %vm7948, %v4916, -inf
        %v8088 = vsel %vm7948, %v5028, -inf
        %v8089 = vmax.f32 %v8087, %v8088
        %v8090 = vsel %vm7948, %v4923, -inf
        %v8091 = vsel %vm7948, %v5035, -inf
        %v8092 = vmax.f32 %v8090, %v8091
        %v8093 = vsel %vm7948, %v5042, -inf
        %v8094 = vsel %vm7948, %v5154, -inf
        %v8095 = vmax.f32 %v8093, %v8094
        %v8096 = vsel %vm7948, %v5049, -inf
        %v8097 = vsel %vm7948, %v5161, -inf
        %v8098 = vmax.f32 %v8096, %v8097
        %v8099 = vsel %vm7948, %v5056, -inf
        %v8100 = vsel %vm7948, %v5168, -inf
        %v8101 = vmax.f32 %v8099, %v8100
        %v8102 = vsel %vm7948, %v5063, -inf
        %v8103 = vsel %vm7948, %v5175, -inf
        %v8104 = vmax.f32 %v8102, %v8103
        %v8105 = vsel %vm7948, %v5070, -inf
        %v8106 = vsel %vm7948, %v5182, -inf
        %v8107 = vmax.f32 %v8105, %v8106
        %v8108 = vsel %vm7948, %v5077, -inf
        %v8109 = vsel %vm7948, %v5189, -inf
        %v8110 = vmax.f32 %v8108, %v8109
        %v8111 = vsel %vm7948, %v5084, -inf
        %v8112 = vsel %vm7948, %v5196, -inf
        %v8113 = vmax.f32 %v8111, %v8112
        %v8114 = vsel %vm7948, %v5091, -inf
        %v8115 = vsel %vm7948, %v5203, -inf
        %v8116 = vmax.f32 %v8114, %v8115
        %v8117 = vsel %vm7948, %v5098, -inf
        %v8118 = vsel %vm7948, %v5210, -inf
        %v8119 = vmax.f32 %v8117, %v8118
        %v8120 = vsel %vm7948, %v5105, -inf
        %v8121 = vsel %vm7948, %v5217, -inf
        %v8122 = vmax.f32 %v8120, %v8121
        %v8123 = vsel %vm7948, %v5112, -inf
        %v8124 = vsel %vm7948, %v5224, -inf
        %v8125 = vmax.f32 %v8123, %v8124
        %v8126 = vsel %vm7948, %v5119, -inf
        %v8127 = vsel %vm7948, %v5231, -inf
        %v8128 = vmax.f32 %v8126, %v8127
        %v8129 = vsel %vm7948, %v5126, -inf
        %v8130 = vsel %vm7948, %v5238, -inf
        %v8131 = vmax.f32 %v8129, %v8130
        %v8132 = vsel %vm7948, %v5133, -inf
        %v8133 = vsel %vm7948, %v5245, -inf
        %v8134 = vmax.f32 %v8132, %v8133
        %v8135 = vsel %vm7948, %v5140, -inf
        %v8136 = vsel %vm7948, %v5252, -inf
        %v8137 = vmax.f32 %v8135, %v8136
        %v8138 = vsel %vm7948, %v5147, -inf
        %v8139 = vsel %vm7948, %v5259, -inf
        %v8140 = vmax.f32 %v8138, %v8139
        %v8141 = vsel %vm7948, %v5266, -inf
        %v8142 = vsel %vm7948, %v5378, -inf
        %v8143 = vmax.f32 %v8141, %v8142
        %v8144 = vsel %vm7948, %v5273, -inf
        %v8145 = vsel %vm7948, %v5385, -inf
        %v8146 = vmax.f32 %v8144, %v8145
        %v8147 = vsel %vm7948, %v5280, -inf
        %v8148 = vsel %vm7948, %v5392, -inf
        %v8149 = vmax.f32 %v8147, %v8148
        %v8150 = vsel %vm7948, %v5287, -inf
        %v8151 = vsel %vm7948, %v5399, -inf
        %v8152 = vmax.f32 %v8150, %v8151
        %v8153 = vsel %vm7948, %v5294, -inf
        %v8154 = vsel %vm7948, %v5406, -inf
        %v8155 = vmax.f32 %v8153, %v8154
        %v8156 = vsel %vm7948, %v5301, -inf
        %v8157 = vsel %vm7948, %v5413, -inf
        %v8158 = vmax.f32 %v8156, %v8157
        %v8159 = vsel %vm7948, %v5308, -inf
        %v8160 = vsel %vm7948, %v5420, -inf
        %v8161 = vmax.f32 %v8159, %v8160
        %v8162 = vsel %vm7948, %v5315, -inf
        %v8163 = vsel %vm7948, %v5427, -inf
        %v8164 = vmax.f32 %v8162, %v8163
        %v8165 = vsel %vm7948, %v5322, -inf
        %v8166 = vsel %vm7948, %v5434, -inf
        %v8167 = vmax.f32 %v8165, %v8166
        %v8168 = vsel %vm7948, %v5329, -inf
        %v8169 = vsel %vm7948, %v5441, -inf
        %v8170 = vmax.f32 %v8168, %v8169
        %v8171 = vsel %vm7948, %v5336, -inf
        %v8172 = vsel %vm7948, %v5448, -inf
        %v8173 = vmax.f32 %v8171, %v8172
        %v8174 = vsel %vm7948, %v5343, -inf
        %v8175 = vsel %vm7948, %v5455, -inf
        %v8176 = vmax.f32 %v8174, %v8175
        %v8177 = vsel %vm7948, %v5350, -inf
        %v8178 = vsel %vm7948, %v5462, -inf
        %v8179 = vmax.f32 %v8177, %v8178
        %v8180 = vsel %vm7948, %v5357, -inf
        %v8181 = vsel %vm7948, %v5469, -inf
        %v8182 = vmax.f32 %v8180, %v8181
        %v8183 = vsel %vm7948, %v5364, -inf
        %v8184 = vsel %vm7948, %v5476, -inf
        %v8185 = vmax.f32 %v8183, %v8184
        %v8186 = vsel %vm7948, %v5371, -inf
        %v8187 = vsel %vm7948, %v5483, -inf
        %v8188 = vmax.f32 %v8186, %v8187
        %v8189 = vsel %vm7948, %v5490, -inf
        %v8190 = vsel %vm7948, %v5602, -inf
        %v8191 = vmax.f32 %v8189, %v8190
        %v8192 = vsel %vm7948, %v5497, -inf
        %v8193 = vsel %vm7948, %v5609, -inf
        %v8194 = vmax.f32 %v8192, %v8193
        %v8195 = vsel %vm7948, %v5504, -inf
        %v8196 = vsel %vm7948, %v5616, -inf
        %v8197 = vmax.f32 %v8195, %v8196
        %v8198 = vsel %vm7948, %v5511, -inf
        %v8199 = vsel %vm7948, %v5623, -inf
        %v8200 = vmax.f32 %v8198, %v8199
        %v8201 = vsel %vm7948, %v5518, -inf
        %v8202 = vsel %vm7948, %v5630, -inf
        %v8203 = vmax.f32 %v8201, %v8202
        %v8204 = vsel %vm7948, %v5525, -inf
        %v8205 = vsel %vm7948, %v5637, -inf
        %v8206 = vmax.f32 %v8204, %v8205
        %v8207 = vsel %vm7948, %v5532, -inf
        %v8208 = vsel %vm7948, %v5644, -inf
        %v8209 = vmax.f32 %v8207, %v8208
        %v8210 = vsel %vm7948, %v5539, -inf
        %v8211 = vsel %vm7948, %v5651, -inf
        %v8212 = vmax.f32 %v8210, %v8211
        %v8213 = vsel %vm7948, %v5546, -inf
        %v8214 = vsel %vm7948, %v5658, -inf
        %v8215 = vmax.f32 %v8213, %v8214
        %v8216 = vsel %vm7948, %v5553, -inf
        %v8217 = vsel %vm7948, %v5665, -inf
        %v8218 = vmax.f32 %v8216, %v8217
        %v8219 = vsel %vm7948, %v5560, -inf
        %v8220 = vsel %vm7948, %v5672, -inf
        %v8221 = vmax.f32 %v8219, %v8220
        %v8222 = vsel %vm7948, %v5567, -inf
        %v8223 = vsel %vm7948, %v5679, -inf
        %v8224 = vmax.f32 %v8222, %v8223
        %v8225 = vsel %vm7948, %v5574, -inf
        %v8226 = vsel %vm7948, %v5686, -inf
        %v8227 = vmax.f32 %v8225, %v8226
        %v8228 = vsel %vm7948, %v5581, -inf
        %v8229 = vsel %vm7948, %v5693, -inf
        %v8230 = vmax.f32 %v8228, %v8229
        %v8231 = vsel %vm7948, %v5588, -inf
        %v8232 = vsel %vm7948, %v5700, -inf
        %v8233 = vmax.f32 %v8231, %v8232
        %v8234 = vsel %vm7948, %v5595, -inf
        %v8235 = vsel %vm7948, %v5707, -inf
        %v8236 = vmax.f32 %v8234, %v8235
        %v8237 = vsel %vm7948, %v5714, -inf
        %v8238 = vsel %vm7948, %v5826, -inf
        %v8239 = vmax.f32 %v8237, %v8238
        %v8240 = vsel %vm7948, %v5721, -inf
        %v8241 = vsel %vm7948, %v5833, -inf
        %v8242 = vmax.f32 %v8240, %v8241
        %v8243 = vsel %vm7948, %v5728, -inf
        %v8244 = vsel %vm7948, %v5840, -inf
        %v8245 = vmax.f32 %v8243, %v8244
        %v8246 = vsel %vm7948, %v5735, -inf
        %v8247 = vsel %vm7948, %v5847, -inf
        %v8248 = vmax.f32 %v8246, %v8247
        %v8249 = vsel %vm7948, %v5742, -inf
        %v8250 = vsel %vm7948, %v5854, -inf
        %v8251 = vmax.f32 %v8249, %v8250
        %v8252 = vsel %vm7948, %v5749, -inf
        %v8253 = vsel %vm7948, %v5861, -inf
        %v8254 = vmax.f32 %v8252, %v8253
        %v8255 = vsel %vm7948, %v5756, -inf
        %v8256 = vsel %vm7948, %v5868, -inf
        %v8257 = vmax.f32 %v8255, %v8256
        %v8258 = vsel %vm7948, %v5763, -inf
        %v8259 = vsel %vm7948, %v5875, -inf
        %v8260 = vmax.f32 %v8258, %v8259
        %v8261 = vsel %vm7948, %v5770, -inf
        %v8262 = vsel %vm7948, %v5882, -inf
        %v8263 = vmax.f32 %v8261, %v8262
        %v8264 = vsel %vm7948, %v5777, -inf
        %v8265 = vsel %vm7948, %v5889, -inf
        %v8266 = vmax.f32 %v8264, %v8265
        %v8267 = vsel %vm7948, %v5784, -inf
        %v8268 = vsel %vm7948, %v5896, -inf
        %v8269 = vmax.f32 %v8267, %v8268
        %v8270 = vsel %vm7948, %v5791, -inf
        %v8271 = vsel %vm7948, %v5903, -inf
        %v8272 = vmax.f32 %v8270, %v8271
        %v8273 = vsel %vm7948, %v5798, -inf
        %v8274 = vsel %vm7948, %v5910, -inf
        %v8275 = vmax.f32 %v8273, %v8274
        %v8276 = vsel %vm7948, %v5805, -inf
        %v8277 = vsel %vm7948, %v5917, -inf
        %v8278 = vmax.f32 %v8276, %v8277
        %v8279 = vsel %vm7948, %v5812, -inf
        %v8280 = vsel %vm7948, %v5924, -inf
        %v8281 = vmax.f32 %v8279, %v8280
        %v8282 = vsel %vm7948, %v5819, -inf
        %v8283 = vsel %vm7948, %v5931, -inf
        %v8284 = vmax.f32 %v8282, %v8283
        %v8285 = vsel %vm7948, %v5938, -inf
        %v8286 = vsel %vm7948, %v6050, -inf
        %v8287 = vmax.f32 %v8285, %v8286
        %v8288 = vsel %vm7948, %v5945, -inf
        %v8289 = vsel %vm7948, %v6057, -inf
        %v8290 = vmax.f32 %v8288, %v8289
        %v8291 = vsel %vm7948, %v5952, -inf
        %v8292 = vsel %vm7948, %v6064, -inf
        %v8293 = vmax.f32 %v8291, %v8292
        %v8294 = vsel %vm7948, %v5959, -inf
        %v8295 = vsel %vm7948, %v6071, -inf
        %v8296 = vmax.f32 %v8294, %v8295
        %v8297 = vsel %vm7948, %v5966, -inf
        %v8298 = vsel %vm7948, %v6078, -inf
        %v8299 = vmax.f32 %v8297, %v8298
        %v8300 = vsel %vm7948, %v5973, -inf
        %v8301 = vsel %vm7948, %v6085, -inf
        %v8302 = vmax.f32 %v8300, %v8301
        %v8303 = vsel %vm7948, %v5980, -inf
        %v8304 = vsel %vm7948, %v6092, -inf
        %v8305 = vmax.f32 %v8303, %v8304
        %v8306 = vsel %vm7948, %v5987, -inf
        %v8307 = vsel %vm7948, %v6099, -inf
        %v8308 = vmax.f32 %v8306, %v8307
        %v8309 = vsel %vm7948, %v5994, -inf
        %v8310 = vsel %vm7948, %v6106, -inf
        %v8311 = vmax.f32 %v8309, %v8310
        %v8312 = vsel %vm7948, %v6001, -inf
        %v8313 = vsel %vm7948, %v6113, -inf
        %v8314 = vmax.f32 %v8312, %v8313
        %v8315 = vsel %vm7948, %v6008, -inf
        %v8316 = vsel %vm7948, %v6120, -inf
        %v8317 = vmax.f32 %v8315, %v8316
        %v8318 = vsel %vm7948, %v6015, -inf
        %v8319 = vsel %vm7948, %v6127, -inf
        %v8320 = vmax.f32 %v8318, %v8319
        %v8321 = vsel %vm7948, %v6022, -inf
        %v8322 = vsel %vm7948, %v6134, -inf
        %v8323 = vmax.f32 %v8321, %v8322
        %v8324 = vsel %vm7948, %v6029, -inf
        %v8325 = vsel %vm7948, %v6141, -inf
        %v8326 = vmax.f32 %v8324, %v8325
        %v8327 = vsel %vm7948, %v6036, -inf
        %v8328 = vsel %vm7948, %v6148, -inf
        %v8329 = vmax.f32 %v8327, %v8328
        %v8330 = vsel %vm7948, %v6043, -inf
        %v8331 = vsel %vm7948, %v6155, -inf
        %v8332 = vmax.f32 %v8330, %v8331
        %v8333 = vsel %vm7948, %v6162, -inf
        %v8334 = vsel %vm7948, %v6274, -inf
        %v8335 = vmax.f32 %v8333, %v8334
        %v8336 = vsel %vm7948, %v6169, -inf
        %v8337 = vsel %vm7948, %v6281, -inf
        %v8338 = vmax.f32 %v8336, %v8337
        %v8339 = vsel %vm7948, %v6176, -inf
        %v8340 = vsel %vm7948, %v6288, -inf
        %v8341 = vmax.f32 %v8339, %v8340
        %v8342 = vsel %vm7948, %v6183, -inf
        %v8343 = vsel %vm7948, %v6295, -inf
        %v8344 = vmax.f32 %v8342, %v8343
        %v8345 = vsel %vm7948, %v6190, -inf
        %v8346 = vsel %vm7948, %v6302, -inf
        %v8347 = vmax.f32 %v8345, %v8346
        %v8348 = vsel %vm7948, %v6197, -inf
        %v8349 = vsel %vm7948, %v6309, -inf
        %v8350 = vmax.f32 %v8348, %v8349
        %v8351 = vsel %vm7948, %v6204, -inf
        %v8352 = vsel %vm7948, %v6316, -inf
        %v8353 = vmax.f32 %v8351, %v8352
        %v8354 = vsel %vm7948, %v6211, -inf
        %v8355 = vsel %vm7948, %v6323, -inf
        %v8356 = vmax.f32 %v8354, %v8355
        %v8357 = vsel %vm7948, %v6218, -inf
        %v8358 = vsel %vm7948, %v6330, -inf
        %v8359 = vmax.f32 %v8357, %v8358
        %v8360 = vsel %vm7948, %v6225, -inf
        %v8361 = vsel %vm7948, %v6337, -inf
        %v8362 = vmax.f32 %v8360, %v8361
        %v8363 = vsel %vm7948, %v6232, -inf
        %v8364 = vsel %vm7948, %v6344, -inf
        %v8365 = vmax.f32 %v8363, %v8364
        %v8366 = vsel %vm7948, %v6239, -inf
        %v8367 = vsel %vm7948, %v6351, -inf
        %v8368 = vmax.f32 %v8366, %v8367
        %v8369 = vsel %vm7948, %v6246, -inf
        %v8370 = vsel %vm7948, %v6358, -inf
        %v8371 = vmax.f32 %v8369, %v8370
        %v8372 = vsel %vm7948, %v6253, -inf
        %v8373 = vsel %vm7948, %v6365, -inf
        %v8374 = vmax.f32 %v8372, %v8373
        %v8375 = vsel %vm7948, %v6260, -inf
        %v8376 = vsel %vm7948, %v6372, -inf
        %v8377 = vmax.f32 %v8375, %v8376
        %v8378 = vsel %vm7948, %v6267, -inf
        %v8379 = vsel %vm7948, %v6379, -inf
        %v8380 = vmax.f32 %v8378, %v8379
        %v8381 = vsel %vm7948, %v6386, -inf
        %v8382 = vsel %vm7948, %v6498, -inf
        %v8383 = vmax.f32 %v8381, %v8382
        %v8384 = vsel %vm7948, %v6393, -inf
        %v8385 = vsel %vm7948, %v6505, -inf
        %v8386 = vmax.f32 %v8384, %v8385
        %v8387 = vsel %vm7948, %v6400, -inf
        %v8388 = vsel %vm7948, %v6512, -inf
        %v8389 = vmax.f32 %v8387, %v8388
        %v8390 = vsel %vm7948, %v6407, -inf
        %v8391 = vsel %vm7948, %v6519, -inf
        %v8392 = vmax.f32 %v8390, %v8391
        %v8393 = vsel %vm7948, %v6414, -inf
        %v8394 = vsel %vm7948, %v6526, -inf
        %v8395 = vmax.f32 %v8393, %v8394
        %v8396 = vsel %vm7948, %v6421, -inf
        %v8397 = vsel %vm7948, %v6533, -inf
        %v8398 = vmax.f32 %v8396, %v8397
        %v8399 = vsel %vm7948, %v6428, -inf
        %v8400 = vsel %vm7948, %v6540, -inf
        %v8401 = vmax.f32 %v8399, %v8400
        %v8402 = vsel %vm7948, %v6435, -inf
        %v8403 = vsel %vm7948, %v6547, -inf
        %v8404 = vmax.f32 %v8402, %v8403
        %v8405 = vsel %vm7948, %v6442, -inf
        %v8406 = vsel %vm7948, %v6554, -inf
        %v8407 = vmax.f32 %v8405, %v8406
        %v8408 = vsel %vm7948, %v6449, -inf
        %v8409 = vsel %vm7948, %v6561, -inf
        %v8410 = vmax.f32 %v8408, %v8409
        %v8411 = vsel %vm7948, %v6456, -inf
        %v8412 = vsel %vm7948, %v6568, -inf
        %v8413 = vmax.f32 %v8411, %v8412
        %v8414 = vsel %vm7948, %v6463, -inf
        %v8415 = vsel %vm7948, %v6575, -inf
        %v8416 = vmax.f32 %v8414, %v8415
        %v8417 = vsel %vm7948, %v6470, -inf
        %v8418 = vsel %vm7948, %v6582, -inf
        %v8419 = vmax.f32 %v8417, %v8418
        %v8420 = vsel %vm7948, %v6477, -inf
        %v8421 = vsel %vm7948, %v6589, -inf
        %v8422 = vmax.f32 %v8420, %v8421
        %v8423 = vsel %vm7948, %v6484, -inf
        %v8424 = vsel %vm7948, %v6596, -inf
        %v8425 = vmax.f32 %v8423, %v8424
        %v8426 = vsel %vm7948, %v6491, -inf
        %v8427 = vsel %vm7948, %v6603, -inf
        %v8428 = vmax.f32 %v8426, %v8427
        %v8429 = vsel %vm7948, %v6610, -inf
        %v8430 = vsel %vm7948, %v6722, -inf
        %v8431 = vmax.f32 %v8429, %v8430
        %v8432 = vsel %vm7948, %v6617, -inf
        %v8433 = vsel %vm7948, %v6729, -inf
        %v8434 = vmax.f32 %v8432, %v8433
        %v8435 = vsel %vm7948, %v6624, -inf
        %v8436 = vsel %vm7948, %v6736, -inf
        %v8437 = vmax.f32 %v8435, %v8436
        %v8438 = vsel %vm7948, %v6631, -inf
        %v8439 = vsel %vm7948, %v6743, -inf
        %v8440 = vmax.f32 %v8438, %v8439
        %v8441 = vsel %vm7948, %v6638, -inf
        %v8442 = vsel %vm7948, %v6750, -inf
        %v8443 = vmax.f32 %v8441, %v8442
        %v8444 = vsel %vm7948, %v6645, -inf
        %v8445 = vsel %vm7948, %v6757, -inf
        %v8446 = vmax.f32 %v8444, %v8445
        %v8447 = vsel %vm7948, %v6652, -inf
        %v8448 = vsel %vm7948, %v6764, -inf
        %v8449 = vmax.f32 %v8447, %v8448
        %v8450 = vsel %vm7948, %v6659, -inf
        %v8451 = vsel %vm7948, %v6771, -inf
        %v8452 = vmax.f32 %v8450, %v8451
        %v8453 = vsel %vm7948, %v6666, -inf
        %v8454 = vsel %vm7948, %v6778, -inf
        %v8455 = vmax.f32 %v8453, %v8454
        %v8456 = vsel %vm7948, %v6673, -inf
        %v8457 = vsel %vm7948, %v6785, -inf
        %v8458 = vmax.f32 %v8456, %v8457
        %v8459 = vsel %vm7948, %v6680, -inf
        %v8460 = vsel %vm7948, %v6792, -inf
        %v8461 = vmax.f32 %v8459, %v8460
        %v8462 = vsel %vm7948, %v6687, -inf
        %v8463 = vsel %vm7948, %v6799, -inf
        %v8464 = vmax.f32 %v8462, %v8463
        %v8465 = vsel %vm7948, %v6694, -inf
        %v8466 = vsel %vm7948, %v6806, -inf
        %v8467 = vmax.f32 %v8465, %v8466
        %v8468 = vsel %vm7948, %v6701, -inf
        %v8469 = vsel %vm7948, %v6813, -inf
        %v8470 = vmax.f32 %v8468, %v8469
        %v8471 = vsel %vm7948, %v6708, -inf
        %v8472 = vsel %vm7948, %v6820, -inf
        %v8473 = vmax.f32 %v8471, %v8472
        %v8474 = vsel %vm7948, %v6715, -inf
        %v8475 = vsel %vm7948, %v6827, -inf
        %v8476 = vmax.f32 %v8474, %v8475
        %v8477 = vsel %vm7948, %v6834, -inf
        %v8478 = vsel %vm7948, %v6946, -inf
        %v8479 = vmax.f32 %v8477, %v8478
        %v8480 = vsel %vm7948, %v6841, -inf
        %v8481 = vsel %vm7948, %v6953, -inf
        %v8482 = vmax.f32 %v8480, %v8481
        %v8483 = vsel %vm7948, %v6848, -inf
        %v8484 = vsel %vm7948, %v6960, -inf
        %v8485 = vmax.f32 %v8483, %v8484
        %v8486 = vsel %vm7948, %v6855, -inf
        %v8487 = vsel %vm7948, %v6967, -inf
        %v8488 = vmax.f32 %v8486, %v8487
        %v8489 = vsel %vm7948, %v6862, -inf
        %v8490 = vsel %vm7948, %v6974, -inf
        %v8491 = vmax.f32 %v8489, %v8490
        %v8492 = vsel %vm7948, %v6869, -inf
        %v8493 = vsel %vm7948, %v6981, -inf
        %v8494 = vmax.f32 %v8492, %v8493
        %v8495 = vsel %vm7948, %v6876, -inf
        %v8496 = vsel %vm7948, %v6988, -inf
        %v8497 = vmax.f32 %v8495, %v8496
        %v8498 = vsel %vm7948, %v6883, -inf
        %v8499 = vsel %vm7948, %v6995, -inf
        %v8500 = vmax.f32 %v8498, %v8499
        %v8501 = vsel %vm7948, %v6890, -inf
        %v8502 = vsel %vm7948, %v7002, -inf
        %v8503 = vmax.f32 %v8501, %v8502
        %v8504 = vsel %vm7948, %v6897, -inf
        %v8505 = vsel %vm7948, %v7009, -inf
        %v8506 = vmax.f32 %v8504, %v8505
        %v8507 = vsel %vm7948, %v6904, -inf
        %v8508 = vsel %vm7948, %v7016, -inf
        %v8509 = vmax.f32 %v8507, %v8508
        %v8510 = vsel %vm7948, %v6911, -inf
        %v8511 = vsel %vm7948, %v7023, -inf
        %v8512 = vmax.f32 %v8510, %v8511
        %v8513 = vsel %vm7948, %v6918, -inf
        %v8514 = vsel %vm7948, %v7030, -inf
        %v8515 = vmax.f32 %v8513, %v8514
        %v8516 = vsel %vm7948, %v6925, -inf
        %v8517 = vsel %vm7948, %v7037, -inf
        %v8518 = vmax.f32 %v8516, %v8517
        %v8519 = vsel %vm7948, %v6932, -inf
        %v8520 = vsel %vm7948, %v7044, -inf
        %v8521 = vmax.f32 %v8519, %v8520
        %v8522 = vsel %vm7948, %v6939, -inf
        %v8523 = vsel %vm7948, %v7051, -inf
        %v8524 = vmax.f32 %v8522, %v8523
        %v8525 = vsel %vm7948, %v7058, -inf
        %v8526 = vsel %vm7948, %v7170, -inf
        %v8527 = vmax.f32 %v8525, %v8526
        %v8528 = vsel %vm7948, %v7065, -inf
        %v8529 = vsel %vm7948, %v7177, -inf
        %v8530 = vmax.f32 %v8528, %v8529
        %v8531 = vsel %vm7948, %v7072, -inf
        %v8532 = vsel %vm7948, %v7184, -inf
        %v8533 = vmax.f32 %v8531, %v8532
        %v8534 = vsel %vm7948, %v7079, -inf
        %v8535 = vsel %vm7948, %v7191, -inf
        %v8536 = vmax.f32 %v8534, %v8535
        %v8537 = vsel %vm7948, %v7086, -inf
        %v8538 = vsel %vm7948, %v7198, -inf
        %v8539 = vmax.f32 %v8537, %v8538
        %v8540 = vsel %vm7948, %v7093, -inf
        %v8541 = vsel %vm7948, %v7205, -inf
        %v8542 = vmax.f32 %v8540, %v8541
        %v8543 = vsel %vm7948, %v7100, -inf
        %v8544 = vsel %vm7948, %v7212, -inf
        %v8545 = vmax.f32 %v8543, %v8544
        %v8546 = vsel %vm7948, %v7107, -inf
        %v8547 = vsel %vm7948, %v7219, -inf
        %v8548 = vmax.f32 %v8546, %v8547
        %v8549 = vsel %vm7948, %v7114, -inf
        %v8550 = vsel %vm7948, %v7226, -inf
        %v8551 = vmax.f32 %v8549, %v8550
        %v8552 = vsel %vm7948, %v7121, -inf
        %v8553 = vsel %vm7948, %v7233, -inf
        %v8554 = vmax.f32 %v8552, %v8553
        %v8555 = vsel %vm7948, %v7128, -inf
        %v8556 = vsel %vm7948, %v7240, -inf
        %v8557 = vmax.f32 %v8555, %v8556
        %v8558 = vsel %vm7948, %v7135, -inf
        %v8559 = vsel %vm7948, %v7247, -inf
        %v8560 = vmax.f32 %v8558, %v8559
        %v8561 = vsel %vm7948, %v7142, -inf
        %v8562 = vsel %vm7948, %v7254, -inf
        %v8563 = vmax.f32 %v8561, %v8562
        %v8564 = vsel %vm7948, %v7149, -inf
        %v8565 = vsel %vm7948, %v7261, -inf
        %v8566 = vmax.f32 %v8564, %v8565
        %v8567 = vsel %vm7948, %v7156, -inf
        %v8568 = vsel %vm7948, %v7268, -inf
        %v8569 = vmax.f32 %v8567, %v8568
        %v8570 = vsel %vm7948, %v7163, -inf
        %v8571 = vsel %vm7948, %v7275, -inf
        %v8572 = vmax.f32 %v8570, %v8571
        %v8573 = vsel %vm7948, %v7282, -inf
        %v8574 = vsel %vm7948, %v7394, -inf
        %v8575 = vmax.f32 %v8573, %v8574
        %v8576 = vsel %vm7948, %v7289, -inf
        %v8577 = vsel %vm7948, %v7401, -inf
        %v8578 = vmax.f32 %v8576, %v8577
        %v8579 = vsel %vm7948, %v7296, -inf
        %v8580 = vsel %vm7948, %v7408, -inf
        %v8581 = vmax.f32 %v8579, %v8580
        %v8582 = vsel %vm7948, %v7303, -inf
        %v8583 = vsel %vm7948, %v7415, -inf
        %v8584 = vmax.f32 %v8582, %v8583
        %v8585 = vsel %vm7948, %v7310, -inf
        %v8586 = vsel %vm7948, %v7422, -inf
        %v8587 = vmax.f32 %v8585, %v8586
        %v8588 = vsel %vm7948, %v7317, -inf
        %v8589 = vsel %vm7948, %v7429, -inf
        %v8590 = vmax.f32 %v8588, %v8589
        %v8591 = vsel %vm7948, %v7324, -inf
        %v8592 = vsel %vm7948, %v7436, -inf
        %v8593 = vmax.f32 %v8591, %v8592
        %v8594 = vsel %vm7948, %v7331, -inf
        %v8595 = vsel %vm7948, %v7443, -inf
        %v8596 = vmax.f32 %v8594, %v8595
        %v8597 = vsel %vm7948, %v7338, -inf
        %v8598 = vsel %vm7948, %v7450, -inf
        %v8599 = vmax.f32 %v8597, %v8598
        %v8600 = vsel %vm7948, %v7345, -inf
        %v8601 = vsel %vm7948, %v7457, -inf
        %v8602 = vmax.f32 %v8600, %v8601
        %v8603 = vsel %vm7948, %v7352, -inf
        %v8604 = vsel %vm7948, %v7464, -inf
        %v8605 = vmax.f32 %v8603, %v8604
        %v8606 = vsel %vm7948, %v7359, -inf
        %v8607 = vsel %vm7948, %v7471, -inf
        %v8608 = vmax.f32 %v8606, %v8607
        %v8609 = vsel %vm7948, %v7366, -inf
        %v8610 = vsel %vm7948, %v7478, -inf
        %v8611 = vmax.f32 %v8609, %v8610
        %v8612 = vsel %vm7948, %v7373, -inf
        %v8613 = vsel %vm7948, %v7485, -inf
        %v8614 = vmax.f32 %v8612, %v8613
        %v8615 = vsel %vm7948, %v7380, -inf
        %v8616 = vsel %vm7948, %v7492, -inf
        %v8617 = vmax.f32 %v8615, %v8616
        %v8618 = vsel %vm7948, %v7387, -inf
        %v8619 = vsel %vm7948, %v7499, -inf
        %v8620 = vmax.f32 %v8618, %v8619
        %v8621 = vsel %vm7948, %v7506, -inf
        %v8622 = vsel %vm7948, %v7618, -inf
        %v8623 = vmax.f32 %v8621, %v8622
        %v8624 = vsel %vm7948, %v7513, -inf
        %v8625 = vsel %vm7948, %v7625, -inf
        %v8626 = vmax.f32 %v8624, %v8625
        %v8627 = vsel %vm7948, %v7520, -inf
        %v8628 = vsel %vm7948, %v7632, -inf
        %v8629 = vmax.f32 %v8627, %v8628
        %v8630 = vsel %vm7948, %v7527, -inf
        %v8631 = vsel %vm7948, %v7639, -inf
        %v8632 = vmax.f32 %v8630, %v8631
        %v8633 = vsel %vm7948, %v7534, -inf
        %v8634 = vsel %vm7948, %v7646, -inf
        %v8635 = vmax.f32 %v8633, %v8634
        %v8636 = vsel %vm7948, %v7541, -inf
        %v8637 = vsel %vm7948, %v7653, -inf
        %v8638 = vmax.f32 %v8636, %v8637
        %v8639 = vsel %vm7948, %v7548, -inf
        %v8640 = vsel %vm7948, %v7660, -inf
        %v8641 = vmax.f32 %v8639, %v8640
        %v8642 = vsel %vm7948, %v7555, -inf
        %v8643 = vsel %vm7948, %v7667, -inf
        %v8644 = vmax.f32 %v8642, %v8643
        %v8645 = vsel %vm7948, %v7562, -inf
        %v8646 = vsel %vm7948, %v7674, -inf
        %v8647 = vmax.f32 %v8645, %v8646
        %v8648 = vsel %vm7948, %v7569, -inf
        %v8649 = vsel %vm7948, %v7681, -inf
        %v8650 = vmax.f32 %v8648, %v8649
        %v8651 = vsel %vm7948, %v7576, -inf
        %v8652 = vsel %vm7948, %v7688, -inf
        %v8653 = vmax.f32 %v8651, %v8652
        %v8654 = vsel %vm7948, %v7583, -inf
        %v8655 = vsel %vm7948, %v7695, -inf
        %v8656 = vmax.f32 %v8654, %v8655
        %v8657 = vsel %vm7948, %v7590, -inf
        %v8658 = vsel %vm7948, %v7702, -inf
        %v8659 = vmax.f32 %v8657, %v8658
        %v8660 = vsel %vm7948, %v7597, -inf
        %v8661 = vsel %vm7948, %v7709, -inf
        %v8662 = vmax.f32 %v8660, %v8661
        %v8663 = vsel %vm7948, %v7604, -inf
        %v8664 = vsel %vm7948, %v7716, -inf
        %v8665 = vmax.f32 %v8663, %v8664
        %v8666 = vsel %vm7948, %v7611, -inf
        %v8667 = vsel %vm7948, %v7723, -inf
        %v8668 = vmax.f32 %v8666, %v8667
        %v8669 = vsel %vm7948, %v7730, -inf
        %v8670 = vsel %vm7948, %v7842, -inf
        %v8671 = vmax.f32 %v8669, %v8670
        %v8672 = vsel %vm7948, %v7737, -inf
        %v8673 = vsel %vm7948, %v7849, -inf
        %v8674 = vmax.f32 %v8672, %v8673
        %v8675 = vsel %vm7948, %v7744, -inf
        %v8676 = vsel %vm7948, %v7856, -inf
        %v8677 = vmax.f32 %v8675, %v8676
        %v8678 = vsel %vm7948, %v7751, -inf
        %v8679 = vsel %vm7948, %v7863, -inf
        %v8680 = vmax.f32 %v8678, %v8679
        %v8681 = vsel %vm7948, %v7758, -inf
        %v8682 = vsel %vm7948, %v7870, -inf
        %v8683 = vmax.f32 %v8681, %v8682
        %v8684 = vsel %vm7948, %v7765, -inf
        %v8685 = vsel %vm7948, %v7877, -inf
        %v8686 = vmax.f32 %v8684, %v8685
        %v8687 = vsel %vm7948, %v7772, -inf
        %v8688 = vsel %vm7948, %v7884, -inf
        %v8689 = vmax.f32 %v8687, %v8688
        %v8690 = vsel %vm7948, %v7779, -inf
        %v8691 = vsel %vm7948, %v7891, -inf
        %v8692 = vmax.f32 %v8690, %v8691
        %v8693 = vsel %vm7948, %v7786, -inf
        %v8694 = vsel %vm7948, %v7898, -inf
        %v8695 = vmax.f32 %v8693, %v8694
        %v8696 = vsel %vm7948, %v7793, -inf
        %v8697 = vsel %vm7948, %v7905, -inf
        %v8698 = vmax.f32 %v8696, %v8697
        %v8699 = vsel %vm7948, %v7800, -inf
        %v8700 = vsel %vm7948, %v7912, -inf
        %v8701 = vmax.f32 %v8699, %v8700
        %v8702 = vsel %vm7948, %v7807, -inf
        %v8703 = vsel %vm7948, %v7919, -inf
        %v8704 = vmax.f32 %v8702, %v8703
        %v8705 = vsel %vm7948, %v7814, -inf
        %v8706 = vsel %vm7948, %v7926, -inf
        %v8707 = vmax.f32 %v8705, %v8706
        %v8708 = vsel %vm7948, %v7821, -inf
        %v8709 = vsel %vm7948, %v7933, -inf
        %v8710 = vmax.f32 %v8708, %v8709
        %v8711 = vsel %vm7948, %v7828, -inf
        %v8712 = vsel %vm7948, %v7940, -inf
        %v8713 = vmax.f32 %v8711, %v8712
        %v8714 = vsel %vm7948, %v7835, -inf
        %v8715 = vsel %vm7948, %v7947, -inf
        %v8716 = vmax.f32 %v8714, %v8715
        %v8717 = vpack.c.bf16 %v7951, %v7951
        %v8718 = vpack.c.bf16 %v7954, %v7954
        %v8719 = vpack.c.bf16 %v7957, %v7957
        %v8720 = vpack.c.bf16 %v7960, %v7960
        %v8721 = vpack.c.bf16 %v7963, %v7963
        %v8722 = vpack.c.bf16 %v7966, %v7966
        %v8723 = vpack.c.bf16 %v7969, %v7969
        %v8724 = vpack.c.bf16 %v7972, %v7972
        %v8725 = vpack.c.bf16 %v7975, %v7975
        %v8726 = vpack.c.bf16 %v7978, %v7978
        %v8727 = vpack.c.bf16 %v7981, %v7981
        %v8728 = vpack.c.bf16 %v7984, %v7984
        %v8729 = vpack.c.bf16 %v7987, %v7987
        %v8730 = vpack.c.bf16 %v7990, %v7990
        %v8731 = vpack.c.bf16 %v7993, %v7993
        %v8732 = vpack.c.bf16 %v7996, %v7996
        %v8733 = vpack.c.bf16 %v7999, %v7999
        %v8734 = vpack.c.bf16 %v8002, %v8002
        %v8735 = vpack.c.bf16 %v8005, %v8005
        %v8736 = vpack.c.bf16 %v8008, %v8008
        %v8737 = vpack.c.bf16 %v8011, %v8011
        %v8738 = vpack.c.bf16 %v8014, %v8014
        %v8739 = vpack.c.bf16 %v8017, %v8017
        %v8740 = vpack.c.bf16 %v8020, %v8020
        %v8741 = vpack.c.bf16 %v8023, %v8023
        %v8742 = vpack.c.bf16 %v8026, %v8026
        %v8743 = vpack.c.bf16 %v8029, %v8029
        %v8744 = vpack.c.bf16 %v8032, %v8032
        %v8745 = vpack.c.bf16 %v8035, %v8035
        %v8746 = vpack.c.bf16 %v8038, %v8038
        %v8747 = vpack.c.bf16 %v8041, %v8041
        %v8748 = vpack.c.bf16 %v8044, %v8044
        %v8749 = vpack.c.bf16 %v8047, %v8047
        %v8750 = vpack.c.bf16 %v8050, %v8050
        %v8751 = vpack.c.bf16 %v8053, %v8053
        %v8752 = vpack.c.bf16 %v8056, %v8056
        %v8753 = vpack.c.bf16 %v8059, %v8059
        %v8754 = vpack.c.bf16 %v8062, %v8062
        %v8755 = vpack.c.bf16 %v8065, %v8065
        %v8756 = vpack.c.bf16 %v8068, %v8068
        %v8757 = vpack.c.bf16 %v8071, %v8071
        %v8758 = vpack.c.bf16 %v8074, %v8074
        %v8759 = vpack.c.bf16 %v8077, %v8077
        %v8760 = vpack.c.bf16 %v8080, %v8080
        %v8761 = vpack.c.bf16 %v8083, %v8083
        %v8762 = vpack.c.bf16 %v8086, %v8086
        %v8763 = vpack.c.bf16 %v8089, %v8089
        %v8764 = vpack.c.bf16 %v8092, %v8092
        %v8765 = vpack.c.bf16 %v8095, %v8095
        %v8766 = vpack.c.bf16 %v8098, %v8098
        %v8767 = vpack.c.bf16 %v8101, %v8101
        %v8768 = vpack.c.bf16 %v8104, %v8104
        %v8769 = vpack.c.bf16 %v8107, %v8107
        %v8770 = vpack.c.bf16 %v8110, %v8110
        %v8771 = vpack.c.bf16 %v8113, %v8113
        %v8772 = vpack.c.bf16 %v8116, %v8116
        %v8773 = vpack.c.bf16 %v8119, %v8119
        %v8774 = vpack.c.bf16 %v8122, %v8122
        %v8775 = vpack.c.bf16 %v8125, %v8125
        %v8776 = vpack.c.bf16 %v8128, %v8128
        %v8777 = vpack.c.bf16 %v8131, %v8131
        %v8778 = vpack.c.bf16 %v8134, %v8134
        %v8779 = vpack.c.bf16 %v8137, %v8137
        %v8780 = vpack.c.bf16 %v8140, %v8140
        %v8781 = vpack.c.bf16 %v8143, %v8143
        %v8782 = vpack.c.bf16 %v8146, %v8146
        %v8783 = vpack.c.bf16 %v8149, %v8149
        %v8784 = vpack.c.bf16 %v8152, %v8152
        %v8785 = vpack.c.bf16 %v8155, %v8155
        %v8786 = vpack.c.bf16 %v8158, %v8158
        %v8787 = vpack.c.bf16 %v8161, %v8161
        %v8788 = vpack.c.bf16 %v8164, %v8164
        %v8789 = vpack.c.bf16 %v8167, %v8167
        %v8790 = vpack.c.bf16 %v8170, %v8170
        %v8791 = vpack.c.bf16 %v8173, %v8173
        %v8792 = vpack.c.bf16 %v8176, %v8176
        %v8793 = vpack.c.bf16 %v8179, %v8179
        %v8794 = vpack.c.bf16 %v8182, %v8182
        %v8795 = vpack.c.bf16 %v8185, %v8185
        %v8796 = vpack.c.bf16 %v8188, %v8188
        %v8797 = vpack.c.bf16 %v8191, %v8191
        %v8798 = vpack.c.bf16 %v8194, %v8194
        %v8799 = vpack.c.bf16 %v8197, %v8197
        %v8800 = vpack.c.bf16 %v8200, %v8200
        %v8801 = vpack.c.bf16 %v8203, %v8203
        %v8802 = vpack.c.bf16 %v8206, %v8206
        %v8803 = vpack.c.bf16 %v8209, %v8209
        %v8804 = vpack.c.bf16 %v8212, %v8212
        %v8805 = vpack.c.bf16 %v8215, %v8215
        %v8806 = vpack.c.bf16 %v8218, %v8218
        %v8807 = vpack.c.bf16 %v8221, %v8221
        %v8808 = vpack.c.bf16 %v8224, %v8224
        %v8809 = vpack.c.bf16 %v8227, %v8227
        %v8810 = vpack.c.bf16 %v8230, %v8230
        %v8811 = vpack.c.bf16 %v8233, %v8233
        %v8812 = vpack.c.bf16 %v8236, %v8236
        %v8813 = vpack.c.bf16 %v8239, %v8239
        %v8814 = vpack.c.bf16 %v8242, %v8242
        %v8815 = vpack.c.bf16 %v8245, %v8245
        %v8816 = vpack.c.bf16 %v8248, %v8248
        %v8817 = vpack.c.bf16 %v8251, %v8251
        %v8818 = vpack.c.bf16 %v8254, %v8254
        %v8819 = vpack.c.bf16 %v8257, %v8257
        %v8820 = vpack.c.bf16 %v8260, %v8260
        %v8821 = vpack.c.bf16 %v8263, %v8263
        %v8822 = vpack.c.bf16 %v8266, %v8266
        %v8823 = vpack.c.bf16 %v8269, %v8269
        %v8824 = vpack.c.bf16 %v8272, %v8272
        %v8825 = vpack.c.bf16 %v8275, %v8275
        %v8826 = vpack.c.bf16 %v8278, %v8278
        %v8827 = vpack.c.bf16 %v8281, %v8281
        %v8828 = vpack.c.bf16 %v8284, %v8284
        %v8829 = vpack.c.bf16 %v8287, %v8287
        %v8830 = vpack.c.bf16 %v8290, %v8290
        %v8831 = vpack.c.bf16 %v8293, %v8293
        %v8832 = vpack.c.bf16 %v8296, %v8296
        %v8833 = vpack.c.bf16 %v8299, %v8299
        %v8834 = vpack.c.bf16 %v8302, %v8302
        %v8835 = vpack.c.bf16 %v8305, %v8305
        %v8836 = vpack.c.bf16 %v8308, %v8308
        %v8837 = vpack.c.bf16 %v8311, %v8311
        %v8838 = vpack.c.bf16 %v8314, %v8314
        %v8839 = vpack.c.bf16 %v8317, %v8317
        %v8840 = vpack.c.bf16 %v8320, %v8320
        %v8841 = vpack.c.bf16 %v8323, %v8323
        %v8842 = vpack.c.bf16 %v8326, %v8326
        %v8843 = vpack.c.bf16 %v8329, %v8329
        %v8844 = vpack.c.bf16 %v8332, %v8332
        %v8845 = vpack.c.bf16 %v8335, %v8335
        %v8846 = vpack.c.bf16 %v8338, %v8338
        %v8847 = vpack.c.bf16 %v8341, %v8341
        %v8848 = vpack.c.bf16 %v8344, %v8344
        %v8849 = vpack.c.bf16 %v8347, %v8347
        %v8850 = vpack.c.bf16 %v8350, %v8350
        %v8851 = vpack.c.bf16 %v8353, %v8353
        %v8852 = vpack.c.bf16 %v8356, %v8356
        %v8853 = vpack.c.bf16 %v8359, %v8359
        %v8854 = vpack.c.bf16 %v8362, %v8362
        %v8855 = vpack.c.bf16 %v8365, %v8365
        %v8856 = vpack.c.bf16 %v8368, %v8368
        %v8857 = vpack.c.bf16 %v8371, %v8371
        %v8858 = vpack.c.bf16 %v8374, %v8374
        %v8859 = vpack.c.bf16 %v8377, %v8377
        %v8860 = vpack.c.bf16 %v8380, %v8380
        %v8861 = vpack.c.bf16 %v8383, %v8383
        %v8862 = vpack.c.bf16 %v8386, %v8386
        %v8863 = vpack.c.bf16 %v8389, %v8389
        %v8864 = vpack.c.bf16 %v8392, %v8392
        %v8865 = vpack.c.bf16 %v8395, %v8395
        %v8866 = vpack.c.bf16 %v8398, %v8398
        %v8867 = vpack.c.bf16 %v8401, %v8401
        %v8868 = vpack.c.bf16 %v8404, %v8404
        %v8869 = vpack.c.bf16 %v8407, %v8407
        %v8870 = vpack.c.bf16 %v8410, %v8410
        %v8871 = vpack.c.bf16 %v8413, %v8413
        %v8872 = vpack.c.bf16 %v8416, %v8416
        %v8873 = vpack.c.bf16 %v8419, %v8419
        %v8874 = vpack.c.bf16 %v8422, %v8422
        %v8875 = vpack.c.bf16 %v8425, %v8425
        %v8876 = vpack.c.bf16 %v8428, %v8428
        %v8877 = vpack.c.bf16 %v8431, %v8431
        %v8878 = vpack.c.bf16 %v8434, %v8434
        %v8879 = vpack.c.bf16 %v8437, %v8437
        %v8880 = vpack.c.bf16 %v8440, %v8440
        %v8881 = vpack.c.bf16 %v8443, %v8443
        %v8882 = vpack.c.bf16 %v8446, %v8446
        %v8883 = vpack.c.bf16 %v8449, %v8449
        %v8884 = vpack.c.bf16 %v8452, %v8452
        %v8885 = vpack.c.bf16 %v8455, %v8455
        %v8886 = vpack.c.bf16 %v8458, %v8458
        %v8887 = vpack.c.bf16 %v8461, %v8461
        %v8888 = vpack.c.bf16 %v8464, %v8464
        %v8889 = vpack.c.bf16 %v8467, %v8467
        %v8890 = vpack.c.bf16 %v8470, %v8470
        %v8891 = vpack.c.bf16 %v8473, %v8473
        %v8892 = vpack.c.bf16 %v8476, %v8476
        %v8893 = vpack.c.bf16 %v8479, %v8479
        %v8894 = vpack.c.bf16 %v8482, %v8482
        %v8895 = vpack.c.bf16 %v8485, %v8485
        %v8896 = vpack.c.bf16 %v8488, %v8488
        %v8897 = vpack.c.bf16 %v8491, %v8491
        %v8898 = vpack.c.bf16 %v8494, %v8494
        %v8899 = vpack.c.bf16 %v8497, %v8497
        %v8900 = vpack.c.bf16 %v8500, %v8500
        %v8901 = vpack.c.bf16 %v8503, %v8503
        %v8902 = vpack.c.bf16 %v8506, %v8506
        %v8903 = vpack.c.bf16 %v8509, %v8509
        %v8904 = vpack.c.bf16 %v8512, %v8512
        %v8905 = vpack.c.bf16 %v8515, %v8515
        %v8906 = vpack.c.bf16 %v8518, %v8518
        %v8907 = vpack.c.bf16 %v8521, %v8521
        %v8908 = vpack.c.bf16 %v8524, %v8524
        %v8909 = vpack.c.bf16 %v8527, %v8527
        %v8910 = vpack.c.bf16 %v8530, %v8530
        %v8911 = vpack.c.bf16 %v8533, %v8533
        %v8912 = vpack.c.bf16 %v8536, %v8536
        %v8913 = vpack.c.bf16 %v8539, %v8539
        %v8914 = vpack.c.bf16 %v8542, %v8542
        %v8915 = vpack.c.bf16 %v8545, %v8545
        %v8916 = vpack.c.bf16 %v8548, %v8548
        %v8917 = vpack.c.bf16 %v8551, %v8551
        %v8918 = vpack.c.bf16 %v8554, %v8554
        %v8919 = vpack.c.bf16 %v8557, %v8557
        %v8920 = vpack.c.bf16 %v8560, %v8560
        %v8921 = vpack.c.bf16 %v8563, %v8563
        %v8922 = vpack.c.bf16 %v8566, %v8566
        %v8923 = vpack.c.bf16 %v8569, %v8569
        %v8924 = vpack.c.bf16 %v8572, %v8572
        %v8925 = vpack.c.bf16 %v8575, %v8575
        %v8926 = vpack.c.bf16 %v8578, %v8578
        %v8927 = vpack.c.bf16 %v8581, %v8581
        %v8928 = vpack.c.bf16 %v8584, %v8584
        %v8929 = vpack.c.bf16 %v8587, %v8587
        %v8930 = vpack.c.bf16 %v8590, %v8590
        %v8931 = vpack.c.bf16 %v8593, %v8593
        %v8932 = vpack.c.bf16 %v8596, %v8596
        %v8933 = vpack.c.bf16 %v8599, %v8599
        %v8934 = vpack.c.bf16 %v8602, %v8602
        %v8935 = vpack.c.bf16 %v8605, %v8605
        %v8936 = vpack.c.bf16 %v8608, %v8608
        %v8937 = vpack.c.bf16 %v8611, %v8611
        %v8938 = vpack.c.bf16 %v8614, %v8614
        %v8939 = vpack.c.bf16 %v8617, %v8617
        %v8940 = vpack.c.bf16 %v8620, %v8620
        %v8941 = vpack.c.bf16 %v8623, %v8623
        %v8942 = vpack.c.bf16 %v8626, %v8626
        %v8943 = vpack.c.bf16 %v8629, %v8629
        %v8944 = vpack.c.bf16 %v8632, %v8632
        %v8945 = vpack.c.bf16 %v8635, %v8635
        %v8946 = vpack.c.bf16 %v8638, %v8638
        %v8947 = vpack.c.bf16 %v8641, %v8641
        %v8948 = vpack.c.bf16 %v8644, %v8644
        %v8949 = vpack.c.bf16 %v8647, %v8647
        %v8950 = vpack.c.bf16 %v8650, %v8650
        %v8951 = vpack.c.bf16 %v8653, %v8653
        %v8952 = vpack.c.bf16 %v8656, %v8656
        %v8953 = vpack.c.bf16 %v8659, %v8659
        %v8954 = vpack.c.bf16 %v8662, %v8662
        %v8955 = vpack.c.bf16 %v8665, %v8665
        %v8956 = vpack.c.bf16 %v8668, %v8668
        %v8957 = vpack.c.bf16 %v8671, %v8671
        %v8958 = vpack.c.bf16 %v8674, %v8674
        %v8959 = vpack.c.bf16 %v8677, %v8677
        %v8960 = vpack.c.bf16 %v8680, %v8680
        %v8961 = vpack.c.bf16 %v8683, %v8683
        %v8962 = vpack.c.bf16 %v8686, %v8686
        %v8963 = vpack.c.bf16 %v8689, %v8689
        %v8964 = vpack.c.bf16 %v8692, %v8692
        %v8965 = vpack.c.bf16 %v8695, %v8695
        %v8966 = vpack.c.bf16 %v8698, %v8698
        %v8967 = vpack.c.bf16 %v8701, %v8701
        %v8968 = vpack.c.bf16 %v8704, %v8704
        %v8969 = vpack.c.bf16 %v8707, %v8707
        %v8970 = vpack.c.bf16 %v8710, %v8710
        %v8971 = vpack.c.bf16 %v8713, %v8713
        %v8972 = vpack.c.bf16 %v8716, %v8716
        %v9229 = vunpack.c.l.b16 %v8717
        %v9230 = vunpack.c.l.b16 %v8718
        %v9231 = vunpack.c.l.b16 %v8719
        %v9232 = vunpack.c.l.b16 %v8720
        %v9233 = vunpack.c.l.b16 %v8721
        %v9234 = vunpack.c.l.b16 %v8722
        %v9235 = vunpack.c.l.b16 %v8723
        %v9236 = vunpack.c.l.b16 %v8724
        %v9237 = vunpack.c.l.b16 %v8725
        %v9238 = vunpack.c.l.b16 %v8726
        %v9239 = vunpack.c.l.b16 %v8727
        %v9240 = vunpack.c.l.b16 %v8728
        %v9241 = vunpack.c.l.b16 %v8729
        %v9242 = vunpack.c.l.b16 %v8730
        %v9243 = vunpack.c.l.b16 %v8731
        %v9244 = vunpack.c.l.b16 %v8732
        %v9245 = vunpack.c.l.b16 %v8733
        %v9246 = vunpack.c.l.b16 %v8734
        %v9247 = vunpack.c.l.b16 %v8735
        %v9248 = vunpack.c.l.b16 %v8736
        %v9249 = vunpack.c.l.b16 %v8737
        %v9250 = vunpack.c.l.b16 %v8738
        %v9251 = vunpack.c.l.b16 %v8739
        %v9252 = vunpack.c.l.b16 %v8740
        %v9253 = vunpack.c.l.b16 %v8741
        %v9254 = vunpack.c.l.b16 %v8742
        %v9255 = vunpack.c.l.b16 %v8743
        %v9256 = vunpack.c.l.b16 %v8744
        %v9257 = vunpack.c.l.b16 %v8745
        %v9258 = vunpack.c.l.b16 %v8746
        %v9259 = vunpack.c.l.b16 %v8747
        %v9260 = vunpack.c.l.b16 %v8748
        %v9261 = vunpack.c.l.b16 %v8749
        %v9262 = vunpack.c.l.b16 %v8750
        %v9263 = vunpack.c.l.b16 %v8751
        %v9264 = vunpack.c.l.b16 %v8752
        %v9265 = vunpack.c.l.b16 %v8753
        %v9266 = vunpack.c.l.b16 %v8754
        %v9267 = vunpack.c.l.b16 %v8755
        %v9268 = vunpack.c.l.b16 %v8756
        %v9269 = vunpack.c.l.b16 %v8757
        %v9270 = vunpack.c.l.b16 %v8758
        %v9271 = vunpack.c.l.b16 %v8759
        %v9272 = vunpack.c.l.b16 %v8760
        %v9273 = vunpack.c.l.b16 %v8761
        %v9274 = vunpack.c.l.b16 %v8762
        %v9275 = vunpack.c.l.b16 %v8763
        %v9276 = vunpack.c.l.b16 %v8764
        %v9277 = vunpack.c.l.b16 %v8765
        %v9278 = vunpack.c.l.b16 %v8766
        %v9279 = vunpack.c.l.b16 %v8767
        %v9280 = vunpack.c.l.b16 %v8768
        %v9281 = vunpack.c.l.b16 %v8769
        %v9282 = vunpack.c.l.b16 %v8770
        %v9283 = vunpack.c.l.b16 %v8771
        %v9284 = vunpack.c.l.b16 %v8772
        %v9285 = vunpack.c.l.b16 %v8773
        %v9286 = vunpack.c.l.b16 %v8774
        %v9287 = vunpack.c.l.b16 %v8775
        %v9288 = vunpack.c.l.b16 %v8776
        %v9289 = vunpack.c.l.b16 %v8777
        %v9290 = vunpack.c.l.b16 %v8778
        %v9291 = vunpack.c.l.b16 %v8779
        %v9292 = vunpack.c.l.b16 %v8780
        %v9293 = vunpack.c.l.b16 %v8781
        %v9294 = vunpack.c.l.b16 %v8782
        %v9295 = vunpack.c.l.b16 %v8783
        %v9296 = vunpack.c.l.b16 %v8784
        %v9297 = vunpack.c.l.b16 %v8785
        %v9298 = vunpack.c.l.b16 %v8786
        %v9299 = vunpack.c.l.b16 %v8787
        %v9300 = vunpack.c.l.b16 %v8788
        %v9301 = vunpack.c.l.b16 %v8789
        %v9302 = vunpack.c.l.b16 %v8790
        %v9303 = vunpack.c.l.b16 %v8791
        %v9304 = vunpack.c.l.b16 %v8792
        %v9305 = vunpack.c.l.b16 %v8793
        %v9306 = vunpack.c.l.b16 %v8794
        %v9307 = vunpack.c.l.b16 %v8795
        %v9308 = vunpack.c.l.b16 %v8796
        %v9309 = vunpack.c.l.b16 %v8797
        %v9310 = vunpack.c.l.b16 %v8798
        %v9311 = vunpack.c.l.b16 %v8799
        %v9312 = vunpack.c.l.b16 %v8800
        %v9313 = vunpack.c.l.b16 %v8801
        %v9314 = vunpack.c.l.b16 %v8802
        %v9315 = vunpack.c.l.b16 %v8803
        %v9316 = vunpack.c.l.b16 %v8804
        %v9317 = vunpack.c.l.b16 %v8805
        %v9318 = vunpack.c.l.b16 %v8806
        %v9319 = vunpack.c.l.b16 %v8807
        %v9320 = vunpack.c.l.b16 %v8808
        %v9321 = vunpack.c.l.b16 %v8809
        %v9322 = vunpack.c.l.b16 %v8810
        %v9323 = vunpack.c.l.b16 %v8811
        %v9324 = vunpack.c.l.b16 %v8812
        %v9325 = vunpack.c.l.b16 %v8813
        %v9326 = vunpack.c.l.b16 %v8814
        %v9327 = vunpack.c.l.b16 %v8815
        %v9328 = vunpack.c.l.b16 %v8816
        %v9329 = vunpack.c.l.b16 %v8817
        %v9330 = vunpack.c.l.b16 %v8818
        %v9331 = vunpack.c.l.b16 %v8819
        %v9332 = vunpack.c.l.b16 %v8820
        %v9333 = vunpack.c.l.b16 %v8821
        %v9334 = vunpack.c.l.b16 %v8822
        %v9335 = vunpack.c.l.b16 %v8823
        %v9336 = vunpack.c.l.b16 %v8824
        %v9337 = vunpack.c.l.b16 %v8825
        %v9338 = vunpack.c.l.b16 %v8826
        %v9339 = vunpack.c.l.b16 %v8827
        %v9340 = vunpack.c.l.b16 %v8828
        %v9341 = vunpack.c.l.b16 %v8829
        %v9342 = vunpack.c.l.b16 %v8830
        %v9343 = vunpack.c.l.b16 %v8831
        %v9344 = vunpack.c.l.b16 %v8832
        %v9345 = vunpack.c.l.b16 %v8833
        %v9346 = vunpack.c.l.b16 %v8834
        %v9347 = vunpack.c.l.b16 %v8835
        %v9348 = vunpack.c.l.b16 %v8836
        %v9349 = vunpack.c.l.b16 %v8837
        %v9350 = vunpack.c.l.b16 %v8838
        %v9351 = vunpack.c.l.b16 %v8839
        %v9352 = vunpack.c.l.b16 %v8840
        %v9353 = vunpack.c.l.b16 %v8841
        %v9354 = vunpack.c.l.b16 %v8842
        %v9355 = vunpack.c.l.b16 %v8843
        %v9356 = vunpack.c.l.b16 %v8844
        %v9357 = vunpack.c.l.b16 %v8845
        %v9358 = vunpack.c.l.b16 %v8846
        %v9359 = vunpack.c.l.b16 %v8847
        %v9360 = vunpack.c.l.b16 %v8848
        %v9361 = vunpack.c.l.b16 %v8849
        %v9362 = vunpack.c.l.b16 %v8850
        %v9363 = vunpack.c.l.b16 %v8851
        %v9364 = vunpack.c.l.b16 %v8852
        %v9365 = vunpack.c.l.b16 %v8853
        %v9366 = vunpack.c.l.b16 %v8854
        %v9367 = vunpack.c.l.b16 %v8855
        %v9368 = vunpack.c.l.b16 %v8856
        %v9369 = vunpack.c.l.b16 %v8857
        %v9370 = vunpack.c.l.b16 %v8858
        %v9371 = vunpack.c.l.b16 %v8859
        %v9372 = vunpack.c.l.b16 %v8860
        %v9373 = vunpack.c.l.b16 %v8861
        %v9374 = vunpack.c.l.b16 %v8862
        %v9375 = vunpack.c.l.b16 %v8863
        %v9376 = vunpack.c.l.b16 %v8864
        %v9377 = vunpack.c.l.b16 %v8865
        %v9378 = vunpack.c.l.b16 %v8866
        %v9379 = vunpack.c.l.b16 %v8867
        %v9380 = vunpack.c.l.b16 %v8868
        %v9381 = vunpack.c.l.b16 %v8869
        %v9382 = vunpack.c.l.b16 %v8870
        %v9383 = vunpack.c.l.b16 %v8871
        %v9384 = vunpack.c.l.b16 %v8872
        %v9385 = vunpack.c.l.b16 %v8873
        %v9386 = vunpack.c.l.b16 %v8874
        %v9387 = vunpack.c.l.b16 %v8875
        %v9388 = vunpack.c.l.b16 %v8876
        %v9389 = vunpack.c.l.b16 %v8877
        %v9390 = vunpack.c.l.b16 %v8878
        %v9391 = vunpack.c.l.b16 %v8879
        %v9392 = vunpack.c.l.b16 %v8880
        %v9393 = vunpack.c.l.b16 %v8881
        %v9394 = vunpack.c.l.b16 %v8882
        %v9395 = vunpack.c.l.b16 %v8883
        %v9396 = vunpack.c.l.b16 %v8884
        %v9397 = vunpack.c.l.b16 %v8885
        %v9398 = vunpack.c.l.b16 %v8886
        %v9399 = vunpack.c.l.b16 %v8887
        %v9400 = vunpack.c.l.b16 %v8888
        %v9401 = vunpack.c.l.b16 %v8889
        %v9402 = vunpack.c.l.b16 %v8890
        %v9403 = vunpack.c.l.b16 %v8891
        %v9404 = vunpack.c.l.b16 %v8892
        %v9405 = vunpack.c.l.b16 %v8893
        %v9406 = vunpack.c.l.b16 %v8894
        %v9407 = vunpack.c.l.b16 %v8895
        %v9408 = vunpack.c.l.b16 %v8896
        %v9409 = vunpack.c.l.b16 %v8897
        %v9410 = vunpack.c.l.b16 %v8898
        %v9411 = vunpack.c.l.b16 %v8899
        %v9412 = vunpack.c.l.b16 %v8900
        %v9413 = vunpack.c.l.b16 %v8901
        %v9414 = vunpack.c.l.b16 %v8902
        %v9415 = vunpack.c.l.b16 %v8903
        %v9416 = vunpack.c.l.b16 %v8904
        %v9417 = vunpack.c.l.b16 %v8905
        %v9418 = vunpack.c.l.b16 %v8906
        %v9419 = vunpack.c.l.b16 %v8907
        %v9420 = vunpack.c.l.b16 %v8908
        %v9421 = vunpack.c.l.b16 %v8909
        %v9422 = vunpack.c.l.b16 %v8910
        %v9423 = vunpack.c.l.b16 %v8911
        %v9424 = vunpack.c.l.b16 %v8912
        %v9425 = vunpack.c.l.b16 %v8913
        %v9426 = vunpack.c.l.b16 %v8914
        %v9427 = vunpack.c.l.b16 %v8915
        %v9428 = vunpack.c.l.b16 %v8916
        %v9429 = vunpack.c.l.b16 %v8917
        %v9430 = vunpack.c.l.b16 %v8918
        %v9431 = vunpack.c.l.b16 %v8919
        %v9432 = vunpack.c.l.b16 %v8920
        %v9433 = vunpack.c.l.b16 %v8921
        %v9434 = vunpack.c.l.b16 %v8922
        %v9435 = vunpack.c.l.b16 %v8923
        %v9436 = vunpack.c.l.b16 %v8924
        %v9437 = vunpack.c.l.b16 %v8925
        %v9438 = vunpack.c.l.b16 %v8926
        %v9439 = vunpack.c.l.b16 %v8927
        %v9440 = vunpack.c.l.b16 %v8928
        %v9441 = vunpack.c.l.b16 %v8929
        %v9442 = vunpack.c.l.b16 %v8930
        %v9443 = vunpack.c.l.b16 %v8931
        %v9444 = vunpack.c.l.b16 %v8932
        %v9445 = vunpack.c.l.b16 %v8933
        %v9446 = vunpack.c.l.b16 %v8934
        %v9447 = vunpack.c.l.b16 %v8935
        %v9448 = vunpack.c.l.b16 %v8936
        %v9449 = vunpack.c.l.b16 %v8937
        %v9450 = vunpack.c.l.b16 %v8938
        %v9451 = vunpack.c.l.b16 %v8939
        %v9452 = vunpack.c.l.b16 %v8940
        %v9453 = vunpack.c.l.b16 %v8941
        %v9454 = vunpack.c.l.b16 %v8942
        %v9455 = vunpack.c.l.b16 %v8943
        %v9456 = vunpack.c.l.b16 %v8944
        %v9457 = vunpack.c.l.b16 %v8945
        %v9458 = vunpack.c.l.b16 %v8946
        %v9459 = vunpack.c.l.b16 %v8947
        %v9460 = vunpack.c.l.b16 %v8948
        %v9461 = vunpack.c.l.b16 %v8949
        %v9462 = vunpack.c.l.b16 %v8950
        %v9463 = vunpack.c.l.b16 %v8951
        %v9464 = vunpack.c.l.b16 %v8952
        %v9465 = vunpack.c.l.b16 %v8953
        %v9466 = vunpack.c.l.b16 %v8954
        %v9467 = vunpack.c.l.b16 %v8955
        %v9468 = vunpack.c.l.b16 %v8956
        %v9469 = vunpack.c.l.b16 %v8957
        %v9470 = vunpack.c.l.b16 %v8958
        %v9471 = vunpack.c.l.b16 %v8959
        %v9472 = vunpack.c.l.b16 %v8960
        %v9473 = vunpack.c.l.b16 %v8961
        %v9474 = vunpack.c.l.b16 %v8962
        %v9475 = vunpack.c.l.b16 %v8963
        %v9476 = vunpack.c.l.b16 %v8964
        %v9477 = vunpack.c.l.b16 %v8965
        %v9478 = vunpack.c.l.b16 %v8966
        %v9479 = vunpack.c.l.b16 %v8967
        %v9480 = vunpack.c.l.b16 %v8968
        %v9481 = vunpack.c.l.b16 %v8969
        %v9482 = vunpack.c.l.b16 %v8970
        %v9483 = vunpack.c.l.b16 %v8971
        %v9484 = vunpack.c.l.b16 %v8972
        %v9485 = vpack.c.b16 %v9229, %v9229
        %v9486 = vpack.c.b16 %v9230, %v9230
        %v9487 = vpack.c.b16 %v9231, %v9231
        %v9488 = vpack.c.b16 %v9232, %v9232
        %v9489 = vpack.c.b16 %v9233, %v9233
        %v9490 = vpack.c.b16 %v9234, %v9234
        %v9491 = vpack.c.b16 %v9235, %v9235
        %v9492 = vpack.c.b16 %v9236, %v9236
        %v9493 = vpack.c.b16 %v9237, %v9237
        %v9494 = vpack.c.b16 %v9238, %v9238
        %v9495 = vpack.c.b16 %v9239, %v9239
        %v9496 = vpack.c.b16 %v9240, %v9240
        %v9497 = vpack.c.b16 %v9241, %v9241
        %v9498 = vpack.c.b16 %v9242, %v9242
        %v9499 = vpack.c.b16 %v9243, %v9243
        %v9500 = vpack.c.b16 %v9244, %v9244
        %v9501 = vpack.c.b16 %v9245, %v9245
        %v9502 = vpack.c.b16 %v9246, %v9246
        %v9503 = vpack.c.b16 %v9247, %v9247
        %v9504 = vpack.c.b16 %v9248, %v9248
        %v9505 = vpack.c.b16 %v9249, %v9249
        %v9506 = vpack.c.b16 %v9250, %v9250
        %v9507 = vpack.c.b16 %v9251, %v9251
        %v9508 = vpack.c.b16 %v9252, %v9252
        %v9509 = vpack.c.b16 %v9253, %v9253
        %v9510 = vpack.c.b16 %v9254, %v9254
        %v9511 = vpack.c.b16 %v9255, %v9255
        %v9512 = vpack.c.b16 %v9256, %v9256
        %v9513 = vpack.c.b16 %v9257, %v9257
        %v9514 = vpack.c.b16 %v9258, %v9258
        %v9515 = vpack.c.b16 %v9259, %v9259
        %v9516 = vpack.c.b16 %v9260, %v9260
        %v9517 = vpack.c.b16 %v9261, %v9261
        %v9518 = vpack.c.b16 %v9262, %v9262
        %v9519 = vpack.c.b16 %v9263, %v9263
        %v9520 = vpack.c.b16 %v9264, %v9264
        %v9521 = vpack.c.b16 %v9265, %v9265
        %v9522 = vpack.c.b16 %v9266, %v9266
        %v9523 = vpack.c.b16 %v9267, %v9267
        %v9524 = vpack.c.b16 %v9268, %v9268
        %v9525 = vpack.c.b16 %v9269, %v9269
        %v9526 = vpack.c.b16 %v9270, %v9270
        %v9527 = vpack.c.b16 %v9271, %v9271
        %v9528 = vpack.c.b16 %v9272, %v9272
        %v9529 = vpack.c.b16 %v9273, %v9273
        %v9530 = vpack.c.b16 %v9274, %v9274
        %v9531 = vpack.c.b16 %v9275, %v9275
        %v9532 = vpack.c.b16 %v9276, %v9276
        %v9533 = vpack.c.b16 %v9277, %v9277
        %v9534 = vpack.c.b16 %v9278, %v9278
        %v9535 = vpack.c.b16 %v9279, %v9279
        %v9536 = vpack.c.b16 %v9280, %v9280
        %v9537 = vpack.c.b16 %v9281, %v9281
        %v9538 = vpack.c.b16 %v9282, %v9282
        %v9539 = vpack.c.b16 %v9283, %v9283
        %v9540 = vpack.c.b16 %v9284, %v9284
        %v9541 = vpack.c.b16 %v9285, %v9285
        %v9542 = vpack.c.b16 %v9286, %v9286
        %v9543 = vpack.c.b16 %v9287, %v9287
        %v9544 = vpack.c.b16 %v9288, %v9288
        %v9545 = vpack.c.b16 %v9289, %v9289
        %v9546 = vpack.c.b16 %v9290, %v9290
        %v9547 = vpack.c.b16 %v9291, %v9291
        %v9548 = vpack.c.b16 %v9292, %v9292
        %v9549 = vpack.c.b16 %v9293, %v9293
        %v9550 = vpack.c.b16 %v9294, %v9294
        %v9551 = vpack.c.b16 %v9295, %v9295
        %v9552 = vpack.c.b16 %v9296, %v9296
        %v9553 = vpack.c.b16 %v9297, %v9297
        %v9554 = vpack.c.b16 %v9298, %v9298
        %v9555 = vpack.c.b16 %v9299, %v9299
        %v9556 = vpack.c.b16 %v9300, %v9300
        %v9557 = vpack.c.b16 %v9301, %v9301
        %v9558 = vpack.c.b16 %v9302, %v9302
        %v9559 = vpack.c.b16 %v9303, %v9303
        %v9560 = vpack.c.b16 %v9304, %v9304
        %v9561 = vpack.c.b16 %v9305, %v9305
        %v9562 = vpack.c.b16 %v9306, %v9306
        %v9563 = vpack.c.b16 %v9307, %v9307
        %v9564 = vpack.c.b16 %v9308, %v9308
        %v9565 = vpack.c.b16 %v9309, %v9309
        %v9566 = vpack.c.b16 %v9310, %v9310
        %v9567 = vpack.c.b16 %v9311, %v9311
        %v9568 = vpack.c.b16 %v9312, %v9312
        %v9569 = vpack.c.b16 %v9313, %v9313
        %v9570 = vpack.c.b16 %v9314, %v9314
        %v9571 = vpack.c.b16 %v9315, %v9315
        %v9572 = vpack.c.b16 %v9316, %v9316
        %v9573 = vpack.c.b16 %v9317, %v9317
        %v9574 = vpack.c.b16 %v9318, %v9318
        %v9575 = vpack.c.b16 %v9319, %v9319
        %v9576 = vpack.c.b16 %v9320, %v9320
        %v9577 = vpack.c.b16 %v9321, %v9321
        %v9578 = vpack.c.b16 %v9322, %v9322
        %v9579 = vpack.c.b16 %v9323, %v9323
        %v9580 = vpack.c.b16 %v9324, %v9324
        %v9581 = vpack.c.b16 %v9325, %v9325
        %v9582 = vpack.c.b16 %v9326, %v9326
        %v9583 = vpack.c.b16 %v9327, %v9327
        %v9584 = vpack.c.b16 %v9328, %v9328
        %v9585 = vpack.c.b16 %v9329, %v9329
        %v9586 = vpack.c.b16 %v9330, %v9330
        %v9587 = vpack.c.b16 %v9331, %v9331
        %v9588 = vpack.c.b16 %v9332, %v9332
        %v9589 = vpack.c.b16 %v9333, %v9333
        %v9590 = vpack.c.b16 %v9334, %v9334
        %v9591 = vpack.c.b16 %v9335, %v9335
        %v9592 = vpack.c.b16 %v9336, %v9336
        %v9593 = vpack.c.b16 %v9337, %v9337
        %v9594 = vpack.c.b16 %v9338, %v9338
        %v9595 = vpack.c.b16 %v9339, %v9339
        %v9596 = vpack.c.b16 %v9340, %v9340
        %v9597 = vpack.c.b16 %v9341, %v9341
        %v9598 = vpack.c.b16 %v9342, %v9342
        %v9599 = vpack.c.b16 %v9343, %v9343
        %v9600 = vpack.c.b16 %v9344, %v9344
        %v9601 = vpack.c.b16 %v9345, %v9345
        %v9602 = vpack.c.b16 %v9346, %v9346
        %v9603 = vpack.c.b16 %v9347, %v9347
        %v9604 = vpack.c.b16 %v9348, %v9348
        %v9605 = vpack.c.b16 %v9349, %v9349
        %v9606 = vpack.c.b16 %v9350, %v9350
        %v9607 = vpack.c.b16 %v9351, %v9351
        %v9608 = vpack.c.b16 %v9352, %v9352
        %v9609 = vpack.c.b16 %v9353, %v9353
        %v9610 = vpack.c.b16 %v9354, %v9354
        %v9611 = vpack.c.b16 %v9355, %v9355
        %v9612 = vpack.c.b16 %v9356, %v9356
        %v9613 = vpack.c.b16 %v9357, %v9357
        %v9614 = vpack.c.b16 %v9358, %v9358
        %v9615 = vpack.c.b16 %v9359, %v9359
        %v9616 = vpack.c.b16 %v9360, %v9360
        %v9617 = vpack.c.b16 %v9361, %v9361
        %v9618 = vpack.c.b16 %v9362, %v9362
        %v9619 = vpack.c.b16 %v9363, %v9363
        %v9620 = vpack.c.b16 %v9364, %v9364
        %v9621 = vpack.c.b16 %v9365, %v9365
        %v9622 = vpack.c.b16 %v9366, %v9366
        %v9623 = vpack.c.b16 %v9367, %v9367
        %v9624 = vpack.c.b16 %v9368, %v9368
        %v9625 = vpack.c.b16 %v9369, %v9369
        %v9626 = vpack.c.b16 %v9370, %v9370
        %v9627 = vpack.c.b16 %v9371, %v9371
        %v9628 = vpack.c.b16 %v9372, %v9372
        %v9629 = vpack.c.b16 %v9373, %v9373
        %v9630 = vpack.c.b16 %v9374, %v9374
        %v9631 = vpack.c.b16 %v9375, %v9375
        %v9632 = vpack.c.b16 %v9376, %v9376
        %v9633 = vpack.c.b16 %v9377, %v9377
        %v9634 = vpack.c.b16 %v9378, %v9378
        %v9635 = vpack.c.b16 %v9379, %v9379
        %v9636 = vpack.c.b16 %v9380, %v9380
        %v9637 = vpack.c.b16 %v9381, %v9381
        %v9638 = vpack.c.b16 %v9382, %v9382
        %v9639 = vpack.c.b16 %v9383, %v9383
        %v9640 = vpack.c.b16 %v9384, %v9384
        %v9641 = vpack.c.b16 %v9385, %v9385
        %v9642 = vpack.c.b16 %v9386, %v9386
        %v9643 = vpack.c.b16 %v9387, %v9387
        %v9644 = vpack.c.b16 %v9388, %v9388
        %v9645 = vpack.c.b16 %v9389, %v9389
        %v9646 = vpack.c.b16 %v9390, %v9390
        %v9647 = vpack.c.b16 %v9391, %v9391
        %v9648 = vpack.c.b16 %v9392, %v9392
        %v9649 = vpack.c.b16 %v9393, %v9393
        %v9650 = vpack.c.b16 %v9394, %v9394
        %v9651 = vpack.c.b16 %v9395, %v9395
        %v9652 = vpack.c.b16 %v9396, %v9396
        %v9653 = vpack.c.b16 %v9397, %v9397
        %v9654 = vpack.c.b16 %v9398, %v9398
        %v9655 = vpack.c.b16 %v9399, %v9399
        %v9656 = vpack.c.b16 %v9400, %v9400
        %v9657 = vpack.c.b16 %v9401, %v9401
        %v9658 = vpack.c.b16 %v9402, %v9402
        %v9659 = vpack.c.b16 %v9403, %v9403
        %v9660 = vpack.c.b16 %v9404, %v9404
        %v9661 = vpack.c.b16 %v9405, %v9405
        %v9662 = vpack.c.b16 %v9406, %v9406
        %v9663 = vpack.c.b16 %v9407, %v9407
        %v9664 = vpack.c.b16 %v9408, %v9408
        %v9665 = vpack.c.b16 %v9409, %v9409
        %v9666 = vpack.c.b16 %v9410, %v9410
        %v9667 = vpack.c.b16 %v9411, %v9411
        %v9668 = vpack.c.b16 %v9412, %v9412
        %v9669 = vpack.c.b16 %v9413, %v9413
        %v9670 = vpack.c.b16 %v9414, %v9414
        %v9671 = vpack.c.b16 %v9415, %v9415
        %v9672 = vpack.c.b16 %v9416, %v9416
        %v9673 = vpack.c.b16 %v9417, %v9417
        %v9674 = vpack.c.b16 %v9418, %v9418
        %v9675 = vpack.c.b16 %v9419, %v9419
        %v9676 = vpack.c.b16 %v9420, %v9420
        %v9677 = vpack.c.b16 %v9421, %v9421
        %v9678 = vpack.c.b16 %v9422, %v9422
        %v9679 = vpack.c.b16 %v9423, %v9423
        %v9680 = vpack.c.b16 %v9424, %v9424
        %v9681 = vpack.c.b16 %v9425, %v9425
        %v9682 = vpack.c.b16 %v9426, %v9426
        %v9683 = vpack.c.b16 %v9427, %v9427
        %v9684 = vpack.c.b16 %v9428, %v9428
        %v9685 = vpack.c.b16 %v9429, %v9429
        %v9686 = vpack.c.b16 %v9430, %v9430
        %v9687 = vpack.c.b16 %v9431, %v9431
        %v9688 = vpack.c.b16 %v9432, %v9432
        %v9689 = vpack.c.b16 %v9433, %v9433
        %v9690 = vpack.c.b16 %v9434, %v9434
        %v9691 = vpack.c.b16 %v9435, %v9435
        %v9692 = vpack.c.b16 %v9436, %v9436
        %v9693 = vpack.c.b16 %v9437, %v9437
        %v9694 = vpack.c.b16 %v9438, %v9438
        %v9695 = vpack.c.b16 %v9439, %v9439
        %v9696 = vpack.c.b16 %v9440, %v9440
        %v9697 = vpack.c.b16 %v9441, %v9441
        %v9698 = vpack.c.b16 %v9442, %v9442
        %v9699 = vpack.c.b16 %v9443, %v9443
        %v9700 = vpack.c.b16 %v9444, %v9444
        %v9701 = vpack.c.b16 %v9445, %v9445
        %v9702 = vpack.c.b16 %v9446, %v9446
        %v9703 = vpack.c.b16 %v9447, %v9447
        %v9704 = vpack.c.b16 %v9448, %v9448
        %v9705 = vpack.c.b16 %v9449, %v9449
        %v9706 = vpack.c.b16 %v9450, %v9450
        %v9707 = vpack.c.b16 %v9451, %v9451
        %v9708 = vpack.c.b16 %v9452, %v9452
        %v9709 = vpack.c.b16 %v9453, %v9453
        %v9710 = vpack.c.b16 %v9454, %v9454
        %v9711 = vpack.c.b16 %v9455, %v9455
        %v9712 = vpack.c.b16 %v9456, %v9456
        %v9713 = vpack.c.b16 %v9457, %v9457
        %v9714 = vpack.c.b16 %v9458, %v9458
        %v9715 = vpack.c.b16 %v9459, %v9459
        %v9716 = vpack.c.b16 %v9460, %v9460
        %v9717 = vpack.c.b16 %v9461, %v9461
        %v9718 = vpack.c.b16 %v9462, %v9462
        %v9719 = vpack.c.b16 %v9463, %v9463
        %v9720 = vpack.c.b16 %v9464, %v9464
        %v9721 = vpack.c.b16 %v9465, %v9465
        %v9722 = vpack.c.b16 %v9466, %v9466
        %v9723 = vpack.c.b16 %v9467, %v9467
        %v9724 = vpack.c.b16 %v9468, %v9468
        %v9725 = vpack.c.b16 %v9469, %v9469
        %v9726 = vpack.c.b16 %v9470, %v9470
        %v9727 = vpack.c.b16 %v9471, %v9471
        %v9728 = vpack.c.b16 %v9472, %v9472
        %v9729 = vpack.c.b16 %v9473, %v9473
        %v9730 = vpack.c.b16 %v9474, %v9474
        %v9731 = vpack.c.b16 %v9475, %v9475
        %v9732 = vpack.c.b16 %v9476, %v9476
        %v9733 = vpack.c.b16 %v9477, %v9477
        %v9734 = vpack.c.b16 %v9478, %v9478
        %v9735 = vpack.c.b16 %v9479, %v9479
        %v9736 = vpack.c.b16 %v9480, %v9480
        %v9737 = vpack.c.b16 %v9481, %v9481
        %v9738 = vpack.c.b16 %v9482, %v9482
        %v9739 = vpack.c.b16 %v9483, %v9483
        %v9740 = vpack.c.b16 %v9484, %v9484
        %v9741 = vunpack.c.l.b16 %v9485
        %v9742 = vunpack.c.l.b16 %v9486
        %v9743 = vunpack.c.l.b16 %v9487
        %v9744 = vunpack.c.l.b16 %v9488
        %v9745 = vunpack.c.l.b16 %v9489
        %v9746 = vunpack.c.l.b16 %v9490
        %v9747 = vunpack.c.l.b16 %v9491
        %v9748 = vunpack.c.l.b16 %v9492
        %v9749 = vunpack.c.l.b16 %v9493
        %v9750 = vunpack.c.l.b16 %v9494
        %v9751 = vunpack.c.l.b16 %v9495
        %v9752 = vunpack.c.l.b16 %v9496
        %v9753 = vunpack.c.l.b16 %v9497
        %v9754 = vunpack.c.l.b16 %v9498
        %v9755 = vunpack.c.l.b16 %v9499
        %v9756 = vunpack.c.l.b16 %v9500
        %v9757 = vunpack.c.l.b16 %v9501
        %v9758 = vunpack.c.l.b16 %v9502
        %v9759 = vunpack.c.l.b16 %v9503
        %v9760 = vunpack.c.l.b16 %v9504
        %v9761 = vunpack.c.l.b16 %v9505
        %v9762 = vunpack.c.l.b16 %v9506
        %v9763 = vunpack.c.l.b16 %v9507
        %v9764 = vunpack.c.l.b16 %v9508
        %v9765 = vunpack.c.l.b16 %v9509
        %v9766 = vunpack.c.l.b16 %v9510
        %v9767 = vunpack.c.l.b16 %v9511
        %v9768 = vunpack.c.l.b16 %v9512
        %v9769 = vunpack.c.l.b16 %v9513
        %v9770 = vunpack.c.l.b16 %v9514
        %v9771 = vunpack.c.l.b16 %v9515
        %v9772 = vunpack.c.l.b16 %v9516
        %v9773 = vunpack.c.l.b16 %v9517
        %v9774 = vunpack.c.l.b16 %v9518
        %v9775 = vunpack.c.l.b16 %v9519
        %v9776 = vunpack.c.l.b16 %v9520
        %v9777 = vunpack.c.l.b16 %v9521
        %v9778 = vunpack.c.l.b16 %v9522
        %v9779 = vunpack.c.l.b16 %v9523
        %v9780 = vunpack.c.l.b16 %v9524
        %v9781 = vunpack.c.l.b16 %v9525
        %v9782 = vunpack.c.l.b16 %v9526
        %v9783 = vunpack.c.l.b16 %v9527
        %v9784 = vunpack.c.l.b16 %v9528
        %v9785 = vunpack.c.l.b16 %v9529
        %v9786 = vunpack.c.l.b16 %v9530
        %v9787 = vunpack.c.l.b16 %v9531
        %v9788 = vunpack.c.l.b16 %v9532
        %v9789 = vunpack.c.l.b16 %v9533
        %v9790 = vunpack.c.l.b16 %v9534
        %v9791 = vunpack.c.l.b16 %v9535
        %v9792 = vunpack.c.l.b16 %v9536
        %v9793 = vunpack.c.l.b16 %v9537
        %v9794 = vunpack.c.l.b16 %v9538
        %v9795 = vunpack.c.l.b16 %v9539
        %v9796 = vunpack.c.l.b16 %v9540
        %v9797 = vunpack.c.l.b16 %v9541
        %v9798 = vunpack.c.l.b16 %v9542
        %v9799 = vunpack.c.l.b16 %v9543
        %v9800 = vunpack.c.l.b16 %v9544
        %v9801 = vunpack.c.l.b16 %v9545
        %v9802 = vunpack.c.l.b16 %v9546
        %v9803 = vunpack.c.l.b16 %v9547
        %v9804 = vunpack.c.l.b16 %v9548
        %v9805 = vunpack.c.l.b16 %v9549
        %v9806 = vunpack.c.l.b16 %v9550
        %v9807 = vunpack.c.l.b16 %v9551
        %v9808 = vunpack.c.l.b16 %v9552
        %v9809 = vunpack.c.l.b16 %v9553
        %v9810 = vunpack.c.l.b16 %v9554
        %v9811 = vunpack.c.l.b16 %v9555
        %v9812 = vunpack.c.l.b16 %v9556
        %v9813 = vunpack.c.l.b16 %v9557
        %v9814 = vunpack.c.l.b16 %v9558
        %v9815 = vunpack.c.l.b16 %v9559
        %v9816 = vunpack.c.l.b16 %v9560
        %v9817 = vunpack.c.l.b16 %v9561
        %v9818 = vunpack.c.l.b16 %v9562
        %v9819 = vunpack.c.l.b16 %v9563
        %v9820 = vunpack.c.l.b16 %v9564
        %v9821 = vunpack.c.l.b16 %v9565
        %v9822 = vunpack.c.l.b16 %v9566
        %v9823 = vunpack.c.l.b16 %v9567
        %v9824 = vunpack.c.l.b16 %v9568
        %v9825 = vunpack.c.l.b16 %v9569
        %v9826 = vunpack.c.l.b16 %v9570
        %v9827 = vunpack.c.l.b16 %v9571
        %v9828 = vunpack.c.l.b16 %v9572
        %v9829 = vunpack.c.l.b16 %v9573
        %v9830 = vunpack.c.l.b16 %v9574
        %v9831 = vunpack.c.l.b16 %v9575
        %v9832 = vunpack.c.l.b16 %v9576
        %v9833 = vunpack.c.l.b16 %v9577
        %v9834 = vunpack.c.l.b16 %v9578
        %v9835 = vunpack.c.l.b16 %v9579
        %v9836 = vunpack.c.l.b16 %v9580
        %v9837 = vunpack.c.l.b16 %v9581
        %v9838 = vunpack.c.l.b16 %v9582
        %v9839 = vunpack.c.l.b16 %v9583
        %v9840 = vunpack.c.l.b16 %v9584
        %v9841 = vunpack.c.l.b16 %v9585
        %v9842 = vunpack.c.l.b16 %v9586
        %v9843 = vunpack.c.l.b16 %v9587
        %v9844 = vunpack.c.l.b16 %v9588
        %v9845 = vunpack.c.l.b16 %v9589
        %v9846 = vunpack.c.l.b16 %v9590
        %v9847 = vunpack.c.l.b16 %v9591
        %v9848 = vunpack.c.l.b16 %v9592
        %v9849 = vunpack.c.l.b16 %v9593
        %v9850 = vunpack.c.l.b16 %v9594
        %v9851 = vunpack.c.l.b16 %v9595
        %v9852 = vunpack.c.l.b16 %v9596
        %v9853 = vunpack.c.l.b16 %v9597
        %v9854 = vunpack.c.l.b16 %v9598
        %v9855 = vunpack.c.l.b16 %v9599
        %v9856 = vunpack.c.l.b16 %v9600
        %v9857 = vunpack.c.l.b16 %v9601
        %v9858 = vunpack.c.l.b16 %v9602
        %v9859 = vunpack.c.l.b16 %v9603
        %v9860 = vunpack.c.l.b16 %v9604
        %v9861 = vunpack.c.l.b16 %v9605
        %v9862 = vunpack.c.l.b16 %v9606
        %v9863 = vunpack.c.l.b16 %v9607
        %v9864 = vunpack.c.l.b16 %v9608
        %v9865 = vunpack.c.l.b16 %v9609
        %v9866 = vunpack.c.l.b16 %v9610
        %v9867 = vunpack.c.l.b16 %v9611
        %v9868 = vunpack.c.l.b16 %v9612
        %v9869 = vunpack.c.l.b16 %v9613
        %v9870 = vunpack.c.l.b16 %v9614
        %v9871 = vunpack.c.l.b16 %v9615
        %v9872 = vunpack.c.l.b16 %v9616
        %v9873 = vunpack.c.l.b16 %v9617
        %v9874 = vunpack.c.l.b16 %v9618
        %v9875 = vunpack.c.l.b16 %v9619
        %v9876 = vunpack.c.l.b16 %v9620
        %v9877 = vunpack.c.l.b16 %v9621
        %v9878 = vunpack.c.l.b16 %v9622
        %v9879 = vunpack.c.l.b16 %v9623
        %v9880 = vunpack.c.l.b16 %v9624
        %v9881 = vunpack.c.l.b16 %v9625
        %v9882 = vunpack.c.l.b16 %v9626
        %v9883 = vunpack.c.l.b16 %v9627
        %v9884 = vunpack.c.l.b16 %v9628
        %v9885 = vunpack.c.l.b16 %v9629
        %v9886 = vunpack.c.l.b16 %v9630
        %v9887 = vunpack.c.l.b16 %v9631
        %v9888 = vunpack.c.l.b16 %v9632
        %v9889 = vunpack.c.l.b16 %v9633
        %v9890 = vunpack.c.l.b16 %v9634
        %v9891 = vunpack.c.l.b16 %v9635
        %v9892 = vunpack.c.l.b16 %v9636
        %v9893 = vunpack.c.l.b16 %v9637
        %v9894 = vunpack.c.l.b16 %v9638
        %v9895 = vunpack.c.l.b16 %v9639
        %v9896 = vunpack.c.l.b16 %v9640
        %v9897 = vunpack.c.l.b16 %v9641
        %v9898 = vunpack.c.l.b16 %v9642
        %v9899 = vunpack.c.l.b16 %v9643
        %v9900 = vunpack.c.l.b16 %v9644
        %v9901 = vunpack.c.l.b16 %v9645
        %v9902 = vunpack.c.l.b16 %v9646
        %v9903 = vunpack.c.l.b16 %v9647
        %v9904 = vunpack.c.l.b16 %v9648
        %v9905 = vunpack.c.l.b16 %v9649
        %v9906 = vunpack.c.l.b16 %v9650
        %v9907 = vunpack.c.l.b16 %v9651
        %v9908 = vunpack.c.l.b16 %v9652
        %v9909 = vunpack.c.l.b16 %v9653
        %v9910 = vunpack.c.l.b16 %v9654
        %v9911 = vunpack.c.l.b16 %v9655
        %v9912 = vunpack.c.l.b16 %v9656
        %v9913 = vunpack.c.l.b16 %v9657
        %v9914 = vunpack.c.l.b16 %v9658
        %v9915 = vunpack.c.l.b16 %v9659
        %v9916 = vunpack.c.l.b16 %v9660
        %v9917 = vunpack.c.l.b16 %v9661
        %v9918 = vunpack.c.l.b16 %v9662
        %v9919 = vunpack.c.l.b16 %v9663
        %v9920 = vunpack.c.l.b16 %v9664
        %v9921 = vunpack.c.l.b16 %v9665
        %v9922 = vunpack.c.l.b16 %v9666
        %v9923 = vunpack.c.l.b16 %v9667
        %v9924 = vunpack.c.l.b16 %v9668
        %v9925 = vunpack.c.l.b16 %v9669
        %v9926 = vunpack.c.l.b16 %v9670
        %v9927 = vunpack.c.l.b16 %v9671
        %v9928 = vunpack.c.l.b16 %v9672
        %v9929 = vunpack.c.l.b16 %v9673
        %v9930 = vunpack.c.l.b16 %v9674
        %v9931 = vunpack.c.l.b16 %v9675
        %v9932 = vunpack.c.l.b16 %v9676
        %v9933 = vunpack.c.l.b16 %v9677
        %v9934 = vunpack.c.l.b16 %v9678
        %v9935 = vunpack.c.l.b16 %v9679
        %v9936 = vunpack.c.l.b16 %v9680
        %v9937 = vunpack.c.l.b16 %v9681
        %v9938 = vunpack.c.l.b16 %v9682
        %v9939 = vunpack.c.l.b16 %v9683
        %v9940 = vunpack.c.l.b16 %v9684
        %v9941 = vunpack.c.l.b16 %v9685
        %v9942 = vunpack.c.l.b16 %v9686
        %v9943 = vunpack.c.l.b16 %v9687
        %v9944 = vunpack.c.l.b16 %v9688
        %v9945 = vunpack.c.l.b16 %v9689
        %v9946 = vunpack.c.l.b16 %v9690
        %v9947 = vunpack.c.l.b16 %v9691
        %v9948 = vunpack.c.l.b16 %v9692
        %v9949 = vunpack.c.l.b16 %v9693
        %v9950 = vunpack.c.l.b16 %v9694
        %v9951 = vunpack.c.l.b16 %v9695
        %v9952 = vunpack.c.l.b16 %v9696
        %v9953 = vunpack.c.l.b16 %v9697
        %v9954 = vunpack.c.l.b16 %v9698
        %v9955 = vunpack.c.l.b16 %v9699
        %v9956 = vunpack.c.l.b16 %v9700
        %v9957 = vunpack.c.l.b16 %v9701
        %v9958 = vunpack.c.l.b16 %v9702
        %v9959 = vunpack.c.l.b16 %v9703
        %v9960 = vunpack.c.l.b16 %v9704
        %v9961 = vunpack.c.l.b16 %v9705
        %v9962 = vunpack.c.l.b16 %v9706
        %v9963 = vunpack.c.l.b16 %v9707
        %v9964 = vunpack.c.l.b16 %v9708
        %v9965 = vunpack.c.l.b16 %v9709
        %v9966 = vunpack.c.l.b16 %v9710
        %v9967 = vunpack.c.l.b16 %v9711
        %v9968 = vunpack.c.l.b16 %v9712
        %v9969 = vunpack.c.l.b16 %v9713
        %v9970 = vunpack.c.l.b16 %v9714
        %v9971 = vunpack.c.l.b16 %v9715
        %v9972 = vunpack.c.l.b16 %v9716
        %v9973 = vunpack.c.l.b16 %v9717
        %v9974 = vunpack.c.l.b16 %v9718
        %v9975 = vunpack.c.l.b16 %v9719
        %v9976 = vunpack.c.l.b16 %v9720
        %v9977 = vunpack.c.l.b16 %v9721
        %v9978 = vunpack.c.l.b16 %v9722
        %v9979 = vunpack.c.l.b16 %v9723
        %v9980 = vunpack.c.l.b16 %v9724
        %v9981 = vunpack.c.l.b16 %v9725
        %v9982 = vunpack.c.l.b16 %v9726
        %v9983 = vunpack.c.l.b16 %v9727
        %v9984 = vunpack.c.l.b16 %v9728
        %v9985 = vunpack.c.l.b16 %v9729
        %v9986 = vunpack.c.l.b16 %v9730
        %v9987 = vunpack.c.l.b16 %v9731
        %v9988 = vunpack.c.l.b16 %v9732
        %v9989 = vunpack.c.l.b16 %v9733
        %v9990 = vunpack.c.l.b16 %v9734
        %v9991 = vunpack.c.l.b16 %v9735
        %v9992 = vunpack.c.l.b16 %v9736
        %v9993 = vunpack.c.l.b16 %v9737
        %v9994 = vunpack.c.l.b16 %v9738
        %v9995 = vunpack.c.l.b16 %v9739
        %v9996 = vunpack.c.l.b16 %v9740
        %vm9997 = vcmask 1041409
        %v9998 = vsel %vm9997, %v9742, %v9741
        %vm9999 = vcmask 1042434
        %v10000 = vsel %vm9999, %v9743, %v9998
        %vm10001 = vcmask 1043459
        %v10002 = vsel %vm10001, %v9744, %v10000
        %vm10003 = vcmask 1044484
        %v10004 = vsel %vm10003, %v9745, %v10002
        %vm10005 = vcmask 1045509
        %v10006 = vsel %vm10005, %v9746, %v10004
        %vm10007 = vcmask 1046534
        %v10008 = vsel %vm10007, %v9747, %v10006
        %vm10009 = vcmask 1047559
        %v10010 = vsel %vm10009, %v9748, %v10008
        %v10011 = vsel %vm9997, %v9750, %v9749
        %v10012 = vsel %vm9999, %v9751, %v10011
        %v10013 = vsel %vm10001, %v9752, %v10012
        %v10014 = vsel %vm10003, %v9753, %v10013
        %v10015 = vsel %vm10005, %v9754, %v10014
        %v10016 = vsel %vm10007, %v9755, %v10015
        %v10017 = vsel %vm10009, %v9756, %v10016
        %v10018 = vsel %vm9997, %v9758, %v9757
        %v10019 = vsel %vm9999, %v9759, %v10018
        %v10020 = vsel %vm10001, %v9760, %v10019
        %v10021 = vsel %vm10003, %v9761, %v10020
        %v10022 = vsel %vm10005, %v9762, %v10021
        %v10023 = vsel %vm10007, %v9763, %v10022
        %v10024 = vsel %vm10009, %v9764, %v10023
        %v10025 = vsel %vm9997, %v9766, %v9765
        %v10026 = vsel %vm9999, %v9767, %v10025
        %v10027 = vsel %vm10001, %v9768, %v10026
        %v10028 = vsel %vm10003, %v9769, %v10027
        %v10029 = vsel %vm10005, %v9770, %v10028
        %v10030 = vsel %vm10007, %v9771, %v10029
        %v10031 = vsel %vm10009, %v9772, %v10030
        %v10032 = vsel %vm9997, %v9774, %v9773
        %v10033 = vsel %vm9999, %v9775, %v10032
        %v10034 = vsel %vm10001, %v9776, %v10033
        %v10035 = vsel %vm10003, %v9777, %v10034
        %v10036 = vsel %vm10005, %v9778, %v10035
        %v10037 = vsel %vm10007, %v9779, %v10036
        %v10038 = vsel %vm10009, %v9780, %v10037
        %v10039 = vsel %vm9997, %v9782, %v9781
        %v10040 = vsel %vm9999, %v9783, %v10039
        %v10041 = vsel %vm10001, %v9784, %v10040
        %v10042 = vsel %vm10003, %v9785, %v10041
        %v10043 = vsel %vm10005, %v9786, %v10042
        %v10044 = vsel %vm10007, %v9787, %v10043
        %v10045 = vsel %vm10009, %v9788, %v10044
        %v10046 = vsel %vm9997, %v9790, %v9789
        %v10047 = vsel %vm9999, %v9791, %v10046
        %v10048 = vsel %vm10001, %v9792, %v10047
        %v10049 = vsel %vm10003, %v9793, %v10048
        %v10050 = vsel %vm10005, %v9794, %v10049
        %v10051 = vsel %vm10007, %v9795, %v10050
        %v10052 = vsel %vm10009, %v9796, %v10051
        %v10053 = vsel %vm9997, %v9798, %v9797
        %v10054 = vsel %vm9999, %v9799, %v10053
        %v10055 = vsel %vm10001, %v9800, %v10054
        %v10056 = vsel %vm10003, %v9801, %v10055
        %v10057 = vsel %vm10005, %v9802, %v10056
        %v10058 = vsel %vm10007, %v9803, %v10057
        %v10059 = vsel %vm10009, %v9804, %v10058
        %v10060 = vsel %vm9997, %v9806, %v9805
        %v10061 = vsel %vm9999, %v9807, %v10060
        %v10062 = vsel %vm10001, %v9808, %v10061
        %v10063 = vsel %vm10003, %v9809, %v10062
        %v10064 = vsel %vm10005, %v9810, %v10063
        %v10065 = vsel %vm10007, %v9811, %v10064
        %v10066 = vsel %vm10009, %v9812, %v10065
        %v10067 = vsel %vm9997, %v9814, %v9813
        %v10068 = vsel %vm9999, %v9815, %v10067
        %v10069 = vsel %vm10001, %v9816, %v10068
        %v10070 = vsel %vm10003, %v9817, %v10069
        %v10071 = vsel %vm10005, %v9818, %v10070
        %v10072 = vsel %vm10007, %v9819, %v10071
        %v10073 = vsel %vm10009, %v9820, %v10072
        %v10074 = vsel %vm9997, %v9822, %v9821
        %v10075 = vsel %vm9999, %v9823, %v10074
        %v10076 = vsel %vm10001, %v9824, %v10075
        %v10077 = vsel %vm10003, %v9825, %v10076
        %v10078 = vsel %vm10005, %v9826, %v10077
        %v10079 = vsel %vm10007, %v9827, %v10078
        %v10080 = vsel %vm10009, %v9828, %v10079
        %v10081 = vsel %vm9997, %v9830, %v9829
        %v10082 = vsel %vm9999, %v9831, %v10081
        %v10083 = vsel %vm10001, %v9832, %v10082
        %v10084 = vsel %vm10003, %v9833, %v10083
        %v10085 = vsel %vm10005, %v9834, %v10084
        %v10086 = vsel %vm10007, %v9835, %v10085
        %v10087 = vsel %vm10009, %v9836, %v10086
        %v10088 = vsel %vm9997, %v9838, %v9837
        %v10089 = vsel %vm9999, %v9839, %v10088
        %v10090 = vsel %vm10001, %v9840, %v10089
        %v10091 = vsel %vm10003, %v9841, %v10090
        %v10092 = vsel %vm10005, %v9842, %v10091
        %v10093 = vsel %vm10007, %v9843, %v10092
        %v10094 = vsel %vm10009, %v9844, %v10093
        %v10095 = vsel %vm9997, %v9846, %v9845
        %v10096 = vsel %vm9999, %v9847, %v10095
        %v10097 = vsel %vm10001, %v9848, %v10096
        %v10098 = vsel %vm10003, %v9849, %v10097
        %v10099 = vsel %vm10005, %v9850, %v10098
        %v10100 = vsel %vm10007, %v9851, %v10099
        %v10101 = vsel %vm10009, %v9852, %v10100
        %v10102 = vsel %vm9997, %v9854, %v9853
        %v10103 = vsel %vm9999, %v9855, %v10102
        %v10104 = vsel %vm10001, %v9856, %v10103
        %v10105 = vsel %vm10003, %v9857, %v10104
        %v10106 = vsel %vm10005, %v9858, %v10105
        %v10107 = vsel %vm10007, %v9859, %v10106
        %v10108 = vsel %vm10009, %v9860, %v10107
        %v10109 = vsel %vm9997, %v9862, %v9861
        %v10110 = vsel %vm9999, %v9863, %v10109
        %v10111 = vsel %vm10001, %v9864, %v10110
        %v10112 = vsel %vm10003, %v9865, %v10111
        %v10113 = vsel %vm10005, %v9866, %v10112
        %v10114 = vsel %vm10007, %v9867, %v10113
        %v10115 = vsel %vm10009, %v9868, %v10114
        %v10116 = vsel %vm9997, %v9870, %v9869
        %v10117 = vsel %vm9999, %v9871, %v10116
        %v10118 = vsel %vm10001, %v9872, %v10117
        %v10119 = vsel %vm10003, %v9873, %v10118
        %v10120 = vsel %vm10005, %v9874, %v10119
        %v10121 = vsel %vm10007, %v9875, %v10120
        %v10122 = vsel %vm10009, %v9876, %v10121
        %v10123 = vsel %vm9997, %v9878, %v9877
        %v10124 = vsel %vm9999, %v9879, %v10123
        %v10125 = vsel %vm10001, %v9880, %v10124
        %v10126 = vsel %vm10003, %v9881, %v10125
        %v10127 = vsel %vm10005, %v9882, %v10126
        %v10128 = vsel %vm10007, %v9883, %v10127
        %v10129 = vsel %vm10009, %v9884, %v10128
        %v10130 = vsel %vm9997, %v9886, %v9885
        %v10131 = vsel %vm9999, %v9887, %v10130
        %v10132 = vsel %vm10001, %v9888, %v10131
        %v10133 = vsel %vm10003, %v9889, %v10132
        %v10134 = vsel %vm10005, %v9890, %v10133
        %v10135 = vsel %vm10007, %v9891, %v10134
        %v10136 = vsel %vm10009, %v9892, %v10135
        %v10137 = vsel %vm9997, %v9894, %v9893
        %v10138 = vsel %vm9999, %v9895, %v10137
        %v10139 = vsel %vm10001, %v9896, %v10138
        %v10140 = vsel %vm10003, %v9897, %v10139
        %v10141 = vsel %vm10005, %v9898, %v10140
        %v10142 = vsel %vm10007, %v9899, %v10141
        %v10143 = vsel %vm10009, %v9900, %v10142
        %v10144 = vsel %vm9997, %v9902, %v9901
        %v10145 = vsel %vm9999, %v9903, %v10144
        %v10146 = vsel %vm10001, %v9904, %v10145
        %v10147 = vsel %vm10003, %v9905, %v10146
        %v10148 = vsel %vm10005, %v9906, %v10147
        %v10149 = vsel %vm10007, %v9907, %v10148
        %v10150 = vsel %vm10009, %v9908, %v10149
        %v10151 = vsel %vm9997, %v9910, %v9909
        %v10152 = vsel %vm9999, %v9911, %v10151
        %v10153 = vsel %vm10001, %v9912, %v10152
        %v10154 = vsel %vm10003, %v9913, %v10153
        %v10155 = vsel %vm10005, %v9914, %v10154
        %v10156 = vsel %vm10007, %v9915, %v10155
        %v10157 = vsel %vm10009, %v9916, %v10156
        %v10158 = vsel %vm9997, %v9918, %v9917
        %v10159 = vsel %vm9999, %v9919, %v10158
        %v10160 = vsel %vm10001, %v9920, %v10159
        %v10161 = vsel %vm10003, %v9921, %v10160
        %v10162 = vsel %vm10005, %v9922, %v10161
        %v10163 = vsel %vm10007, %v9923, %v10162
        %v10164 = vsel %vm10009, %v9924, %v10163
        %v10165 = vsel %vm9997, %v9926, %v9925
        %v10166 = vsel %vm9999, %v9927, %v10165
        %v10167 = vsel %vm10001, %v9928, %v10166
        %v10168 = vsel %vm10003, %v9929, %v10167
        %v10169 = vsel %vm10005, %v9930, %v10168
        %v10170 = vsel %vm10007, %v9931, %v10169
        %v10171 = vsel %vm10009, %v9932, %v10170
        %v10172 = vsel %vm9997, %v9934, %v9933
        %v10173 = vsel %vm9999, %v9935, %v10172
        %v10174 = vsel %vm10001, %v9936, %v10173
        %v10175 = vsel %vm10003, %v9937, %v10174
        %v10176 = vsel %vm10005, %v9938, %v10175
        %v10177 = vsel %vm10007, %v9939, %v10176
        %v10178 = vsel %vm10009, %v9940, %v10177
        %v10179 = vsel %vm9997, %v9942, %v9941
        %v10180 = vsel %vm9999, %v9943, %v10179
        %v10181 = vsel %vm10001, %v9944, %v10180
        %v10182 = vsel %vm10003, %v9945, %v10181
        %v10183 = vsel %vm10005, %v9946, %v10182
        %v10184 = vsel %vm10007, %v9947, %v10183
        %v10185 = vsel %vm10009, %v9948, %v10184
        %v10186 = vsel %vm9997, %v9950, %v9949
        %v10187 = vsel %vm9999, %v9951, %v10186
        %v10188 = vsel %vm10001, %v9952, %v10187
        %v10189 = vsel %vm10003, %v9953, %v10188
        %v10190 = vsel %vm10005, %v9954, %v10189
        %v10191 = vsel %vm10007, %v9955, %v10190
        %v10192 = vsel %vm10009, %v9956, %v10191
        %v10193 = vsel %vm9997, %v9958, %v9957
        %v10194 = vsel %vm9999, %v9959, %v10193
        %v10195 = vsel %vm10001, %v9960, %v10194
        %v10196 = vsel %vm10003, %v9961, %v10195
        %v10197 = vsel %vm10005, %v9962, %v10196
        %v10198 = vsel %vm10007, %v9963, %v10197
        %v10199 = vsel %vm10009, %v9964, %v10198
        %v10200 = vsel %vm9997, %v9966, %v9965
        %v10201 = vsel %vm9999, %v9967, %v10200
        %v10202 = vsel %vm10001, %v9968, %v10201
        %v10203 = vsel %vm10003, %v9969, %v10202
        %v10204 = vsel %vm10005, %v9970, %v10203
        %v10205 = vsel %vm10007, %v9971, %v10204
        %v10206 = vsel %vm10009, %v9972, %v10205
        %v10207 = vsel %vm9997, %v9974, %v9973
        %v10208 = vsel %vm9999, %v9975, %v10207
        %v10209 = vsel %vm10001, %v9976, %v10208
        %v10210 = vsel %vm10003, %v9977, %v10209
        %v10211 = vsel %vm10005, %v9978, %v10210
        %v10212 = vsel %vm10007, %v9979, %v10211
        %v10213 = vsel %vm10009, %v9980, %v10212
        %v10214 = vsel %vm9997, %v9982, %v9981
        %v10215 = vsel %vm9999, %v9983, %v10214
        %v10216 = vsel %vm10001, %v9984, %v10215
        %v10217 = vsel %vm10003, %v9985, %v10216
        %v10218 = vsel %vm10005, %v9986, %v10217
        %v10219 = vsel %vm10007, %v9987, %v10218
        %v10220 = vsel %vm10009, %v9988, %v10219
        %v10221 = vsel %vm9997, %v9990, %v9989
        %v10222 = vsel %vm9999, %v9991, %v10221
        %v10223 = vsel %vm10001, %v9992, %v10222
        %v10224 = vsel %vm10003, %v9993, %v10223
        %v10225 = vsel %vm10005, %v9994, %v10224
        %v10226 = vsel %vm10007, %v9995, %v10225
        %v10227 = vsel %vm10009, %v9996, %v10226
        %v10228 = vpack.c.b16 %v10010, %v10010
        %v10229 = vpack.c.b16 %v10017, %v10017
        %v10230 = vpack.c.b16 %v10024, %v10024
        %v10231 = vpack.c.b16 %v10031, %v10031
        %v10232 = vpack.c.b16 %v10038, %v10038
        %v10233 = vpack.c.b16 %v10045, %v10045
        %v10234 = vpack.c.b16 %v10052, %v10052
        %v10235 = vpack.c.b16 %v10059, %v10059
        %v10236 = vpack.c.b16 %v10066, %v10066
        %v10237 = vpack.c.b16 %v10073, %v10073
        %v10238 = vpack.c.b16 %v10080, %v10080
        %v10239 = vpack.c.b16 %v10087, %v10087
        %v10240 = vpack.c.b16 %v10094, %v10094
        %v10241 = vpack.c.b16 %v10101, %v10101
        %v10242 = vpack.c.b16 %v10108, %v10108
        %v10243 = vpack.c.b16 %v10115, %v10115
        %v10244 = vpack.c.b16 %v10122, %v10122
        %v10245 = vpack.c.b16 %v10129, %v10129
        %v10246 = vpack.c.b16 %v10136, %v10136
        %v10247 = vpack.c.b16 %v10143, %v10143
        %v10248 = vpack.c.b16 %v10150, %v10150
        %v10249 = vpack.c.b16 %v10157, %v10157
        %v10250 = vpack.c.b16 %v10164, %v10164
        %v10251 = vpack.c.b16 %v10171, %v10171
        %v10252 = vpack.c.b16 %v10178, %v10178
        %v10253 = vpack.c.b16 %v10185, %v10185
        %v10254 = vpack.c.b16 %v10192, %v10192
        %v10255 = vpack.c.b16 %v10199, %v10199
        %v10256 = vpack.c.b16 %v10206, %v10206
        %v10257 = vpack.c.b16 %v10213, %v10213
        %v10258 = vpack.c.b16 %v10220, %v10220
        %v10259 = vpack.c.b16 %v10227, %v10227
        %vm10292 = vcmask 519168
        %10293 = vst.msk [vmem:[%s190] sm:$0xf] %vm10292, %v10228
        %10294 = vst.msk [vmem:[%s190 + $0x4] sm:$0xf] %vm10292, %v10229
        %10295 = vst.msk [vmem:[%s190 + $0x8] sm:$0xf] %vm10292, %v10230
        %10296 = vst.msk [vmem:[%s190 + $0xc] sm:$0xf] %vm10292, %v10231
        %10297 = vst.msk [vmem:[%s190 + $0x10] sm:$0xf] %vm10292, %v10232
        %10298 = vst.msk [vmem:[%s190 + $0x14] sm:$0xf] %vm10292, %v10233
        %10299 = vst.msk [vmem:[%s190 + $0x18] sm:$0xf] %vm10292, %v10234
        %10300 = vst.msk [vmem:[%s190 + $0x1c] sm:$0xf] %vm10292, %v10235
        %10301 = vst.msk [vmem:[%s190 + $0x20] sm:$0xf] %vm10292, %v10236
        %10302 = vst.msk [vmem:[%s190 + $0x24] sm:$0xf] %vm10292, %v10237
        %10303 = vst.msk [vmem:[%s190 + $0x28] sm:$0xf] %vm10292, %v10238
        %10304 = vst.msk [vmem:[%s190 + $0x2c] sm:$0xf] %vm10292, %v10239
        %10305 = vst.msk [vmem:[%s190 + $0x30] sm:$0xf] %vm10292, %v10240
        %10306 = vst.msk [vmem:[%s190 + $0x34] sm:$0xf] %vm10292, %v10241
        %10307 = vst.msk [vmem:[%s190 + $0x38] sm:$0xf] %vm10292, %v10242
        %10308 = vst.msk [vmem:[%s190 + $0x3c] sm:$0xf] %vm10292, %v10243
        %10309 = vst.msk [vmem:[%s190 + $0x40] sm:$0xf] %vm10292, %v10244
        %10310 = vst.msk [vmem:[%s190 + $0x44] sm:$0xf] %vm10292, %v10245
        %10311 = vst.msk [vmem:[%s190 + $0x48] sm:$0xf] %vm10292, %v10246
        %10312 = vst.msk [vmem:[%s190 + $0x4c] sm:$0xf] %vm10292, %v10247
        %10313 = vst.msk [vmem:[%s190 + $0x50] sm:$0xf] %vm10292, %v10248
        %10314 = vst.msk [vmem:[%s190 + $0x54] sm:$0xf] %vm10292, %v10249
        %10315 = vst.msk [vmem:[%s190 + $0x58] sm:$0xf] %vm10292, %v10250
        %10316 = vst.msk [vmem:[%s190 + $0x5c] sm:$0xf] %vm10292, %v10251
        %10317 = vst.msk [vmem:[%s190 + $0x60] sm:$0xf] %vm10292, %v10252
        %10318 = vst.msk [vmem:[%s190 + $0x64] sm:$0xf] %vm10292, %v10253
        %10319 = vst.msk [vmem:[%s190 + $0x68] sm:$0xf] %vm10292, %v10254
        %10320 = vst.msk [vmem:[%s190 + $0x6c] sm:$0xf] %vm10292, %v10255
        %10321 = vst.msk [vmem:[%s190 + $0x70] sm:$0xf] %vm10292, %v10256
        %10322 = vst.msk [vmem:[%s190 + $0x74] sm:$0xf] %vm10292, %v10257
        %10323 = vst.msk [vmem:[%s190 + $0x78] sm:$0xf] %vm10292, %v10258
        %10324 = vst.msk [vmem:[%s190 + $0x7c] sm:$0xf] %vm10292, %v10259
        %s10325 = sand.u32 %s109, 1
        %s10326 = scalar_lea.sflag [#allocation3], %s10325
        %s10327 = sand.u32 %s109, 1
        %s10328 = smul.addr %s10327, 128
        %s10329 = scalar_lea.vmem [#allocation2], %s10328
        // Predicated region
        $region33: #{tpu_custom_call.1} parent=31 // pred_check
          %p10330 = pneg %p119
        $region34: #{tpu_custom_call.1} parent=31 // pred_check_branch
          %10332 = sbr.rel (%p10330) target = $region36
        $region35: #{tpu_custom_call.1} parent=31 // pred_region
          %s10333 = smul.u32 16, %s22
          %s10335 = ssub.s32 2048, 2048
          %10336 = vsyncadd %s10326, %s10335
          %s10337 = smul.addr %s10333, 2
          %s10338 = smul.addr %s21, 32
          %s10339 = sadd.s32 %s10337, %s10338
          %s10340 = smul.addr %s10339, 64
          %s10341 = scalar_lea.hbm %s3, %s10340
          %s10342 = sshll.u32 %s10329, 4
          %s10343 = int_to_ptr.vmem [resolvable:$true] %s10342
          %10348 = dma.vmem_to_hbm [thread:$0]  %s10343, 2048, %s10341, %s10326, 64, 64, 4
        $region36: #{tpu_custom_call.1} parent=31 // pred_fallthru
          _
      $region32: #{tpu_custom_call.1} parent=5 // pred_fallthru
        _
      %p10349 = scmp.le.s32.totalorder 2, %s12
      // Predicated region
      $region37: #{tpu_custom_call.1} parent=5 // pred_check
        %p10350 = pneg %p10349
      $region38: #{tpu_custom_call.1} parent=5 // pred_check_branch
        %10352 = sbr.rel (%p10350) target = $region40
      $region39: #{tpu_custom_call.1} parent=5 // pred_region
        %s10353 = ssub.s32 %s12, 2
        // Predicated region
        $region41: #{tpu_custom_call.1} parent=39 // pred_check
          %p10354 = pneg %p125
        $region42: #{tpu_custom_call.1} parent=39 // pred_check_branch
          %10356 = sbr.rel (%p10354) target = $region44
        $region43: #{tpu_custom_call.1} parent=39 // pred_region
          %s10357 = sand.u32 %s110, 1
          %s10358 = scalar_lea.sflag [#allocation3], %s10357
          %s10359 = sand.u32 %s110, 1
          %s10360 = smul.addr %s10359, 128
          %s10361 = scalar_lea.vmem [#allocation2], %s10360
          %10362 = dma.done %s10358, 2048
        $region44: #{tpu_custom_call.1} parent=39 // pred_fallthru
          _
      $region40: #{tpu_custom_call.1} parent=5 // pred_fallthru
        _
    $region6: #{tpu_custom_call.1} parent=1 // loop_footer
      %s16 = sadd.s32 1, %s12
    $region7: #{tpu_custom_call.1} parent=1 // loop_footer_branch
      %11 = sbr.rel target = $region3
    $region8: #{tpu_custom_call.1} parent=1 // loop_exit
      _
    %10363 = vsyncpa [#allocation3], 1
    %s10364 = scalar_lea.sflag [#allocation3], 1
    %10365 = vsyncpa %s10364, 1

</llo_original>
